<compile_context>
chip_gen: v5e
topology: v5e:2x2
jax: 0.10.0
libtpu: 0.0.40
codegen_flags: <defaults>
</compile_context>

<pallas_src>
import functools

import jax
import jax.numpy as jnp
from jax.experimental import pallas as pl
from jax.experimental.pallas import tpu as pltpu


# ----------------------------------------------------------------------------
# In-kernel helpers (operate on values / weight Refs)
# ----------------------------------------------------------------------------
def _bf16(x):
    return x.astype(jnp.bfloat16)


def _layernorm(x, g, b, eps):
    mu = jnp.mean(x, axis=-1, keepdims=True)
    d = x - mu
    var = jnp.mean(d * d, axis=-1, keepdims=True)
    return d * jax.lax.rsqrt(var + eps) * g + b


def _encoder_layer(x, l, ln_g, ln_b, w_q, b_q, w_k, b_k, w_vo, b_vo, b_o,
                   w1, b1, w2, b2, mask, num_heads, eps):
    """One pre-LN CLIP encoder layer, fully unrolled, on in-register values.

    Weight Refs are indexed along leading dims only (layer, head):
      w_q/w_k : [L, nh, H, dh]   (w_q pre-scaled by dh^-0.5)
      w_vo    : [L, nh, H, H]    (value proj folded with per-head output proj)
      b_*     : matching per-head row vectors."""
    # ---- multi-head self attention ----
    h = _layernorm(x, ln_g[l, 0], ln_b[l, 0], eps)
    hb = _bf16(h)
    attn = jnp.zeros(x.shape, jnp.float32)
    for hd in range(num_heads):
        q = jnp.dot(hb, w_q[l, hd], preferred_element_type=jnp.float32) + b_q[l, hd]
        k = jnp.dot(hb, w_k[l, hd], preferred_element_type=jnp.float32) + b_k[l, hd]
        # q @ k^T via dot_general contracting the last dim of both operands
        # (MXU-native, no materialized transpose). Scale already folded into Wq.
        s = jax.lax.dot_general(
            _bf16(q), _bf16(k), (((1,), (1,)), ((), ())),
            preferred_element_type=jnp.float32)
        if mask is not None:
            s = s + mask
        s = s - jnp.max(s, axis=-1, keepdims=True)
        p = jnp.exp(s)
        p = p * pl.reciprocal(jnp.sum(p, axis=-1, keepdims=True), approx=True)
        # Folded value+output projection: p_h @ (hb @ (Wv_h @ Wo_h) + bv_h @ Wo_h)
        vproj = jnp.dot(hb, w_vo[l, hd], preferred_element_type=jnp.float32) + b_vo[l, hd]
        attn = attn + jnp.dot(_bf16(p), _bf16(vproj),
                              preferred_element_type=jnp.float32)
    x = x + attn + b_o[l]

    # ---- MLP with quick_gelu ----
    h = _layernorm(x, ln_g[l, 1], ln_b[l, 1], eps)
    h1 = jnp.dot(_bf16(h), w1[l], preferred_element_type=jnp.float32) + b1[l]
    h1 = h1 * jax.nn.sigmoid(1.702 * h1)            # quick_gelu (f32 element-wise)
    h2 = jnp.dot(_bf16(h1), w2[l], preferred_element_type=jnp.float32) + b2[l]
    return x + h2


# ----------------------------------------------------------------------------
# The single fused kernel: vision tower + text tower + head, one batch element
# per grid step.
# ----------------------------------------------------------------------------
def fused_clip_kernel(
    # vision tower
    patches_ref, vis_base_ref, vis_preln_g_ref, vis_preln_b_ref,
    vis_patch_w_ref, vis_proj_w_ref,
    v_ln_g_ref, v_ln_b_ref, v_wq_ref, v_bq_ref, v_wk_ref, v_bk_ref,
    v_wvo_ref, v_bvo_ref, v_bo_ref, v_w1_ref, v_b1_ref, v_w2_ref, v_b2_ref,
    # text tower
    txt_emb_ref, txt_mask_ref, txt_finln_g_ref, txt_finln_b_ref,
    txt_proj_w_ref, txt_proj_b_ref,
    t_ln_g_ref, t_ln_b_ref, t_wq_ref, t_bq_ref, t_wk_ref, t_bk_ref,
    t_wvo_ref, t_bvo_ref, t_bo_ref, t_w1_ref, t_b1_ref, t_w2_ref, t_b2_ref,
    # head
    cls_w_ref, cls_b_ref,
    # output
    logits_ref,
    *, vision_layers, vision_heads, text_layers, text_heads, eps):
    f32 = jnp.float32

    # ---------------- vision tower ----------------
    # patches row 0 is zero (CLS slot); vis_base = [cls_emb; 0] + pos_embedding.
    x = jnp.dot(_bf16(patches_ref[0]), vis_patch_w_ref[...],
                preferred_element_type=f32)                    # [Sv, Hv]
    x = x + vis_base_ref[...]
    x = _layernorm(x, vis_preln_g_ref[...], vis_preln_b_ref[...], eps)
    for l in range(vision_layers):
        x = _encoder_layer(x, l, v_ln_g_ref, v_ln_b_ref, v_wq_ref, v_bq_ref,
                           v_wk_ref, v_bk_ref, v_wvo_ref, v_bvo_ref, v_bo_ref,
                           v_w1_ref, v_b1_ref, v_w2_ref, v_b2_ref,
                           mask=None, num_heads=vision_heads, eps=eps)
    # HF CLIP: last_hidden_state[:, 0, :] (no post_layernorm), then
    # visual_projection (no bias).
    img = jnp.dot(_bf16(x[0:1, :]), vis_proj_w_ref[...],
                  preferred_element_type=f32)                  # [1, proj]

    # ---------------- text tower ----------------
    x = txt_emb_ref[0]                                         # [St, Ht]
    mask = txt_mask_ref[0]                                     # additive causal+pad
    for l in range(text_layers):
        x = _encoder_layer(x, l, t_ln_g_ref, t_ln_b_ref, t_wq_ref, t_bq_ref,
                           t_wk_ref, t_bk_ref, t_wvo_ref, t_bvo_ref, t_bo_ref,
                           t_w1_ref, t_b1_ref, t_w2_ref, t_b2_ref,
                           mask=mask, num_heads=text_heads, eps=eps)
    x = _layernorm(x, txt_finln_g_ref[...], txt_finln_b_ref[...], eps)
    # Module pools token 0 (as written in the PyTorch spec) and applies its own
    # text_projection Linear (with bias).
    txt = jnp.dot(_bf16(x[0:1, :]), txt_proj_w_ref[...],
                  preferred_element_type=f32) + txt_proj_b_ref[...]

    # ---------------- head: normalize, average, classify ----------------
    # Matches the module's plain `x / x.norm()` (no epsilon), via EUP rsqrt.
    img = img * jax.lax.rsqrt(jnp.sum(img * img, axis=-1, keepdims=True))
    txt = txt * jax.lax.rsqrt(jnp.sum(txt * txt, axis=-1, keepdims=True))
    # 0.5 averaging factor folded into cls_w in the wrapper.
    logits = jnp.dot(_bf16(img + txt), cls_w_ref[...],
                     preferred_element_type=f32) + cls_b_ref[...]
    logits_ref[...] = logits[None]                             # [1, 1, num_classes]


# ----------------------------------------------------------------------------
# Wrapper: one-time weight layout prep (outside the kernel) + pallas_call
# ----------------------------------------------------------------------------
_TOWER_KEYS = ("ln_g", "ln_b", "w_q", "b_q", "w_k", "b_k",
               "w_vo", "b_vo", "b_o", "w1", "b1", "w2", "b2")


def _prep_tower(layers, num_heads):
    """Stack per-layer PyTorch-layout (out,in) weights into pre-transposed,
    per-head-split arrays consumed by the fused kernel.

    Offline algebra: attention scale folded into Wq/bq; the value projection
    and the per-head block of the output projection are folded into one
    weight  W_vo_h = Wv_h @ Wo_h  (b_vo_h = bv_h @ Wo_h).  Matmul weights bf16."""
    hid = layers[0]["q_w"].shape[0]
    dh = hid // num_heads
    scale = jnp.float32(dh ** -0.5)
    bf16 = jnp.bfloat16

    def per_head_in(w):                     # [out, in] -> [heads, in, dh]
        return w.T.reshape(hid, num_heads, dh).transpose(1, 0, 2)

    def per_head_out(w):                    # [out, in] -> [heads, dh, out]
        return w.T.reshape(num_heads, dh, hid)

    def folded_wvo(lp):                     # [heads, in, out]
        return jnp.einsum("nhd,ndk->nhk", per_head_in(lp["v_w"]),
                          per_head_out(lp["o_w"]))

    def folded_bvo(lp):                     # [heads, 1, out]
        return jnp.einsum("nd,ndk->nk", lp["v_b"].reshape(num_heads, dh),
                          per_head_out(lp["o_w"]))[:, None, :]

    def stack(fn):
        return jnp.stack([fn(lp) for lp in layers], axis=0)

    return {
        "ln_g": stack(lambda lp: jnp.stack([lp["ln1_g"], lp["ln2_g"]])[:, None, :]),
        "ln_b": stack(lambda lp: jnp.stack([lp["ln1_b"], lp["ln2_b"]])[:, None, :]),
        "w_q": stack(lambda lp: per_head_in(lp["q_w"]) * scale).astype(bf16),
        "b_q": stack(lambda lp: lp["q_b"].reshape(num_heads, 1, dh) * scale),
        "w_k": stack(lambda lp: per_head_in(lp["k_w"])).astype(bf16),
        "b_k": stack(lambda lp: lp["k_b"].reshape(num_heads, 1, dh)),
        "w_vo": stack(folded_wvo).astype(bf16),                 # [L, nh, H, H]
        "b_vo": stack(folded_bvo),                              # [L, nh, 1, H]
        "b_o": stack(lambda lp: lp["o_b"][None, :]),
        "w1": stack(lambda lp: lp["fc1_w"].T).astype(bf16),
        "b1": stack(lambda lp: lp["fc1_b"][None, :]),
        "w2": stack(lambda lp: lp["fc2_w"].T).astype(bf16),
        "b2": stack(lambda lp: lp["fc2_b"][None, :]),
    }


def _full_spec(x):
    nd, shape = x.ndim, x.shape
    return pl.BlockSpec(shape, lambda b: (0,) * nd)


def _batched_spec(x):
    nd, tail = x.ndim, x.shape[1:]
    return pl.BlockSpec((1,) + tail, lambda b: (b,) + (0,) * (nd - 1))


def extended_clip_forward(params, input_ids, attention_mask, pixel_values, cfg):
    f32, bf16 = jnp.float32, jnp.bfloat16
    bsz, ch, hh, ww = pixel_values.shape
    p = cfg["patch_size"]
    gh, gw = hh // p, ww // p
    hv = cfg["vision_hidden"]
    st = input_ids.shape[1]

    # --- plain-JAX glue: one-time layout prep, all heavy math is in the kernel
    patches = (pixel_values.reshape(bsz, ch, gh, p, gw, p)
               .transpose(0, 2, 4, 1, 3, 5)
               .reshape(bsz, gh * gw, ch * p * p))
    patches = jnp.concatenate(                 # row 0 = zeros -> CLS slot
        [jnp.zeros((bsz, 1, ch * p * p), f32), patches], axis=1)   # [B, Sv, C*p*p]
    vis_base = jnp.concatenate(
        [params["class_emb"][None, :], jnp.zeros((gh * gw, hv), f32)], axis=0
    ) + params["vision_pos"]                                       # [Sv, Hv]

    txt_emb = (jnp.take(params["token_emb"], input_ids, axis=0)
               + params["text_pos"][:st][None])                    # [B, St, Ht]
    neg = jnp.float32(-1e9)
    causal = jnp.triu(jnp.full((st, st), neg, f32), k=1)
    pad = (1.0 - attention_mask.astype(f32)) * neg
    txt_mask = causal[None, :, :] + pad[:, None, :]                # [B, St, St]

    vis_tower = _prep_tower(params["vision_layers"], cfg["vision_heads"])
    txt_tower = _prep_tower(params["text_layers"], cfg["text_heads"])

    inputs, in_specs = [], []

    def add_full(x):
        inputs.append(x); in_specs.append(_full_spec(x))

    def add_batched(x):
        inputs.append(x); in_specs.append(_batched_spec(x))

    # Order MUST match fused_clip_kernel's signature.
    add_batched(patches)
    add_full(vis_base)
    add_full(params["pre_ln_g"][None, :])
    add_full(params["pre_ln_b"][None, :])
    add_full(params["patch_w"].T.astype(bf16))
    add_full(params["visual_proj_w"].T.astype(bf16))
    for key in _TOWER_KEYS:
        add_full(vis_tower[key])
    add_batched(txt_emb)
    add_batched(txt_mask)
    add_full(params["final_ln_g"][None, :])
    add_full(params["final_ln_b"][None, :])
    add_full(params["text_proj_w"].T.astype(bf16))
    add_full(params["text_proj_b"][None, :])
    for key in _TOWER_KEYS:
        add_full(txt_tower[key])
    add_full((params["cls_w"].T * 0.5).astype(bf16))   # 0.5 averaging folded in
    add_full(params["cls_b"][None, :])

    kernel = functools.partial(
        fused_clip_kernel,
        vision_layers=cfg["vision_layers"], vision_heads=cfg["vision_heads"],
        text_layers=cfg["text_layers"], text_heads=cfg["text_heads"],
        eps=cfg["eps"])

    logits = pl.pallas_call(
        kernel,
        out_shape=jax.ShapeDtypeStruct((bsz, 1, cfg["num_classes"]), f32),
        grid=(bsz,),
        in_specs=in_specs,
        out_specs=pl.BlockSpec((1, 1, cfg["num_classes"]), lambda b: (b, 0, 0)),
        compiler_params=pltpu.CompilerParams(
            dimension_semantics=("parallel",)),      # 2 TCs on v7x split the batch
    )(*inputs)
    return logits.reshape(bsz, cfg["num_classes"])


# ----------------------------------------------------------------------------
# Deterministic parameter initialization (PyTorch weight layout: W [out, in])
# ----------------------------------------------------------------------------
def init_params(key, cfg):
    keys = iter(jax.random.split(key, 256))

    def nk():
        return next(keys)

    def nrm(shape, std=0.02):
        return std * jax.random.normal(nk(), shape, jnp.float32)

    def layer_params(h, m):
        return dict(
            ln1_g=jnp.ones((h,), jnp.float32), ln1_b=jnp.zeros((h,), jnp.float32),
            q_w=nrm((h, h)), q_b=jnp.zeros((h,), jnp.float32),
            k_w=nrm((h, h)), k_b=jnp.zeros((h,), jnp.float32),
            v_w=nrm((h, h)), v_b=jnp.zeros((h,), jnp.float32),
            o_w=nrm((h, h)), o_b=jnp.zeros((h,), jnp.float32),
            ln2_g=jnp.ones((h,), jnp.float32), ln2_b=jnp.zeros((h,), jnp.float32),
            fc1_w=nrm((m, h)), fc1_b=jnp.zeros((m,), jnp.float32),
            fc2_w=nrm((h, m)), fc2_b=jnp.zeros((h,), jnp.float32),
        )

    hv, ht, pd = cfg["vision_hidden"], cfg["text_hidden"], cfg["proj_dim"]
    p, c = cfg["patch_size"], cfg["num_channels"]
    n_patches = (cfg["image_size"] // p) ** 2
    return dict(
        patch_w=nrm((hv, c * p * p)),
        class_emb=nrm((hv,)),
        vision_pos=nrm((n_patches + 1, hv)),
        pre_ln_g=jnp.ones((hv,), jnp.float32), pre_ln_b=jnp.zeros((hv,), jnp.float32),
        vision_layers=[layer_params(hv, cfg["vision_mlp"]) for _ in range(cfg["vision_layers"])],
        visual_proj_w=nrm((pd, hv)),
        token_emb=nrm((cfg["vocab_size"], ht)),
        text_pos=nrm((cfg["max_pos"], ht)),
        text_layers=[layer_params(ht, cfg["text_mlp"]) for _ in range(cfg["text_layers"])],
        final_ln_g=jnp.ones((ht,), jnp.float32), final_ln_b=jnp.zeros((ht,), jnp.float32),
        text_proj_w=nrm((pd, ht)), text_proj_b=jnp.zeros((pd,), jnp.float32),
        cls_w=nrm((cfg["num_classes"], pd)), cls_b=jnp.zeros((cfg["num_classes"],), jnp.float32),
    )


# ----------------------------------------------------------------------------
# Main
# ----------------------------------------------------------------------------
if __name__ == "__main__":
    cfg = dict(
        image_size=16, patch_size=8, num_channels=3,
        vision_hidden=32, vision_layers=2, vision_heads=4, vision_mlp=64,
        text_hidden=32, text_layers=2, text_heads=4, text_mlp=64,
        vocab_size=64, max_pos=8, proj_dim=16, num_classes=2,
        eps=1e-5,
    )

    root = jax.random.PRNGKey(0)
    k_params, k_pix, k_ids = jax.random.split(root, 3)

    params = init_params(k_params, cfg)

    pixel_values = jax.random.normal(k_pix, (2, 3, 16, 16), jnp.float32)   # NCHW
    input_ids = jax.random.randint(k_ids, (2, 8), 0, cfg["vocab_size"], jnp.int32)
    attention_mask = jnp.array(
        [[1, 1, 1, 1, 1, 0, 0, 0],
         [1, 1, 1, 1, 1, 1, 1, 1]], jnp.int32)

    fwd = jax.jit(lambda prm, ids, am, px: extended_clip_forward(prm, ids, am, px, cfg))
    logits = fwd(params, input_ids, attention_mask, pixel_values)
    jax.block_until_ready(logits)
    assert logits.shape == (2, cfg["num_classes"])
    print("KERNEL_OK")
</pallas_src>

<mosaic_0001>
module attributes {stable_mosaic.version = 11 : i64} {
  func.func @fused_clip_kernel(%arg0: i32, %arg1: memref<1x5x192xf32, #tpu.memory_space<vmem>>, %arg2: memref<5x32xf32, #tpu.memory_space<vmem>>, %arg3: memref<1x32xf32, #tpu.memory_space<vmem>>, %arg4: memref<1x32xf32, #tpu.memory_space<vmem>>, %arg5: memref<192x32xbf16, #tpu.memory_space<vmem>>, %arg6: memref<32x16xbf16, #tpu.memory_space<vmem>>, %arg7: memref<2x2x1x32xf32, #tpu.memory_space<vmem>>, %arg8: memref<2x2x1x32xf32, #tpu.memory_space<vmem>>, %arg9: memref<2x4x32x8xbf16, #tpu.memory_space<vmem>>, %arg10: memref<2x4x1x8xf32, #tpu.memory_space<vmem>>, %arg11: memref<2x4x32x8xbf16, #tpu.memory_space<vmem>>, %arg12: memref<2x4x1x8xf32, #tpu.memory_space<vmem>>, %arg13: memref<2x4x32x32xbf16, #tpu.memory_space<vmem>>, %arg14: memref<2x4x1x32xf32, #tpu.memory_space<vmem>>, %arg15: memref<2x1x32xf32, #tpu.memory_space<vmem>>, %arg16: memref<2x32x64xbf16, #tpu.memory_space<vmem>>, %arg17: memref<2x1x64xf32, #tpu.memory_space<vmem>>, %arg18: memref<2x64x32xbf16, #tpu.memory_space<vmem>>, %arg19: memref<2x1x32xf32, #tpu.memory_space<vmem>>, %arg20: memref<1x8x32xf32, #tpu.memory_space<vmem>>, %arg21: memref<1x8x8xf32, #tpu.memory_space<vmem>>, %arg22: memref<1x32xf32, #tpu.memory_space<vmem>>, %arg23: memref<1x32xf32, #tpu.memory_space<vmem>>, %arg24: memref<32x16xbf16, #tpu.memory_space<vmem>>, %arg25: memref<1x16xf32, #tpu.memory_space<vmem>>, %arg26: memref<2x2x1x32xf32, #tpu.memory_space<vmem>>, %arg27: memref<2x2x1x32xf32, #tpu.memory_space<vmem>>, %arg28: memref<2x4x32x8xbf16, #tpu.memory_space<vmem>>, %arg29: memref<2x4x1x8xf32, #tpu.memory_space<vmem>>, %arg30: memref<2x4x32x8xbf16, #tpu.memory_space<vmem>>, %arg31: memref<2x4x1x8xf32, #tpu.memory_space<vmem>>, %arg32: memref<2x4x32x32xbf16, #tpu.memory_space<vmem>>, %arg33: memref<2x4x1x32xf32, #tpu.memory_space<vmem>>, %arg34: memref<2x1x32xf32, #tpu.memory_space<vmem>>, %arg35: memref<2x32x64xbf16, #tpu.memory_space<vmem>>, %arg36: memref<2x1x64xf32, #tpu.memory_space<vmem>>, %arg37: memref<2x64x32xbf16, #tpu.memory_space<vmem>>, %arg38: memref<2x1x32xf32, #tpu.memory_space<vmem>>, %arg39: memref<16x2xbf16, #tpu.memory_space<vmem>>, %arg40: memref<1x2xf32, #tpu.memory_space<vmem>>, %arg41: memref<1x1x2xf32, #tpu.memory_space<vmem>>) attributes {dimension_semantics = [#tpu.dimension_semantics<parallel>], iteration_bounds = array<i64: 2>, scalar_prefetch = 0 : i64, scratch_operands = 0 : i64, tpu.core_type = #tpu.core_type<tc>, window_params = [{transform_indices = @transform_0, window_bounds = array<i64: 1, 5, 192>}, {pipeline_mode = #tpu.pipeline_mode<synchronous>, transform_indices = @transform_1, window_bounds = array<i64: 5, 32>}, {pipeline_mode = #tpu.pipeline_mode<synchronous>, transform_indices = @transform_2, window_bounds = array<i64: 1, 32>}, {pipeline_mode = #tpu.pipeline_mode<synchronous>, transform_indices = @transform_3, window_bounds = array<i64: 1, 32>}, {pipeline_mode = #tpu.pipeline_mode<synchronous>, transform_indices = @transform_4, window_bounds = array<i64: 192, 32>}, {pipeline_mode = #tpu.pipeline_mode<synchronous>, transform_indices = @transform_5, window_bounds = array<i64: 32, 16>}, {pipeline_mode = #tpu.pipeline_mode<synchronous>, transform_indices = @transform_6, window_bounds = array<i64: 2, 2, 1, 32>}, {pipeline_mode = #tpu.pipeline_mode<synchronous>, transform_indices = @transform_7, window_bounds = array<i64: 2, 2, 1, 32>}, {pipeline_mode = #tpu.pipeline_mode<synchronous>, transform_indices = @transform_8, window_bounds = array<i64: 2, 4, 32, 8>}, {pipeline_mode = #tpu.pipeline_mode<synchronous>, transform_indices = @transform_9, window_bounds = array<i64: 2, 4, 1, 8>}, {pipeline_mode = #tpu.pipeline_mode<synchronous>, transform_indices = @transform_10, window_bounds = array<i64: 2, 4, 32, 8>}, {pipeline_mode = #tpu.pipeline_mode<synchronous>, transform_indices = @transform_11, window_bounds = array<i64: 2, 4, 1, 8>}, {pipeline_mode = #tpu.pipeline_mode<synchronous>, transform_indices = @transform_12, window_bounds = array<i64: 2, 4, 32, 32>}, {pipeline_mode = #tpu.pipeline_mode<synchronous>, transform_indices = @transform_13, window_bounds = array<i64: 2, 4, 1, 32>}, {pipeline_mode = #tpu.pipeline_mode<synchronous>, transform_indices = @transform_14, window_bounds = array<i64: 2, 1, 32>}, {pipeline_mode = #tpu.pipeline_mode<synchronous>, transform_indices = @transform_15, window_bounds = array<i64: 2, 32, 64>}, {pipeline_mode = #tpu.pipeline_mode<synchronous>, transform_indices = @transform_16, window_bounds = array<i64: 2, 1, 64>}, {pipeline_mode = #tpu.pipeline_mode<synchronous>, transform_indices = @transform_17, window_bounds = array<i64: 2, 64, 32>}, {pipeline_mode = #tpu.pipeline_mode<synchronous>, transform_indices = @transform_18, window_bounds = array<i64: 2, 1, 32>}, {transform_indices = @transform_19, window_bounds = array<i64: 1, 8, 32>}, {transform_indices = @transform_20, window_bounds = array<i64: 1, 8, 8>}, {pipeline_mode = #tpu.pipeline_mode<synchronous>, transform_indices = @transform_21, window_bounds = array<i64: 1, 32>}, {pipeline_mode = #tpu.pipeline_mode<synchronous>, transform_indices = @transform_22, window_bounds = array<i64: 1, 32>}, {pipeline_mode = #tpu.pipeline_mode<synchronous>, transform_indices = @transform_23, window_bounds = array<i64: 32, 16>}, {pipeline_mode = #tpu.pipeline_mode<synchronous>, transform_indices = @transform_24, window_bounds = array<i64: 1, 16>}, {pipeline_mode = #tpu.pipeline_mode<synchronous>, transform_indices = @transform_25, window_bounds = array<i64: 2, 2, 1, 32>}, {pipeline_mode = #tpu.pipeline_mode<synchronous>, transform_indices = @transform_26, window_bounds = array<i64: 2, 2, 1, 32>}, {pipeline_mode = #tpu.pipeline_mode<synchronous>, transform_indices = @transform_27, window_bounds = array<i64: 2, 4, 32, 8>}, {pipeline_mode = #tpu.pipeline_mode<synchronous>, transform_indices = @transform_28, window_bounds = array<i64: 2, 4, 1, 8>}, {pipeline_mode = #tpu.pipeline_mode<synchronous>, transform_indices = @transform_29, window_bounds = array<i64: 2, 4, 32, 8>}, {pipeline_mode = #tpu.pipeline_mode<synchronous>, transform_indices = @transform_30, window_bounds = array<i64: 2, 4, 1, 8>}, {pipeline_mode = #tpu.pipeline_mode<synchronous>, transform_indices = @transform_31, window_bounds = array<i64: 2, 4, 32, 32>}, {pipeline_mode = #tpu.pipeline_mode<synchronous>, transform_indices = @transform_32, window_bounds = array<i64: 2, 4, 1, 32>}, {pipeline_mode = #tpu.pipeline_mode<synchronous>, transform_indices = @transform_33, window_bounds = array<i64: 2, 1, 32>}, {pipeline_mode = #tpu.pipeline_mode<synchronous>, transform_indices = @transform_34, window_bounds = array<i64: 2, 32, 64>}, {pipeline_mode = #tpu.pipeline_mode<synchronous>, transform_indices = @transform_35, window_bounds = array<i64: 2, 1, 64>}, {pipeline_mode = #tpu.pipeline_mode<synchronous>, transform_indices = @transform_36, window_bounds = array<i64: 2, 64, 32>}, {pipeline_mode = #tpu.pipeline_mode<synchronous>, transform_indices = @transform_37, window_bounds = array<i64: 2, 1, 32>}, {pipeline_mode = #tpu.pipeline_mode<synchronous>, transform_indices = @transform_38, window_bounds = array<i64: 16, 2>}, {pipeline_mode = #tpu.pipeline_mode<synchronous>, transform_indices = @transform_39, window_bounds = array<i64: 1, 2>}, {transform_indices = @transform_40, window_bounds = array<i64: 1, 1, 2>}]} {
    %c0 = arith.constant 0 : index
    %c0_0 = arith.constant 0 : index
    %c0_1 = arith.constant 0 : index
    %0 = vector.load %arg1[%c0, %c0_0, %c0_1] : memref<1x5x192xf32, #tpu.memory_space<vmem>>, vector<1x5x192xf32>
    %1 = vector.shape_cast %0 : vector<1x5x192xf32> to vector<5x192xf32>
    %2 = arith.truncf %1 : vector<5x192xf32> to vector<5x192xbf16>
    %c0_2 = arith.constant 0 : index
    %c0_3 = arith.constant 0 : index
    %3 = vector.load %arg5[%c0_2, %c0_3] : memref<192x32xbf16, #tpu.memory_space<vmem>>, vector<192x32xbf16>
    %cst = arith.constant dense<0.000000e+00> : vector<5x32xf32>
    %4 = tpu.matmul %2, %3, %cst {dimension_numbers = #tpu.dot_dimension_numbers<[1], [0], [0], [1], [0, 0, 1, 1], [], []>} : vector<5x192xbf16>, vector<192x32xbf16>, vector<5x32xf32> -> vector<5x32xf32>
    %c0_4 = arith.constant 0 : index
    %c0_5 = arith.constant 0 : index
    %5 = vector.load %arg2[%c0_4, %c0_5] : memref<5x32xf32, #tpu.memory_space<vmem>>, vector<5x32xf32>
    %6 = arith.addf %4, %5 : vector<5x32xf32>
    %c0_6 = arith.constant 0 : index
    %c0_7 = arith.constant 0 : index
    %7 = vector.load %arg3[%c0_6, %c0_7] : memref<1x32xf32, #tpu.memory_space<vmem>>, vector<1x32xf32>
    %c0_8 = arith.constant 0 : index
    %c0_9 = arith.constant 0 : index
    %8 = vector.load %arg4[%c0_8, %c0_9] : memref<1x32xf32, #tpu.memory_space<vmem>>, vector<1x32xf32>
    %cst_10 = arith.constant dense<0.000000e+00> : vector<5xf32>
    %9 = vector.multi_reduction <add>, %6, %cst_10 [1] : vector<5x32xf32> to vector<5xf32>
    %10 = vector.shape_cast %9 : vector<5xf32> to vector<5x1xf32>
    %cst_11 = arith.constant 3.200000e+01 : f32
    %11 = vector.broadcast %cst_11 : f32 to vector<5x1xf32>
    %12 = arith.divf %10, %11 : vector<5x1xf32>
    %13 = vector.broadcast %12 : vector<5x1xf32> to vector<5x32xf32>
    %14 = arith.subf %6, %13 : vector<5x32xf32>
    %15 = arith.mulf %14, %14 : vector<5x32xf32>
    %cst_12 = arith.constant dense<0.000000e+00> : vector<5xf32>
    %16 = vector.multi_reduction <add>, %15, %cst_12 [1] : vector<5x32xf32> to vector<5xf32>
    %17 = vector.shape_cast %16 : vector<5xf32> to vector<5x1xf32>
    %cst_13 = arith.constant 3.200000e+01 : f32
    %18 = vector.broadcast %cst_13 : f32 to vector<5x1xf32>
    %19 = arith.divf %17, %18 : vector<5x1xf32>
    %cst_14 = arith.constant 9.99999974E-6 : f32
    %20 = vector.broadcast %cst_14 : f32 to vector<5x1xf32>
    %21 = arith.addf %19, %20 : vector<5x1xf32>
    %22 = math.rsqrt %21 : vector<5x1xf32>
    %23 = vector.broadcast %22 : vector<5x1xf32> to vector<5x32xf32>
    %24 = arith.mulf %14, %23 : vector<5x32xf32>
    %25 = vector.broadcast %7 : vector<1x32xf32> to vector<5x32xf32>
    %26 = arith.mulf %24, %25 : vector<5x32xf32>
    %27 = vector.broadcast %8 : vector<1x32xf32> to vector<5x32xf32>
    %28 = arith.addf %26, %27 : vector<5x32xf32>
    %c0_15 = arith.constant 0 : index
    %c0_16 = arith.constant 0 : index
    %c0_17 = arith.constant 0 : index
    %c0_18 = arith.constant 0 : index
    %29 = vector.load %arg7[%c0_15, %c0_16, %c0_17, %c0_18] : memref<2x2x1x32xf32, #tpu.memory_space<vmem>>, vector<1x1x1x32xf32>
    %30 = vector.shape_cast %29 : vector<1x1x1x32xf32> to vector<1x32xf32>
    %c0_19 = arith.constant 0 : index
    %c0_20 = arith.constant 0 : index
    %c0_21 = arith.constant 0 : index
    %c0_22 = arith.constant 0 : index
    %31 = vector.load %arg8[%c0_19, %c0_20, %c0_21, %c0_22] : memref<2x2x1x32xf32, #tpu.memory_space<vmem>>, vector<1x1x1x32xf32>
    %32 = vector.shape_cast %31 : vector<1x1x1x32xf32> to vector<1x32xf32>
    %cst_23 = arith.constant dense<0.000000e+00> : vector<5xf32>
    %33 = vector.multi_reduction <add>, %28, %cst_23 [1] : vector<5x32xf32> to vector<5xf32>
    %34 = vector.shape_cast %33 : vector<5xf32> to vector<5x1xf32>
    %cst_24 = arith.constant 3.200000e+01 : f32
    %35 = vector.broadcast %cst_24 : f32 to vector<5x1xf32>
    %36 = arith.divf %34, %35 : vector<5x1xf32>
    %37 = vector.broadcast %36 : vector<5x1xf32> to vector<5x32xf32>
    %38 = arith.subf %28, %37 : vector<5x32xf32>
    %39 = arith.mulf %38, %38 : vector<5x32xf32>
    %cst_25 = arith.constant dense<0.000000e+00> : vector<5xf32>
    %40 = vector.multi_reduction <add>, %39, %cst_25 [1] : vector<5x32xf32> to vector<5xf32>
    %41 = vector.shape_cast %40 : vector<5xf32> to vector<5x1xf32>
    %cst_26 = arith.constant 3.200000e+01 : f32
    %42 = vector.broadcast %cst_26 : f32 to vector<5x1xf32>
    %43 = arith.divf %41, %42 : vector<5x1xf32>
    %cst_27 = arith.constant 9.99999974E-6 : f32
    %44 = vector.broadcast %cst_27 : f32 to vector<5x1xf32>
    %45 = arith.addf %43, %44 : vector<5x1xf32>
    %46 = math.rsqrt %45 : vector<5x1xf32>
    %47 = vector.broadcast %46 : vector<5x1xf32> to vector<5x32xf32>
    %48 = arith.mulf %38, %47 : vector<5x32xf32>
    %49 = vector.broadcast %30 : vector<1x32xf32> to vector<5x32xf32>
    %50 = arith.mulf %48, %49 : vector<5x32xf32>
    %51 = vector.broadcast %32 : vector<1x32xf32> to vector<5x32xf32>
    %52 = arith.addf %50, %51 : vector<5x32xf32>
    %53 = arith.truncf %52 : vector<5x32xf32> to vector<5x32xbf16>
    %cst_28 = arith.constant 0.000000e+00 : f32
    %54 = vector.broadcast %cst_28 : f32 to vector<5x32xf32>
    %c0_29 = arith.constant 0 : index
    %c0_30 = arith.constant 0 : index
    %c0_31 = arith.constant 0 : index
    %c0_32 = arith.constant 0 : index
    %55 = vector.load %arg9[%c0_29, %c0_30, %c0_31, %c0_32] : memref<2x4x32x8xbf16, #tpu.memory_space<vmem>>, vector<1x1x32x8xbf16>
    %56 = vector.shape_cast %55 : vector<1x1x32x8xbf16> to vector<32x8xbf16>
    %cst_33 = arith.constant dense<0.000000e+00> : vector<5x8xf32>
    %57 = tpu.matmul %53, %56, %cst_33 {dimension_numbers = #tpu.dot_dimension_numbers<[1], [0], [0], [1], [0, 0, 1, 1], [], []>} : vector<5x32xbf16>, vector<32x8xbf16>, vector<5x8xf32> -> vector<5x8xf32>
    %c0_34 = arith.constant 0 : index
    %c0_35 = arith.constant 0 : index
    %c0_36 = arith.constant 0 : index
    %c0_37 = arith.constant 0 : index
    %58 = vector.load %arg10[%c0_34, %c0_35, %c0_36, %c0_37] : memref<2x4x1x8xf32, #tpu.memory_space<vmem>>, vector<1x1x1x8xf32>
    %59 = vector.shape_cast %58 : vector<1x1x1x8xf32> to vector<1x8xf32>
    %60 = vector.broadcast %59 : vector<1x8xf32> to vector<5x8xf32>
    %61 = arith.addf %57, %60 : vector<5x8xf32>
    %c0_38 = arith.constant 0 : index
    %c0_39 = arith.constant 0 : index
    %c0_40 = arith.constant 0 : index
    %c0_41 = arith.constant 0 : index
    %62 = vector.load %arg11[%c0_38, %c0_39, %c0_40, %c0_41] : memref<2x4x32x8xbf16, #tpu.memory_space<vmem>>, vector<1x1x32x8xbf16>
    %63 = vector.shape_cast %62 : vector<1x1x32x8xbf16> to vector<32x8xbf16>
    %cst_42 = arith.constant dense<0.000000e+00> : vector<5x8xf32>
    %64 = tpu.matmul %53, %63, %cst_42 {dimension_numbers = #tpu.dot_dimension_numbers<[1], [0], [0], [1], [0, 0, 1, 1], [], []>} : vector<5x32xbf16>, vector<32x8xbf16>, vector<5x8xf32> -> vector<5x8xf32>
    %c0_43 = arith.constant 0 : index
    %c0_44 = arith.constant 0 : index
    %c0_45 = arith.constant 0 : index
    %c0_46 = arith.constant 0 : index
    %65 = vector.load %arg12[%c0_43, %c0_44, %c0_45, %c0_46] : memref<2x4x1x8xf32, #tpu.memory_space<vmem>>, vector<1x1x1x8xf32>
    %66 = vector.shape_cast %65 : vector<1x1x1x8xf32> to vector<1x8xf32>
    %67 = vector.broadcast %66 : vector<1x8xf32> to vector<5x8xf32>
    %68 = arith.addf %64, %67 : vector<5x8xf32>
    %69 = arith.truncf %61 : vector<5x8xf32> to vector<5x8xbf16>
    %70 = arith.truncf %68 : vector<5x8xf32> to vector<5x8xbf16>
    %cst_47 = arith.constant dense<0.000000e+00> : vector<5x5xf32>
    %71 = tpu.matmul %69, %70, %cst_47 {dimension_numbers = #tpu.dot_dimension_numbers<[1], [1], [0], [0], [0, 0, 1, 0], [], []>} : vector<5x8xbf16>, vector<5x8xbf16>, vector<5x5xf32> -> vector<5x5xf32>
    %cst_48 = arith.constant dense<0xFF800000> : vector<5xf32>
    %72 = vector.multi_reduction <maximumf>, %71, %cst_48 [1] : vector<5x5xf32> to vector<5xf32>
    %73 = vector.shape_cast %72 : vector<5xf32> to vector<5x1xf32>
    %74 = vector.broadcast %73 : vector<5x1xf32> to vector<5x5xf32>
    %75 = arith.subf %71, %74 : vector<5x5xf32>
    %76 = math.exp %75 : vector<5x5xf32>
    %cst_49 = arith.constant dense<0.000000e+00> : vector<5xf32>
    %77 = vector.multi_reduction <add>, %76, %cst_49 [1] : vector<5x5xf32> to vector<5xf32>
    %78 = vector.shape_cast %77 : vector<5xf32> to vector<5x1xf32>
    %79 = tpu.reciprocal %78 {approx = true} : vector<5x1xf32> -> vector<5x1xf32>
    %80 = vector.broadcast %79 : vector<5x1xf32> to vector<5x5xf32>
    %81 = arith.mulf %76, %80 : vector<5x5xf32>
    %c0_50 = arith.constant 0 : index
    %c0_51 = arith.constant 0 : index
    %c0_52 = arith.constant 0 : index
    %c0_53 = arith.constant 0 : index
    %82 = vector.load %arg13[%c0_50, %c0_51, %c0_52, %c0_53] : memref<2x4x32x32xbf16, #tpu.memory_space<vmem>>, vector<1x1x32x32xbf16>
    %83 = vector.shape_cast %82 : vector<1x1x32x32xbf16> to vector<32x32xbf16>
    %cst_54 = arith.constant dense<0.000000e+00> : vector<5x32xf32>
    %84 = tpu.matmul %53, %83, %cst_54 {dimension_numbers = #tpu.dot_dimension_numbers<[1], [0], [0], [1], [0, 0, 1, 1], [], []>} : vector<5x32xbf16>, vector<32x32xbf16>, vector<5x32xf32> -> vector<5x32xf32>
    %c0_55 = arith.constant 0 : index
    %c0_56 = arith.constant 0 : index
    %c0_57 = arith.constant 0 : index
    %c0_58 = arith.constant 0 : index
    %85 = vector.load %arg14[%c0_55, %c0_56, %c0_57, %c0_58] : memref<2x4x1x32xf32, #tpu.memory_space<vmem>>, vector<1x1x1x32xf32>
    %86 = vector.shape_cast %85 : vector<1x1x1x32xf32> to vector<1x32xf32>
    %87 = vector.broadcast %86 : vector<1x32xf32> to vector<5x32xf32>
    %88 = arith.addf %84, %87 : vector<5x32xf32>
    %89 = arith.truncf %81 : vector<5x5xf32> to vector<5x5xbf16>
    %90 = arith.truncf %88 : vector<5x32xf32> to vector<5x32xbf16>
    %cst_59 = arith.constant dense<0.000000e+00> : vector<5x32xf32>
    %91 = tpu.matmul %89, %90, %cst_59 {dimension_numbers = #tpu.dot_dimension_numbers<[1], [0], [0], [1], [0, 0, 1, 1], [], []>} : vector<5x5xbf16>, vector<5x32xbf16>, vector<5x32xf32> -> vector<5x32xf32>
    %92 = arith.addf %54, %91 : vector<5x32xf32>
    %c0_60 = arith.constant 0 : index
    %c1 = arith.constant 1 : index
    %c0_61 = arith.constant 0 : index
    %c0_62 = arith.constant 0 : index
    %93 = vector.load %arg9[%c0_60, %c1, %c0_61, %c0_62] : memref<2x4x32x8xbf16, #tpu.memory_space<vmem>>, vector<1x1x32x8xbf16>
    %94 = vector.shape_cast %93 : vector<1x1x32x8xbf16> to vector<32x8xbf16>
    %cst_63 = arith.constant dense<0.000000e+00> : vector<5x8xf32>
    %95 = tpu.matmul %53, %94, %cst_63 {dimension_numbers = #tpu.dot_dimension_numbers<[1], [0], [0], [1], [0, 0, 1, 1], [], []>} : vector<5x32xbf16>, vector<32x8xbf16>, vector<5x8xf32> -> vector<5x8xf32>
    %c0_64 = arith.constant 0 : index
    %c1_65 = arith.constant 1 : index
    %c0_66 = arith.constant 0 : index
    %c0_67 = arith.constant 0 : index
    %96 = vector.load %arg10[%c0_64, %c1_65, %c0_66, %c0_67] : memref<2x4x1x8xf32, #tpu.memory_space<vmem>>, vector<1x1x1x8xf32>
    %97 = vector.shape_cast %96 : vector<1x1x1x8xf32> to vector<1x8xf32>
    %98 = vector.broadcast %97 : vector<1x8xf32> to vector<5x8xf32>
    %99 = arith.addf %95, %98 : vector<5x8xf32>
    %c0_68 = arith.constant 0 : index
    %c1_69 = arith.constant 1 : index
    %c0_70 = arith.constant 0 : index
    %c0_71 = arith.constant 0 : index
    %100 = vector.load %arg11[%c0_68, %c1_69, %c0_70, %c0_71] : memref<2x4x32x8xbf16, #tpu.memory_space<vmem>>, vector<1x1x32x8xbf16>
    %101 = vector.shape_cast %100 : vector<1x1x32x8xbf16> to vector<32x8xbf16>
    %cst_72 = arith.constant dense<0.000000e+00> : vector<5x8xf32>
    %102 = tpu.matmul %53, %101, %cst_72 {dimension_numbers = #tpu.dot_dimension_numbers<[1], [0], [0], [1], [0, 0, 1, 1], [], []>} : vector<5x32xbf16>, vector<32x8xbf16>, vector<5x8xf32> -> vector<5x8xf32>
    %c0_73 = arith.constant 0 : index
    %c1_74 = arith.constant 1 : index
    %c0_75 = arith.constant 0 : index
    %c0_76 = arith.constant 0 : index
    %103 = vector.load %arg12[%c0_73, %c1_74, %c0_75, %c0_76] : memref<2x4x1x8xf32, #tpu.memory_space<vmem>>, vector<1x1x1x8xf32>
    %104 = vector.shape_cast %103 : vector<1x1x1x8xf32> to vector<1x8xf32>
    %105 = vector.broadcast %104 : vector<1x8xf32> to vector<5x8xf32>
    %106 = arith.addf %102, %105 : vector<5x8xf32>
    %107 = arith.truncf %99 : vector<5x8xf32> to vector<5x8xbf16>
    %108 = arith.truncf %106 : vector<5x8xf32> to vector<5x8xbf16>
    %cst_77 = arith.constant dense<0.000000e+00> : vector<5x5xf32>
    %109 = tpu.matmul %107, %108, %cst_77 {dimension_numbers = #tpu.dot_dimension_numbers<[1], [1], [0], [0], [0, 0, 1, 0], [], []>} : vector<5x8xbf16>, vector<5x8xbf16>, vector<5x5xf32> -> vector<5x5xf32>
    %cst_78 = arith.constant dense<0xFF800000> : vector<5xf32>
    %110 = vector.multi_reduction <maximumf>, %109, %cst_78 [1] : vector<5x5xf32> to vector<5xf32>
    %111 = vector.shape_cast %110 : vector<5xf32> to vector<5x1xf32>
    %112 = vector.broadcast %111 : vector<5x1xf32> to vector<5x5xf32>
    %113 = arith.subf %109, %112 : vector<5x5xf32>
    %114 = math.exp %113 : vector<5x5xf32>
    %cst_79 = arith.constant dense<0.000000e+00> : vector<5xf32>
    %115 = vector.multi_reduction <add>, %114, %cst_79 [1] : vector<5x5xf32> to vector<5xf32>
    %116 = vector.shape_cast %115 : vector<5xf32> to vector<5x1xf32>
    %117 = tpu.reciprocal %116 {approx = true} : vector<5x1xf32> -> vector<5x1xf32>
    %118 = vector.broadcast %117 : vector<5x1xf32> to vector<5x5xf32>
    %119 = arith.mulf %114, %118 : vector<5x5xf32>
    %c0_80 = arith.constant 0 : index
    %c1_81 = arith.constant 1 : index
    %c0_82 = arith.constant 0 : index
    %c0_83 = arith.constant 0 : index
    %120 = vector.load %arg13[%c0_80, %c1_81, %c0_82, %c0_83] : memref<2x4x32x32xbf16, #tpu.memory_space<vmem>>, vector<1x1x32x32xbf16>
    %121 = vector.shape_cast %120 : vector<1x1x32x32xbf16> to vector<32x32xbf16>
    %cst_84 = arith.constant dense<0.000000e+00> : vector<5x32xf32>
    %122 = tpu.matmul %53, %121, %cst_84 {dimension_numbers = #tpu.dot_dimension_numbers<[1], [0], [0], [1], [0, 0, 1, 1], [], []>} : vector<5x32xbf16>, vector<32x32xbf16>, vector<5x32xf32> -> vector<5x32xf32>
    %c0_85 = arith.constant 0 : index
    %c1_86 = arith.constant 1 : index
    %c0_87 = arith.constant 0 : index
    %c0_88 = arith.constant 0 : index
    %123 = vector.load %arg14[%c0_85, %c1_86, %c0_87, %c0_88] : memref<2x4x1x32xf32, #tpu.memory_space<vmem>>, vector<1x1x1x32xf32>
    %124 = vector.shape_cast %123 : vector<1x1x1x32xf32> to vector<1x32xf32>
    %125 = vector.broadcast %124 : vector<1x32xf32> to vector<5x32xf32>
    %126 = arith.addf %122, %125 : vector<5x32xf32>
    %127 = arith.truncf %119 : vector<5x5xf32> to vector<5x5xbf16>
    %128 = arith.truncf %126 : vector<5x32xf32> to vector<5x32xbf16>
    %cst_89 = arith.constant dense<0.000000e+00> : vector<5x32xf32>
    %129 = tpu.matmul %127, %128, %cst_89 {dimension_numbers = #tpu.dot_dimension_numbers<[1], [0], [0], [1], [0, 0, 1, 1], [], []>} : vector<5x5xbf16>, vector<5x32xbf16>, vector<5x32xf32> -> vector<5x32xf32>
    %130 = arith.addf %92, %129 : vector<5x32xf32>
    %c0_90 = arith.constant 0 : index
    %c2 = arith.constant 2 : index
    %c0_91 = arith.constant 0 : index
    %c0_92 = arith.constant 0 : index
    %131 = vector.load %arg9[%c0_90, %c2, %c0_91, %c0_92] : memref<2x4x32x8xbf16, #tpu.memory_space<vmem>>, vector<1x1x32x8xbf16>
    %132 = vector.shape_cast %131 : vector<1x1x32x8xbf16> to vector<32x8xbf16>
    %cst_93 = arith.constant dense<0.000000e+00> : vector<5x8xf32>
    %133 = tpu.matmul %53, %132, %cst_93 {dimension_numbers = #tpu.dot_dimension_numbers<[1], [0], [0], [1], [0, 0, 1, 1], [], []>} : vector<5x32xbf16>, vector<32x8xbf16>, vector<5x8xf32> -> vector<5x8xf32>
    %c0_94 = arith.constant 0 : index
    %c2_95 = arith.constant 2 : index
    %c0_96 = arith.constant 0 : index
    %c0_97 = arith.constant 0 : index
    %134 = vector.load %arg10[%c0_94, %c2_95, %c0_96, %c0_97] : memref<2x4x1x8xf32, #tpu.memory_space<vmem>>, vector<1x1x1x8xf32>
    %135 = vector.shape_cast %134 : vector<1x1x1x8xf32> to vector<1x8xf32>
    %136 = vector.broadcast %135 : vector<1x8xf32> to vector<5x8xf32>
    %137 = arith.addf %133, %136 : vector<5x8xf32>
    %c0_98 = arith.constant 0 : index
    %c2_99 = arith.constant 2 : index
    %c0_100 = arith.constant 0 : index
    %c0_101 = arith.constant 0 : index
    %138 = vector.load %arg11[%c0_98, %c2_99, %c0_100, %c0_101] : memref<2x4x32x8xbf16, #tpu.memory_space<vmem>>, vector<1x1x32x8xbf16>
    %139 = vector.shape_cast %138 : vector<1x1x32x8xbf16> to vector<32x8xbf16>
    %cst_102 = arith.constant dense<0.000000e+00> : vector<5x8xf32>
    %140 = tpu.matmul %53, %139, %cst_102 {dimension_numbers = #tpu.dot_dimension_numbers<[1], [0], [0], [1], [0, 0, 1, 1], [], []>} : vector<5x32xbf16>, vector<32x8xbf16>, vector<5x8xf32> -> vector<5x8xf32>
    %c0_103 = arith.constant 0 : index
    %c2_104 = arith.constant 2 : index
    %c0_105 = arith.constant 0 : index
    %c0_106 = arith.constant 0 : index
    %141 = vector.load %arg12[%c0_103, %c2_104, %c0_105, %c0_106] : memref<2x4x1x8xf32, #tpu.memory_space<vmem>>, vector<1x1x1x8xf32>
    %142 = vector.shape_cast %141 : vector<1x1x1x8xf32> to vector<1x8xf32>
    %143 = vector.broadcast %142 : vector<1x8xf32> to vector<5x8xf32>
    %144 = arith.addf %140, %143 : vector<5x8xf32>
    %145 = arith.truncf %137 : vector<5x8xf32> to vector<5x8xbf16>
    %146 = arith.truncf %144 : vector<5x8xf32> to vector<5x8xbf16>
    %cst_107 = arith.constant dense<0.000000e+00> : vector<5x5xf32>
    %147 = tpu.matmul %145, %146, %cst_107 {dimension_numbers = #tpu.dot_dimension_numbers<[1], [1], [0], [0], [0, 0, 1, 0], [], []>} : vector<5x8xbf16>, vector<5x8xbf16>, vector<5x5xf32> -> vector<5x5xf32>
    %cst_108 = arith.constant dense<0xFF800000> : vector<5xf32>
    %148 = vector.multi_reduction <maximumf>, %147, %cst_108 [1] : vector<5x5xf32> to vector<5xf32>
    %149 = vector.shape_cast %148 : vector<5xf32> to vector<5x1xf32>
    %150 = vector.broadcast %149 : vector<5x1xf32> to vector<5x5xf32>
    %151 = arith.subf %147, %150 : vector<5x5xf32>
    %152 = math.exp %151 : vector<5x5xf32>
    %cst_109 = arith.constant dense<0.000000e+00> : vector<5xf32>
    %153 = vector.multi_reduction <add>, %152, %cst_109 [1] : vector<5x5xf32> to vector<5xf32>
    %154 = vector.shape_cast %153 : vector<5xf32> to vector<5x1xf32>
    %155 = tpu.reciprocal %154 {approx = true} : vector<5x1xf32> -> vector<5x1xf32>
    %156 = vector.broadcast %155 : vector<5x1xf32> to vector<5x5xf32>
    %157 = arith.mulf %152, %156 : vector<5x5xf32>
    %c0_110 = arith.constant 0 : index
    %c2_111 = arith.constant 2 : index
    %c0_112 = arith.constant 0 : index
    %c0_113 = arith.constant 0 : index
    %158 = vector.load %arg13[%c0_110, %c2_111, %c0_112, %c0_113] : memref<2x4x32x32xbf16, #tpu.memory_space<vmem>>, vector<1x1x32x32xbf16>
    %159 = vector.shape_cast %158 : vector<1x1x32x32xbf16> to vector<32x32xbf16>
    %cst_114 = arith.constant dense<0.000000e+00> : vector<5x32xf32>
    %160 = tpu.matmul %53, %159, %cst_114 {dimension_numbers = #tpu.dot_dimension_numbers<[1], [0], [0], [1], [0, 0, 1, 1], [], []>} : vector<5x32xbf16>, vector<32x32xbf16>, vector<5x32xf32> -> vector<5x32xf32>
    %c0_115 = arith.constant 0 : index
    %c2_116 = arith.constant 2 : index
    %c0_117 = arith.constant 0 : index
    %c0_118 = arith.constant 0 : index
    %161 = vector.load %arg14[%c0_115, %c2_116, %c0_117, %c0_118] : memref<2x4x1x32xf32, #tpu.memory_space<vmem>>, vector<1x1x1x32xf32>
    %162 = vector.shape_cast %161 : vector<1x1x1x32xf32> to vector<1x32xf32>
    %163 = vector.broadcast %162 : vector<1x32xf32> to vector<5x32xf32>
    %164 = arith.addf %160, %163 : vector<5x32xf32>
    %165 = arith.truncf %157 : vector<5x5xf32> to vector<5x5xbf16>
    %166 = arith.truncf %164 : vector<5x32xf32> to vector<5x32xbf16>
    %cst_119 = arith.constant dense<0.000000e+00> : vector<5x32xf32>
    %167 = tpu.matmul %165, %166, %cst_119 {dimension_numbers = #tpu.dot_dimension_numbers<[1], [0], [0], [1], [0, 0, 1, 1], [], []>} : vector<5x5xbf16>, vector<5x32xbf16>, vector<5x32xf32> -> vector<5x32xf32>
    %168 = arith.addf %130, %167 : vector<5x32xf32>
    %c0_120 = arith.constant 0 : index
    %c3 = arith.constant 3 : index
    %c0_121 = arith.constant 0 : index
    %c0_122 = arith.constant 0 : index
    %169 = vector.load %arg9[%c0_120, %c3, %c0_121, %c0_122] : memref<2x4x32x8xbf16, #tpu.memory_space<vmem>>, vector<1x1x32x8xbf16>
    %170 = vector.shape_cast %169 : vector<1x1x32x8xbf16> to vector<32x8xbf16>
    %cst_123 = arith.constant dense<0.000000e+00> : vector<5x8xf32>
    %171 = tpu.matmul %53, %170, %cst_123 {dimension_numbers = #tpu.dot_dimension_numbers<[1], [0], [0], [1], [0, 0, 1, 1], [], []>} : vector<5x32xbf16>, vector<32x8xbf16>, vector<5x8xf32> -> vector<5x8xf32>
    %c0_124 = arith.constant 0 : index
    %c3_125 = arith.constant 3 : index
    %c0_126 = arith.constant 0 : index
    %c0_127 = arith.constant 0 : index
    %172 = vector.load %arg10[%c0_124, %c3_125, %c0_126, %c0_127] : memref<2x4x1x8xf32, #tpu.memory_space<vmem>>, vector<1x1x1x8xf32>
    %173 = vector.shape_cast %172 : vector<1x1x1x8xf32> to vector<1x8xf32>
    %174 = vector.broadcast %173 : vector<1x8xf32> to vector<5x8xf32>
    %175 = arith.addf %171, %174 : vector<5x8xf32>
    %c0_128 = arith.constant 0 : index
    %c3_129 = arith.constant 3 : index
    %c0_130 = arith.constant 0 : index
    %c0_131 = arith.constant 0 : index
    %176 = vector.load %arg11[%c0_128, %c3_129, %c0_130, %c0_131] : memref<2x4x32x8xbf16, #tpu.memory_space<vmem>>, vector<1x1x32x8xbf16>
    %177 = vector.shape_cast %176 : vector<1x1x32x8xbf16> to vector<32x8xbf16>
    %cst_132 = arith.constant dense<0.000000e+00> : vector<5x8xf32>
    %178 = tpu.matmul %53, %177, %cst_132 {dimension_numbers = #tpu.dot_dimension_numbers<[1], [0], [0], [1], [0, 0, 1, 1], [], []>} : vector<5x32xbf16>, vector<32x8xbf16>, vector<5x8xf32> -> vector<5x8xf32>
    %c0_133 = arith.constant 0 : index
    %c3_134 = arith.constant 3 : index
    %c0_135 = arith.constant 0 : index
    %c0_136 = arith.constant 0 : index
    %179 = vector.load %arg12[%c0_133, %c3_134, %c0_135, %c0_136] : memref<2x4x1x8xf32, #tpu.memory_space<vmem>>, vector<1x1x1x8xf32>
    %180 = vector.shape_cast %179 : vector<1x1x1x8xf32> to vector<1x8xf32>
    %181 = vector.broadcast %180 : vector<1x8xf32> to vector<5x8xf32>
    %182 = arith.addf %178, %181 : vector<5x8xf32>
    %183 = arith.truncf %175 : vector<5x8xf32> to vector<5x8xbf16>
    %184 = arith.truncf %182 : vector<5x8xf32> to vector<5x8xbf16>
    %cst_137 = arith.constant dense<0.000000e+00> : vector<5x5xf32>
    %185 = tpu.matmul %183, %184, %cst_137 {dimension_numbers = #tpu.dot_dimension_numbers<[1], [1], [0], [0], [0, 0, 1, 0], [], []>} : vector<5x8xbf16>, vector<5x8xbf16>, vector<5x5xf32> -> vector<5x5xf32>
    %cst_138 = arith.constant dense<0xFF800000> : vector<5xf32>
    %186 = vector.multi_reduction <maximumf>, %185, %cst_138 [1] : vector<5x5xf32> to vector<5xf32>
    %187 = vector.shape_cast %186 : vector<5xf32> to vector<5x1xf32>
    %188 = vector.broadcast %187 : vector<5x1xf32> to vector<5x5xf32>
    %189 = arith.subf %185, %188 : vector<5x5xf32>
    %190 = math.exp %189 : vector<5x5xf32>
    %cst_139 = arith.constant dense<0.000000e+00> : vector<5xf32>
    %191 = vector.multi_reduction <add>, %190, %cst_139 [1] : vector<5x5xf32> to vector<5xf32>
    %192 = vector.shape_cast %191 : vector<5xf32> to vector<5x1xf32>
    %193 = tpu.reciprocal %192 {approx = true} : vector<5x1xf32> -> vector<5x1xf32>
    %194 = vector.broadcast %193 : vector<5x1xf32> to vector<5x5xf32>
    %195 = arith.mulf %190, %194 : vector<5x5xf32>
    %c0_140 = arith.constant 0 : index
    %c3_141 = arith.constant 3 : index
    %c0_142 = arith.constant 0 : index
    %c0_143 = arith.constant 0 : index
    %196 = vector.load %arg13[%c0_140, %c3_141, %c0_142, %c0_143] : memref<2x4x32x32xbf16, #tpu.memory_space<vmem>>, vector<1x1x32x32xbf16>
    %197 = vector.shape_cast %196 : vector<1x1x32x32xbf16> to vector<32x32xbf16>
    %cst_144 = arith.constant dense<0.000000e+00> : vector<5x32xf32>
    %198 = tpu.matmul %53, %197, %cst_144 {dimension_numbers = #tpu.dot_dimension_numbers<[1], [0], [0], [1], [0, 0, 1, 1], [], []>} : vector<5x32xbf16>, vector<32x32xbf16>, vector<5x32xf32> -> vector<5x32xf32>
    %c0_145 = arith.constant 0 : index
    %c3_146 = arith.constant 3 : index
    %c0_147 = arith.constant 0 : index
    %c0_148 = arith.constant 0 : index
    %199 = vector.load %arg14[%c0_145, %c3_146, %c0_147, %c0_148] : memref<2x4x1x32xf32, #tpu.memory_space<vmem>>, vector<1x1x1x32xf32>
    %200 = vector.shape_cast %199 : vector<1x1x1x32xf32> to vector<1x32xf32>
    %201 = vector.broadcast %200 : vector<1x32xf32> to vector<5x32xf32>
    %202 = arith.addf %198, %201 : vector<5x32xf32>
    %203 = arith.truncf %195 : vector<5x5xf32> to vector<5x5xbf16>
    %204 = arith.truncf %202 : vector<5x32xf32> to vector<5x32xbf16>
    %cst_149 = arith.constant dense<0.000000e+00> : vector<5x32xf32>
    %205 = tpu.matmul %203, %204, %cst_149 {dimension_numbers = #tpu.dot_dimension_numbers<[1], [0], [0], [1], [0, 0, 1, 1], [], []>} : vector<5x5xbf16>, vector<5x32xbf16>, vector<5x32xf32> -> vector<5x32xf32>
    %206 = arith.addf %168, %205 : vector<5x32xf32>
    %207 = arith.addf %28, %206 : vector<5x32xf32>
    %c0_150 = arith.constant 0 : index
    %c0_151 = arith.constant 0 : index
    %c0_152 = arith.constant 0 : index
    %208 = vector.load %arg15[%c0_150, %c0_151, %c0_152] : memref<2x1x32xf32, #tpu.memory_space<vmem>>, vector<1x1x32xf32>
    %209 = vector.shape_cast %208 : vector<1x1x32xf32> to vector<1x32xf32>
    %210 = vector.broadcast %209 : vector<1x32xf32> to vector<5x32xf32>
    %211 = arith.addf %207, %210 : vector<5x32xf32>
    %c0_153 = arith.constant 0 : index
    %c1_154 = arith.constant 1 : index
    %c0_155 = arith.constant 0 : index
    %c0_156 = arith.constant 0 : index
    %212 = vector.load %arg7[%c0_153, %c1_154, %c0_155, %c0_156] : memref<2x2x1x32xf32, #tpu.memory_space<vmem>>, vector<1x1x1x32xf32>
    %213 = vector.shape_cast %212 : vector<1x1x1x32xf32> to vector<1x32xf32>
    %c0_157 = arith.constant 0 : index
    %c1_158 = arith.constant 1 : index
    %c0_159 = arith.constant 0 : index
    %c0_160 = arith.constant 0 : index
    %214 = vector.load %arg8[%c0_157, %c1_158, %c0_159, %c0_160] : memref<2x2x1x32xf32, #tpu.memory_space<vmem>>, vector<1x1x1x32xf32>
    %215 = vector.shape_cast %214 : vector<1x1x1x32xf32> to vector<1x32xf32>
    %cst_161 = arith.constant dense<0.000000e+00> : vector<5xf32>
    %216 = vector.multi_reduction <add>, %211, %cst_161 [1] : vector<5x32xf32> to vector<5xf32>
    %217 = vector.shape_cast %216 : vector<5xf32> to vector<5x1xf32>
    %cst_162 = arith.constant 3.200000e+01 : f32
    %218 = vector.broadcast %cst_162 : f32 to vector<5x1xf32>
    %219 = arith.divf %217, %218 : vector<5x1xf32>
    %220 = vector.broadcast %219 : vector<5x1xf32> to vector<5x32xf32>
    %221 = arith.subf %211, %220 : vector<5x32xf32>
    %222 = arith.mulf %221, %221 : vector<5x32xf32>
    %cst_163 = arith.constant dense<0.000000e+00> : vector<5xf32>
    %223 = vector.multi_reduction <add>, %222, %cst_163 [1] : vector<5x32xf32> to vector<5xf32>
    %224 = vector.shape_cast %223 : vector<5xf32> to vector<5x1xf32>
    %cst_164 = arith.constant 3.200000e+01 : f32
    %225 = vector.broadcast %cst_164 : f32 to vector<5x1xf32>
    %226 = arith.divf %224, %225 : vector<5x1xf32>
    %cst_165 = arith.constant 9.99999974E-6 : f32
    %227 = vector.broadcast %cst_165 : f32 to vector<5x1xf32>
    %228 = arith.addf %226, %227 : vector<5x1xf32>
    %229 = math.rsqrt %228 : vector<5x1xf32>
    %230 = vector.broadcast %229 : vector<5x1xf32> to vector<5x32xf32>
    %231 = arith.mulf %221, %230 : vector<5x32xf32>
    %232 = vector.broadcast %213 : vector<1x32xf32> to vector<5x32xf32>
    %233 = arith.mulf %231, %232 : vector<5x32xf32>
    %234 = vector.broadcast %215 : vector<1x32xf32> to vector<5x32xf32>
    %235 = arith.addf %233, %234 : vector<5x32xf32>
    %236 = arith.truncf %235 : vector<5x32xf32> to vector<5x32xbf16>
    %c0_166 = arith.constant 0 : index
    %c0_167 = arith.constant 0 : index
    %c0_168 = arith.constant 0 : index
    %237 = vector.load %arg16[%c0_166, %c0_167, %c0_168] : memref<2x32x64xbf16, #tpu.memory_space<vmem>>, vector<1x32x64xbf16>
    %238 = vector.shape_cast %237 : vector<1x32x64xbf16> to vector<32x64xbf16>
    %cst_169 = arith.constant dense<0.000000e+00> : vector<5x64xf32>
    %239 = tpu.matmul %236, %238, %cst_169 {dimension_numbers = #tpu.dot_dimension_numbers<[1], [0], [0], [1], [0, 0, 1, 1], [], []>} : vector<5x32xbf16>, vector<32x64xbf16>, vector<5x64xf32> -> vector<5x64xf32>
    %c0_170 = arith.constant 0 : index
    %c0_171 = arith.constant 0 : index
    %c0_172 = arith.constant 0 : index
    %240 = vector.load %arg17[%c0_170, %c0_171, %c0_172] : memref<2x1x64xf32, #tpu.memory_space<vmem>>, vector<1x1x64xf32>
    %241 = vector.shape_cast %240 : vector<1x1x64xf32> to vector<1x64xf32>
    %242 = vector.broadcast %241 : vector<1x64xf32> to vector<5x64xf32>
    %243 = arith.addf %239, %242 : vector<5x64xf32>
    %cst_173 = arith.constant 1.702000e+00 : f32
    %244 = vector.broadcast %cst_173 : f32 to vector<5x64xf32>
    %245 = arith.mulf %244, %243 : vector<5x64xf32>
    %246 = arith.negf %245 : vector<5x64xf32>
    %247 = math.exp %246 : vector<5x64xf32>
    %cst_174 = arith.constant 1.000000e+00 : f32
    %248 = vector.broadcast %cst_174 : f32 to vector<5x64xf32>
    %249 = arith.addf %248, %247 : vector<5x64xf32>
    %250 = arith.divf %248, %249 : vector<5x64xf32>
    %251 = arith.mulf %243, %250 : vector<5x64xf32>
    %252 = arith.truncf %251 : vector<5x64xf32> to vector<5x64xbf16>
    %c0_175 = arith.constant 0 : index
    %c0_176 = arith.constant 0 : index
    %c0_177 = arith.constant 0 : index
    %253 = vector.load %arg18[%c0_175, %c0_176, %c0_177] : memref<2x64x32xbf16, #tpu.memory_space<vmem>>, vector<1x64x32xbf16>
    %254 = vector.shape_cast %253 : vector<1x64x32xbf16> to vector<64x32xbf16>
    %cst_178 = arith.constant dense<0.000000e+00> : vector<5x32xf32>
    %255 = tpu.matmul %252, %254, %cst_178 {dimension_numbers = #tpu.dot_dimension_numbers<[1], [0], [0], [1], [0, 0, 1, 1], [], []>} : vector<5x64xbf16>, vector<64x32xbf16>, vector<5x32xf32> -> vector<5x32xf32>
    %c0_179 = arith.constant 0 : index
    %c0_180 = arith.constant 0 : index
    %c0_181 = arith.constant 0 : index
    %256 = vector.load %arg19[%c0_179, %c0_180, %c0_181] : memref<2x1x32xf32, #tpu.memory_space<vmem>>, vector<1x1x32xf32>
    %257 = vector.shape_cast %256 : vector<1x1x32xf32> to vector<1x32xf32>
    %258 = vector.broadcast %257 : vector<1x32xf32> to vector<5x32xf32>
    %259 = arith.addf %255, %258 : vector<5x32xf32>
    %260 = arith.addf %211, %259 : vector<5x32xf32>
    %c1_182 = arith.constant 1 : index
    %c0_183 = arith.constant 0 : index
    %c0_184 = arith.constant 0 : index
    %c0_185 = arith.constant 0 : index
    %261 = vector.load %arg7[%c1_182, %c0_183, %c0_184, %c0_185] : memref<2x2x1x32xf32, #tpu.memory_space<vmem>>, vector<1x1x1x32xf32>
    %262 = vector.shape_cast %261 : vector<1x1x1x32xf32> to vector<1x32xf32>
    %c1_186 = arith.constant 1 : index
    %c0_187 = arith.constant 0 : index
    %c0_188 = arith.constant 0 : index
    %c0_189 = arith.constant 0 : index
    %263 = vector.load %arg8[%c1_186, %c0_187, %c0_188, %c0_189] : memref<2x2x1x32xf32, #tpu.memory_space<vmem>>, vector<1x1x1x32xf32>
    %264 = vector.shape_cast %263 : vector<1x1x1x32xf32> to vector<1x32xf32>
    %cst_190 = arith.constant dense<0.000000e+00> : vector<5xf32>
    %265 = vector.multi_reduction <add>, %260, %cst_190 [1] : vector<5x32xf32> to vector<5xf32>
    %266 = vector.shape_cast %265 : vector<5xf32> to vector<5x1xf32>
    %cst_191 = arith.constant 3.200000e+01 : f32
    %267 = vector.broadcast %cst_191 : f32 to vector<5x1xf32>
    %268 = arith.divf %266, %267 : vector<5x1xf32>
    %269 = vector.broadcast %268 : vector<5x1xf32> to vector<5x32xf32>
    %270 = arith.subf %260, %269 : vector<5x32xf32>
    %271 = arith.mulf %270, %270 : vector<5x32xf32>
    %cst_192 = arith.constant dense<0.000000e+00> : vector<5xf32>
    %272 = vector.multi_reduction <add>, %271, %cst_192 [1] : vector<5x32xf32> to vector<5xf32>
    %273 = vector.shape_cast %272 : vector<5xf32> to vector<5x1xf32>
    %cst_193 = arith.constant 3.200000e+01 : f32
    %274 = vector.broadcast %cst_193 : f32 to vector<5x1xf32>
    %275 = arith.divf %273, %274 : vector<5x1xf32>
    %cst_194 = arith.constant 9.99999974E-6 : f32
    %276 = vector.broadcast %cst_194 : f32 to vector<5x1xf32>
    %277 = arith.addf %275, %276 : vector<5x1xf32>
    %278 = math.rsqrt %277 : vector<5x1xf32>
    %279 = vector.broadcast %278 : vector<5x1xf32> to vector<5x32xf32>
    %280 = arith.mulf %270, %279 : vector<5x32xf32>
    %281 = vector.broadcast %262 : vector<1x32xf32> to vector<5x32xf32>
    %282 = arith.mulf %280, %281 : vector<5x32xf32>
    %283 = vector.broadcast %264 : vector<1x32xf32> to vector<5x32xf32>
    %284 = arith.addf %282, %283 : vector<5x32xf32>
    %285 = arith.truncf %284 : vector<5x32xf32> to vector<5x32xbf16>
    %cst_195 = arith.constant 0.000000e+00 : f32
    %286 = vector.broadcast %cst_195 : f32 to vector<5x32xf32>
    %c1_196 = arith.constant 1 : index
    %c0_197 = arith.constant 0 : index
    %c0_198 = arith.constant 0 : index
    %c0_199 = arith.constant 0 : index
    %287 = vector.load %arg9[%c1_196, %c0_197, %c0_198, %c0_199] : memref<2x4x32x8xbf16, #tpu.memory_space<vmem>>, vector<1x1x32x8xbf16>
    %288 = vector.shape_cast %287 : vector<1x1x32x8xbf16> to vector<32x8xbf16>
    %cst_200 = arith.constant dense<0.000000e+00> : vector<5x8xf32>
    %289 = tpu.matmul %285, %288, %cst_200 {dimension_numbers = #tpu.dot_dimension_numbers<[1], [0], [0], [1], [0, 0, 1, 1], [], []>} : vector<5x32xbf16>, vector<32x8xbf16>, vector<5x8xf32> -> vector<5x8xf32>
    %c1_201 = arith.constant 1 : index
    %c0_202 = arith.constant 0 : index
    %c0_203 = arith.constant 0 : index
    %c0_204 = arith.constant 0 : index
    %290 = vector.load %arg10[%c1_201, %c0_202, %c0_203, %c0_204] : memref<2x4x1x8xf32, #tpu.memory_space<vmem>>, vector<1x1x1x8xf32>
    %291 = vector.shape_cast %290 : vector<1x1x1x8xf32> to vector<1x8xf32>
    %292 = vector.broadcast %291 : vector<1x8xf32> to vector<5x8xf32>
    %293 = arith.addf %289, %292 : vector<5x8xf32>
    %c1_205 = arith.constant 1 : index
    %c0_206 = arith.constant 0 : index
    %c0_207 = arith.constant 0 : index
    %c0_208 = arith.constant 0 : index
    %294 = vector.load %arg11[%c1_205, %c0_206, %c0_207, %c0_208] : memref<2x4x32x8xbf16, #tpu.memory_space<vmem>>, vector<1x1x32x8xbf16>
    %295 = vector.shape_cast %294 : vector<1x1x32x8xbf16> to vector<32x8xbf16>
    %cst_209 = arith.constant dense<0.000000e+00> : vector<5x8xf32>
    %296 = tpu.matmul %285, %295, %cst_209 {dimension_numbers = #tpu.dot_dimension_numbers<[1], [0], [0], [1], [0, 0, 1, 1], [], []>} : vector<5x32xbf16>, vector<32x8xbf16>, vector<5x8xf32> -> vector<5x8xf32>
    %c1_210 = arith.constant 1 : index
    %c0_211 = arith.constant 0 : index
    %c0_212 = arith.constant 0 : index
    %c0_213 = arith.constant 0 : index
    %297 = vector.load %arg12[%c1_210, %c0_211, %c0_212, %c0_213] : memref<2x4x1x8xf32, #tpu.memory_space<vmem>>, vector<1x1x1x8xf32>
    %298 = vector.shape_cast %297 : vector<1x1x1x8xf32> to vector<1x8xf32>
    %299 = vector.broadcast %298 : vector<1x8xf32> to vector<5x8xf32>
    %300 = arith.addf %296, %299 : vector<5x8xf32>
    %301 = arith.truncf %293 : vector<5x8xf32> to vector<5x8xbf16>
    %302 = arith.truncf %300 : vector<5x8xf32> to vector<5x8xbf16>
    %cst_214 = arith.constant dense<0.000000e+00> : vector<5x5xf32>
    %303 = tpu.matmul %301, %302, %cst_214 {dimension_numbers = #tpu.dot_dimension_numbers<[1], [1], [0], [0], [0, 0, 1, 0], [], []>} : vector<5x8xbf16>, vector<5x8xbf16>, vector<5x5xf32> -> vector<5x5xf32>
    %cst_215 = arith.constant dense<0xFF800000> : vector<5xf32>
    %304 = vector.multi_reduction <maximumf>, %303, %cst_215 [1] : vector<5x5xf32> to vector<5xf32>
    %305 = vector.shape_cast %304 : vector<5xf32> to vector<5x1xf32>
    %306 = vector.broadcast %305 : vector<5x1xf32> to vector<5x5xf32>
    %307 = arith.subf %303, %306 : vector<5x5xf32>
    %308 = math.exp %307 : vector<5x5xf32>
    %cst_216 = arith.constant dense<0.000000e+00> : vector<5xf32>
    %309 = vector.multi_reduction <add>, %308, %cst_216 [1] : vector<5x5xf32> to vector<5xf32>
    %310 = vector.shape_cast %309 : vector<5xf32> to vector<5x1xf32>
    %311 = tpu.reciprocal %310 {approx = true} : vector<5x1xf32> -> vector<5x1xf32>
    %312 = vector.broadcast %311 : vector<5x1xf32> to vector<5x5xf32>
    %313 = arith.mulf %308, %312 : vector<5x5xf32>
    %c1_217 = arith.constant 1 : index
    %c0_218 = arith.constant 0 : index
    %c0_219 = arith.constant 0 : index
    %c0_220 = arith.constant 0 : index
    %314 = vector.load %arg13[%c1_217, %c0_218, %c0_219, %c0_220] : memref<2x4x32x32xbf16, #tpu.memory_space<vmem>>, vector<1x1x32x32xbf16>
    %315 = vector.shape_cast %314 : vector<1x1x32x32xbf16> to vector<32x32xbf16>
    %cst_221 = arith.constant dense<0.000000e+00> : vector<5x32xf32>
    %316 = tpu.matmul %285, %315, %cst_221 {dimension_numbers = #tpu.dot_dimension_numbers<[1], [0], [0], [1], [0, 0, 1, 1], [], []>} : vector<5x32xbf16>, vector<32x32xbf16>, vector<5x32xf32> -> vector<5x32xf32>
    %c1_222 = arith.constant 1 : index
    %c0_223 = arith.constant 0 : index
    %c0_224 = arith.constant 0 : index
    %c0_225 = arith.constant 0 : index
    %317 = vector.load %arg14[%c1_222, %c0_223, %c0_224, %c0_225] : memref<2x4x1x32xf32, #tpu.memory_space<vmem>>, vector<1x1x1x32xf32>
    %318 = vector.shape_cast %317 : vector<1x1x1x32xf32> to vector<1x32xf32>
    %319 = vector.broadcast %318 : vector<1x32xf32> to vector<5x32xf32>
    %320 = arith.addf %316, %319 : vector<5x32xf32>
    %321 = arith.truncf %313 : vector<5x5xf32> to vector<5x5xbf16>
    %322 = arith.truncf %320 : vector<5x32xf32> to vector<5x32xbf16>
    %cst_226 = arith.constant dense<0.000000e+00> : vector<5x32xf32>
    %323 = tpu.matmul %321, %322, %cst_226 {dimension_numbers = #tpu.dot_dimension_numbers<[1], [0], [0], [1], [0, 0, 1, 1], [], []>} : vector<5x5xbf16>, vector<5x32xbf16>, vector<5x32xf32> -> vector<5x32xf32>
    %324 = arith.addf %286, %323 : vector<5x32xf32>
    %c1_227 = arith.constant 1 : index
    %c1_228 = arith.constant 1 : index
    %c0_229 = arith.constant 0 : index
    %c0_230 = arith.constant 0 : index
    %325 = vector.load %arg9[%c1_227, %c1_228, %c0_229, %c0_230] : memref<2x4x32x8xbf16, #tpu.memory_space<vmem>>, vector<1x1x32x8xbf16>
    %326 = vector.shape_cast %325 : vector<1x1x32x8xbf16> to vector<32x8xbf16>
    %cst_231 = arith.constant dense<0.000000e+00> : vector<5x8xf32>
    %327 = tpu.matmul %285, %326, %cst_231 {dimension_numbers = #tpu.dot_dimension_numbers<[1], [0], [0], [1], [0, 0, 1, 1], [], []>} : vector<5x32xbf16>, vector<32x8xbf16>, vector<5x8xf32> -> vector<5x8xf32>
    %c1_232 = arith.constant 1 : index
    %c1_233 = arith.constant 1 : index
    %c0_234 = arith.constant 0 : index
    %c0_235 = arith.constant 0 : index
    %328 = vector.load %arg10[%c1_232, %c1_233, %c0_234, %c0_235] : memref<2x4x1x8xf32, #tpu.memory_space<vmem>>, vector<1x1x1x8xf32>
    %329 = vector.shape_cast %328 : vector<1x1x1x8xf32> to vector<1x8xf32>
    %330 = vector.broadcast %329 : vector<1x8xf32> to vector<5x8xf32>
    %331 = arith.addf %327, %330 : vector<5x8xf32>
    %c1_236 = arith.constant 1 : index
    %c1_237 = arith.constant 1 : index
    %c0_238 = arith.constant 0 : index
    %c0_239 = arith.constant 0 : index
    %332 = vector.load %arg11[%c1_236, %c1_237, %c0_238, %c0_239] : memref<2x4x32x8xbf16, #tpu.memory_space<vmem>>, vector<1x1x32x8xbf16>
    %333 = vector.shape_cast %332 : vector<1x1x32x8xbf16> to vector<32x8xbf16>
    %cst_240 = arith.constant dense<0.000000e+00> : vector<5x8xf32>
    %334 = tpu.matmul %285, %333, %cst_240 {dimension_numbers = #tpu.dot_dimension_numbers<[1], [0], [0], [1], [0, 0, 1, 1], [], []>} : vector<5x32xbf16>, vector<32x8xbf16>, vector<5x8xf32> -> vector<5x8xf32>
    %c1_241 = arith.constant 1 : index
    %c1_242 = arith.constant 1 : index
    %c0_243 = arith.constant 0 : index
    %c0_244 = arith.constant 0 : index
    %335 = vector.load %arg12[%c1_241, %c1_242, %c0_243, %c0_244] : memref<2x4x1x8xf32, #tpu.memory_space<vmem>>, vector<1x1x1x8xf32>
    %336 = vector.shape_cast %335 : vector<1x1x1x8xf32> to vector<1x8xf32>
    %337 = vector.broadcast %336 : vector<1x8xf32> to vector<5x8xf32>
    %338 = arith.addf %334, %337 : vector<5x8xf32>
    %339 = arith.truncf %331 : vector<5x8xf32> to vector<5x8xbf16>
    %340 = arith.truncf %338 : vector<5x8xf32> to vector<5x8xbf16>
    %cst_245 = arith.constant dense<0.000000e+00> : vector<5x5xf32>
    %341 = tpu.matmul %339, %340, %cst_245 {dimension_numbers = #tpu.dot_dimension_numbers<[1], [1], [0], [0], [0, 0, 1, 0], [], []>} : vector<5x8xbf16>, vector<5x8xbf16>, vector<5x5xf32> -> vector<5x5xf32>
    %cst_246 = arith.constant dense<0xFF800000> : vector<5xf32>
    %342 = vector.multi_reduction <maximumf>, %341, %cst_246 [1] : vector<5x5xf32> to vector<5xf32>
    %343 = vector.shape_cast %342 : vector<5xf32> to vector<5x1xf32>
    %344 = vector.broadcast %343 : vector<5x1xf32> to vector<5x5xf32>
    %345 = arith.subf %341, %344 : vector<5x5xf32>
    %346 = math.exp %345 : vector<5x5xf32>
    %cst_247 = arith.constant dense<0.000000e+00> : vector<5xf32>
    %347 = vector.multi_reduction <add>, %346, %cst_247 [1] : vector<5x5xf32> to vector<5xf32>
    %348 = vector.shape_cast %347 : vector<5xf32> to vector<5x1xf32>
    %349 = tpu.reciprocal %348 {approx = true} : vector<5x1xf32> -> vector<5x1xf32>
    %350 = vector.broadcast %349 : vector<5x1xf32> to vector<5x5xf32>
    %351 = arith.mulf %346, %350 : vector<5x5xf32>
    %c1_248 = arith.constant 1 : index
    %c1_249 = arith.constant 1 : index
    %c0_250 = arith.constant 0 : index
    %c0_251 = arith.constant 0 : index
    %352 = vector.load %arg13[%c1_248, %c1_249, %c0_250, %c0_251] : memref<2x4x32x32xbf16, #tpu.memory_space<vmem>>, vector<1x1x32x32xbf16>
    %353 = vector.shape_cast %352 : vector<1x1x32x32xbf16> to vector<32x32xbf16>
    %cst_252 = arith.constant dense<0.000000e+00> : vector<5x32xf32>
    %354 = tpu.matmul %285, %353, %cst_252 {dimension_numbers = #tpu.dot_dimension_numbers<[1], [0], [0], [1], [0, 0, 1, 1], [], []>} : vector<5x32xbf16>, vector<32x32xbf16>, vector<5x32xf32> -> vector<5x32xf32>
    %c1_253 = arith.constant 1 : index
    %c1_254 = arith.constant 1 : index
    %c0_255 = arith.constant 0 : index
    %c0_256 = arith.constant 0 : index
    %355 = vector.load %arg14[%c1_253, %c1_254, %c0_255, %c0_256] : memref<2x4x1x32xf32, #tpu.memory_space<vmem>>, vector<1x1x1x32xf32>
    %356 = vector.shape_cast %355 : vector<1x1x1x32xf32> to vector<1x32xf32>
    %357 = vector.broadcast %356 : vector<1x32xf32> to vector<5x32xf32>
    %358 = arith.addf %354, %357 : vector<5x32xf32>
    %359 = arith.truncf %351 : vector<5x5xf32> to vector<5x5xbf16>
    %360 = arith.truncf %358 : vector<5x32xf32> to vector<5x32xbf16>
    %cst_257 = arith.constant dense<0.000000e+00> : vector<5x32xf32>
    %361 = tpu.matmul %359, %360, %cst_257 {dimension_numbers = #tpu.dot_dimension_numbers<[1], [0], [0], [1], [0, 0, 1, 1], [], []>} : vector<5x5xbf16>, vector<5x32xbf16>, vector<5x32xf32> -> vector<5x32xf32>
    %362 = arith.addf %324, %361 : vector<5x32xf32>
    %c1_258 = arith.constant 1 : index
    %c2_259 = arith.constant 2 : index
    %c0_260 = arith.constant 0 : index
    %c0_261 = arith.constant 0 : index
    %363 = vector.load %arg9[%c1_258, %c2_259, %c0_260, %c0_261] : memref<2x4x32x8xbf16, #tpu.memory_space<vmem>>, vector<1x1x32x8xbf16>
    %364 = vector.shape_cast %363 : vector<1x1x32x8xbf16> to vector<32x8xbf16>
    %cst_262 = arith.constant dense<0.000000e+00> : vector<5x8xf32>
    %365 = tpu.matmul %285, %364, %cst_262 {dimension_numbers = #tpu.dot_dimension_numbers<[1], [0], [0], [1], [0, 0, 1, 1], [], []>} : vector<5x32xbf16>, vector<32x8xbf16>, vector<5x8xf32> -> vector<5x8xf32>
    %c1_263 = arith.constant 1 : index
    %c2_264 = arith.constant 2 : index
    %c0_265 = arith.constant 0 : index
    %c0_266 = arith.constant 0 : index
    %366 = vector.load %arg10[%c1_263, %c2_264, %c0_265, %c0_266] : memref<2x4x1x8xf32, #tpu.memory_space<vmem>>, vector<1x1x1x8xf32>
    %367 = vector.shape_cast %366 : vector<1x1x1x8xf32> to vector<1x8xf32>
    %368 = vector.broadcast %367 : vector<1x8xf32> to vector<5x8xf32>
    %369 = arith.addf %365, %368 : vector<5x8xf32>
    %c1_267 = arith.constant 1 : index
    %c2_268 = arith.constant 2 : index
    %c0_269 = arith.constant 0 : index
    %c0_270 = arith.constant 0 : index
    %370 = vector.load %arg11[%c1_267, %c2_268, %c0_269, %c0_270] : memref<2x4x32x8xbf16, #tpu.memory_space<vmem>>, vector<1x1x32x8xbf16>
    %371 = vector.shape_cast %370 : vector<1x1x32x8xbf16> to vector<32x8xbf16>
    %cst_271 = arith.constant dense<0.000000e+00> : vector<5x8xf32>
    %372 = tpu.matmul %285, %371, %cst_271 {dimension_numbers = #tpu.dot_dimension_numbers<[1], [0], [0], [1], [0, 0, 1, 1], [], []>} : vector<5x32xbf16>, vector<32x8xbf16>, vector<5x8xf32> -> vector<5x8xf32>
    %c1_272 = arith.constant 1 : index
    %c2_273 = arith.constant 2 : index
    %c0_274 = arith.constant 0 : index
    %c0_275 = arith.constant 0 : index
    %373 = vector.load %arg12[%c1_272, %c2_273, %c0_274, %c0_275] : memref<2x4x1x8xf32, #tpu.memory_space<vmem>>, vector<1x1x1x8xf32>
    %374 = vector.shape_cast %373 : vector<1x1x1x8xf32> to vector<1x8xf32>
    %375 = vector.broadcast %374 : vector<1x8xf32> to vector<5x8xf32>
    %376 = arith.addf %372, %375 : vector<5x8xf32>
    %377 = arith.truncf %369 : vector<5x8xf32> to vector<5x8xbf16>
    %378 = arith.truncf %376 : vector<5x8xf32> to vector<5x8xbf16>
    %cst_276 = arith.constant dense<0.000000e+00> : vector<5x5xf32>
    %379 = tpu.matmul %377, %378, %cst_276 {dimension_numbers = #tpu.dot_dimension_numbers<[1], [1], [0], [0], [0, 0, 1, 0], [], []>} : vector<5x8xbf16>, vector<5x8xbf16>, vector<5x5xf32> -> vector<5x5xf32>
    %cst_277 = arith.constant dense<0xFF800000> : vector<5xf32>
    %380 = vector.multi_reduction <maximumf>, %379, %cst_277 [1] : vector<5x5xf32> to vector<5xf32>
    %381 = vector.shape_cast %380 : vector<5xf32> to vector<5x1xf32>
    %382 = vector.broadcast %381 : vector<5x1xf32> to vector<5x5xf32>
    %383 = arith.subf %379, %382 : vector<5x5xf32>
    %384 = math.exp %383 : vector<5x5xf32>
    %cst_278 = arith.constant dense<0.000000e+00> : vector<5xf32>
    %385 = vector.multi_reduction <add>, %384, %cst_278 [1] : vector<5x5xf32> to vector<5xf32>
    %386 = vector.shape_cast %385 : vector<5xf32> to vector<5x1xf32>
    %387 = tpu.reciprocal %386 {approx = true} : vector<5x1xf32> -> vector<5x1xf32>
    %388 = vector.broadcast %387 : vector<5x1xf32> to vector<5x5xf32>
    %389 = arith.mulf %384, %388 : vector<5x5xf32>
    %c1_279 = arith.constant 1 : index
    %c2_280 = arith.constant 2 : index
    %c0_281 = arith.constant 0 : index
    %c0_282 = arith.constant 0 : index
    %390 = vector.load %arg13[%c1_279, %c2_280, %c0_281, %c0_282] : memref<2x4x32x32xbf16, #tpu.memory_space<vmem>>, vector<1x1x32x32xbf16>
    %391 = vector.shape_cast %390 : vector<1x1x32x32xbf16> to vector<32x32xbf16>
    %cst_283 = arith.constant dense<0.000000e+00> : vector<5x32xf32>
    %392 = tpu.matmul %285, %391, %cst_283 {dimension_numbers = #tpu.dot_dimension_numbers<[1], [0], [0], [1], [0, 0, 1, 1], [], []>} : vector<5x32xbf16>, vector<32x32xbf16>, vector<5x32xf32> -> vector<5x32xf32>
    %c1_284 = arith.constant 1 : index
    %c2_285 = arith.constant 2 : index
    %c0_286 = arith.constant 0 : index
    %c0_287 = arith.constant 0 : index
    %393 = vector.load %arg14[%c1_284, %c2_285, %c0_286, %c0_287] : memref<2x4x1x32xf32, #tpu.memory_space<vmem>>, vector<1x1x1x32xf32>
    %394 = vector.shape_cast %393 : vector<1x1x1x32xf32> to vector<1x32xf32>
    %395 = vector.broadcast %394 : vector<1x32xf32> to vector<5x32xf32>
    %396 = arith.addf %392, %395 : vector<5x32xf32>
    %397 = arith.truncf %389 : vector<5x5xf32> to vector<5x5xbf16>
    %398 = arith.truncf %396 : vector<5x32xf32> to vector<5x32xbf16>
    %cst_288 = arith.constant dense<0.000000e+00> : vector<5x32xf32>
    %399 = tpu.matmul %397, %398, %cst_288 {dimension_numbers = #tpu.dot_dimension_numbers<[1], [0], [0], [1], [0, 0, 1, 1], [], []>} : vector<5x5xbf16>, vector<5x32xbf16>, vector<5x32xf32> -> vector<5x32xf32>
    %400 = arith.addf %362, %399 : vector<5x32xf32>
    %c1_289 = arith.constant 1 : index
    %c3_290 = arith.constant 3 : index
    %c0_291 = arith.constant 0 : index
    %c0_292 = arith.constant 0 : index
    %401 = vector.load %arg9[%c1_289, %c3_290, %c0_291, %c0_292] : memref<2x4x32x8xbf16, #tpu.memory_space<vmem>>, vector<1x1x32x8xbf16>
    %402 = vector.shape_cast %401 : vector<1x1x32x8xbf16> to vector<32x8xbf16>
    %cst_293 = arith.constant dense<0.000000e+00> : vector<5x8xf32>
    %403 = tpu.matmul %285, %402, %cst_293 {dimension_numbers = #tpu.dot_dimension_numbers<[1], [0], [0], [1], [0, 0, 1, 1], [], []>} : vector<5x32xbf16>, vector<32x8xbf16>, vector<5x8xf32> -> vector<5x8xf32>
    %c1_294 = arith.constant 1 : index
    %c3_295 = arith.constant 3 : index
    %c0_296 = arith.constant 0 : index
    %c0_297 = arith.constant 0 : index
    %404 = vector.load %arg10[%c1_294, %c3_295, %c0_296, %c0_297] : memref<2x4x1x8xf32, #tpu.memory_space<vmem>>, vector<1x1x1x8xf32>
    %405 = vector.shape_cast %404 : vector<1x1x1x8xf32> to vector<1x8xf32>
    %406 = vector.broadcast %405 : vector<1x8xf32> to vector<5x8xf32>
    %407 = arith.addf %403, %406 : vector<5x8xf32>
    %c1_298 = arith.constant 1 : index
    %c3_299 = arith.constant 3 : index
    %c0_300 = arith.constant 0 : index
    %c0_301 = arith.constant 0 : index
    %408 = vector.load %arg11[%c1_298, %c3_299, %c0_300, %c0_301] : memref<2x4x32x8xbf16, #tpu.memory_space<vmem>>, vector<1x1x32x8xbf16>
    %409 = vector.shape_cast %408 : vector<1x1x32x8xbf16> to vector<32x8xbf16>
    %cst_302 = arith.constant dense<0.000000e+00> : vector<5x8xf32>
    %410 = tpu.matmul %285, %409, %cst_302 {dimension_numbers = #tpu.dot_dimension_numbers<[1], [0], [0], [1], [0, 0, 1, 1], [], []>} : vector<5x32xbf16>, vector<32x8xbf16>, vector<5x8xf32> -> vector<5x8xf32>
    %c1_303 = arith.constant 1 : index
    %c3_304 = arith.constant 3 : index
    %c0_305 = arith.constant 0 : index
    %c0_306 = arith.constant 0 : index
    %411 = vector.load %arg12[%c1_303, %c3_304, %c0_305, %c0_306] : memref<2x4x1x8xf32, #tpu.memory_space<vmem>>, vector<1x1x1x8xf32>
    %412 = vector.shape_cast %411 : vector<1x1x1x8xf32> to vector<1x8xf32>
    %413 = vector.broadcast %412 : vector<1x8xf32> to vector<5x8xf32>
    %414 = arith.addf %410, %413 : vector<5x8xf32>
    %415 = arith.truncf %407 : vector<5x8xf32> to vector<5x8xbf16>
    %416 = arith.truncf %414 : vector<5x8xf32> to vector<5x8xbf16>
    %cst_307 = arith.constant dense<0.000000e+00> : vector<5x5xf32>
    %417 = tpu.matmul %415, %416, %cst_307 {dimension_numbers = #tpu.dot_dimension_numbers<[1], [1], [0], [0], [0, 0, 1, 0], [], []>} : vector<5x8xbf16>, vector<5x8xbf16>, vector<5x5xf32> -> vector<5x5xf32>
    %cst_308 = arith.constant dense<0xFF800000> : vector<5xf32>
    %418 = vector.multi_reduction <maximumf>, %417, %cst_308 [1] : vector<5x5xf32> to vector<5xf32>
    %419 = vector.shape_cast %418 : vector<5xf32> to vector<5x1xf32>
    %420 = vector.broadcast %419 : vector<5x1xf32> to vector<5x5xf32>
    %421 = arith.subf %417, %420 : vector<5x5xf32>
    %422 = math.exp %421 : vector<5x5xf32>
    %cst_309 = arith.constant dense<0.000000e+00> : vector<5xf32>
    %423 = vector.multi_reduction <add>, %422, %cst_309 [1] : vector<5x5xf32> to vector<5xf32>
    %424 = vector.shape_cast %423 : vector<5xf32> to vector<5x1xf32>
    %425 = tpu.reciprocal %424 {approx = true} : vector<5x1xf32> -> vector<5x1xf32>
    %426 = vector.broadcast %425 : vector<5x1xf32> to vector<5x5xf32>
    %427 = arith.mulf %422, %426 : vector<5x5xf32>
    %c1_310 = arith.constant 1 : index
    %c3_311 = arith.constant 3 : index
    %c0_312 = arith.constant 0 : index
    %c0_313 = arith.constant 0 : index
    %428 = vector.load %arg13[%c1_310, %c3_311, %c0_312, %c0_313] : memref<2x4x32x32xbf16, #tpu.memory_space<vmem>>, vector<1x1x32x32xbf16>
    %429 = vector.shape_cast %428 : vector<1x1x32x32xbf16> to vector<32x32xbf16>
    %cst_314 = arith.constant dense<0.000000e+00> : vector<5x32xf32>
    %430 = tpu.matmul %285, %429, %cst_314 {dimension_numbers = #tpu.dot_dimension_numbers<[1], [0], [0], [1], [0, 0, 1, 1], [], []>} : vector<5x32xbf16>, vector<32x32xbf16>, vector<5x32xf32> -> vector<5x32xf32>
    %c1_315 = arith.constant 1 : index
    %c3_316 = arith.constant 3 : index
    %c0_317 = arith.constant 0 : index
    %c0_318 = arith.constant 0 : index
    %431 = vector.load %arg14[%c1_315, %c3_316, %c0_317, %c0_318] : memref<2x4x1x32xf32, #tpu.memory_space<vmem>>, vector<1x1x1x32xf32>
    %432 = vector.shape_cast %431 : vector<1x1x1x32xf32> to vector<1x32xf32>
    %433 = vector.broadcast %432 : vector<1x32xf32> to vector<5x32xf32>
    %434 = arith.addf %430, %433 : vector<5x32xf32>
    %435 = arith.truncf %427 : vector<5x5xf32> to vector<5x5xbf16>
    %436 = arith.truncf %434 : vector<5x32xf32> to vector<5x32xbf16>
    %cst_319 = arith.constant dense<0.000000e+00> : vector<5x32xf32>
    %437 = tpu.matmul %435, %436, %cst_319 {dimension_numbers = #tpu.dot_dimension_numbers<[1], [0], [0], [1], [0, 0, 1, 1], [], []>} : vector<5x5xbf16>, vector<5x32xbf16>, vector<5x32xf32> -> vector<5x32xf32>
    %438 = arith.addf %400, %437 : vector<5x32xf32>
    %439 = arith.addf %260, %438 : vector<5x32xf32>
    %c1_320 = arith.constant 1 : index
    %c0_321 = arith.constant 0 : index
    %c0_322 = arith.constant 0 : index
    %440 = vector.load %arg15[%c1_320, %c0_321, %c0_322] : memref<2x1x32xf32, #tpu.memory_space<vmem>>, vector<1x1x32xf32>
    %441 = vector.shape_cast %440 : vector<1x1x32xf32> to vector<1x32xf32>
    %442 = vector.broadcast %441 : vector<1x32xf32> to vector<5x32xf32>
    %443 = arith.addf %439, %442 : vector<5x32xf32>
    %c1_323 = arith.constant 1 : index
    %c1_324 = arith.constant 1 : index
    %c0_325 = arith.constant 0 : index
    %c0_326 = arith.constant 0 : index
    %444 = vector.load %arg7[%c1_323, %c1_324, %c0_325, %c0_326] : memref<2x2x1x32xf32, #tpu.memory_space<vmem>>, vector<1x1x1x32xf32>
    %445 = vector.shape_cast %444 : vector<1x1x1x32xf32> to vector<1x32xf32>
    %c1_327 = arith.constant 1 : index
    %c1_328 = arith.constant 1 : index
    %c0_329 = arith.constant 0 : index
    %c0_330 = arith.constant 0 : index
    %446 = vector.load %arg8[%c1_327, %c1_328, %c0_329, %c0_330] : memref<2x2x1x32xf32, #tpu.memory_space<vmem>>, vector<1x1x1x32xf32>
    %447 = vector.shape_cast %446 : vector<1x1x1x32xf32> to vector<1x32xf32>
    %cst_331 = arith.constant dense<0.000000e+00> : vector<5xf32>
    %448 = vector.multi_reduction <add>, %443, %cst_331 [1] : vector<5x32xf32> to vector<5xf32>
    %449 = vector.shape_cast %448 : vector<5xf32> to vector<5x1xf32>
    %cst_332 = arith.constant 3.200000e+01 : f32
    %450 = vector.broadcast %cst_332 : f32 to vector<5x1xf32>
    %451 = arith.divf %449, %450 : vector<5x1xf32>
    %452 = vector.broadcast %451 : vector<5x1xf32> to vector<5x32xf32>
    %453 = arith.subf %443, %452 : vector<5x32xf32>
    %454 = arith.mulf %453, %453 : vector<5x32xf32>
    %cst_333 = arith.constant dense<0.000000e+00> : vector<5xf32>
    %455 = vector.multi_reduction <add>, %454, %cst_333 [1] : vector<5x32xf32> to vector<5xf32>
    %456 = vector.shape_cast %455 : vector<5xf32> to vector<5x1xf32>
    %cst_334 = arith.constant 3.200000e+01 : f32
    %457 = vector.broadcast %cst_334 : f32 to vector<5x1xf32>
    %458 = arith.divf %456, %457 : vector<5x1xf32>
    %cst_335 = arith.constant 9.99999974E-6 : f32
    %459 = vector.broadcast %cst_335 : f32 to vector<5x1xf32>
    %460 = arith.addf %458, %459 : vector<5x1xf32>
    %461 = math.rsqrt %460 : vector<5x1xf32>
    %462 = vector.broadcast %461 : vector<5x1xf32> to vector<5x32xf32>
    %463 = arith.mulf %453, %462 : vector<5x32xf32>
    %464 = vector.broadcast %445 : vector<1x32xf32> to vector<5x32xf32>
    %465 = arith.mulf %463, %464 : vector<5x32xf32>
    %466 = vector.broadcast %447 : vector<1x32xf32> to vector<5x32xf32>
    %467 = arith.addf %465, %466 : vector<5x32xf32>
    %468 = arith.truncf %467 : vector<5x32xf32> to vector<5x32xbf16>
    %c1_336 = arith.constant 1 : index
    %c0_337 = arith.constant 0 : index
    %c0_338 = arith.constant 0 : index
    %469 = vector.load %arg16[%c1_336, %c0_337, %c0_338] : memref<2x32x64xbf16, #tpu.memory_space<vmem>>, vector<1x32x64xbf16>
    %470 = vector.shape_cast %469 : vector<1x32x64xbf16> to vector<32x64xbf16>
    %cst_339 = arith.constant dense<0.000000e+00> : vector<5x64xf32>
    %471 = tpu.matmul %468, %470, %cst_339 {dimension_numbers = #tpu.dot_dimension_numbers<[1], [0], [0], [1], [0, 0, 1, 1], [], []>} : vector<5x32xbf16>, vector<32x64xbf16>, vector<5x64xf32> -> vector<5x64xf32>
    %c1_340 = arith.constant 1 : index
    %c0_341 = arith.constant 0 : index
    %c0_342 = arith.constant 0 : index
    %472 = vector.load %arg17[%c1_340, %c0_341, %c0_342] : memref<2x1x64xf32, #tpu.memory_space<vmem>>, vector<1x1x64xf32>
    %473 = vector.shape_cast %472 : vector<1x1x64xf32> to vector<1x64xf32>
    %474 = vector.broadcast %473 : vector<1x64xf32> to vector<5x64xf32>
    %475 = arith.addf %471, %474 : vector<5x64xf32>
    %cst_343 = arith.constant 1.702000e+00 : f32
    %476 = vector.broadcast %cst_343 : f32 to vector<5x64xf32>
    %477 = arith.mulf %476, %475 : vector<5x64xf32>
    %478 = arith.negf %477 : vector<5x64xf32>
    %479 = math.exp %478 : vector<5x64xf32>
    %cst_344 = arith.constant 1.000000e+00 : f32
    %480 = vector.broadcast %cst_344 : f32 to vector<5x64xf32>
    %481 = arith.addf %480, %479 : vector<5x64xf32>
    %482 = arith.divf %480, %481 : vector<5x64xf32>
    %483 = arith.mulf %475, %482 : vector<5x64xf32>
    %484 = arith.truncf %483 : vector<5x64xf32> to vector<5x64xbf16>
    %c1_345 = arith.constant 1 : index
    %c0_346 = arith.constant 0 : index
    %c0_347 = arith.constant 0 : index
    %485 = vector.load %arg18[%c1_345, %c0_346, %c0_347] : memref<2x64x32xbf16, #tpu.memory_space<vmem>>, vector<1x64x32xbf16>
    %486 = vector.shape_cast %485 : vector<1x64x32xbf16> to vector<64x32xbf16>
    %cst_348 = arith.constant dense<0.000000e+00> : vector<5x32xf32>
    %487 = tpu.matmul %484, %486, %cst_348 {dimension_numbers = #tpu.dot_dimension_numbers<[1], [0], [0], [1], [0, 0, 1, 1], [], []>} : vector<5x64xbf16>, vector<64x32xbf16>, vector<5x32xf32> -> vector<5x32xf32>
    %c1_349 = arith.constant 1 : index
    %c0_350 = arith.constant 0 : index
    %c0_351 = arith.constant 0 : index
    %488 = vector.load %arg19[%c1_349, %c0_350, %c0_351] : memref<2x1x32xf32, #tpu.memory_space<vmem>>, vector<1x1x32xf32>
    %489 = vector.shape_cast %488 : vector<1x1x32xf32> to vector<1x32xf32>
    %490 = vector.broadcast %489 : vector<1x32xf32> to vector<5x32xf32>
    %491 = arith.addf %487, %490 : vector<5x32xf32>
    %492 = arith.addf %443, %491 : vector<5x32xf32>
    %493 = vector.extract_strided_slice %492 {offsets = [0, 0], sizes = [1, 32], strides = [1, 1]} : vector<5x32xf32> to vector<1x32xf32>
    %494 = arith.truncf %493 : vector<1x32xf32> to vector<1x32xbf16>
    %c0_352 = arith.constant 0 : index
    %c0_353 = arith.constant 0 : index
    %495 = vector.load %arg6[%c0_352, %c0_353] : memref<32x16xbf16, #tpu.memory_space<vmem>>, vector<32x16xbf16>
    %cst_354 = arith.constant dense<0.000000e+00> : vector<1x16xf32>
    %496 = tpu.matmul %494, %495, %cst_354 {dimension_numbers = #tpu.dot_dimension_numbers<[1], [0], [0], [1], [0, 0, 1, 1], [], []>} : vector<1x32xbf16>, vector<32x16xbf16>, vector<1x16xf32> -> vector<1x16xf32>
    %c0_355 = arith.constant 0 : index
    %c0_356 = arith.constant 0 : index
    %c0_357 = arith.constant 0 : index
    %497 = vector.load %arg20[%c0_355, %c0_356, %c0_357] : memref<1x8x32xf32, #tpu.memory_space<vmem>>, vector<1x8x32xf32>
    %498 = vector.shape_cast %497 : vector<1x8x32xf32> to vector<8x32xf32>
    %c0_358 = arith.constant 0 : index
    %c0_359 = arith.constant 0 : index
    %c0_360 = arith.constant 0 : index
    %499 = vector.load %arg21[%c0_358, %c0_359, %c0_360] : memref<1x8x8xf32, #tpu.memory_space<vmem>>, vector<1x8x8xf32>
    %500 = vector.shape_cast %499 : vector<1x8x8xf32> to vector<8x8xf32>
    %c0_361 = arith.constant 0 : index
    %c0_362 = arith.constant 0 : index
    %c0_363 = arith.constant 0 : index
    %c0_364 = arith.constant 0 : index
    %501 = vector.load %arg26[%c0_361, %c0_362, %c0_363, %c0_364] : memref<2x2x1x32xf32, #tpu.memory_space<vmem>>, vector<1x1x1x32xf32>
    %502 = vector.shape_cast %501 : vector<1x1x1x32xf32> to vector<1x32xf32>
    %c0_365 = arith.constant 0 : index
    %c0_366 = arith.constant 0 : index
    %c0_367 = arith.constant 0 : index
    %c0_368 = arith.constant 0 : index
    %503 = vector.load %arg27[%c0_365, %c0_366, %c0_367, %c0_368] : memref<2x2x1x32xf32, #tpu.memory_space<vmem>>, vector<1x1x1x32xf32>
    %504 = vector.shape_cast %503 : vector<1x1x1x32xf32> to vector<1x32xf32>
    %cst_369 = arith.constant dense<0.000000e+00> : vector<8xf32>
    %505 = vector.multi_reduction <add>, %498, %cst_369 [1] : vector<8x32xf32> to vector<8xf32>
    %506 = vector.shape_cast %505 : vector<8xf32> to vector<8x1xf32>
    %cst_370 = arith.constant 3.200000e+01 : f32
    %507 = vector.broadcast %cst_370 : f32 to vector<8x1xf32>
    %508 = arith.divf %506, %507 : vector<8x1xf32>
    %509 = vector.broadcast %508 : vector<8x1xf32> to vector<8x32xf32>
    %510 = arith.subf %498, %509 : vector<8x32xf32>
    %511 = arith.mulf %510, %510 : vector<8x32xf32>
    %cst_371 = arith.constant dense<0.000000e+00> : vector<8xf32>
    %512 = vector.multi_reduction <add>, %511, %cst_371 [1] : vector<8x32xf32> to vector<8xf32>
    %513 = vector.shape_cast %512 : vector<8xf32> to vector<8x1xf32>
    %cst_372 = arith.constant 3.200000e+01 : f32
    %514 = vector.broadcast %cst_372 : f32 to vector<8x1xf32>
    %515 = arith.divf %513, %514 : vector<8x1xf32>
    %cst_373 = arith.constant 9.99999974E-6 : f32
    %516 = vector.broadcast %cst_373 : f32 to vector<8x1xf32>
    %517 = arith.addf %515, %516 : vector<8x1xf32>
    %518 = math.rsqrt %517 : vector<8x1xf32>
    %519 = vector.broadcast %518 : vector<8x1xf32> to vector<8x32xf32>
    %520 = arith.mulf %510, %519 : vector<8x32xf32>
    %521 = vector.broadcast %502 : vector<1x32xf32> to vector<8x32xf32>
    %522 = arith.mulf %520, %521 : vector<8x32xf32>
    %523 = vector.broadcast %504 : vector<1x32xf32> to vector<8x32xf32>
    %524 = arith.addf %522, %523 : vector<8x32xf32>
    %525 = arith.truncf %524 : vector<8x32xf32> to vector<8x32xbf16>
    %cst_374 = arith.constant 0.000000e+00 : f32
    %526 = vector.broadcast %cst_374 : f32 to vector<8x32xf32>
    %c0_375 = arith.constant 0 : index
    %c0_376 = arith.constant 0 : index
    %c0_377 = arith.constant 0 : index
    %c0_378 = arith.constant 0 : index
    %527 = vector.load %arg28[%c0_375, %c0_376, %c0_377, %c0_378] : memref<2x4x32x8xbf16, #tpu.memory_space<vmem>>, vector<1x1x32x8xbf16>
    %528 = vector.shape_cast %527 : vector<1x1x32x8xbf16> to vector<32x8xbf16>
    %cst_379 = arith.constant dense<0.000000e+00> : vector<8x8xf32>
    %529 = tpu.matmul %525, %528, %cst_379 {dimension_numbers = #tpu.dot_dimension_numbers<[1], [0], [0], [1], [0, 0, 1, 1], [], []>} : vector<8x32xbf16>, vector<32x8xbf16>, vector<8x8xf32> -> vector<8x8xf32>
    %c0_380 = arith.constant 0 : index
    %c0_381 = arith.constant 0 : index
    %c0_382 = arith.constant 0 : index
    %c0_383 = arith.constant 0 : index
    %530 = vector.load %arg29[%c0_380, %c0_381, %c0_382, %c0_383] : memref<2x4x1x8xf32, #tpu.memory_space<vmem>>, vector<1x1x1x8xf32>
    %531 = vector.shape_cast %530 : vector<1x1x1x8xf32> to vector<1x8xf32>
    %532 = vector.broadcast %531 : vector<1x8xf32> to vector<8x8xf32>
    %533 = arith.addf %529, %532 : vector<8x8xf32>
    %c0_384 = arith.constant 0 : index
    %c0_385 = arith.constant 0 : index
    %c0_386 = arith.constant 0 : index
    %c0_387 = arith.constant 0 : index
    %534 = vector.load %arg30[%c0_384, %c0_385, %c0_386, %c0_387] : memref<2x4x32x8xbf16, #tpu.memory_space<vmem>>, vector<1x1x32x8xbf16>
    %535 = vector.shape_cast %534 : vector<1x1x32x8xbf16> to vector<32x8xbf16>
    %cst_388 = arith.constant dense<0.000000e+00> : vector<8x8xf32>
    %536 = tpu.matmul %525, %535, %cst_388 {dimension_numbers = #tpu.dot_dimension_numbers<[1], [0], [0], [1], [0, 0, 1, 1], [], []>} : vector<8x32xbf16>, vector<32x8xbf16>, vector<8x8xf32> -> vector<8x8xf32>
    %c0_389 = arith.constant 0 : index
    %c0_390 = arith.constant 0 : index
    %c0_391 = arith.constant 0 : index
    %c0_392 = arith.constant 0 : index
    %537 = vector.load %arg31[%c0_389, %c0_390, %c0_391, %c0_392] : memref<2x4x1x8xf32, #tpu.memory_space<vmem>>, vector<1x1x1x8xf32>
    %538 = vector.shape_cast %537 : vector<1x1x1x8xf32> to vector<1x8xf32>
    %539 = vector.broadcast %538 : vector<1x8xf32> to vector<8x8xf32>
    %540 = arith.addf %536, %539 : vector<8x8xf32>
    %541 = arith.truncf %533 : vector<8x8xf32> to vector<8x8xbf16>
    %542 = arith.truncf %540 : vector<8x8xf32> to vector<8x8xbf16>
    %cst_393 = arith.constant dense<0.000000e+00> : vector<8x8xf32>
    %543 = tpu.matmul %541, %542, %cst_393 {dimension_numbers = #tpu.dot_dimension_numbers<[1], [1], [0], [0], [0, 0, 1, 0], [], []>} : vector<8x8xbf16>, vector<8x8xbf16>, vector<8x8xf32> -> vector<8x8xf32>
    %544 = arith.addf %543, %500 : vector<8x8xf32>
    %cst_394 = arith.constant dense<0xFF800000> : vector<8xf32>
    %545 = vector.multi_reduction <maximumf>, %544, %cst_394 [1] : vector<8x8xf32> to vector<8xf32>
    %546 = vector.shape_cast %545 : vector<8xf32> to vector<8x1xf32>
    %547 = vector.broadcast %546 : vector<8x1xf32> to vector<8x8xf32>
    %548 = arith.subf %544, %547 : vector<8x8xf32>
    %549 = math.exp %548 : vector<8x8xf32>
    %cst_395 = arith.constant dense<0.000000e+00> : vector<8xf32>
    %550 = vector.multi_reduction <add>, %549, %cst_395 [1] : vector<8x8xf32> to vector<8xf32>
    %551 = vector.shape_cast %550 : vector<8xf32> to vector<8x1xf32>
    %552 = tpu.reciprocal %551 {approx = true} : vector<8x1xf32> -> vector<8x1xf32>
    %553 = vector.broadcast %552 : vector<8x1xf32> to vector<8x8xf32>
    %554 = arith.mulf %549, %553 : vector<8x8xf32>
    %c0_396 = arith.constant 0 : index
    %c0_397 = arith.constant 0 : index
    %c0_398 = arith.constant 0 : index
    %c0_399 = arith.constant 0 : index
    %555 = vector.load %arg32[%c0_396, %c0_397, %c0_398, %c0_399] : memref<2x4x32x32xbf16, #tpu.memory_space<vmem>>, vector<1x1x32x32xbf16>
    %556 = vector.shape_cast %555 : vector<1x1x32x32xbf16> to vector<32x32xbf16>
    %cst_400 = arith.constant dense<0.000000e+00> : vector<8x32xf32>
    %557 = tpu.matmul %525, %556, %cst_400 {dimension_numbers = #tpu.dot_dimension_numbers<[1], [0], [0], [1], [0, 0, 1, 1], [], []>} : vector<8x32xbf16>, vector<32x32xbf16>, vector<8x32xf32> -> vector<8x32xf32>
    %c0_401 = arith.constant 0 : index
    %c0_402 = arith.constant 0 : index
    %c0_403 = arith.constant 0 : index
    %c0_404 = arith.constant 0 : index
    %558 = vector.load %arg33[%c0_401, %c0_402, %c0_403, %c0_404] : memref<2x4x1x32xf32, #tpu.memory_space<vmem>>, vector<1x1x1x32xf32>
    %559 = vector.shape_cast %558 : vector<1x1x1x32xf32> to vector<1x32xf32>
    %560 = vector.broadcast %559 : vector<1x32xf32> to vector<8x32xf32>
    %561 = arith.addf %557, %560 : vector<8x32xf32>
    %562 = arith.truncf %554 : vector<8x8xf32> to vector<8x8xbf16>
    %563 = arith.truncf %561 : vector<8x32xf32> to vector<8x32xbf16>
    %cst_405 = arith.constant dense<0.000000e+00> : vector<8x32xf32>
    %564 = tpu.matmul %562, %563, %cst_405 {dimension_numbers = #tpu.dot_dimension_numbers<[1], [0], [0], [1], [0, 0, 1, 1], [], []>} : vector<8x8xbf16>, vector<8x32xbf16>, vector<8x32xf32> -> vector<8x32xf32>
    %565 = arith.addf %526, %564 : vector<8x32xf32>
    %c0_406 = arith.constant 0 : index
    %c1_407 = arith.constant 1 : index
    %c0_408 = arith.constant 0 : index
    %c0_409 = arith.constant 0 : index
    %566 = vector.load %arg28[%c0_406, %c1_407, %c0_408, %c0_409] : memref<2x4x32x8xbf16, #tpu.memory_space<vmem>>, vector<1x1x32x8xbf16>
    %567 = vector.shape_cast %566 : vector<1x1x32x8xbf16> to vector<32x8xbf16>
    %cst_410 = arith.constant dense<0.000000e+00> : vector<8x8xf32>
    %568 = tpu.matmul %525, %567, %cst_410 {dimension_numbers = #tpu.dot_dimension_numbers<[1], [0], [0], [1], [0, 0, 1, 1], [], []>} : vector<8x32xbf16>, vector<32x8xbf16>, vector<8x8xf32> -> vector<8x8xf32>
    %c0_411 = arith.constant 0 : index
    %c1_412 = arith.constant 1 : index
    %c0_413 = arith.constant 0 : index
    %c0_414 = arith.constant 0 : index
    %569 = vector.load %arg29[%c0_411, %c1_412, %c0_413, %c0_414] : memref<2x4x1x8xf32, #tpu.memory_space<vmem>>, vector<1x1x1x8xf32>
    %570 = vector.shape_cast %569 : vector<1x1x1x8xf32> to vector<1x8xf32>
    %571 = vector.broadcast %570 : vector<1x8xf32> to vector<8x8xf32>
    %572 = arith.addf %568, %571 : vector<8x8xf32>
    %c0_415 = arith.constant 0 : index
    %c1_416 = arith.constant 1 : index
    %c0_417 = arith.constant 0 : index
    %c0_418 = arith.constant 0 : index
    %573 = vector.load %arg30[%c0_415, %c1_416, %c0_417, %c0_418] : memref<2x4x32x8xbf16, #tpu.memory_space<vmem>>, vector<1x1x32x8xbf16>
    %574 = vector.shape_cast %573 : vector<1x1x32x8xbf16> to vector<32x8xbf16>
    %cst_419 = arith.constant dense<0.000000e+00> : vector<8x8xf32>
    %575 = tpu.matmul %525, %574, %cst_419 {dimension_numbers = #tpu.dot_dimension_numbers<[1], [0], [0], [1], [0, 0, 1, 1], [], []>} : vector<8x32xbf16>, vector<32x8xbf16>, vector<8x8xf32> -> vector<8x8xf32>
    %c0_420 = arith.constant 0 : index
    %c1_421 = arith.constant 1 : index
    %c0_422 = arith.constant 0 : index
    %c0_423 = arith.constant 0 : index
    %576 = vector.load %arg31[%c0_420, %c1_421, %c0_422, %c0_423] : memref<2x4x1x8xf32, #tpu.memory_space<vmem>>, vector<1x1x1x8xf32>
    %577 = vector.shape_cast %576 : vector<1x1x1x8xf32> to vector<1x8xf32>
    %578 = vector.broadcast %577 : vector<1x8xf32> to vector<8x8xf32>
    %579 = arith.addf %575, %578 : vector<8x8xf32>
    %580 = arith.truncf %572 : vector<8x8xf32> to vector<8x8xbf16>
    %581 = arith.truncf %579 : vector<8x8xf32> to vector<8x8xbf16>
    %cst_424 = arith.constant dense<0.000000e+00> : vector<8x8xf32>
    %582 = tpu.matmul %580, %581, %cst_424 {dimension_numbers = #tpu.dot_dimension_numbers<[1], [1], [0], [0], [0, 0, 1, 0], [], []>} : vector<8x8xbf16>, vector<8x8xbf16>, vector<8x8xf32> -> vector<8x8xf32>
    %583 = arith.addf %582, %500 : vector<8x8xf32>
    %cst_425 = arith.constant dense<0xFF800000> : vector<8xf32>
    %584 = vector.multi_reduction <maximumf>, %583, %cst_425 [1] : vector<8x8xf32> to vector<8xf32>
    %585 = vector.shape_cast %584 : vector<8xf32> to vector<8x1xf32>
    %586 = vector.broadcast %585 : vector<8x1xf32> to vector<8x8xf32>
    %587 = arith.subf %583, %586 : vector<8x8xf32>
    %588 = math.exp %587 : vector<8x8xf32>
    %cst_426 = arith.constant dense<0.000000e+00> : vector<8xf32>
    %589 = vector.multi_reduction <add>, %588, %cst_426 [1] : vector<8x8xf32> to vector<8xf32>
    %590 = vector.shape_cast %589 : vector<8xf32> to vector<8x1xf32>
    %591 = tpu.reciprocal %590 {approx = true} : vector<8x1xf32> -> vector<8x1xf32>
    %592 = vector.broadcast %591 : vector<8x1xf32> to vector<8x8xf32>
    %593 = arith.mulf %588, %592 : vector<8x8xf32>
    %c0_427 = arith.constant 0 : index
    %c1_428 = arith.constant 1 : index
    %c0_429 = arith.constant 0 : index
    %c0_430 = arith.constant 0 : index
    %594 = vector.load %arg32[%c0_427, %c1_428, %c0_429, %c0_430] : memref<2x4x32x32xbf16, #tpu.memory_space<vmem>>, vector<1x1x32x32xbf16>
    %595 = vector.shape_cast %594 : vector<1x1x32x32xbf16> to vector<32x32xbf16>
    %cst_431 = arith.constant dense<0.000000e+00> : vector<8x32xf32>
    %596 = tpu.matmul %525, %595, %cst_431 {dimension_numbers = #tpu.dot_dimension_numbers<[1], [0], [0], [1], [0, 0, 1, 1], [], []>} : vector<8x32xbf16>, vector<32x32xbf16>, vector<8x32xf32> -> vector<8x32xf32>
    %c0_432 = arith.constant 0 : index
    %c1_433 = arith.constant 1 : index
    %c0_434 = arith.constant 0 : index
    %c0_435 = arith.constant 0 : index
    %597 = vector.load %arg33[%c0_432, %c1_433, %c0_434, %c0_435] : memref<2x4x1x32xf32, #tpu.memory_space<vmem>>, vector<1x1x1x32xf32>
    %598 = vector.shape_cast %597 : vector<1x1x1x32xf32> to vector<1x32xf32>
    %599 = vector.broadcast %598 : vector<1x32xf32> to vector<8x32xf32>
    %600 = arith.addf %596, %599 : vector<8x32xf32>
    %601 = arith.truncf %593 : vector<8x8xf32> to vector<8x8xbf16>
    %602 = arith.truncf %600 : vector<8x32xf32> to vector<8x32xbf16>
    %cst_436 = arith.constant dense<0.000000e+00> : vector<8x32xf32>
    %603 = tpu.matmul %601, %602, %cst_436 {dimension_numbers = #tpu.dot_dimension_numbers<[1], [0], [0], [1], [0, 0, 1, 1], [], []>} : vector<8x8xbf16>, vector<8x32xbf16>, vector<8x32xf32> -> vector<8x32xf32>
    %604 = arith.addf %565, %603 : vector<8x32xf32>
    %c0_437 = arith.constant 0 : index
    %c2_438 = arith.constant 2 : index
    %c0_439 = arith.constant 0 : index
    %c0_440 = arith.constant 0 : index
    %605 = vector.load %arg28[%c0_437, %c2_438, %c0_439, %c0_440] : memref<2x4x32x8xbf16, #tpu.memory_space<vmem>>, vector<1x1x32x8xbf16>
    %606 = vector.shape_cast %605 : vector<1x1x32x8xbf16> to vector<32x8xbf16>
    %cst_441 = arith.constant dense<0.000000e+00> : vector<8x8xf32>
    %607 = tpu.matmul %525, %606, %cst_441 {dimension_numbers = #tpu.dot_dimension_numbers<[1], [0], [0], [1], [0, 0, 1, 1], [], []>} : vector<8x32xbf16>, vector<32x8xbf16>, vector<8x8xf32> -> vector<8x8xf32>
    %c0_442 = arith.constant 0 : index
    %c2_443 = arith.constant 2 : index
    %c0_444 = arith.constant 0 : index
    %c0_445 = arith.constant 0 : index
    %608 = vector.load %arg29[%c0_442, %c2_443, %c0_444, %c0_445] : memref<2x4x1x8xf32, #tpu.memory_space<vmem>>, vector<1x1x1x8xf32>
    %609 = vector.shape_cast %608 : vector<1x1x1x8xf32> to vector<1x8xf32>
    %610 = vector.broadcast %609 : vector<1x8xf32> to vector<8x8xf32>
    %611 = arith.addf %607, %610 : vector<8x8xf32>
    %c0_446 = arith.constant 0 : index
    %c2_447 = arith.constant 2 : index
    %c0_448 = arith.constant 0 : index
    %c0_449 = arith.constant 0 : index
    %612 = vector.load %arg30[%c0_446, %c2_447, %c0_448, %c0_449] : memref<2x4x32x8xbf16, #tpu.memory_space<vmem>>, vector<1x1x32x8xbf16>
    %613 = vector.shape_cast %612 : vector<1x1x32x8xbf16> to vector<32x8xbf16>
    %cst_450 = arith.constant dense<0.000000e+00> : vector<8x8xf32>
    %614 = tpu.matmul %525, %613, %cst_450 {dimension_numbers = #tpu.dot_dimension_numbers<[1], [0], [0], [1], [0, 0, 1, 1], [], []>} : vector<8x32xbf16>, vector<32x8xbf16>, vector<8x8xf32> -> vector<8x8xf32>
    %c0_451 = arith.constant 0 : index
    %c2_452 = arith.constant 2 : index
    %c0_453 = arith.constant 0 : index
    %c0_454 = arith.constant 0 : index
    %615 = vector.load %arg31[%c0_451, %c2_452, %c0_453, %c0_454] : memref<2x4x1x8xf32, #tpu.memory_space<vmem>>, vector<1x1x1x8xf32>
    %616 = vector.shape_cast %615 : vector<1x1x1x8xf32> to vector<1x8xf32>
    %617 = vector.broadcast %616 : vector<1x8xf32> to vector<8x8xf32>
    %618 = arith.addf %614, %617 : vector<8x8xf32>
    %619 = arith.truncf %611 : vector<8x8xf32> to vector<8x8xbf16>
    %620 = arith.truncf %618 : vector<8x8xf32> to vector<8x8xbf16>
    %cst_455 = arith.constant dense<0.000000e+00> : vector<8x8xf32>
    %621 = tpu.matmul %619, %620, %cst_455 {dimension_numbers = #tpu.dot_dimension_numbers<[1], [1], [0], [0], [0, 0, 1, 0], [], []>} : vector<8x8xbf16>, vector<8x8xbf16>, vector<8x8xf32> -> vector<8x8xf32>
    %622 = arith.addf %621, %500 : vector<8x8xf32>
    %cst_456 = arith.constant dense<0xFF800000> : vector<8xf32>
    %623 = vector.multi_reduction <maximumf>, %622, %cst_456 [1] : vector<8x8xf32> to vector<8xf32>
    %624 = vector.shape_cast %623 : vector<8xf32> to vector<8x1xf32>
    %625 = vector.broadcast %624 : vector<8x1xf32> to vector<8x8xf32>
    %626 = arith.subf %622, %625 : vector<8x8xf32>
    %627 = math.exp %626 : vector<8x8xf32>
    %cst_457 = arith.constant dense<0.000000e+00> : vector<8xf32>
    %628 = vector.multi_reduction <add>, %627, %cst_457 [1] : vector<8x8xf32> to vector<8xf32>
    %629 = vector.shape_cast %628 : vector<8xf32> to vector<8x1xf32>
    %630 = tpu.reciprocal %629 {approx = true} : vector<8x1xf32> -> vector<8x1xf32>
    %631 = vector.broadcast %630 : vector<8x1xf32> to vector<8x8xf32>
    %632 = arith.mulf %627, %631 : vector<8x8xf32>
    %c0_458 = arith.constant 0 : index
    %c2_459 = arith.constant 2 : index
    %c0_460 = arith.constant 0 : index
    %c0_461 = arith.constant 0 : index
    %633 = vector.load %arg32[%c0_458, %c2_459, %c0_460, %c0_461] : memref<2x4x32x32xbf16, #tpu.memory_space<vmem>>, vector<1x1x32x32xbf16>
    %634 = vector.shape_cast %633 : vector<1x1x32x32xbf16> to vector<32x32xbf16>
    %cst_462 = arith.constant dense<0.000000e+00> : vector<8x32xf32>
    %635 = tpu.matmul %525, %634, %cst_462 {dimension_numbers = #tpu.dot_dimension_numbers<[1], [0], [0], [1], [0, 0, 1, 1], [], []>} : vector<8x32xbf16>, vector<32x32xbf16>, vector<8x32xf32> -> vector<8x32xf32>
    %c0_463 = arith.constant 0 : index
    %c2_464 = arith.constant 2 : index
    %c0_465 = arith.constant 0 : index
    %c0_466 = arith.constant 0 : index
    %636 = vector.load %arg33[%c0_463, %c2_464, %c0_465, %c0_466] : memref<2x4x1x32xf32, #tpu.memory_space<vmem>>, vector<1x1x1x32xf32>
    %637 = vector.shape_cast %636 : vector<1x1x1x32xf32> to vector<1x32xf32>
    %638 = vector.broadcast %637 : vector<1x32xf32> to vector<8x32xf32>
    %639 = arith.addf %635, %638 : vector<8x32xf32>
    %640 = arith.truncf %632 : vector<8x8xf32> to vector<8x8xbf16>
    %641 = arith.truncf %639 : vector<8x32xf32> to vector<8x32xbf16>
    %cst_467 = arith.constant dense<0.000000e+00> : vector<8x32xf32>
    %642 = tpu.matmul %640, %641, %cst_467 {dimension_numbers = #tpu.dot_dimension_numbers<[1], [0], [0], [1], [0, 0, 1, 1], [], []>} : vector<8x8xbf16>, vector<8x32xbf16>, vector<8x32xf32> -> vector<8x32xf32>
    %643 = arith.addf %604, %642 : vector<8x32xf32>
    %c0_468 = arith.constant 0 : index
    %c3_469 = arith.constant 3 : index
    %c0_470 = arith.constant 0 : index
    %c0_471 = arith.constant 0 : index
    %644 = vector.load %arg28[%c0_468, %c3_469, %c0_470, %c0_471] : memref<2x4x32x8xbf16, #tpu.memory_space<vmem>>, vector<1x1x32x8xbf16>
    %645 = vector.shape_cast %644 : vector<1x1x32x8xbf16> to vector<32x8xbf16>
    %cst_472 = arith.constant dense<0.000000e+00> : vector<8x8xf32>
    %646 = tpu.matmul %525, %645, %cst_472 {dimension_numbers = #tpu.dot_dimension_numbers<[1], [0], [0], [1], [0, 0, 1, 1], [], []>} : vector<8x32xbf16>, vector<32x8xbf16>, vector<8x8xf32> -> vector<8x8xf32>
    %c0_473 = arith.constant 0 : index
    %c3_474 = arith.constant 3 : index
    %c0_475 = arith.constant 0 : index
    %c0_476 = arith.constant 0 : index
    %647 = vector.load %arg29[%c0_473, %c3_474, %c0_475, %c0_476] : memref<2x4x1x8xf32, #tpu.memory_space<vmem>>, vector<1x1x1x8xf32>
    %648 = vector.shape_cast %647 : vector<1x1x1x8xf32> to vector<1x8xf32>
    %649 = vector.broadcast %648 : vector<1x8xf32> to vector<8x8xf32>
    %650 = arith.addf %646, %649 : vector<8x8xf32>
    %c0_477 = arith.constant 0 : index
    %c3_478 = arith.constant 3 : index
    %c0_479 = arith.constant 0 : index
    %c0_480 = arith.constant 0 : index
    %651 = vector.load %arg30[%c0_477, %c3_478, %c0_479, %c0_480] : memref<2x4x32x8xbf16, #tpu.memory_space<vmem>>, vector<1x1x32x8xbf16>
    %652 = vector.shape_cast %651 : vector<1x1x32x8xbf16> to vector<32x8xbf16>
    %cst_481 = arith.constant dense<0.000000e+00> : vector<8x8xf32>
    %653 = tpu.matmul %525, %652, %cst_481 {dimension_numbers = #tpu.dot_dimension_numbers<[1], [0], [0], [1], [0, 0, 1, 1], [], []>} : vector<8x32xbf16>, vector<32x8xbf16>, vector<8x8xf32> -> vector<8x8xf32>
    %c0_482 = arith.constant 0 : index
    %c3_483 = arith.constant 3 : index
    %c0_484 = arith.constant 0 : index
    %c0_485 = arith.constant 0 : index
    %654 = vector.load %arg31[%c0_482, %c3_483, %c0_484, %c0_485] : memref<2x4x1x8xf32, #tpu.memory_space<vmem>>, vector<1x1x1x8xf32>
    %655 = vector.shape_cast %654 : vector<1x1x1x8xf32> to vector<1x8xf32>
    %656 = vector.broadcast %655 : vector<1x8xf32> to vector<8x8xf32>
    %657 = arith.addf %653, %656 : vector<8x8xf32>
    %658 = arith.truncf %650 : vector<8x8xf32> to vector<8x8xbf16>
    %659 = arith.truncf %657 : vector<8x8xf32> to vector<8x8xbf16>
    %cst_486 = arith.constant dense<0.000000e+00> : vector<8x8xf32>
    %660 = tpu.matmul %658, %659, %cst_486 {dimension_numbers = #tpu.dot_dimension_numbers<[1], [1], [0], [0], [0, 0, 1, 0], [], []>} : vector<8x8xbf16>, vector<8x8xbf16>, vector<8x8xf32> -> vector<8x8xf32>
    %661 = arith.addf %660, %500 : vector<8x8xf32>
    %cst_487 = arith.constant dense<0xFF800000> : vector<8xf32>
    %662 = vector.multi_reduction <maximumf>, %661, %cst_487 [1] : vector<8x8xf32> to vector<8xf32>
    %663 = vector.shape_cast %662 : vector<8xf32> to vector<8x1xf32>
    %664 = vector.broadcast %663 : vector<8x1xf32> to vector<8x8xf32>
    %665 = arith.subf %661, %664 : vector<8x8xf32>
    %666 = math.exp %665 : vector<8x8xf32>
    %cst_488 = arith.constant dense<0.000000e+00> : vector<8xf32>
    %667 = vector.multi_reduction <add>, %666, %cst_488 [1] : vector<8x8xf32> to vector<8xf32>
    %668 = vector.shape_cast %667 : vector<8xf32> to vector<8x1xf32>
    %669 = tpu.reciprocal %668 {approx = true} : vector<8x1xf32> -> vector<8x1xf32>
    %670 = vector.broadcast %669 : vector<8x1xf32> to vector<8x8xf32>
    %671 = arith.mulf %666, %670 : vector<8x8xf32>
    %c0_489 = arith.constant 0 : index
    %c3_490 = arith.constant 3 : index
    %c0_491 = arith.constant 0 : index
    %c0_492 = arith.constant 0 : index
    %672 = vector.load %arg32[%c0_489, %c3_490, %c0_491, %c0_492] : memref<2x4x32x32xbf16, #tpu.memory_space<vmem>>, vector<1x1x32x32xbf16>
    %673 = vector.shape_cast %672 : vector<1x1x32x32xbf16> to vector<32x32xbf16>
    %cst_493 = arith.constant dense<0.000000e+00> : vector<8x32xf32>
    %674 = tpu.matmul %525, %673, %cst_493 {dimension_numbers = #tpu.dot_dimension_numbers<[1], [0], [0], [1], [0, 0, 1, 1], [], []>} : vector<8x32xbf16>, vector<32x32xbf16>, vector<8x32xf32> -> vector<8x32xf32>
    %c0_494 = arith.constant 0 : index
    %c3_495 = arith.constant 3 : index
    %c0_496 = arith.constant 0 : index
    %c0_497 = arith.constant 0 : index
    %675 = vector.load %arg33[%c0_494, %c3_495, %c0_496, %c0_497] : memref<2x4x1x32xf32, #tpu.memory_space<vmem>>, vector<1x1x1x32xf32>
    %676 = vector.shape_cast %675 : vector<1x1x1x32xf32> to vector<1x32xf32>
    %677 = vector.broadcast %676 : vector<1x32xf32> to vector<8x32xf32>
    %678 = arith.addf %674, %677 : vector<8x32xf32>
    %679 = arith.truncf %671 : vector<8x8xf32> to vector<8x8xbf16>
    %680 = arith.truncf %678 : vector<8x32xf32> to vector<8x32xbf16>
    %cst_498 = arith.constant dense<0.000000e+00> : vector<8x32xf32>
    %681 = tpu.matmul %679, %680, %cst_498 {dimension_numbers = #tpu.dot_dimension_numbers<[1], [0], [0], [1], [0, 0, 1, 1], [], []>} : vector<8x8xbf16>, vector<8x32xbf16>, vector<8x32xf32> -> vector<8x32xf32>
    %682 = arith.addf %643, %681 : vector<8x32xf32>
    %683 = arith.addf %498, %682 : vector<8x32xf32>
    %c0_499 = arith.constant 0 : index
    %c0_500 = arith.constant 0 : index
    %c0_501 = arith.constant 0 : index
    %684 = vector.load %arg34[%c0_499, %c0_500, %c0_501] : memref<2x1x32xf32, #tpu.memory_space<vmem>>, vector<1x1x32xf32>
    %685 = vector.shape_cast %684 : vector<1x1x32xf32> to vector<1x32xf32>
    %686 = vector.broadcast %685 : vector<1x32xf32> to vector<8x32xf32>
    %687 = arith.addf %683, %686 : vector<8x32xf32>
    %c0_502 = arith.constant 0 : index
    %c1_503 = arith.constant 1 : index
    %c0_504 = arith.constant 0 : index
    %c0_505 = arith.constant 0 : index
    %688 = vector.load %arg26[%c0_502, %c1_503, %c0_504, %c0_505] : memref<2x2x1x32xf32, #tpu.memory_space<vmem>>, vector<1x1x1x32xf32>
    %689 = vector.shape_cast %688 : vector<1x1x1x32xf32> to vector<1x32xf32>
    %c0_506 = arith.constant 0 : index
    %c1_507 = arith.constant 1 : index
    %c0_508 = arith.constant 0 : index
    %c0_509 = arith.constant 0 : index
    %690 = vector.load %arg27[%c0_506, %c1_507, %c0_508, %c0_509] : memref<2x2x1x32xf32, #tpu.memory_space<vmem>>, vector<1x1x1x32xf32>
    %691 = vector.shape_cast %690 : vector<1x1x1x32xf32> to vector<1x32xf32>
    %cst_510 = arith.constant dense<0.000000e+00> : vector<8xf32>
    %692 = vector.multi_reduction <add>, %687, %cst_510 [1] : vector<8x32xf32> to vector<8xf32>
    %693 = vector.shape_cast %692 : vector<8xf32> to vector<8x1xf32>
    %cst_511 = arith.constant 3.200000e+01 : f32
    %694 = vector.broadcast %cst_511 : f32 to vector<8x1xf32>
    %695 = arith.divf %693, %694 : vector<8x1xf32>
    %696 = vector.broadcast %695 : vector<8x1xf32> to vector<8x32xf32>
    %697 = arith.subf %687, %696 : vector<8x32xf32>
    %698 = arith.mulf %697, %697 : vector<8x32xf32>
    %cst_512 = arith.constant dense<0.000000e+00> : vector<8xf32>
    %699 = vector.multi_reduction <add>, %698, %cst_512 [1] : vector<8x32xf32> to vector<8xf32>
    %700 = vector.shape_cast %699 : vector<8xf32> to vector<8x1xf32>
    %cst_513 = arith.constant 3.200000e+01 : f32
    %701 = vector.broadcast %cst_513 : f32 to vector<8x1xf32>
    %702 = arith.divf %700, %701 : vector<8x1xf32>
    %cst_514 = arith.constant 9.99999974E-6 : f32
    %703 = vector.broadcast %cst_514 : f32 to vector<8x1xf32>
    %704 = arith.addf %702, %703 : vector<8x1xf32>
    %705 = math.rsqrt %704 : vector<8x1xf32>
    %706 = vector.broadcast %705 : vector<8x1xf32> to vector<8x32xf32>
    %707 = arith.mulf %697, %706 : vector<8x32xf32>
    %708 = vector.broadcast %689 : vector<1x32xf32> to vector<8x32xf32>
    %709 = arith.mulf %707, %708 : vector<8x32xf32>
    %710 = vector.broadcast %691 : vector<1x32xf32> to vector<8x32xf32>
    %711 = arith.addf %709, %710 : vector<8x32xf32>
    %712 = arith.truncf %711 : vector<8x32xf32> to vector<8x32xbf16>
    %c0_515 = arith.constant 0 : index
    %c0_516 = arith.constant 0 : index
    %c0_517 = arith.constant 0 : index
    %713 = vector.load %arg35[%c0_515, %c0_516, %c0_517] : memref<2x32x64xbf16, #tpu.memory_space<vmem>>, vector<1x32x64xbf16>
    %714 = vector.shape_cast %713 : vector<1x32x64xbf16> to vector<32x64xbf16>
    %cst_518 = arith.constant dense<0.000000e+00> : vector<8x64xf32>
    %715 = tpu.matmul %712, %714, %cst_518 {dimension_numbers = #tpu.dot_dimension_numbers<[1], [0], [0], [1], [0, 0, 1, 1], [], []>} : vector<8x32xbf16>, vector<32x64xbf16>, vector<8x64xf32> -> vector<8x64xf32>
    %c0_519 = arith.constant 0 : index
    %c0_520 = arith.constant 0 : index
    %c0_521 = arith.constant 0 : index
    %716 = vector.load %arg36[%c0_519, %c0_520, %c0_521] : memref<2x1x64xf32, #tpu.memory_space<vmem>>, vector<1x1x64xf32>
    %717 = vector.shape_cast %716 : vector<1x1x64xf32> to vector<1x64xf32>
    %718 = vector.broadcast %717 : vector<1x64xf32> to vector<8x64xf32>
    %719 = arith.addf %715, %718 : vector<8x64xf32>
    %cst_522 = arith.constant 1.702000e+00 : f32
    %720 = vector.broadcast %cst_522 : f32 to vector<8x64xf32>
    %721 = arith.mulf %720, %719 : vector<8x64xf32>
    %722 = arith.negf %721 : vector<8x64xf32>
    %723 = math.exp %722 : vector<8x64xf32>
    %cst_523 = arith.constant 1.000000e+00 : f32
    %724 = vector.broadcast %cst_523 : f32 to vector<8x64xf32>
    %725 = arith.addf %724, %723 : vector<8x64xf32>
    %726 = arith.divf %724, %725 : vector<8x64xf32>
    %727 = arith.mulf %719, %726 : vector<8x64xf32>
    %728 = arith.truncf %727 : vector<8x64xf32> to vector<8x64xbf16>
    %c0_524 = arith.constant 0 : index
    %c0_525 = arith.constant 0 : index
    %c0_526 = arith.constant 0 : index
    %729 = vector.load %arg37[%c0_524, %c0_525, %c0_526] : memref<2x64x32xbf16, #tpu.memory_space<vmem>>, vector<1x64x32xbf16>
    %730 = vector.shape_cast %729 : vector<1x64x32xbf16> to vector<64x32xbf16>
    %cst_527 = arith.constant dense<0.000000e+00> : vector<8x32xf32>
    %731 = tpu.matmul %728, %730, %cst_527 {dimension_numbers = #tpu.dot_dimension_numbers<[1], [0], [0], [1], [0, 0, 1, 1], [], []>} : vector<8x64xbf16>, vector<64x32xbf16>, vector<8x32xf32> -> vector<8x32xf32>
    %c0_528 = arith.constant 0 : index
    %c0_529 = arith.constant 0 : index
    %c0_530 = arith.constant 0 : index
    %732 = vector.load %arg38[%c0_528, %c0_529, %c0_530] : memref<2x1x32xf32, #tpu.memory_space<vmem>>, vector<1x1x32xf32>
    %733 = vector.shape_cast %732 : vector<1x1x32xf32> to vector<1x32xf32>
    %734 = vector.broadcast %733 : vector<1x32xf32> to vector<8x32xf32>
    %735 = arith.addf %731, %734 : vector<8x32xf32>
    %736 = arith.addf %687, %735 : vector<8x32xf32>
    %c1_531 = arith.constant 1 : index
    %c0_532 = arith.constant 0 : index
    %c0_533 = arith.constant 0 : index
    %c0_534 = arith.constant 0 : index
    %737 = vector.load %arg26[%c1_531, %c0_532, %c0_533, %c0_534] : memref<2x2x1x32xf32, #tpu.memory_space<vmem>>, vector<1x1x1x32xf32>
    %738 = vector.shape_cast %737 : vector<1x1x1x32xf32> to vector<1x32xf32>
    %c1_535 = arith.constant 1 : index
    %c0_536 = arith.constant 0 : index
    %c0_537 = arith.constant 0 : index
    %c0_538 = arith.constant 0 : index
    %739 = vector.load %arg27[%c1_535, %c0_536, %c0_537, %c0_538] : memref<2x2x1x32xf32, #tpu.memory_space<vmem>>, vector<1x1x1x32xf32>
    %740 = vector.shape_cast %739 : vector<1x1x1x32xf32> to vector<1x32xf32>
    %cst_539 = arith.constant dense<0.000000e+00> : vector<8xf32>
    %741 = vector.multi_reduction <add>, %736, %cst_539 [1] : vector<8x32xf32> to vector<8xf32>
    %742 = vector.shape_cast %741 : vector<8xf32> to vector<8x1xf32>
    %cst_540 = arith.constant 3.200000e+01 : f32
    %743 = vector.broadcast %cst_540 : f32 to vector<8x1xf32>
    %744 = arith.divf %742, %743 : vector<8x1xf32>
    %745 = vector.broadcast %744 : vector<8x1xf32> to vector<8x32xf32>
    %746 = arith.subf %736, %745 : vector<8x32xf32>
    %747 = arith.mulf %746, %746 : vector<8x32xf32>
    %cst_541 = arith.constant dense<0.000000e+00> : vector<8xf32>
    %748 = vector.multi_reduction <add>, %747, %cst_541 [1] : vector<8x32xf32> to vector<8xf32>
    %749 = vector.shape_cast %748 : vector<8xf32> to vector<8x1xf32>
    %cst_542 = arith.constant 3.200000e+01 : f32
    %750 = vector.broadcast %cst_542 : f32 to vector<8x1xf32>
    %751 = arith.divf %749, %750 : vector<8x1xf32>
    %cst_543 = arith.constant 9.99999974E-6 : f32
    %752 = vector.broadcast %cst_543 : f32 to vector<8x1xf32>
    %753 = arith.addf %751, %752 : vector<8x1xf32>
    %754 = math.rsqrt %753 : vector<8x1xf32>
    %755 = vector.broadcast %754 : vector<8x1xf32> to vector<8x32xf32>
    %756 = arith.mulf %746, %755 : vector<8x32xf32>
    %757 = vector.broadcast %738 : vector<1x32xf32> to vector<8x32xf32>
    %758 = arith.mulf %756, %757 : vector<8x32xf32>
    %759 = vector.broadcast %740 : vector<1x32xf32> to vector<8x32xf32>
    %760 = arith.addf %758, %759 : vector<8x32xf32>
    %761 = arith.truncf %760 : vector<8x32xf32> to vector<8x32xbf16>
    %cst_544 = arith.constant 0.000000e+00 : f32
    %762 = vector.broadcast %cst_544 : f32 to vector<8x32xf32>
    %c1_545 = arith.constant 1 : index
    %c0_546 = arith.constant 0 : index
    %c0_547 = arith.constant 0 : index
    %c0_548 = arith.constant 0 : index
    %763 = vector.load %arg28[%c1_545, %c0_546, %c0_547, %c0_548] : memref<2x4x32x8xbf16, #tpu.memory_space<vmem>>, vector<1x1x32x8xbf16>
    %764 = vector.shape_cast %763 : vector<1x1x32x8xbf16> to vector<32x8xbf16>
    %cst_549 = arith.constant dense<0.000000e+00> : vector<8x8xf32>
    %765 = tpu.matmul %761, %764, %cst_549 {dimension_numbers = #tpu.dot_dimension_numbers<[1], [0], [0], [1], [0, 0, 1, 1], [], []>} : vector<8x32xbf16>, vector<32x8xbf16>, vector<8x8xf32> -> vector<8x8xf32>
    %c1_550 = arith.constant 1 : index
    %c0_551 = arith.constant 0 : index
    %c0_552 = arith.constant 0 : index
    %c0_553 = arith.constant 0 : index
    %766 = vector.load %arg29[%c1_550, %c0_551, %c0_552, %c0_553] : memref<2x4x1x8xf32, #tpu.memory_space<vmem>>, vector<1x1x1x8xf32>
    %767 = vector.shape_cast %766 : vector<1x1x1x8xf32> to vector<1x8xf32>
    %768 = vector.broadcast %767 : vector<1x8xf32> to vector<8x8xf32>
    %769 = arith.addf %765, %768 : vector<8x8xf32>
    %c1_554 = arith.constant 1 : index
    %c0_555 = arith.constant 0 : index
    %c0_556 = arith.constant 0 : index
    %c0_557 = arith.constant 0 : index
    %770 = vector.load %arg30[%c1_554, %c0_555, %c0_556, %c0_557] : memref<2x4x32x8xbf16, #tpu.memory_space<vmem>>, vector<1x1x32x8xbf16>
    %771 = vector.shape_cast %770 : vector<1x1x32x8xbf16> to vector<32x8xbf16>
    %cst_558 = arith.constant dense<0.000000e+00> : vector<8x8xf32>
    %772 = tpu.matmul %761, %771, %cst_558 {dimension_numbers = #tpu.dot_dimension_numbers<[1], [0], [0], [1], [0, 0, 1, 1], [], []>} : vector<8x32xbf16>, vector<32x8xbf16>, vector<8x8xf32> -> vector<8x8xf32>
    %c1_559 = arith.constant 1 : index
    %c0_560 = arith.constant 0 : index
    %c0_561 = arith.constant 0 : index
    %c0_562 = arith.constant 0 : index
    %773 = vector.load %arg31[%c1_559, %c0_560, %c0_561, %c0_562] : memref<2x4x1x8xf32, #tpu.memory_space<vmem>>, vector<1x1x1x8xf32>
    %774 = vector.shape_cast %773 : vector<1x1x1x8xf32> to vector<1x8xf32>
    %775 = vector.broadcast %774 : vector<1x8xf32> to vector<8x8xf32>
    %776 = arith.addf %772, %775 : vector<8x8xf32>
    %777 = arith.truncf %769 : vector<8x8xf32> to vector<8x8xbf16>
    %778 = arith.truncf %776 : vector<8x8xf32> to vector<8x8xbf16>
    %cst_563 = arith.constant dense<0.000000e+00> : vector<8x8xf32>
    %779 = tpu.matmul %777, %778, %cst_563 {dimension_numbers = #tpu.dot_dimension_numbers<[1], [1], [0], [0], [0, 0, 1, 0], [], []>} : vector<8x8xbf16>, vector<8x8xbf16>, vector<8x8xf32> -> vector<8x8xf32>
    %780 = arith.addf %779, %500 : vector<8x8xf32>
    %cst_564 = arith.constant dense<0xFF800000> : vector<8xf32>
    %781 = vector.multi_reduction <maximumf>, %780, %cst_564 [1] : vector<8x8xf32> to vector<8xf32>
    %782 = vector.shape_cast %781 : vector<8xf32> to vector<8x1xf32>
    %783 = vector.broadcast %782 : vector<8x1xf32> to vector<8x8xf32>
    %784 = arith.subf %780, %783 : vector<8x8xf32>
    %785 = math.exp %784 : vector<8x8xf32>
    %cst_565 = arith.constant dense<0.000000e+00> : vector<8xf32>
    %786 = vector.multi_reduction <add>, %785, %cst_565 [1] : vector<8x8xf32> to vector<8xf32>
    %787 = vector.shape_cast %786 : vector<8xf32> to vector<8x1xf32>
    %788 = tpu.reciprocal %787 {approx = true} : vector<8x1xf32> -> vector<8x1xf32>
    %789 = vector.broadcast %788 : vector<8x1xf32> to vector<8x8xf32>
    %790 = arith.mulf %785, %789 : vector<8x8xf32>
    %c1_566 = arith.constant 1 : index
    %c0_567 = arith.constant 0 : index
    %c0_568 = arith.constant 0 : index
    %c0_569 = arith.constant 0 : index
    %791 = vector.load %arg32[%c1_566, %c0_567, %c0_568, %c0_569] : memref<2x4x32x32xbf16, #tpu.memory_space<vmem>>, vector<1x1x32x32xbf16>
    %792 = vector.shape_cast %791 : vector<1x1x32x32xbf16> to vector<32x32xbf16>
    %cst_570 = arith.constant dense<0.000000e+00> : vector<8x32xf32>
    %793 = tpu.matmul %761, %792, %cst_570 {dimension_numbers = #tpu.dot_dimension_numbers<[1], [0], [0], [1], [0, 0, 1, 1], [], []>} : vector<8x32xbf16>, vector<32x32xbf16>, vector<8x32xf32> -> vector<8x32xf32>
    %c1_571 = arith.constant 1 : index
    %c0_572 = arith.constant 0 : index
    %c0_573 = arith.constant 0 : index
    %c0_574 = arith.constant 0 : index
    %794 = vector.load %arg33[%c1_571, %c0_572, %c0_573, %c0_574] : memref<2x4x1x32xf32, #tpu.memory_space<vmem>>, vector<1x1x1x32xf32>
    %795 = vector.shape_cast %794 : vector<1x1x1x32xf32> to vector<1x32xf32>
    %796 = vector.broadcast %795 : vector<1x32xf32> to vector<8x32xf32>
    %797 = arith.addf %793, %796 : vector<8x32xf32>
    %798 = arith.truncf %790 : vector<8x8xf32> to vector<8x8xbf16>
    %799 = arith.truncf %797 : vector<8x32xf32> to vector<8x32xbf16>
    %cst_575 = arith.constant dense<0.000000e+00> : vector<8x32xf32>
    %800 = tpu.matmul %798, %799, %cst_575 {dimension_numbers = #tpu.dot_dimension_numbers<[1], [0], [0], [1], [0, 0, 1, 1], [], []>} : vector<8x8xbf16>, vector<8x32xbf16>, vector<8x32xf32> -> vector<8x32xf32>
    %801 = arith.addf %762, %800 : vector<8x32xf32>
    %c1_576 = arith.constant 1 : index
    %c1_577 = arith.constant 1 : index
    %c0_578 = arith.constant 0 : index
    %c0_579 = arith.constant 0 : index
    %802 = vector.load %arg28[%c1_576, %c1_577, %c0_578, %c0_579] : memref<2x4x32x8xbf16, #tpu.memory_space<vmem>>, vector<1x1x32x8xbf16>
    %803 = vector.shape_cast %802 : vector<1x1x32x8xbf16> to vector<32x8xbf16>
    %cst_580 = arith.constant dense<0.000000e+00> : vector<8x8xf32>
    %804 = tpu.matmul %761, %803, %cst_580 {dimension_numbers = #tpu.dot_dimension_numbers<[1], [0], [0], [1], [0, 0, 1, 1], [], []>} : vector<8x32xbf16>, vector<32x8xbf16>, vector<8x8xf32> -> vector<8x8xf32>
    %c1_581 = arith.constant 1 : index
    %c1_582 = arith.constant 1 : index
    %c0_583 = arith.constant 0 : index
    %c0_584 = arith.constant 0 : index
    %805 = vector.load %arg29[%c1_581, %c1_582, %c0_583, %c0_584] : memref<2x4x1x8xf32, #tpu.memory_space<vmem>>, vector<1x1x1x8xf32>
    %806 = vector.shape_cast %805 : vector<1x1x1x8xf32> to vector<1x8xf32>
    %807 = vector.broadcast %806 : vector<1x8xf32> to vector<8x8xf32>
    %808 = arith.addf %804, %807 : vector<8x8xf32>
    %c1_585 = arith.constant 1 : index
    %c1_586 = arith.constant 1 : index
    %c0_587 = arith.constant 0 : index
    %c0_588 = arith.constant 0 : index
    %809 = vector.load %arg30[%c1_585, %c1_586, %c0_587, %c0_588] : memref<2x4x32x8xbf16, #tpu.memory_space<vmem>>, vector<1x1x32x8xbf16>
    %810 = vector.shape_cast %809 : vector<1x1x32x8xbf16> to vector<32x8xbf16>
    %cst_589 = arith.constant dense<0.000000e+00> : vector<8x8xf32>
    %811 = tpu.matmul %761, %810, %cst_589 {dimension_numbers = #tpu.dot_dimension_numbers<[1], [0], [0], [1], [0, 0, 1, 1], [], []>} : vector<8x32xbf16>, vector<32x8xbf16>, vector<8x8xf32> -> vector<8x8xf32>
    %c1_590 = arith.constant 1 : index
    %c1_591 = arith.constant 1 : index
    %c0_592 = arith.constant 0 : index
    %c0_593 = arith.constant 0 : index
    %812 = vector.load %arg31[%c1_590, %c1_591, %c0_592, %c0_593] : memref<2x4x1x8xf32, #tpu.memory_space<vmem>>, vector<1x1x1x8xf32>
    %813 = vector.shape_cast %812 : vector<1x1x1x8xf32> to vector<1x8xf32>
    %814 = vector.broadcast %813 : vector<1x8xf32> to vector<8x8xf32>
    %815 = arith.addf %811, %814 : vector<8x8xf32>
    %816 = arith.truncf %808 : vector<8x8xf32> to vector<8x8xbf16>
    %817 = arith.truncf %815 : vector<8x8xf32> to vector<8x8xbf16>
    %cst_594 = arith.constant dense<0.000000e+00> : vector<8x8xf32>
    %818 = tpu.matmul %816, %817, %cst_594 {dimension_numbers = #tpu.dot_dimension_numbers<[1], [1], [0], [0], [0, 0, 1, 0], [], []>} : vector<8x8xbf16>, vector<8x8xbf16>, vector<8x8xf32> -> vector<8x8xf32>
    %819 = arith.addf %818, %500 : vector<8x8xf32>
    %cst_595 = arith.constant dense<0xFF800000> : vector<8xf32>
    %820 = vector.multi_reduction <maximumf>, %819, %cst_595 [1] : vector<8x8xf32> to vector<8xf32>
    %821 = vector.shape_cast %820 : vector<8xf32> to vector<8x1xf32>
    %822 = vector.broadcast %821 : vector<8x1xf32> to vector<8x8xf32>
    %823 = arith.subf %819, %822 : vector<8x8xf32>
    %824 = math.exp %823 : vector<8x8xf32>
    %cst_596 = arith.constant dense<0.000000e+00> : vector<8xf32>
    %825 = vector.multi_reduction <add>, %824, %cst_596 [1] : vector<8x8xf32> to vector<8xf32>
    %826 = vector.shape_cast %825 : vector<8xf32> to vector<8x1xf32>
    %827 = tpu.reciprocal %826 {approx = true} : vector<8x1xf32> -> vector<8x1xf32>
    %828 = vector.broadcast %827 : vector<8x1xf32> to vector<8x8xf32>
    %829 = arith.mulf %824, %828 : vector<8x8xf32>
    %c1_597 = arith.constant 1 : index
    %c1_598 = arith.constant 1 : index
    %c0_599 = arith.constant 0 : index
    %c0_600 = arith.constant 0 : index
    %830 = vector.load %arg32[%c1_597, %c1_598, %c0_599, %c0_600] : memref<2x4x32x32xbf16, #tpu.memory_space<vmem>>, vector<1x1x32x32xbf16>
    %831 = vector.shape_cast %830 : vector<1x1x32x32xbf16> to vector<32x32xbf16>
    %cst_601 = arith.constant dense<0.000000e+00> : vector<8x32xf32>
    %832 = tpu.matmul %761, %831, %cst_601 {dimension_numbers = #tpu.dot_dimension_numbers<[1], [0], [0], [1], [0, 0, 1, 1], [], []>} : vector<8x32xbf16>, vector<32x32xbf16>, vector<8x32xf32> -> vector<8x32xf32>
    %c1_602 = arith.constant 1 : index
    %c1_603 = arith.constant 1 : index
    %c0_604 = arith.constant 0 : index
    %c0_605 = arith.constant 0 : index
    %833 = vector.load %arg33[%c1_602, %c1_603, %c0_604, %c0_605] : memref<2x4x1x32xf32, #tpu.memory_space<vmem>>, vector<1x1x1x32xf32>
    %834 = vector.shape_cast %833 : vector<1x1x1x32xf32> to vector<1x32xf32>
    %835 = vector.broadcast %834 : vector<1x32xf32> to vector<8x32xf32>
    %836 = arith.addf %832, %835 : vector<8x32xf32>
    %837 = arith.truncf %829 : vector<8x8xf32> to vector<8x8xbf16>
    %838 = arith.truncf %836 : vector<8x32xf32> to vector<8x32xbf16>
    %cst_606 = arith.constant dense<0.000000e+00> : vector<8x32xf32>
    %839 = tpu.matmul %837, %838, %cst_606 {dimension_numbers = #tpu.dot_dimension_numbers<[1], [0], [0], [1], [0, 0, 1, 1], [], []>} : vector<8x8xbf16>, vector<8x32xbf16>, vector<8x32xf32> -> vector<8x32xf32>
    %840 = arith.addf %801, %839 : vector<8x32xf32>
    %c1_607 = arith.constant 1 : index
    %c2_608 = arith.constant 2 : index
    %c0_609 = arith.constant 0 : index
    %c0_610 = arith.constant 0 : index
    %841 = vector.load %arg28[%c1_607, %c2_608, %c0_609, %c0_610] : memref<2x4x32x8xbf16, #tpu.memory_space<vmem>>, vector<1x1x32x8xbf16>
    %842 = vector.shape_cast %841 : vector<1x1x32x8xbf16> to vector<32x8xbf16>
    %cst_611 = arith.constant dense<0.000000e+00> : vector<8x8xf32>
    %843 = tpu.matmul %761, %842, %cst_611 {dimension_numbers = #tpu.dot_dimension_numbers<[1], [0], [0], [1], [0, 0, 1, 1], [], []>} : vector<8x32xbf16>, vector<32x8xbf16>, vector<8x8xf32> -> vector<8x8xf32>
    %c1_612 = arith.constant 1 : index
    %c2_613 = arith.constant 2 : index
    %c0_614 = arith.constant 0 : index
    %c0_615 = arith.constant 0 : index
    %844 = vector.load %arg29[%c1_612, %c2_613, %c0_614, %c0_615] : memref<2x4x1x8xf32, #tpu.memory_space<vmem>>, vector<1x1x1x8xf32>
    %845 = vector.shape_cast %844 : vector<1x1x1x8xf32> to vector<1x8xf32>
    %846 = vector.broadcast %845 : vector<1x8xf32> to vector<8x8xf32>
    %847 = arith.addf %843, %846 : vector<8x8xf32>
    %c1_616 = arith.constant 1 : index
    %c2_617 = arith.constant 2 : index
    %c0_618 = arith.constant 0 : index
    %c0_619 = arith.constant 0 : index
    %848 = vector.load %arg30[%c1_616, %c2_617, %c0_618, %c0_619] : memref<2x4x32x8xbf16, #tpu.memory_space<vmem>>, vector<1x1x32x8xbf16>
    %849 = vector.shape_cast %848 : vector<1x1x32x8xbf16> to vector<32x8xbf16>
    %cst_620 = arith.constant dense<0.000000e+00> : vector<8x8xf32>
    %850 = tpu.matmul %761, %849, %cst_620 {dimension_numbers = #tpu.dot_dimension_numbers<[1], [0], [0], [1], [0, 0, 1, 1], [], []>} : vector<8x32xbf16>, vector<32x8xbf16>, vector<8x8xf32> -> vector<8x8xf32>
    %c1_621 = arith.constant 1 : index
    %c2_622 = arith.constant 2 : index
    %c0_623 = arith.constant 0 : index
    %c0_624 = arith.constant 0 : index
    %851 = vector.load %arg31[%c1_621, %c2_622, %c0_623, %c0_624] : memref<2x4x1x8xf32, #tpu.memory_space<vmem>>, vector<1x1x1x8xf32>
    %852 = vector.shape_cast %851 : vector<1x1x1x8xf32> to vector<1x8xf32>
    %853 = vector.broadcast %852 : vector<1x8xf32> to vector<8x8xf32>
    %854 = arith.addf %850, %853 : vector<8x8xf32>
    %855 = arith.truncf %847 : vector<8x8xf32> to vector<8x8xbf16>
    %856 = arith.truncf %854 : vector<8x8xf32> to vector<8x8xbf16>
    %cst_625 = arith.constant dense<0.000000e+00> : vector<8x8xf32>
    %857 = tpu.matmul %855, %856, %cst_625 {dimension_numbers = #tpu.dot_dimension_numbers<[1], [1], [0], [0], [0, 0, 1, 0], [], []>} : vector<8x8xbf16>, vector<8x8xbf16>, vector<8x8xf32> -> vector<8x8xf32>
    %858 = arith.addf %857, %500 : vector<8x8xf32>
    %cst_626 = arith.constant dense<0xFF800000> : vector<8xf32>
    %859 = vector.multi_reduction <maximumf>, %858, %cst_626 [1] : vector<8x8xf32> to vector<8xf32>
    %860 = vector.shape_cast %859 : vector<8xf32> to vector<8x1xf32>
    %861 = vector.broadcast %860 : vector<8x1xf32> to vector<8x8xf32>
    %862 = arith.subf %858, %861 : vector<8x8xf32>
    %863 = math.exp %862 : vector<8x8xf32>
    %cst_627 = arith.constant dense<0.000000e+00> : vector<8xf32>
    %864 = vector.multi_reduction <add>, %863, %cst_627 [1] : vector<8x8xf32> to vector<8xf32>
    %865 = vector.shape_cast %864 : vector<8xf32> to vector<8x1xf32>
    %866 = tpu.reciprocal %865 {approx = true} : vector<8x1xf32> -> vector<8x1xf32>
    %867 = vector.broadcast %866 : vector<8x1xf32> to vector<8x8xf32>
    %868 = arith.mulf %863, %867 : vector<8x8xf32>
    %c1_628 = arith.constant 1 : index
    %c2_629 = arith.constant 2 : index
    %c0_630 = arith.constant 0 : index
    %c0_631 = arith.constant 0 : index
    %869 = vector.load %arg32[%c1_628, %c2_629, %c0_630, %c0_631] : memref<2x4x32x32xbf16, #tpu.memory_space<vmem>>, vector<1x1x32x32xbf16>
    %870 = vector.shape_cast %869 : vector<1x1x32x32xbf16> to vector<32x32xbf16>
    %cst_632 = arith.constant dense<0.000000e+00> : vector<8x32xf32>
    %871 = tpu.matmul %761, %870, %cst_632 {dimension_numbers = #tpu.dot_dimension_numbers<[1], [0], [0], [1], [0, 0, 1, 1], [], []>} : vector<8x32xbf16>, vector<32x32xbf16>, vector<8x32xf32> -> vector<8x32xf32>
    %c1_633 = arith.constant 1 : index
    %c2_634 = arith.constant 2 : index
    %c0_635 = arith.constant 0 : index
    %c0_636 = arith.constant 0 : index
    %872 = vector.load %arg33[%c1_633, %c2_634, %c0_635, %c0_636] : memref<2x4x1x32xf32, #tpu.memory_space<vmem>>, vector<1x1x1x32xf32>
    %873 = vector.shape_cast %872 : vector<1x1x1x32xf32> to vector<1x32xf32>
    %874 = vector.broadcast %873 : vector<1x32xf32> to vector<8x32xf32>
    %875 = arith.addf %871, %874 : vector<8x32xf32>
    %876 = arith.truncf %868 : vector<8x8xf32> to vector<8x8xbf16>
    %877 = arith.truncf %875 : vector<8x32xf32> to vector<8x32xbf16>
    %cst_637 = arith.constant dense<0.000000e+00> : vector<8x32xf32>
    %878 = tpu.matmul %876, %877, %cst_637 {dimension_numbers = #tpu.dot_dimension_numbers<[1], [0], [0], [1], [0, 0, 1, 1], [], []>} : vector<8x8xbf16>, vector<8x32xbf16>, vector<8x32xf32> -> vector<8x32xf32>
    %879 = arith.addf %840, %878 : vector<8x32xf32>
    %c1_638 = arith.constant 1 : index
    %c3_639 = arith.constant 3 : index
    %c0_640 = arith.constant 0 : index
    %c0_641 = arith.constant 0 : index
    %880 = vector.load %arg28[%c1_638, %c3_639, %c0_640, %c0_641] : memref<2x4x32x8xbf16, #tpu.memory_space<vmem>>, vector<1x1x32x8xbf16>
    %881 = vector.shape_cast %880 : vector<1x1x32x8xbf16> to vector<32x8xbf16>
    %cst_642 = arith.constant dense<0.000000e+00> : vector<8x8xf32>
    %882 = tpu.matmul %761, %881, %cst_642 {dimension_numbers = #tpu.dot_dimension_numbers<[1], [0], [0], [1], [0, 0, 1, 1], [], []>} : vector<8x32xbf16>, vector<32x8xbf16>, vector<8x8xf32> -> vector<8x8xf32>
    %c1_643 = arith.constant 1 : index
    %c3_644 = arith.constant 3 : index
    %c0_645 = arith.constant 0 : index
    %c0_646 = arith.constant 0 : index
    %883 = vector.load %arg29[%c1_643, %c3_644, %c0_645, %c0_646] : memref<2x4x1x8xf32, #tpu.memory_space<vmem>>, vector<1x1x1x8xf32>
    %884 = vector.shape_cast %883 : vector<1x1x1x8xf32> to vector<1x8xf32>
    %885 = vector.broadcast %884 : vector<1x8xf32> to vector<8x8xf32>
    %886 = arith.addf %882, %885 : vector<8x8xf32>
    %c1_647 = arith.constant 1 : index
    %c3_648 = arith.constant 3 : index
    %c0_649 = arith.constant 0 : index
    %c0_650 = arith.constant 0 : index
    %887 = vector.load %arg30[%c1_647, %c3_648, %c0_649, %c0_650] : memref<2x4x32x8xbf16, #tpu.memory_space<vmem>>, vector<1x1x32x8xbf16>
    %888 = vector.shape_cast %887 : vector<1x1x32x8xbf16> to vector<32x8xbf16>
    %cst_651 = arith.constant dense<0.000000e+00> : vector<8x8xf32>
    %889 = tpu.matmul %761, %888, %cst_651 {dimension_numbers = #tpu.dot_dimension_numbers<[1], [0], [0], [1], [0, 0, 1, 1], [], []>} : vector<8x32xbf16>, vector<32x8xbf16>, vector<8x8xf32> -> vector<8x8xf32>
    %c1_652 = arith.constant 1 : index
    %c3_653 = arith.constant 3 : index
    %c0_654 = arith.constant 0 : index
    %c0_655 = arith.constant 0 : index
    %890 = vector.load %arg31[%c1_652, %c3_653, %c0_654, %c0_655] : memref<2x4x1x8xf32, #tpu.memory_space<vmem>>, vector<1x1x1x8xf32>
    %891 = vector.shape_cast %890 : vector<1x1x1x8xf32> to vector<1x8xf32>
    %892 = vector.broadcast %891 : vector<1x8xf32> to vector<8x8xf32>
    %893 = arith.addf %889, %892 : vector<8x8xf32>
    %894 = arith.truncf %886 : vector<8x8xf32> to vector<8x8xbf16>
    %895 = arith.truncf %893 : vector<8x8xf32> to vector<8x8xbf16>
    %cst_656 = arith.constant dense<0.000000e+00> : vector<8x8xf32>
    %896 = tpu.matmul %894, %895, %cst_656 {dimension_numbers = #tpu.dot_dimension_numbers<[1], [1], [0], [0], [0, 0, 1, 0], [], []>} : vector<8x8xbf16>, vector<8x8xbf16>, vector<8x8xf32> -> vector<8x8xf32>
    %897 = arith.addf %896, %500 : vector<8x8xf32>
    %cst_657 = arith.constant dense<0xFF800000> : vector<8xf32>
    %898 = vector.multi_reduction <maximumf>, %897, %cst_657 [1] : vector<8x8xf32> to vector<8xf32>
    %899 = vector.shape_cast %898 : vector<8xf32> to vector<8x1xf32>
    %900 = vector.broadcast %899 : vector<8x1xf32> to vector<8x8xf32>
    %901 = arith.subf %897, %900 : vector<8x8xf32>
    %902 = math.exp %901 : vector<8x8xf32>
    %cst_658 = arith.constant dense<0.000000e+00> : vector<8xf32>
    %903 = vector.multi_reduction <add>, %902, %cst_658 [1] : vector<8x8xf32> to vector<8xf32>
    %904 = vector.shape_cast %903 : vector<8xf32> to vector<8x1xf32>
    %905 = tpu.reciprocal %904 {approx = true} : vector<8x1xf32> -> vector<8x1xf32>
    %906 = vector.broadcast %905 : vector<8x1xf32> to vector<8x8xf32>
    %907 = arith.mulf %902, %906 : vector<8x8xf32>
    %c1_659 = arith.constant 1 : index
    %c3_660 = arith.constant 3 : index
    %c0_661 = arith.constant 0 : index
    %c0_662 = arith.constant 0 : index
    %908 = vector.load %arg32[%c1_659, %c3_660, %c0_661, %c0_662] : memref<2x4x32x32xbf16, #tpu.memory_space<vmem>>, vector<1x1x32x32xbf16>
    %909 = vector.shape_cast %908 : vector<1x1x32x32xbf16> to vector<32x32xbf16>
    %cst_663 = arith.constant dense<0.000000e+00> : vector<8x32xf32>
    %910 = tpu.matmul %761, %909, %cst_663 {dimension_numbers = #tpu.dot_dimension_numbers<[1], [0], [0], [1], [0, 0, 1, 1], [], []>} : vector<8x32xbf16>, vector<32x32xbf16>, vector<8x32xf32> -> vector<8x32xf32>
    %c1_664 = arith.constant 1 : index
    %c3_665 = arith.constant 3 : index
    %c0_666 = arith.constant 0 : index
    %c0_667 = arith.constant 0 : index
    %911 = vector.load %arg33[%c1_664, %c3_665, %c0_666, %c0_667] : memref<2x4x1x32xf32, #tpu.memory_space<vmem>>, vector<1x1x1x32xf32>
    %912 = vector.shape_cast %911 : vector<1x1x1x32xf32> to vector<1x32xf32>
    %913 = vector.broadcast %912 : vector<1x32xf32> to vector<8x32xf32>
    %914 = arith.addf %910, %913 : vector<8x32xf32>
    %915 = arith.truncf %907 : vector<8x8xf32> to vector<8x8xbf16>
    %916 = arith.truncf %914 : vector<8x32xf32> to vector<8x32xbf16>
    %cst_668 = arith.constant dense<0.000000e+00> : vector<8x32xf32>
    %917 = tpu.matmul %915, %916, %cst_668 {dimension_numbers = #tpu.dot_dimension_numbers<[1], [0], [0], [1], [0, 0, 1, 1], [], []>} : vector<8x8xbf16>, vector<8x32xbf16>, vector<8x32xf32> -> vector<8x32xf32>
    %918 = arith.addf %879, %917 : vector<8x32xf32>
    %919 = arith.addf %736, %918 : vector<8x32xf32>
    %c1_669 = arith.constant 1 : index
    %c0_670 = arith.constant 0 : index
    %c0_671 = arith.constant 0 : index
    %920 = vector.load %arg34[%c1_669, %c0_670, %c0_671] : memref<2x1x32xf32, #tpu.memory_space<vmem>>, vector<1x1x32xf32>
    %921 = vector.shape_cast %920 : vector<1x1x32xf32> to vector<1x32xf32>
    %922 = vector.broadcast %921 : vector<1x32xf32> to vector<8x32xf32>
    %923 = arith.addf %919, %922 : vector<8x32xf32>
    %c1_672 = arith.constant 1 : index
    %c1_673 = arith.constant 1 : index
    %c0_674 = arith.constant 0 : index
    %c0_675 = arith.constant 0 : index
    %924 = vector.load %arg26[%c1_672, %c1_673, %c0_674, %c0_675] : memref<2x2x1x32xf32, #tpu.memory_space<vmem>>, vector<1x1x1x32xf32>
    %925 = vector.shape_cast %924 : vector<1x1x1x32xf32> to vector<1x32xf32>
    %c1_676 = arith.constant 1 : index
    %c1_677 = arith.constant 1 : index
    %c0_678 = arith.constant 0 : index
    %c0_679 = arith.constant 0 : index
    %926 = vector.load %arg27[%c1_676, %c1_677, %c0_678, %c0_679] : memref<2x2x1x32xf32, #tpu.memory_space<vmem>>, vector<1x1x1x32xf32>
    %927 = vector.shape_cast %926 : vector<1x1x1x32xf32> to vector<1x32xf32>
    %cst_680 = arith.constant dense<0.000000e+00> : vector<8xf32>
    %928 = vector.multi_reduction <add>, %923, %cst_680 [1] : vector<8x32xf32> to vector<8xf32>
    %929 = vector.shape_cast %928 : vector<8xf32> to vector<8x1xf32>
    %cst_681 = arith.constant 3.200000e+01 : f32
    %930 = vector.broadcast %cst_681 : f32 to vector<8x1xf32>
    %931 = arith.divf %929, %930 : vector<8x1xf32>
    %932 = vector.broadcast %931 : vector<8x1xf32> to vector<8x32xf32>
    %933 = arith.subf %923, %932 : vector<8x32xf32>
    %934 = arith.mulf %933, %933 : vector<8x32xf32>
    %cst_682 = arith.constant dense<0.000000e+00> : vector<8xf32>
    %935 = vector.multi_reduction <add>, %934, %cst_682 [1] : vector<8x32xf32> to vector<8xf32>
    %936 = vector.shape_cast %935 : vector<8xf32> to vector<8x1xf32>
    %cst_683 = arith.constant 3.200000e+01 : f32
    %937 = vector.broadcast %cst_683 : f32 to vector<8x1xf32>
    %938 = arith.divf %936, %937 : vector<8x1xf32>
    %cst_684 = arith.constant 9.99999974E-6 : f32
    %939 = vector.broadcast %cst_684 : f32 to vector<8x1xf32>
    %940 = arith.addf %938, %939 : vector<8x1xf32>
    %941 = math.rsqrt %940 : vector<8x1xf32>
    %942 = vector.broadcast %941 : vector<8x1xf32> to vector<8x32xf32>
    %943 = arith.mulf %933, %942 : vector<8x32xf32>
    %944 = vector.broadcast %925 : vector<1x32xf32> to vector<8x32xf32>
    %945 = arith.mulf %943, %944 : vector<8x32xf32>
    %946 = vector.broadcast %927 : vector<1x32xf32> to vector<8x32xf32>
    %947 = arith.addf %945, %946 : vector<8x32xf32>
    %948 = arith.truncf %947 : vector<8x32xf32> to vector<8x32xbf16>
    %c1_685 = arith.constant 1 : index
    %c0_686 = arith.constant 0 : index
    %c0_687 = arith.constant 0 : index
    %949 = vector.load %arg35[%c1_685, %c0_686, %c0_687] : memref<2x32x64xbf16, #tpu.memory_space<vmem>>, vector<1x32x64xbf16>
    %950 = vector.shape_cast %949 : vector<1x32x64xbf16> to vector<32x64xbf16>
    %cst_688 = arith.constant dense<0.000000e+00> : vector<8x64xf32>
    %951 = tpu.matmul %948, %950, %cst_688 {dimension_numbers = #tpu.dot_dimension_numbers<[1], [0], [0], [1], [0, 0, 1, 1], [], []>} : vector<8x32xbf16>, vector<32x64xbf16>, vector<8x64xf32> -> vector<8x64xf32>
    %c1_689 = arith.constant 1 : index
    %c0_690 = arith.constant 0 : index
    %c0_691 = arith.constant 0 : index
    %952 = vector.load %arg36[%c1_689, %c0_690, %c0_691] : memref<2x1x64xf32, #tpu.memory_space<vmem>>, vector<1x1x64xf32>
    %953 = vector.shape_cast %952 : vector<1x1x64xf32> to vector<1x64xf32>
    %954 = vector.broadcast %953 : vector<1x64xf32> to vector<8x64xf32>
    %955 = arith.addf %951, %954 : vector<8x64xf32>
    %cst_692 = arith.constant 1.702000e+00 : f32
    %956 = vector.broadcast %cst_692 : f32 to vector<8x64xf32>
    %957 = arith.mulf %956, %955 : vector<8x64xf32>
    %958 = arith.negf %957 : vector<8x64xf32>
    %959 = math.exp %958 : vector<8x64xf32>
    %cst_693 = arith.constant 1.000000e+00 : f32
    %960 = vector.broadcast %cst_693 : f32 to vector<8x64xf32>
    %961 = arith.addf %960, %959 : vector<8x64xf32>
    %962 = arith.divf %960, %961 : vector<8x64xf32>
    %963 = arith.mulf %955, %962 : vector<8x64xf32>
    %964 = arith.truncf %963 : vector<8x64xf32> to vector<8x64xbf16>
    %c1_694 = arith.constant 1 : index
    %c0_695 = arith.constant 0 : index
    %c0_696 = arith.constant 0 : index
    %965 = vector.load %arg37[%c1_694, %c0_695, %c0_696] : memref<2x64x32xbf16, #tpu.memory_space<vmem>>, vector<1x64x32xbf16>
    %966 = vector.shape_cast %965 : vector<1x64x32xbf16> to vector<64x32xbf16>
    %cst_697 = arith.constant dense<0.000000e+00> : vector<8x32xf32>
    %967 = tpu.matmul %964, %966, %cst_697 {dimension_numbers = #tpu.dot_dimension_numbers<[1], [0], [0], [1], [0, 0, 1, 1], [], []>} : vector<8x64xbf16>, vector<64x32xbf16>, vector<8x32xf32> -> vector<8x32xf32>
    %c1_698 = arith.constant 1 : index
    %c0_699 = arith.constant 0 : index
    %c0_700 = arith.constant 0 : index
    %968 = vector.load %arg38[%c1_698, %c0_699, %c0_700] : memref<2x1x32xf32, #tpu.memory_space<vmem>>, vector<1x1x32xf32>
    %969 = vector.shape_cast %968 : vector<1x1x32xf32> to vector<1x32xf32>
    %970 = vector.broadcast %969 : vector<1x32xf32> to vector<8x32xf32>
    %971 = arith.addf %967, %970 : vector<8x32xf32>
    %972 = arith.addf %923, %971 : vector<8x32xf32>
    %c0_701 = arith.constant 0 : index
    %c0_702 = arith.constant 0 : index
    %973 = vector.load %arg22[%c0_701, %c0_702] : memref<1x32xf32, #tpu.memory_space<vmem>>, vector<1x32xf32>
    %c0_703 = arith.constant 0 : index
    %c0_704 = arith.constant 0 : index
    %974 = vector.load %arg23[%c0_703, %c0_704] : memref<1x32xf32, #tpu.memory_space<vmem>>, vector<1x32xf32>
    %cst_705 = arith.constant dense<0.000000e+00> : vector<8xf32>
    %975 = vector.multi_reduction <add>, %972, %cst_705 [1] : vector<8x32xf32> to vector<8xf32>
    %976 = vector.shape_cast %975 : vector<8xf32> to vector<8x1xf32>
    %cst_706 = arith.constant 3.200000e+01 : f32
    %977 = vector.broadcast %cst_706 : f32 to vector<8x1xf32>
    %978 = arith.divf %976, %977 : vector<8x1xf32>
    %979 = vector.broadcast %978 : vector<8x1xf32> to vector<8x32xf32>
    %980 = arith.subf %972, %979 : vector<8x32xf32>
    %981 = arith.mulf %980, %980 : vector<8x32xf32>
    %cst_707 = arith.constant dense<0.000000e+00> : vector<8xf32>
    %982 = vector.multi_reduction <add>, %981, %cst_707 [1] : vector<8x32xf32> to vector<8xf32>
    %983 = vector.shape_cast %982 : vector<8xf32> to vector<8x1xf32>
    %cst_708 = arith.constant 3.200000e+01 : f32
    %984 = vector.broadcast %cst_708 : f32 to vector<8x1xf32>
    %985 = arith.divf %983, %984 : vector<8x1xf32>
    %cst_709 = arith.constant 9.99999974E-6 : f32
    %986 = vector.broadcast %cst_709 : f32 to vector<8x1xf32>
    %987 = arith.addf %985, %986 : vector<8x1xf32>
    %988 = math.rsqrt %987 : vector<8x1xf32>
    %989 = vector.broadcast %988 : vector<8x1xf32> to vector<8x32xf32>
    %990 = arith.mulf %980, %989 : vector<8x32xf32>
    %991 = vector.broadcast %973 : vector<1x32xf32> to vector<8x32xf32>
    %992 = arith.mulf %990, %991 : vector<8x32xf32>
    %993 = vector.broadcast %974 : vector<1x32xf32> to vector<8x32xf32>
    %994 = arith.addf %992, %993 : vector<8x32xf32>
    %995 = vector.extract_strided_slice %994 {offsets = [0, 0], sizes = [1, 32], strides = [1, 1]} : vector<8x32xf32> to vector<1x32xf32>
    %996 = arith.truncf %995 : vector<1x32xf32> to vector<1x32xbf16>
    %c0_710 = arith.constant 0 : index
    %c0_711 = arith.constant 0 : index
    %997 = vector.load %arg24[%c0_710, %c0_711] : memref<32x16xbf16, #tpu.memory_space<vmem>>, vector<32x16xbf16>
    %cst_712 = arith.constant dense<0.000000e+00> : vector<1x16xf32>
    %998 = tpu.matmul %996, %997, %cst_712 {dimension_numbers = #tpu.dot_dimension_numbers<[1], [0], [0], [1], [0, 0, 1, 1], [], []>} : vector<1x32xbf16>, vector<32x16xbf16>, vector<1x16xf32> -> vector<1x16xf32>
    %c0_713 = arith.constant 0 : index
    %c0_714 = arith.constant 0 : index
    %999 = vector.load %arg25[%c0_713, %c0_714] : memref<1x16xf32, #tpu.memory_space<vmem>>, vector<1x16xf32>
    %1000 = arith.addf %998, %999 : vector<1x16xf32>
    %1001 = arith.mulf %496, %496 : vector<1x16xf32>
    %cst_715 = arith.constant dense<0.000000e+00> : vector<1xf32>
    %1002 = vector.multi_reduction <add>, %1001, %cst_715 [1] : vector<1x16xf32> to vector<1xf32>
    %1003 = vector.shape_cast %1002 : vector<1xf32> to vector<1x1xf32>
    %1004 = math.rsqrt %1003 : vector<1x1xf32>
    %1005 = vector.broadcast %1004 : vector<1x1xf32> to vector<1x16xf32>
    %1006 = arith.mulf %496, %1005 : vector<1x16xf32>
    %1007 = arith.mulf %1000, %1000 : vector<1x16xf32>
    %cst_716 = arith.constant dense<0.000000e+00> : vector<1xf32>
    %1008 = vector.multi_reduction <add>, %1007, %cst_716 [1] : vector<1x16xf32> to vector<1xf32>
    %1009 = vector.shape_cast %1008 : vector<1xf32> to vector<1x1xf32>
    %1010 = math.rsqrt %1009 : vector<1x1xf32>
    %1011 = vector.broadcast %1010 : vector<1x1xf32> to vector<1x16xf32>
    %1012 = arith.mulf %1000, %1011 : vector<1x16xf32>
    %1013 = arith.addf %1006, %1012 : vector<1x16xf32>
    %1014 = arith.truncf %1013 : vector<1x16xf32> to vector<1x16xbf16>
    %c0_717 = arith.constant 0 : index
    %c0_718 = arith.constant 0 : index
    %1015 = vector.load %arg39[%c0_717, %c0_718] : memref<16x2xbf16, #tpu.memory_space<vmem>>, vector<16x2xbf16>
    %cst_719 = arith.constant dense<0.000000e+00> : vector<1x2xf32>
    %1016 = tpu.matmul %1014, %1015, %cst_719 {dimension_numbers = #tpu.dot_dimension_numbers<[1], [0], [0], [1], [0, 0, 1, 1], [], []>} : vector<1x16xbf16>, vector<16x2xbf16>, vector<1x2xf32> -> vector<1x2xf32>
    %c0_720 = arith.constant 0 : index
    %c0_721 = arith.constant 0 : index
    %1017 = vector.load %arg40[%c0_720, %c0_721] : memref<1x2xf32, #tpu.memory_space<vmem>>, vector<1x2xf32>
    %1018 = arith.addf %1016, %1017 : vector<1x2xf32>
    %1019 = vector.shape_cast %1018 : vector<1x2xf32> to vector<1x1x2xf32>
    %c0_722 = arith.constant 0 : index
    %c0_723 = arith.constant 0 : index
    %c0_724 = arith.constant 0 : index
    %1020 = vector.load %arg41[%c0_722, %c0_723, %c0_724] : memref<1x1x2xf32, #tpu.memory_space<vmem>>, vector<1x1x2xf32>
    tpu.vector_store %arg41[%c0_722, %c0_723, %c0_724], %1019 {strides = array<i32>} : memref<1x1x2xf32, #tpu.memory_space<vmem>>, vector<1x1x2xf32>,
    return
  }
  func.func @transform_0(%arg0: i32) -> (i32, i32, i32) {
    %c0_i32 = arith.constant 0 : i32
    %c0_i32_0 = arith.constant 0 : i32
    %c0_i32_1 = arith.constant 0 : i32
    return %arg0, %c0_i32, %c0_i32_0 : i32, i32, i32
  }
  func.func @transform_1(%arg0: i32) -> (i32, i32) {
    %c0_i32 = arith.constant 0 : i32
    %c0_i32_0 = arith.constant 0 : i32
    %c0_i32_1 = arith.constant 0 : i32
    return %c0_i32, %c0_i32_0 : i32, i32
  }
  func.func @transform_2(%arg0: i32) -> (i32, i32) {
    %c0_i32 = arith.constant 0 : i32
    %c0_i32_0 = arith.constant 0 : i32
    %c0_i32_1 = arith.constant 0 : i32
    return %c0_i32, %c0_i32_0 : i32, i32
  }
  func.func @transform_3(%arg0: i32) -> (i32, i32) {
    %c0_i32 = arith.constant 0 : i32
    %c0_i32_0 = arith.constant 0 : i32
    %c0_i32_1 = arith.constant 0 : i32
    return %c0_i32, %c0_i32_0 : i32, i32
  }
  func.func @transform_4(%arg0: i32) -> (i32, i32) {
    %c0_i32 = arith.constant 0 : i32
    %c0_i32_0 = arith.constant 0 : i32
    %c0_i32_1 = arith.constant 0 : i32
    return %c0_i32, %c0_i32_0 : i32, i32
  }
  func.func @transform_5(%arg0: i32) -> (i32, i32) {
    %c0_i32 = arith.constant 0 : i32
    %c0_i32_0 = arith.constant 0 : i32
    %c0_i32_1 = arith.constant 0 : i32
    return %c0_i32, %c0_i32_0 : i32, i32
  }
  func.func @transform_6(%arg0: i32) -> (i32, i32, i32, i32) {
    %c0_i32 = arith.constant 0 : i32
    %c0_i32_0 = arith.constant 0 : i32
    %c0_i32_1 = arith.constant 0 : i32
    %c0_i32_2 = arith.constant 0 : i32
    %c0_i32_3 = arith.constant 0 : i32
    return %c0_i32, %c0_i32_0, %c0_i32_1, %c0_i32_2 : i32, i32, i32, i32
  }
  func.func @transform_7(%arg0: i32) -> (i32, i32, i32, i32) {
    %c0_i32 = arith.constant 0 : i32
    %c0_i32_0 = arith.constant 0 : i32
    %c0_i32_1 = arith.constant 0 : i32
    %c0_i32_2 = arith.constant 0 : i32
    %c0_i32_3 = arith.constant 0 : i32
    return %c0_i32, %c0_i32_0, %c0_i32_1, %c0_i32_2 : i32, i32, i32, i32
  }
  func.func @transform_8(%arg0: i32) -> (i32, i32, i32, i32) {
    %c0_i32 = arith.constant 0 : i32
    %c0_i32_0 = arith.constant 0 : i32
    %c0_i32_1 = arith.constant 0 : i32
    %c0_i32_2 = arith.constant 0 : i32
    %c0_i32_3 = arith.constant 0 : i32
    return %c0_i32, %c0_i32_0, %c0_i32_1, %c0_i32_2 : i32, i32, i32, i32
  }
  func.func @transform_9(%arg0: i32) -> (i32, i32, i32, i32) {
    %c0_i32 = arith.constant 0 : i32
    %c0_i32_0 = arith.constant 0 : i32
    %c0_i32_1 = arith.constant 0 : i32
    %c0_i32_2 = arith.constant 0 : i32
    %c0_i32_3 = arith.constant 0 : i32
    return %c0_i32, %c0_i32_0, %c0_i32_1, %c0_i32_2 : i32, i32, i32, i32
  }
  func.func @transform_10(%arg0: i32) -> (i32, i32, i32, i32) {
    %c0_i32 = arith.constant 0 : i32
    %c0_i32_0 = arith.constant 0 : i32
    %c0_i32_1 = arith.constant 0 : i32
    %c0_i32_2 = arith.constant 0 : i32
    %c0_i32_3 = arith.constant 0 : i32
    return %c0_i32, %c0_i32_0, %c0_i32_1, %c0_i32_2 : i32, i32, i32, i32
  }
  func.func @transform_11(%arg0: i32) -> (i32, i32, i32, i32) {
    %c0_i32 = arith.constant 0 : i32
    %c0_i32_0 = arith.constant 0 : i32
    %c0_i32_1 = arith.constant 0 : i32
    %c0_i32_2 = arith.constant 0 : i32
    %c0_i32_3 = arith.constant 0 : i32
    return %c0_i32, %c0_i32_0, %c0_i32_1, %c0_i32_2 : i32, i32, i32, i32
  }
  func.func @transform_12(%arg0: i32) -> (i32, i32, i32, i32) {
    %c0_i32 = arith.constant 0 : i32
    %c0_i32_0 = arith.constant 0 : i32
    %c0_i32_1 = arith.constant 0 : i32
    %c0_i32_2 = arith.constant 0 : i32
    %c0_i32_3 = arith.constant 0 : i32
    return %c0_i32, %c0_i32_0, %c0_i32_1, %c0_i32_2 : i32, i32, i32, i32
  }
  func.func @transform_13(%arg0: i32) -> (i32, i32, i32, i32) {
    %c0_i32 = arith.constant 0 : i32
    %c0_i32_0 = arith.constant 0 : i32
    %c0_i32_1 = arith.constant 0 : i32
    %c0_i32_2 = arith.constant 0 : i32
    %c0_i32_3 = arith.constant 0 : i32
    return %c0_i32, %c0_i32_0, %c0_i32_1, %c0_i32_2 : i32, i32, i32, i32
  }
  func.func @transform_14(%arg0: i32) -> (i32, i32, i32) {
    %c0_i32 = arith.constant 0 : i32
    %c0_i32_0 = arith.constant 0 : i32
    %c0_i32_1 = arith.constant 0 : i32
    %c0_i32_2 = arith.constant 0 : i32
    return %c0_i32, %c0_i32_0, %c0_i32_1 : i32, i32, i32
  }
  func.func @transform_15(%arg0: i32) -> (i32, i32, i32) {
    %c0_i32 = arith.constant 0 : i32
    %c0_i32_0 = arith.constant 0 : i32
    %c0_i32_1 = arith.constant 0 : i32
    %c0_i32_2 = arith.constant 0 : i32
    return %c0_i32, %c0_i32_0, %c0_i32_1 : i32, i32, i32
  }
  func.func @transform_16(%arg0: i32) -> (i32, i32, i32) {
    %c0_i32 = arith.constant 0 : i32
    %c0_i32_0 = arith.constant 0 : i32
    %c0_i32_1 = arith.constant 0 : i32
    %c0_i32_2 = arith.constant 0 : i32
    return %c0_i32, %c0_i32_0, %c0_i32_1 : i32, i32, i32
  }
  func.func @transform_17(%arg0: i32) -> (i32, i32, i32) {
    %c0_i32 = arith.constant 0 : i32
    %c0_i32_0 = arith.constant 0 : i32
    %c0_i32_1 = arith.constant 0 : i32
    %c0_i32_2 = arith.constant 0 : i32
    return %c0_i32, %c0_i32_0, %c0_i32_1 : i32, i32, i32
  }
  func.func @transform_18(%arg0: i32) -> (i32, i32, i32) {
    %c0_i32 = arith.constant 0 : i32
    %c0_i32_0 = arith.constant 0 : i32
    %c0_i32_1 = arith.constant 0 : i32
    %c0_i32_2 = arith.constant 0 : i32
    return %c0_i32, %c0_i32_0, %c0_i32_1 : i32, i32, i32
  }
  func.func @transform_19(%arg0: i32) -> (i32, i32, i32) {
    %c0_i32 = arith.constant 0 : i32
    %c0_i32_0 = arith.constant 0 : i32
    %c0_i32_1 = arith.constant 0 : i32
    return %arg0, %c0_i32, %c0_i32_0 : i32, i32, i32
  }
  func.func @transform_20(%arg0: i32) -> (i32, i32, i32) {
    %c0_i32 = arith.constant 0 : i32
    %c0_i32_0 = arith.constant 0 : i32
    %c0_i32_1 = arith.constant 0 : i32
    return %arg0, %c0_i32, %c0_i32_0 : i32, i32, i32
  }
  func.func @transform_21(%arg0: i32) -> (i32, i32) {
    %c0_i32 = arith.constant 0 : i32
    %c0_i32_0 = arith.constant 0 : i32
    %c0_i32_1 = arith.constant 0 : i32
    return %c0_i32, %c0_i32_0 : i32, i32
  }
  func.func @transform_22(%arg0: i32) -> (i32, i32) {
    %c0_i32 = arith.constant 0 : i32
    %c0_i32_0 = arith.constant 0 : i32
    %c0_i32_1 = arith.constant 0 : i32
    return %c0_i32, %c0_i32_0 : i32, i32
  }
  func.func @transform_23(%arg0: i32) -> (i32, i32) {
    %c0_i32 = arith.constant 0 : i32
    %c0_i32_0 = arith.constant 0 : i32
    %c0_i32_1 = arith.constant 0 : i32
    return %c0_i32, %c0_i32_0 : i32, i32
  }
  func.func @transform_24(%arg0: i32) -> (i32, i32) {
    %c0_i32 = arith.constant 0 : i32
    %c0_i32_0 = arith.constant 0 : i32
    %c0_i32_1 = arith.constant 0 : i32
    return %c0_i32, %c0_i32_0 : i32, i32
  }
  func.func @transform_25(%arg0: i32) -> (i32, i32, i32, i32) {
    %c0_i32 = arith.constant 0 : i32
    %c0_i32_0 = arith.constant 0 : i32
    %c0_i32_1 = arith.constant 0 : i32
    %c0_i32_2 = arith.constant 0 : i32
    %c0_i32_3 = arith.constant 0 : i32
    return %c0_i32, %c0_i32_0, %c0_i32_1, %c0_i32_2 : i32, i32, i32, i32
  }
  func.func @transform_26(%arg0: i32) -> (i32, i32, i32, i32) {
    %c0_i32 = arith.constant 0 : i32
    %c0_i32_0 = arith.constant 0 : i32
    %c0_i32_1 = arith.constant 0 : i32
    %c0_i32_2 = arith.constant 0 : i32
    %c0_i32_3 = arith.constant 0 : i32
    return %c0_i32, %c0_i32_0, %c0_i32_1, %c0_i32_2 : i32, i32, i32, i32
  }
  func.func @transform_27(%arg0: i32) -> (i32, i32, i32, i32) {
    %c0_i32 = arith.constant 0 : i32
    %c0_i32_0 = arith.constant 0 : i32
    %c0_i32_1 = arith.constant 0 : i32
    %c0_i32_2 = arith.constant 0 : i32
    %c0_i32_3 = arith.constant 0 : i32
    return %c0_i32, %c0_i32_0, %c0_i32_1, %c0_i32_2 : i32, i32, i32, i32
  }
  func.func @transform_28(%arg0: i32) -> (i32, i32, i32, i32) {
    %c0_i32 = arith.constant 0 : i32
    %c0_i32_0 = arith.constant 0 : i32
    %c0_i32_1 = arith.constant 0 : i32
    %c0_i32_2 = arith.constant 0 : i32
    %c0_i32_3 = arith.constant 0 : i32
    return %c0_i32, %c0_i32_0, %c0_i32_1, %c0_i32_2 : i32, i32, i32, i32
  }
  func.func @transform_29(%arg0: i32) -> (i32, i32, i32, i32) {
    %c0_i32 = arith.constant 0 : i32
    %c0_i32_0 = arith.constant 0 : i32
    %c0_i32_1 = arith.constant 0 : i32
    %c0_i32_2 = arith.constant 0 : i32
    %c0_i32_3 = arith.constant 0 : i32
    return %c0_i32, %c0_i32_0, %c0_i32_1, %c0_i32_2 : i32, i32, i32, i32
  }
  func.func @transform_30(%arg0: i32) -> (i32, i32, i32, i32) {
    %c0_i32 = arith.constant 0 : i32
    %c0_i32_0 = arith.constant 0 : i32
    %c0_i32_1 = arith.constant 0 : i32
    %c0_i32_2 = arith.constant 0 : i32
    %c0_i32_3 = arith.constant 0 : i32
    return %c0_i32, %c0_i32_0, %c0_i32_1, %c0_i32_2 : i32, i32, i32, i32
  }
  func.func @transform_31(%arg0: i32) -> (i32, i32, i32, i32) {
    %c0_i32 = arith.constant 0 : i32
    %c0_i32_0 = arith.constant 0 : i32
    %c0_i32_1 = arith.constant 0 : i32
    %c0_i32_2 = arith.constant 0 : i32
    %c0_i32_3 = arith.constant 0 : i32
    return %c0_i32, %c0_i32_0, %c0_i32_1, %c0_i32_2 : i32, i32, i32, i32
  }
  func.func @transform_32(%arg0: i32) -> (i32, i32, i32, i32) {
    %c0_i32 = arith.constant 0 : i32
    %c0_i32_0 = arith.constant 0 : i32
    %c0_i32_1 = arith.constant 0 : i32
    %c0_i32_2 = arith.constant 0 : i32
    %c0_i32_3 = arith.constant 0 : i32
    return %c0_i32, %c0_i32_0, %c0_i32_1, %c0_i32_2 : i32, i32, i32, i32
  }
  func.func @transform_33(%arg0: i32) -> (i32, i32, i32) {
    %c0_i32 = arith.constant 0 : i32
    %c0_i32_0 = arith.constant 0 : i32
    %c0_i32_1 = arith.constant 0 : i32
    %c0_i32_2 = arith.constant 0 : i32
    return %c0_i32, %c0_i32_0, %c0_i32_1 : i32, i32, i32
  }
  func.func @transform_34(%arg0: i32) -> (i32, i32, i32) {
    %c0_i32 = arith.constant 0 : i32
    %c0_i32_0 = arith.constant 0 : i32
    %c0_i32_1 = arith.constant 0 : i32
    %c0_i32_2 = arith.constant 0 : i32
    return %c0_i32, %c0_i32_0, %c0_i32_1 : i32, i32, i32
  }
  func.func @transform_35(%arg0: i32) -> (i32, i32, i32) {
    %c0_i32 = arith.constant 0 : i32
    %c0_i32_0 = arith.constant 0 : i32
    %c0_i32_1 = arith.constant 0 : i32
    %c0_i32_2 = arith.constant 0 : i32
    return %c0_i32, %c0_i32_0, %c0_i32_1 : i32, i32, i32
  }
  func.func @transform_36(%arg0: i32) -> (i32, i32, i32) {
    %c0_i32 = arith.constant 0 : i32
    %c0_i32_0 = arith.constant 0 : i32
    %c0_i32_1 = arith.constant 0 : i32
    %c0_i32_2 = arith.constant 0 : i32
    return %c0_i32, %c0_i32_0, %c0_i32_1 : i32, i32, i32
  }
  func.func @transform_37(%arg0: i32) -> (i32, i32, i32) {
    %c0_i32 = arith.constant 0 : i32
    %c0_i32_0 = arith.constant 0 : i32
    %c0_i32_1 = arith.constant 0 : i32
    %c0_i32_2 = arith.constant 0 : i32
    return %c0_i32, %c0_i32_0, %c0_i32_1 : i32, i32, i32
  }
  func.func @transform_38(%arg0: i32) -> (i32, i32) {
    %c0_i32 = arith.constant 0 : i32
    %c0_i32_0 = arith.constant 0 : i32
    %c0_i32_1 = arith.constant 0 : i32
    return %c0_i32, %c0_i32_0 : i32, i32
  }
  func.func @transform_39(%arg0: i32) -> (i32, i32) {
    %c0_i32 = arith.constant 0 : i32
    %c0_i32_0 = arith.constant 0 : i32
    %c0_i32_1 = arith.constant 0 : i32
    return %c0_i32, %c0_i32_0 : i32, i32
  }
  func.func @transform_40(%arg0: i32) -> (i32, i32, i32) {
    %c0_i32 = arith.constant 0 : i32
    %c0_i32_0 = arith.constant 0 : i32
    %c0_i32_1 = arith.constant 0 : i32
    return %arg0, %c0_i32, %c0_i32_0 : i32, i32, i32
  }
}

</mosaic_0001>

<llo_original>
// kernel: _lambda_.1
$region0: #{_lambda_.1}
  #allocation0 [shape = 'u32[]', space=smem, size = 0x4, offset = 0x4, fixed_abs, tag = 'smem constant byte address 0x4 - core index']
  #allocation1 [shape = 'u32[72,128]{1,0:T(1,128)}', space=vmem, size = 0x9000, scoped, tag = 'internal scratch']
  %s0 = inlined_call_operand.smem [shape: u32[41], index: -1, kind: input, shape index: {}]
  %s1 = sld [smem:[%s0]]
  %s2 = scalar_lea.smem %s0, 1
  %s3 = sld [smem:[%s2]]
  %s4 = scalar_lea.smem %s0, 2
  %s5 = sld [smem:[%s4]]
  %s6 = scalar_lea.smem %s0, 3
  %s7 = sld [smem:[%s6]]
  %s8 = scalar_lea.smem %s0, 4
  %s9 = sld [smem:[%s8]]
  %s10 = scalar_lea.smem %s0, 5
  %s11 = sld [smem:[%s10]]
  %s12 = scalar_lea.smem %s0, 6
  %s13 = sld [smem:[%s12]]
  %s14 = scalar_lea.smem %s0, 7
  %s15 = sld [smem:[%s14]]
  %s16 = scalar_lea.smem %s0, 8
  %s17 = sld [smem:[%s16]]
  %s18 = scalar_lea.smem %s0, 9
  %s19 = sld [smem:[%s18]]
  %s20 = scalar_lea.smem %s0, 10
  %s21 = sld [smem:[%s20]]
  %s22 = scalar_lea.smem %s0, 11
  %s23 = sld [smem:[%s22]]
  %s24 = scalar_lea.smem %s0, 12
  %s25 = sld [smem:[%s24]]
  %s26 = scalar_lea.smem %s0, 13
  %s27 = sld [smem:[%s26]]
  %s28 = scalar_lea.smem %s0, 14
  %s29 = sld [smem:[%s28]]
  %s30 = scalar_lea.smem %s0, 15
  %s31 = sld [smem:[%s30]]
  %s32 = scalar_lea.smem %s0, 16
  %s33 = sld [smem:[%s32]]
  %s34 = scalar_lea.smem %s0, 17
  %s35 = sld [smem:[%s34]]
  %s36 = scalar_lea.smem %s0, 18
  %s37 = sld [smem:[%s36]]
  %s38 = scalar_lea.smem %s0, 19
  %s39 = sld [smem:[%s38]]
  %s40 = scalar_lea.smem %s0, 20
  %s41 = sld [smem:[%s40]]
  %s42 = scalar_lea.smem %s0, 21
  %s43 = sld [smem:[%s42]]
  %s44 = scalar_lea.smem %s0, 22
  %s45 = sld [smem:[%s44]]
  %s46 = scalar_lea.smem %s0, 23
  %s47 = sld [smem:[%s46]]
  %s48 = scalar_lea.smem %s0, 24
  %s49 = sld [smem:[%s48]]
  %s50 = scalar_lea.smem %s0, 25
  %s51 = sld [smem:[%s50]]
  %s52 = scalar_lea.smem %s0, 26
  %s53 = sld [smem:[%s52]]
  %s54 = scalar_lea.smem %s0, 27
  %s55 = sld [smem:[%s54]]
  %s56 = scalar_lea.smem %s0, 28
  %s57 = sld [smem:[%s56]]
  %s58 = scalar_lea.smem %s0, 29
  %s59 = sld [smem:[%s58]]
  %s60 = scalar_lea.smem %s0, 30
  %s61 = sld [smem:[%s60]]
  %s62 = scalar_lea.smem %s0, 31
  %s63 = sld [smem:[%s62]]
  %s64 = scalar_lea.smem %s0, 32
  %s65 = sld [smem:[%s64]]
  %s66 = scalar_lea.smem %s0, 33
  %s67 = sld [smem:[%s66]]
  %s68 = scalar_lea.smem %s0, 34
  %s69 = sld [smem:[%s68]]
  %s70 = scalar_lea.smem %s0, 35
  %s71 = sld [smem:[%s70]]
  %s72 = scalar_lea.smem %s0, 36
  %s73 = sld [smem:[%s72]]
  %s74 = scalar_lea.smem %s0, 37
  %s75 = sld [smem:[%s74]]
  %s76 = scalar_lea.smem %s0, 38
  %s77 = sld [smem:[%s76]]
  %s78 = scalar_lea.smem %s0, 39
  %s79 = sld [smem:[%s78]]
  %s80 = scalar_lea.smem %s0, 40
  %s81 = sld [smem:[%s80]]
  %s82 = sld [smem:[#allocation0]]
  $region193: #{_lambda_.1} parent=0
    _
  %s84 = ssub.s32 1, %s82
  %s85 = scalar_select 0, %s84, %s82
  $region1: #{_lambda_.1} parent=0
    #allocation2 [shape = 'u8[1024]{0}', space=vmem, size = 0x400, scoped, tag = 'output window, operand 0']
    #allocation3 [shape = 's32[2]{0}', space=sflag, size = 0x8, scoped, tag = 'scoped memory for _lambda_.1']
    %86 = vsyncpa [#allocation3], 0
    %s87 = scalar_lea.sflag [#allocation3], 1
    %88 = vsyncpa %s87, 0
    loop: start=0, step=1, limit=4
    $region2: #{_lambda_.1} parent=1 // loop_pre_header
      _
    $region3: #{_lambda_.1} parent=1 // loop_header
      %s90 = sphi 0, %s94
      %p91 = scmp.ge.s32.totalorder %s90, 4
      %s100 = sphi 0, %s102
      %s103 = sphi 0, %s100
      %s104 = sphi 0, %s103
      %s120 = sphi 0, %s104
      %s124 = sphi 0, %s124
      %s126 = sphi 0, %s124
      %s127 = sphi 0, %s126
      %s141 = sphi 0, %s127
      %s145 = sphi 0, %s145
      %s147 = sphi 0, %s145
      %s148 = sphi 0, %s147
      %s162 = sphi 0, %s148
      %s166 = sphi 0, %s166
      %s168 = sphi 0, %s166
      %s169 = sphi 0, %s168
      %s183 = sphi 0, %s169
      %s187 = sphi 0, %s187
      %s189 = sphi 0, %s187
      %s190 = sphi 0, %s189
      %s204 = sphi 0, %s190
      %s208 = sphi 0, %s208
      %s210 = sphi 0, %s208
      %s211 = sphi 0, %s210
      %s225 = sphi 0, %s211
      %s229 = sphi 0, %s229
      %s231 = sphi 0, %s229
      %s232 = sphi 0, %s231
      %s246 = sphi 0, %s232
      %s250 = sphi 0, %s250
      %s252 = sphi 0, %s250
      %s253 = sphi 0, %s252
      %s267 = sphi 0, %s253
      %s271 = sphi 0, %s271
      %s273 = sphi 0, %s271
      %s274 = sphi 0, %s273
      %s288 = sphi 0, %s274
      %s292 = sphi 0, %s292
      %s294 = sphi 0, %s292
      %s295 = sphi 0, %s294
      %s309 = sphi 0, %s295
      %s313 = sphi 0, %s313
      %s315 = sphi 0, %s313
      %s316 = sphi 0, %s315
      %s330 = sphi 0, %s316
      %s334 = sphi 0, %s334
      %s336 = sphi 0, %s334
      %s337 = sphi 0, %s336
      %s351 = sphi 0, %s337
      %s355 = sphi 0, %s355
      %s357 = sphi 0, %s355
      %s358 = sphi 0, %s357
      %s372 = sphi 0, %s358
      %s376 = sphi 0, %s376
      %s378 = sphi 0, %s376
      %s379 = sphi 0, %s378
      %s393 = sphi 0, %s379
      %s397 = sphi 0, %s397
      %s399 = sphi 0, %s397
      %s400 = sphi 0, %s399
      %s414 = sphi 0, %s400
      %s418 = sphi 0, %s418
      %s420 = sphi 0, %s418
      %s421 = sphi 0, %s420
      %s435 = sphi 0, %s421
      %s439 = sphi 0, %s439
      %s441 = sphi 0, %s439
      %s442 = sphi 0, %s441
      %s456 = sphi 0, %s442
      %s460 = sphi 0, %s460
      %s462 = sphi 0, %s460
      %s463 = sphi 0, %s462
      %s477 = sphi 0, %s463
      %s481 = sphi 0, %s481
      %s483 = sphi 0, %s481
      %s484 = sphi 0, %s483
      %s498 = sphi 0, %s484
      %s504 = sphi 0, %s506
      %s507 = sphi 0, %s504
      %s508 = sphi 0, %s507
      %s524 = sphi 0, %s508
      %s530 = sphi 0, %s532
      %s533 = sphi 0, %s530
      %s534 = sphi 0, %s533
      %s550 = sphi 0, %s534
      %s554 = sphi 0, %s554
      %s556 = sphi 0, %s554
      %s557 = sphi 0, %s556
      %s571 = sphi 0, %s557
      %s575 = sphi 0, %s575
      %s577 = sphi 0, %s575
      %s578 = sphi 0, %s577
      %s592 = sphi 0, %s578
      %s596 = sphi 0, %s596
      %s598 = sphi 0, %s596
      %s599 = sphi 0, %s598
      %s613 = sphi 0, %s599
      %s617 = sphi 0, %s617
      %s619 = sphi 0, %s617
      %s620 = sphi 0, %s619
      %s634 = sphi 0, %s620
      %s638 = sphi 0, %s638
      %s640 = sphi 0, %s638
      %s641 = sphi 0, %s640
      %s655 = sphi 0, %s641
      %s659 = sphi 0, %s659
      %s661 = sphi 0, %s659
      %s662 = sphi 0, %s661
      %s676 = sphi 0, %s662
      %s680 = sphi 0, %s680
      %s682 = sphi 0, %s680
      %s683 = sphi 0, %s682
      %s697 = sphi 0, %s683
      %s701 = sphi 0, %s701
      %s703 = sphi 0, %s701
      %s704 = sphi 0, %s703
      %s718 = sphi 0, %s704
      %s722 = sphi 0, %s722
      %s724 = sphi 0, %s722
      %s725 = sphi 0, %s724
      %s739 = sphi 0, %s725
      %s743 = sphi 0, %s743
      %s745 = sphi 0, %s743
      %s746 = sphi 0, %s745
      %s760 = sphi 0, %s746
      %s764 = sphi 0, %s764
      %s766 = sphi 0, %s764
      %s767 = sphi 0, %s766
      %s781 = sphi 0, %s767
      %s785 = sphi 0, %s785
      %s787 = sphi 0, %s785
      %s788 = sphi 0, %s787
      %s802 = sphi 0, %s788
      %s806 = sphi 0, %s806
      %s808 = sphi 0, %s806
      %s809 = sphi 0, %s808
      %s823 = sphi 0, %s809
      %s827 = sphi 0, %s827
      %s829 = sphi 0, %s827
      %s830 = sphi 0, %s829
      %s844 = sphi 0, %s830
      %s848 = sphi 0, %s848
      %s850 = sphi 0, %s848
      %s851 = sphi 0, %s850
      %s865 = sphi 0, %s851
      %s869 = sphi 0, %s869
      %s871 = sphi 0, %s869
      %s872 = sphi 0, %s871
      %s886 = sphi 0, %s872
      %s890 = sphi 0, %s890
      %s892 = sphi 0, %s890
      %s893 = sphi 0, %s892
      %s907 = sphi 0, %s893
      %s911 = sphi 0, %s911
      %s913 = sphi 0, %s911
      %s914 = sphi 0, %s913
      %s928 = sphi 0, %s914
      %s932 = sphi 0, %s932
      %s934 = sphi 0, %s932
      %s935 = sphi 0, %s934
      %s949 = sphi 0, %s935
      %s955 = sphi 0, %s957
      %s958 = sphi 0, %s955
      %s959 = sphi 0, %s958
      %s975 = sphi 0, %s959
    $region4: #{_lambda_.1} parent=1 // loop_header_branch
      %93 = sbr.rel (%p91) target = $region8
    $region5: #{_lambda_.1} parent=1 // loop_body
      %s95 = ssub.s32 %s90, 1
      %s96 = ssub.s32 %s90, 2
      %s97 = sadd.s32 %s90, 1
      %s98 = ssub.s32 %s90, %s97
      %p99 = scmp.eq.s32.totalorder %s98, 0
      %s101 = sadd.s32 %s100, 1
      %s102 = scalar_select %p99, %s100, %s101
      %p105 = pneg %p99
      %p106 = scmp.eq.s32.totalorder %s90, 1
      %p107 = por %p105, %p106
      %p108 = scmp.ne.s32.totalorder %s100, %s103
      %p109 = scmp.eq.s32.totalorder %s90, 0
      %p110 = por %p108, %p109
      %p111 = scmp.ne.s32.totalorder %s100, %s103
      %p112 = scmp.eq.s32.totalorder %s95, 1
      %p113 = por %p111, %p112
      %p114 = scmp.ne.s32.totalorder %s103, %s104
      %p115 = scmp.eq.s32.totalorder %s95, 0
      %p116 = por %p114, %p115
      %p117 = scmp.ne.s32.totalorder %s103, %s104
      %p118 = scmp.eq.s32.totalorder %s96, 1
      %p119 = por %p117, %p118
      %p121 = scmp.ne.s32.totalorder %s104, %s120
      %p122 = scmp.eq.s32.totalorder %s96, 0
      %p123 = por %p121, %p122
      %s125 = sadd.s32 %s124, 1
      %p128 = scmp.eq.s32.totalorder %s90, 1
      %p129 = scmp.ne.s32.totalorder %s124, %s126
      %p130 = scmp.eq.s32.totalorder %s90, 0
      %p131 = por %p129, %p130
      %p132 = scmp.ne.s32.totalorder %s124, %s126
      %p133 = scmp.eq.s32.totalorder %s95, 1
      %p134 = por %p132, %p133
      %p135 = scmp.ne.s32.totalorder %s126, %s127
      %p136 = scmp.eq.s32.totalorder %s95, 0
      %p137 = por %p135, %p136
      %p138 = scmp.ne.s32.totalorder %s126, %s127
      %p139 = scmp.eq.s32.totalorder %s96, 1
      %p140 = por %p138, %p139
      %p142 = scmp.ne.s32.totalorder %s127, %s141
      %p143 = scmp.eq.s32.totalorder %s96, 0
      %p144 = por %p142, %p143
      %s146 = sadd.s32 %s145, 1
      %p149 = scmp.eq.s32.totalorder %s90, 1
      %p150 = scmp.ne.s32.totalorder %s145, %s147
      %p151 = scmp.eq.s32.totalorder %s90, 0
      %p152 = por %p150, %p151
      %p153 = scmp.ne.s32.totalorder %s145, %s147
      %p154 = scmp.eq.s32.totalorder %s95, 1
      %p155 = por %p153, %p154
      %p156 = scmp.ne.s32.totalorder %s147, %s148
      %p157 = scmp.eq.s32.totalorder %s95, 0
      %p158 = por %p156, %p157
      %p159 = scmp.ne.s32.totalorder %s147, %s148
      %p160 = scmp.eq.s32.totalorder %s96, 1
      %p161 = por %p159, %p160
      %p163 = scmp.ne.s32.totalorder %s148, %s162
      %p164 = scmp.eq.s32.totalorder %s96, 0
      %p165 = por %p163, %p164
      %s167 = sadd.s32 %s166, 1
      %p170 = scmp.eq.s32.totalorder %s90, 1
      %p171 = scmp.ne.s32.totalorder %s166, %s168
      %p172 = scmp.eq.s32.totalorder %s90, 0
      %p173 = por %p171, %p172
      %p174 = scmp.ne.s32.totalorder %s166, %s168
      %p175 = scmp.eq.s32.totalorder %s95, 1
      %p176 = por %p174, %p175
      %p177 = scmp.ne.s32.totalorder %s168, %s169
      %p178 = scmp.eq.s32.totalorder %s95, 0
      %p179 = por %p177, %p178
      %p180 = scmp.ne.s32.totalorder %s168, %s169
      %p181 = scmp.eq.s32.totalorder %s96, 1
      %p182 = por %p180, %p181
      %p184 = scmp.ne.s32.totalorder %s169, %s183
      %p185 = scmp.eq.s32.totalorder %s96, 0
      %p186 = por %p184, %p185
      %s188 = sadd.s32 %s187, 1
      %p191 = scmp.eq.s32.totalorder %s90, 1
      %p192 = scmp.ne.s32.totalorder %s187, %s189
      %p193 = scmp.eq.s32.totalorder %s90, 0
      %p194 = por %p192, %p193
      %p195 = scmp.ne.s32.totalorder %s187, %s189
      %p196 = scmp.eq.s32.totalorder %s95, 1
      %p197 = por %p195, %p196
      %p198 = scmp.ne.s32.totalorder %s189, %s190
      %p199 = scmp.eq.s32.totalorder %s95, 0
      %p200 = por %p198, %p199
      %p201 = scmp.ne.s32.totalorder %s189, %s190
      %p202 = scmp.eq.s32.totalorder %s96, 1
      %p203 = por %p201, %p202
      %p205 = scmp.ne.s32.totalorder %s190, %s204
      %p206 = scmp.eq.s32.totalorder %s96, 0
      %p207 = por %p205, %p206
      %s209 = sadd.s32 %s208, 1
      %p212 = scmp.eq.s32.totalorder %s90, 1
      %p213 = scmp.ne.s32.totalorder %s208, %s210
      %p214 = scmp.eq.s32.totalorder %s90, 0
      %p215 = por %p213, %p214
      %p216 = scmp.ne.s32.totalorder %s208, %s210
      %p217 = scmp.eq.s32.totalorder %s95, 1
      %p218 = por %p216, %p217
      %p219 = scmp.ne.s32.totalorder %s210, %s211
      %p220 = scmp.eq.s32.totalorder %s95, 0
      %p221 = por %p219, %p220
      %p222 = scmp.ne.s32.totalorder %s210, %s211
      %p223 = scmp.eq.s32.totalorder %s96, 1
      %p224 = por %p222, %p223
      %p226 = scmp.ne.s32.totalorder %s211, %s225
      %p227 = scmp.eq.s32.totalorder %s96, 0
      %p228 = por %p226, %p227
      %s230 = sadd.s32 %s229, 1
      %p233 = scmp.eq.s32.totalorder %s90, 1
      %p234 = scmp.ne.s32.totalorder %s229, %s231
      %p235 = scmp.eq.s32.totalorder %s90, 0
      %p236 = por %p234, %p235
      %p237 = scmp.ne.s32.totalorder %s229, %s231
      %p238 = scmp.eq.s32.totalorder %s95, 1
      %p239 = por %p237, %p238
      %p240 = scmp.ne.s32.totalorder %s231, %s232
      %p241 = scmp.eq.s32.totalorder %s95, 0
      %p242 = por %p240, %p241
      %p243 = scmp.ne.s32.totalorder %s231, %s232
      %p244 = scmp.eq.s32.totalorder %s96, 1
      %p245 = por %p243, %p244
      %p247 = scmp.ne.s32.totalorder %s232, %s246
      %p248 = scmp.eq.s32.totalorder %s96, 0
      %p249 = por %p247, %p248
      %s251 = sadd.s32 %s250, 1
      %p254 = scmp.eq.s32.totalorder %s90, 1
      %p255 = scmp.ne.s32.totalorder %s250, %s252
      %p256 = scmp.eq.s32.totalorder %s90, 0
      %p257 = por %p255, %p256
      %p258 = scmp.ne.s32.totalorder %s250, %s252
      %p259 = scmp.eq.s32.totalorder %s95, 1
      %p260 = por %p258, %p259
      %p261 = scmp.ne.s32.totalorder %s252, %s253
      %p262 = scmp.eq.s32.totalorder %s95, 0
      %p263 = por %p261, %p262
      %p264 = scmp.ne.s32.totalorder %s252, %s253
      %p265 = scmp.eq.s32.totalorder %s96, 1
      %p266 = por %p264, %p265
      %p268 = scmp.ne.s32.totalorder %s253, %s267
      %p269 = scmp.eq.s32.totalorder %s96, 0
      %p270 = por %p268, %p269
      %s272 = sadd.s32 %s271, 1
      %p275 = scmp.eq.s32.totalorder %s90, 1
      %p276 = scmp.ne.s32.totalorder %s271, %s273
      %p277 = scmp.eq.s32.totalorder %s90, 0
      %p278 = por %p276, %p277
      %p279 = scmp.ne.s32.totalorder %s271, %s273
      %p280 = scmp.eq.s32.totalorder %s95, 1
      %p281 = por %p279, %p280
      %p282 = scmp.ne.s32.totalorder %s273, %s274
      %p283 = scmp.eq.s32.totalorder %s95, 0
      %p284 = por %p282, %p283
      %p285 = scmp.ne.s32.totalorder %s273, %s274
      %p286 = scmp.eq.s32.totalorder %s96, 1
      %p287 = por %p285, %p286
      %p289 = scmp.ne.s32.totalorder %s274, %s288
      %p290 = scmp.eq.s32.totalorder %s96, 0
      %p291 = por %p289, %p290
      %s293 = sadd.s32 %s292, 1
      %p296 = scmp.eq.s32.totalorder %s90, 1
      %p297 = scmp.ne.s32.totalorder %s292, %s294
      %p298 = scmp.eq.s32.totalorder %s90, 0
      %p299 = por %p297, %p298
      %p300 = scmp.ne.s32.totalorder %s292, %s294
      %p301 = scmp.eq.s32.totalorder %s95, 1
      %p302 = por %p300, %p301
      %p303 = scmp.ne.s32.totalorder %s294, %s295
      %p304 = scmp.eq.s32.totalorder %s95, 0
      %p305 = por %p303, %p304
      %p306 = scmp.ne.s32.totalorder %s294, %s295
      %p307 = scmp.eq.s32.totalorder %s96, 1
      %p308 = por %p306, %p307
      %p310 = scmp.ne.s32.totalorder %s295, %s309
      %p311 = scmp.eq.s32.totalorder %s96, 0
      %p312 = por %p310, %p311
      %s314 = sadd.s32 %s313, 1
      %p317 = scmp.eq.s32.totalorder %s90, 1
      %p318 = scmp.ne.s32.totalorder %s313, %s315
      %p319 = scmp.eq.s32.totalorder %s90, 0
      %p320 = por %p318, %p319
      %p321 = scmp.ne.s32.totalorder %s313, %s315
      %p322 = scmp.eq.s32.totalorder %s95, 1
      %p323 = por %p321, %p322
      %p324 = scmp.ne.s32.totalorder %s315, %s316
      %p325 = scmp.eq.s32.totalorder %s95, 0
      %p326 = por %p324, %p325
      %p327 = scmp.ne.s32.totalorder %s315, %s316
      %p328 = scmp.eq.s32.totalorder %s96, 1
      %p329 = por %p327, %p328
      %p331 = scmp.ne.s32.totalorder %s316, %s330
      %p332 = scmp.eq.s32.totalorder %s96, 0
      %p333 = por %p331, %p332
      %s335 = sadd.s32 %s334, 1
      %p338 = scmp.eq.s32.totalorder %s90, 1
      %p339 = scmp.ne.s32.totalorder %s334, %s336
      %p340 = scmp.eq.s32.totalorder %s90, 0
      %p341 = por %p339, %p340
      %p342 = scmp.ne.s32.totalorder %s334, %s336
      %p343 = scmp.eq.s32.totalorder %s95, 1
      %p344 = por %p342, %p343
      %p345 = scmp.ne.s32.totalorder %s336, %s337
      %p346 = scmp.eq.s32.totalorder %s95, 0
      %p347 = por %p345, %p346
      %p348 = scmp.ne.s32.totalorder %s336, %s337
      %p349 = scmp.eq.s32.totalorder %s96, 1
      %p350 = por %p348, %p349
      %p352 = scmp.ne.s32.totalorder %s337, %s351
      %p353 = scmp.eq.s32.totalorder %s96, 0
      %p354 = por %p352, %p353
      %s356 = sadd.s32 %s355, 1
      %p359 = scmp.eq.s32.totalorder %s90, 1
      %p360 = scmp.ne.s32.totalorder %s355, %s357
      %p361 = scmp.eq.s32.totalorder %s90, 0
      %p362 = por %p360, %p361
      %p363 = scmp.ne.s32.totalorder %s355, %s357
      %p364 = scmp.eq.s32.totalorder %s95, 1
      %p365 = por %p363, %p364
      %p366 = scmp.ne.s32.totalorder %s357, %s358
      %p367 = scmp.eq.s32.totalorder %s95, 0
      %p368 = por %p366, %p367
      %p369 = scmp.ne.s32.totalorder %s357, %s358
      %p370 = scmp.eq.s32.totalorder %s96, 1
      %p371 = por %p369, %p370
      %p373 = scmp.ne.s32.totalorder %s358, %s372
      %p374 = scmp.eq.s32.totalorder %s96, 0
      %p375 = por %p373, %p374
      %s377 = sadd.s32 %s376, 1
      %p380 = scmp.eq.s32.totalorder %s90, 1
      %p381 = scmp.ne.s32.totalorder %s376, %s378
      %p382 = scmp.eq.s32.totalorder %s90, 0
      %p383 = por %p381, %p382
      %p384 = scmp.ne.s32.totalorder %s376, %s378
      %p385 = scmp.eq.s32.totalorder %s95, 1
      %p386 = por %p384, %p385
      %p387 = scmp.ne.s32.totalorder %s378, %s379
      %p388 = scmp.eq.s32.totalorder %s95, 0
      %p389 = por %p387, %p388
      %p390 = scmp.ne.s32.totalorder %s378, %s379
      %p391 = scmp.eq.s32.totalorder %s96, 1
      %p392 = por %p390, %p391
      %p394 = scmp.ne.s32.totalorder %s379, %s393
      %p395 = scmp.eq.s32.totalorder %s96, 0
      %p396 = por %p394, %p395
      %s398 = sadd.s32 %s397, 1
      %p401 = scmp.eq.s32.totalorder %s90, 1
      %p402 = scmp.ne.s32.totalorder %s397, %s399
      %p403 = scmp.eq.s32.totalorder %s90, 0
      %p404 = por %p402, %p403
      %p405 = scmp.ne.s32.totalorder %s397, %s399
      %p406 = scmp.eq.s32.totalorder %s95, 1
      %p407 = por %p405, %p406
      %p408 = scmp.ne.s32.totalorder %s399, %s400
      %p409 = scmp.eq.s32.totalorder %s95, 0
      %p410 = por %p408, %p409
      %p411 = scmp.ne.s32.totalorder %s399, %s400
      %p412 = scmp.eq.s32.totalorder %s96, 1
      %p413 = por %p411, %p412
      %p415 = scmp.ne.s32.totalorder %s400, %s414
      %p416 = scmp.eq.s32.totalorder %s96, 0
      %p417 = por %p415, %p416
      %s419 = sadd.s32 %s418, 1
      %p422 = scmp.eq.s32.totalorder %s90, 1
      %p423 = scmp.ne.s32.totalorder %s418, %s420
      %p424 = scmp.eq.s32.totalorder %s90, 0
      %p425 = por %p423, %p424
      %p426 = scmp.ne.s32.totalorder %s418, %s420
      %p427 = scmp.eq.s32.totalorder %s95, 1
      %p428 = por %p426, %p427
      %p429 = scmp.ne.s32.totalorder %s420, %s421
      %p430 = scmp.eq.s32.totalorder %s95, 0
      %p431 = por %p429, %p430
      %p432 = scmp.ne.s32.totalorder %s420, %s421
      %p433 = scmp.eq.s32.totalorder %s96, 1
      %p434 = por %p432, %p433
      %p436 = scmp.ne.s32.totalorder %s421, %s435
      %p437 = scmp.eq.s32.totalorder %s96, 0
      %p438 = por %p436, %p437
      %s440 = sadd.s32 %s439, 1
      %p443 = scmp.eq.s32.totalorder %s90, 1
      %p444 = scmp.ne.s32.totalorder %s439, %s441
      %p445 = scmp.eq.s32.totalorder %s90, 0
      %p446 = por %p444, %p445
      %p447 = scmp.ne.s32.totalorder %s439, %s441
      %p448 = scmp.eq.s32.totalorder %s95, 1
      %p449 = por %p447, %p448
      %p450 = scmp.ne.s32.totalorder %s441, %s442
      %p451 = scmp.eq.s32.totalorder %s95, 0
      %p452 = por %p450, %p451
      %p453 = scmp.ne.s32.totalorder %s441, %s442
      %p454 = scmp.eq.s32.totalorder %s96, 1
      %p455 = por %p453, %p454
      %p457 = scmp.ne.s32.totalorder %s442, %s456
      %p458 = scmp.eq.s32.totalorder %s96, 0
      %p459 = por %p457, %p458
      %s461 = sadd.s32 %s460, 1
      %p464 = scmp.eq.s32.totalorder %s90, 1
      %p465 = scmp.ne.s32.totalorder %s460, %s462
      %p466 = scmp.eq.s32.totalorder %s90, 0
      %p467 = por %p465, %p466
      %p468 = scmp.ne.s32.totalorder %s460, %s462
      %p469 = scmp.eq.s32.totalorder %s95, 1
      %p470 = por %p468, %p469
      %p471 = scmp.ne.s32.totalorder %s462, %s463
      %p472 = scmp.eq.s32.totalorder %s95, 0
      %p473 = por %p471, %p472
      %p474 = scmp.ne.s32.totalorder %s462, %s463
      %p475 = scmp.eq.s32.totalorder %s96, 1
      %p476 = por %p474, %p475
      %p478 = scmp.ne.s32.totalorder %s463, %s477
      %p479 = scmp.eq.s32.totalorder %s96, 0
      %p480 = por %p478, %p479
      %s482 = sadd.s32 %s481, 1
      %p485 = scmp.eq.s32.totalorder %s90, 1
      %p486 = scmp.ne.s32.totalorder %s481, %s483
      %p487 = scmp.eq.s32.totalorder %s90, 0
      %p488 = por %p486, %p487
      %p489 = scmp.ne.s32.totalorder %s481, %s483
      %p490 = scmp.eq.s32.totalorder %s95, 1
      %p491 = por %p489, %p490
      %p492 = scmp.ne.s32.totalorder %s483, %s484
      %p493 = scmp.eq.s32.totalorder %s95, 0
      %p494 = por %p492, %p493
      %p495 = scmp.ne.s32.totalorder %s483, %s484
      %p496 = scmp.eq.s32.totalorder %s96, 1
      %p497 = por %p495, %p496
      %p499 = scmp.ne.s32.totalorder %s484, %s498
      %p500 = scmp.eq.s32.totalorder %s96, 0
      %p501 = por %p499, %p500
      %s502 = ssub.s32 %s90, %s97
      %p503 = scmp.eq.s32.totalorder %s502, 0
      %s505 = sadd.s32 %s504, 1
      %s506 = scalar_select %p503, %s504, %s505
      %p509 = pneg %p503
      %p510 = scmp.eq.s32.totalorder %s90, 1
      %p511 = por %p509, %p510
      %p512 = scmp.ne.s32.totalorder %s504, %s507
      %p513 = scmp.eq.s32.totalorder %s90, 0
      %p514 = por %p512, %p513
      %p515 = scmp.ne.s32.totalorder %s504, %s507
      %p516 = scmp.eq.s32.totalorder %s95, 1
      %p517 = por %p515, %p516
      %p518 = scmp.ne.s32.totalorder %s507, %s508
      %p519 = scmp.eq.s32.totalorder %s95, 0
      %p520 = por %p518, %p519
      %p521 = scmp.ne.s32.totalorder %s507, %s508
      %p522 = scmp.eq.s32.totalorder %s96, 1
      %p523 = por %p521, %p522
      %p525 = scmp.ne.s32.totalorder %s508, %s524
      %p526 = scmp.eq.s32.totalorder %s96, 0
      %p527 = por %p525, %p526
      %s528 = ssub.s32 %s90, %s97
      %p529 = scmp.eq.s32.totalorder %s528, 0
      %s531 = sadd.s32 %s530, 1
      %s532 = scalar_select %p529, %s530, %s531
      %p535 = pneg %p529
      %p536 = scmp.eq.s32.totalorder %s90, 1
      %p537 = por %p535, %p536
      %p538 = scmp.ne.s32.totalorder %s530, %s533
      %p539 = scmp.eq.s32.totalorder %s90, 0
      %p540 = por %p538, %p539
      %p541 = scmp.ne.s32.totalorder %s530, %s533
      %p542 = scmp.eq.s32.totalorder %s95, 1
      %p543 = por %p541, %p542
      %p544 = scmp.ne.s32.totalorder %s533, %s534
      %p545 = scmp.eq.s32.totalorder %s95, 0
      %p546 = por %p544, %p545
      %p547 = scmp.ne.s32.totalorder %s533, %s534
      %p548 = scmp.eq.s32.totalorder %s96, 1
      %p549 = por %p547, %p548
      %p551 = scmp.ne.s32.totalorder %s534, %s550
      %p552 = scmp.eq.s32.totalorder %s96, 0
      %p553 = por %p551, %p552
      %s555 = sadd.s32 %s554, 1
      %p558 = scmp.eq.s32.totalorder %s90, 1
      %p559 = scmp.ne.s32.totalorder %s554, %s556
      %p560 = scmp.eq.s32.totalorder %s90, 0
      %p561 = por %p559, %p560
      %p562 = scmp.ne.s32.totalorder %s554, %s556
      %p563 = scmp.eq.s32.totalorder %s95, 1
      %p564 = por %p562, %p563
      %p565 = scmp.ne.s32.totalorder %s556, %s557
      %p566 = scmp.eq.s32.totalorder %s95, 0
      %p567 = por %p565, %p566
      %p568 = scmp.ne.s32.totalorder %s556, %s557
      %p569 = scmp.eq.s32.totalorder %s96, 1
      %p570 = por %p568, %p569
      %p572 = scmp.ne.s32.totalorder %s557, %s571
      %p573 = scmp.eq.s32.totalorder %s96, 0
      %p574 = por %p572, %p573
      %s576 = sadd.s32 %s575, 1
      %p579 = scmp.eq.s32.totalorder %s90, 1
      %p580 = scmp.ne.s32.totalorder %s575, %s577
      %p581 = scmp.eq.s32.totalorder %s90, 0
      %p582 = por %p580, %p581
      %p583 = scmp.ne.s32.totalorder %s575, %s577
      %p584 = scmp.eq.s32.totalorder %s95, 1
      %p585 = por %p583, %p584
      %p586 = scmp.ne.s32.totalorder %s577, %s578
      %p587 = scmp.eq.s32.totalorder %s95, 0
      %p588 = por %p586, %p587
      %p589 = scmp.ne.s32.totalorder %s577, %s578
      %p590 = scmp.eq.s32.totalorder %s96, 1
      %p591 = por %p589, %p590
      %p593 = scmp.ne.s32.totalorder %s578, %s592
      %p594 = scmp.eq.s32.totalorder %s96, 0
      %p595 = por %p593, %p594
      %s597 = sadd.s32 %s596, 1
      %p600 = scmp.eq.s32.totalorder %s90, 1
      %p601 = scmp.ne.s32.totalorder %s596, %s598
      %p602 = scmp.eq.s32.totalorder %s90, 0
      %p603 = por %p601, %p602
      %p604 = scmp.ne.s32.totalorder %s596, %s598
      %p605 = scmp.eq.s32.totalorder %s95, 1
      %p606 = por %p604, %p605
      %p607 = scmp.ne.s32.totalorder %s598, %s599
      %p608 = scmp.eq.s32.totalorder %s95, 0
      %p609 = por %p607, %p608
      %p610 = scmp.ne.s32.totalorder %s598, %s599
      %p611 = scmp.eq.s32.totalorder %s96, 1
      %p612 = por %p610, %p611
      %p614 = scmp.ne.s32.totalorder %s599, %s613
      %p615 = scmp.eq.s32.totalorder %s96, 0
      %p616 = por %p614, %p615
      %s618 = sadd.s32 %s617, 1
      %p621 = scmp.eq.s32.totalorder %s90, 1
      %p622 = scmp.ne.s32.totalorder %s617, %s619
      %p623 = scmp.eq.s32.totalorder %s90, 0
      %p624 = por %p622, %p623
      %p625 = scmp.ne.s32.totalorder %s617, %s619
      %p626 = scmp.eq.s32.totalorder %s95, 1
      %p627 = por %p625, %p626
      %p628 = scmp.ne.s32.totalorder %s619, %s620
      %p629 = scmp.eq.s32.totalorder %s95, 0
      %p630 = por %p628, %p629
      %p631 = scmp.ne.s32.totalorder %s619, %s620
      %p632 = scmp.eq.s32.totalorder %s96, 1
      %p633 = por %p631, %p632
      %p635 = scmp.ne.s32.totalorder %s620, %s634
      %p636 = scmp.eq.s32.totalorder %s96, 0
      %p637 = por %p635, %p636
      %s639 = sadd.s32 %s638, 1
      %p642 = scmp.eq.s32.totalorder %s90, 1
      %p643 = scmp.ne.s32.totalorder %s638, %s640
      %p644 = scmp.eq.s32.totalorder %s90, 0
      %p645 = por %p643, %p644
      %p646 = scmp.ne.s32.totalorder %s638, %s640
      %p647 = scmp.eq.s32.totalorder %s95, 1
      %p648 = por %p646, %p647
      %p649 = scmp.ne.s32.totalorder %s640, %s641
      %p650 = scmp.eq.s32.totalorder %s95, 0
      %p651 = por %p649, %p650
      %p652 = scmp.ne.s32.totalorder %s640, %s641
      %p653 = scmp.eq.s32.totalorder %s96, 1
      %p654 = por %p652, %p653
      %p656 = scmp.ne.s32.totalorder %s641, %s655
      %p657 = scmp.eq.s32.totalorder %s96, 0
      %p658 = por %p656, %p657
      %s660 = sadd.s32 %s659, 1
      %p663 = scmp.eq.s32.totalorder %s90, 1
      %p664 = scmp.ne.s32.totalorder %s659, %s661
      %p665 = scmp.eq.s32.totalorder %s90, 0
      %p666 = por %p664, %p665
      %p667 = scmp.ne.s32.totalorder %s659, %s661
      %p668 = scmp.eq.s32.totalorder %s95, 1
      %p669 = por %p667, %p668
      %p670 = scmp.ne.s32.totalorder %s661, %s662
      %p671 = scmp.eq.s32.totalorder %s95, 0
      %p672 = por %p670, %p671
      %p673 = scmp.ne.s32.totalorder %s661, %s662
      %p674 = scmp.eq.s32.totalorder %s96, 1
      %p675 = por %p673, %p674
      %p677 = scmp.ne.s32.totalorder %s662, %s676
      %p678 = scmp.eq.s32.totalorder %s96, 0
      %p679 = por %p677, %p678
      %s681 = sadd.s32 %s680, 1
      %p684 = scmp.eq.s32.totalorder %s90, 1
      %p685 = scmp.ne.s32.totalorder %s680, %s682
      %p686 = scmp.eq.s32.totalorder %s90, 0
      %p687 = por %p685, %p686
      %p688 = scmp.ne.s32.totalorder %s680, %s682
      %p689 = scmp.eq.s32.totalorder %s95, 1
      %p690 = por %p688, %p689
      %p691 = scmp.ne.s32.totalorder %s682, %s683
      %p692 = scmp.eq.s32.totalorder %s95, 0
      %p693 = por %p691, %p692
      %p694 = scmp.ne.s32.totalorder %s682, %s683
      %p695 = scmp.eq.s32.totalorder %s96, 1
      %p696 = por %p694, %p695
      %p698 = scmp.ne.s32.totalorder %s683, %s697
      %p699 = scmp.eq.s32.totalorder %s96, 0
      %p700 = por %p698, %p699
      %s702 = sadd.s32 %s701, 1
      %p705 = scmp.eq.s32.totalorder %s90, 1
      %p706 = scmp.ne.s32.totalorder %s701, %s703
      %p707 = scmp.eq.s32.totalorder %s90, 0
      %p708 = por %p706, %p707
      %p709 = scmp.ne.s32.totalorder %s701, %s703
      %p710 = scmp.eq.s32.totalorder %s95, 1
      %p711 = por %p709, %p710
      %p712 = scmp.ne.s32.totalorder %s703, %s704
      %p713 = scmp.eq.s32.totalorder %s95, 0
      %p714 = por %p712, %p713
      %p715 = scmp.ne.s32.totalorder %s703, %s704
      %p716 = scmp.eq.s32.totalorder %s96, 1
      %p717 = por %p715, %p716
      %p719 = scmp.ne.s32.totalorder %s704, %s718
      %p720 = scmp.eq.s32.totalorder %s96, 0
      %p721 = por %p719, %p720
      %s723 = sadd.s32 %s722, 1
      %p726 = scmp.eq.s32.totalorder %s90, 1
      %p727 = scmp.ne.s32.totalorder %s722, %s724
      %p728 = scmp.eq.s32.totalorder %s90, 0
      %p729 = por %p727, %p728
      %p730 = scmp.ne.s32.totalorder %s722, %s724
      %p731 = scmp.eq.s32.totalorder %s95, 1
      %p732 = por %p730, %p731
      %p733 = scmp.ne.s32.totalorder %s724, %s725
      %p734 = scmp.eq.s32.totalorder %s95, 0
      %p735 = por %p733, %p734
      %p736 = scmp.ne.s32.totalorder %s724, %s725
      %p737 = scmp.eq.s32.totalorder %s96, 1
      %p738 = por %p736, %p737
      %p740 = scmp.ne.s32.totalorder %s725, %s739
      %p741 = scmp.eq.s32.totalorder %s96, 0
      %p742 = por %p740, %p741
      %s744 = sadd.s32 %s743, 1
      %p747 = scmp.eq.s32.totalorder %s90, 1
      %p748 = scmp.ne.s32.totalorder %s743, %s745
      %p749 = scmp.eq.s32.totalorder %s90, 0
      %p750 = por %p748, %p749
      %p751 = scmp.ne.s32.totalorder %s743, %s745
      %p752 = scmp.eq.s32.totalorder %s95, 1
      %p753 = por %p751, %p752
      %p754 = scmp.ne.s32.totalorder %s745, %s746
      %p755 = scmp.eq.s32.totalorder %s95, 0
      %p756 = por %p754, %p755
      %p757 = scmp.ne.s32.totalorder %s745, %s746
      %p758 = scmp.eq.s32.totalorder %s96, 1
      %p759 = por %p757, %p758
      %p761 = scmp.ne.s32.totalorder %s746, %s760
      %p762 = scmp.eq.s32.totalorder %s96, 0
      %p763 = por %p761, %p762
      %s765 = sadd.s32 %s764, 1
      %p768 = scmp.eq.s32.totalorder %s90, 1
      %p769 = scmp.ne.s32.totalorder %s764, %s766
      %p770 = scmp.eq.s32.totalorder %s90, 0
      %p771 = por %p769, %p770
      %p772 = scmp.ne.s32.totalorder %s764, %s766
      %p773 = scmp.eq.s32.totalorder %s95, 1
      %p774 = por %p772, %p773
      %p775 = scmp.ne.s32.totalorder %s766, %s767
      %p776 = scmp.eq.s32.totalorder %s95, 0
      %p777 = por %p775, %p776
      %p778 = scmp.ne.s32.totalorder %s766, %s767
      %p779 = scmp.eq.s32.totalorder %s96, 1
      %p780 = por %p778, %p779
      %p782 = scmp.ne.s32.totalorder %s767, %s781
      %p783 = scmp.eq.s32.totalorder %s96, 0
      %p784 = por %p782, %p783
      %s786 = sadd.s32 %s785, 1
      %p789 = scmp.eq.s32.totalorder %s90, 1
      %p790 = scmp.ne.s32.totalorder %s785, %s787
      %p791 = scmp.eq.s32.totalorder %s90, 0
      %p792 = por %p790, %p791
      %p793 = scmp.ne.s32.totalorder %s785, %s787
      %p794 = scmp.eq.s32.totalorder %s95, 1
      %p795 = por %p793, %p794
      %p796 = scmp.ne.s32.totalorder %s787, %s788
      %p797 = scmp.eq.s32.totalorder %s95, 0
      %p798 = por %p796, %p797
      %p799 = scmp.ne.s32.totalorder %s787, %s788
      %p800 = scmp.eq.s32.totalorder %s96, 1
      %p801 = por %p799, %p800
      %p803 = scmp.ne.s32.totalorder %s788, %s802
      %p804 = scmp.eq.s32.totalorder %s96, 0
      %p805 = por %p803, %p804
      %s807 = sadd.s32 %s806, 1
      %p810 = scmp.eq.s32.totalorder %s90, 1
      %p811 = scmp.ne.s32.totalorder %s806, %s808
      %p812 = scmp.eq.s32.totalorder %s90, 0
      %p813 = por %p811, %p812
      %p814 = scmp.ne.s32.totalorder %s806, %s808
      %p815 = scmp.eq.s32.totalorder %s95, 1
      %p816 = por %p814, %p815
      %p817 = scmp.ne.s32.totalorder %s808, %s809
      %p818 = scmp.eq.s32.totalorder %s95, 0
      %p819 = por %p817, %p818
      %p820 = scmp.ne.s32.totalorder %s808, %s809
      %p821 = scmp.eq.s32.totalorder %s96, 1
      %p822 = por %p820, %p821
      %p824 = scmp.ne.s32.totalorder %s809, %s823
      %p825 = scmp.eq.s32.totalorder %s96, 0
      %p826 = por %p824, %p825
      %s828 = sadd.s32 %s827, 1
      %p831 = scmp.eq.s32.totalorder %s90, 1
      %p832 = scmp.ne.s32.totalorder %s827, %s829
      %p833 = scmp.eq.s32.totalorder %s90, 0
      %p834 = por %p832, %p833
      %p835 = scmp.ne.s32.totalorder %s827, %s829
      %p836 = scmp.eq.s32.totalorder %s95, 1
      %p837 = por %p835, %p836
      %p838 = scmp.ne.s32.totalorder %s829, %s830
      %p839 = scmp.eq.s32.totalorder %s95, 0
      %p840 = por %p838, %p839
      %p841 = scmp.ne.s32.totalorder %s829, %s830
      %p842 = scmp.eq.s32.totalorder %s96, 1
      %p843 = por %p841, %p842
      %p845 = scmp.ne.s32.totalorder %s830, %s844
      %p846 = scmp.eq.s32.totalorder %s96, 0
      %p847 = por %p845, %p846
      %s849 = sadd.s32 %s848, 1
      %p852 = scmp.eq.s32.totalorder %s90, 1
      %p853 = scmp.ne.s32.totalorder %s848, %s850
      %p854 = scmp.eq.s32.totalorder %s90, 0
      %p855 = por %p853, %p854
      %p856 = scmp.ne.s32.totalorder %s848, %s850
      %p857 = scmp.eq.s32.totalorder %s95, 1
      %p858 = por %p856, %p857
      %p859 = scmp.ne.s32.totalorder %s850, %s851
      %p860 = scmp.eq.s32.totalorder %s95, 0
      %p861 = por %p859, %p860
      %p862 = scmp.ne.s32.totalorder %s850, %s851
      %p863 = scmp.eq.s32.totalorder %s96, 1
      %p864 = por %p862, %p863
      %p866 = scmp.ne.s32.totalorder %s851, %s865
      %p867 = scmp.eq.s32.totalorder %s96, 0
      %p868 = por %p866, %p867
      %s870 = sadd.s32 %s869, 1
      %p873 = scmp.eq.s32.totalorder %s90, 1
      %p874 = scmp.ne.s32.totalorder %s869, %s871
      %p875 = scmp.eq.s32.totalorder %s90, 0
      %p876 = por %p874, %p875
      %p877 = scmp.ne.s32.totalorder %s869, %s871
      %p878 = scmp.eq.s32.totalorder %s95, 1
      %p879 = por %p877, %p878
      %p880 = scmp.ne.s32.totalorder %s871, %s872
      %p881 = scmp.eq.s32.totalorder %s95, 0
      %p882 = por %p880, %p881
      %p883 = scmp.ne.s32.totalorder %s871, %s872
      %p884 = scmp.eq.s32.totalorder %s96, 1
      %p885 = por %p883, %p884
      %p887 = scmp.ne.s32.totalorder %s872, %s886
      %p888 = scmp.eq.s32.totalorder %s96, 0
      %p889 = por %p887, %p888
      %s891 = sadd.s32 %s890, 1
      %p894 = scmp.eq.s32.totalorder %s90, 1
      %p895 = scmp.ne.s32.totalorder %s890, %s892
      %p896 = scmp.eq.s32.totalorder %s90, 0
      %p897 = por %p895, %p896
      %p898 = scmp.ne.s32.totalorder %s890, %s892
      %p899 = scmp.eq.s32.totalorder %s95, 1
      %p900 = por %p898, %p899
      %p901 = scmp.ne.s32.totalorder %s892, %s893
      %p902 = scmp.eq.s32.totalorder %s95, 0
      %p903 = por %p901, %p902
      %p904 = scmp.ne.s32.totalorder %s892, %s893
      %p905 = scmp.eq.s32.totalorder %s96, 1
      %p906 = por %p904, %p905
      %p908 = scmp.ne.s32.totalorder %s893, %s907
      %p909 = scmp.eq.s32.totalorder %s96, 0
      %p910 = por %p908, %p909
      %s912 = sadd.s32 %s911, 1
      %p915 = scmp.eq.s32.totalorder %s90, 1
      %p916 = scmp.ne.s32.totalorder %s911, %s913
      %p917 = scmp.eq.s32.totalorder %s90, 0
      %p918 = por %p916, %p917
      %p919 = scmp.ne.s32.totalorder %s911, %s913
      %p920 = scmp.eq.s32.totalorder %s95, 1
      %p921 = por %p919, %p920
      %p922 = scmp.ne.s32.totalorder %s913, %s914
      %p923 = scmp.eq.s32.totalorder %s95, 0
      %p924 = por %p922, %p923
      %p925 = scmp.ne.s32.totalorder %s913, %s914
      %p926 = scmp.eq.s32.totalorder %s96, 1
      %p927 = por %p925, %p926
      %p929 = scmp.ne.s32.totalorder %s914, %s928
      %p930 = scmp.eq.s32.totalorder %s96, 0
      %p931 = por %p929, %p930
      %s933 = sadd.s32 %s932, 1
      %p936 = scmp.eq.s32.totalorder %s90, 1
      %p937 = scmp.ne.s32.totalorder %s932, %s934
      %p938 = scmp.eq.s32.totalorder %s90, 0
      %p939 = por %p937, %p938
      %p940 = scmp.ne.s32.totalorder %s932, %s934
      %p941 = scmp.eq.s32.totalorder %s95, 1
      %p942 = por %p940, %p941
      %p943 = scmp.ne.s32.totalorder %s934, %s935
      %p944 = scmp.eq.s32.totalorder %s95, 0
      %p945 = por %p943, %p944
      %p946 = scmp.ne.s32.totalorder %s934, %s935
      %p947 = scmp.eq.s32.totalorder %s96, 1
      %p948 = por %p946, %p947
      %p950 = scmp.ne.s32.totalorder %s935, %s949
      %p951 = scmp.eq.s32.totalorder %s96, 0
      %p952 = por %p950, %p951
      %s953 = ssub.s32 %s90, %s97
      %p954 = scmp.eq.s32.totalorder %s953, 0
      %s956 = sadd.s32 %s955, 1
      %s957 = scalar_select %p954, %s955, %s956
      %p960 = pneg %p954
      %p961 = scmp.eq.s32.totalorder %s90, 1
      %p962 = por %p960, %p961
      %p963 = scmp.ne.s32.totalorder %s955, %s958
      %p964 = scmp.eq.s32.totalorder %s90, 0
      %p965 = por %p963, %p964
      %p966 = scmp.ne.s32.totalorder %s955, %s958
      %p967 = scmp.eq.s32.totalorder %s95, 1
      %p968 = por %p966, %p967
      %p969 = scmp.ne.s32.totalorder %s958, %s959
      %p970 = scmp.eq.s32.totalorder %s95, 0
      %p971 = por %p969, %p970
      %p972 = scmp.ne.s32.totalorder %s958, %s959
      %p973 = scmp.eq.s32.totalorder %s96, 1
      %p974 = por %p972, %p973
      %p976 = scmp.ne.s32.totalorder %s959, %s975
      %p977 = scmp.eq.s32.totalorder %s96, 0
      %p978 = por %p976, %p977
      %p979 = scmp.le.s32.totalorder 1, %s90
      %p980 = scmp.lt.s32.totalorder %s90, 3
      %p981 = pnand %p979, %p980
      %p982 = pneg %p981
      // Predicated region
      $region9: #{_lambda_.1} parent=5 // pred_check
        _
      $region10: #{_lambda_.1} parent=5 // pred_check_branch
        %984 = sbr.rel (%p981) target = $region12
      $region11: #{_lambda_.1} parent=5 // pred_region
        %s985 = ssub.s32 %s90, 1
        // Predicated region
        $region13: #{_lambda_.1} parent=11 // pred_check
          %p986 = pneg %p137
        $region14: #{_lambda_.1} parent=11 // pred_check_branch
          %988 = sbr.rel (%p986) target = $region16
        $region15: #{_lambda_.1} parent=11 // pred_region
          _
        $region16: #{_lambda_.1} parent=11 // pred_fallthru
          _
        // Predicated region
        $region17: #{_lambda_.1} parent=11 // pred_check
          %p989 = pneg %p158
        $region18: #{_lambda_.1} parent=11 // pred_check_branch
          %991 = sbr.rel (%p989) target = $region20
        $region19: #{_lambda_.1} parent=11 // pred_region
          _
        $region20: #{_lambda_.1} parent=11 // pred_fallthru
          _
        // Predicated region
        $region21: #{_lambda_.1} parent=11 // pred_check
          %p992 = pneg %p179
        $region22: #{_lambda_.1} parent=11 // pred_check_branch
          %994 = sbr.rel (%p992) target = $region24
        $region23: #{_lambda_.1} parent=11 // pred_region
          _
        $region24: #{_lambda_.1} parent=11 // pred_fallthru
          _
        // Predicated region
        $region25: #{_lambda_.1} parent=11 // pred_check
          %p995 = pneg %p200
        $region26: #{_lambda_.1} parent=11 // pred_check_branch
          %997 = sbr.rel (%p995) target = $region28
        $region27: #{_lambda_.1} parent=11 // pred_region
          _
        $region28: #{_lambda_.1} parent=11 // pred_fallthru
          _
        // Predicated region
        $region29: #{_lambda_.1} parent=11 // pred_check
          %p998 = pneg %p221
        $region30: #{_lambda_.1} parent=11 // pred_check_branch
          %1000 = sbr.rel (%p998) target = $region32
        $region31: #{_lambda_.1} parent=11 // pred_region
          _
        $region32: #{_lambda_.1} parent=11 // pred_fallthru
          _
        // Predicated region
        $region33: #{_lambda_.1} parent=11 // pred_check
          %p1001 = pneg %p242
        $region34: #{_lambda_.1} parent=11 // pred_check_branch
          %1003 = sbr.rel (%p1001) target = $region36
        $region35: #{_lambda_.1} parent=11 // pred_region
          _
        $region36: #{_lambda_.1} parent=11 // pred_fallthru
          _
        // Predicated region
        $region37: #{_lambda_.1} parent=11 // pred_check
          %p1004 = pneg %p263
        $region38: #{_lambda_.1} parent=11 // pred_check_branch
          %1006 = sbr.rel (%p1004) target = $region40
        $region39: #{_lambda_.1} parent=11 // pred_region
          _
        $region40: #{_lambda_.1} parent=11 // pred_fallthru
          _
        // Predicated region
        $region41: #{_lambda_.1} parent=11 // pred_check
          %p1007 = pneg %p284
        $region42: #{_lambda_.1} parent=11 // pred_check_branch
          %1009 = sbr.rel (%p1007) target = $region44
        $region43: #{_lambda_.1} parent=11 // pred_region
          _
        $region44: #{_lambda_.1} parent=11 // pred_fallthru
          _
        // Predicated region
        $region45: #{_lambda_.1} parent=11 // pred_check
          %p1010 = pneg %p305
        $region46: #{_lambda_.1} parent=11 // pred_check_branch
          %1012 = sbr.rel (%p1010) target = $region48
        $region47: #{_lambda_.1} parent=11 // pred_region
          _
        $region48: #{_lambda_.1} parent=11 // pred_fallthru
          _
        // Predicated region
        $region49: #{_lambda_.1} parent=11 // pred_check
          %p1013 = pneg %p326
        $region50: #{_lambda_.1} parent=11 // pred_check_branch
          %1015 = sbr.rel (%p1013) target = $region52
        $region51: #{_lambda_.1} parent=11 // pred_region
          _
        $region52: #{_lambda_.1} parent=11 // pred_fallthru
          _
        // Predicated region
        $region53: #{_lambda_.1} parent=11 // pred_check
          %p1016 = pneg %p347
        $region54: #{_lambda_.1} parent=11 // pred_check_branch
          %1018 = sbr.rel (%p1016) target = $region56
        $region55: #{_lambda_.1} parent=11 // pred_region
          _
        $region56: #{_lambda_.1} parent=11 // pred_fallthru
          _
        // Predicated region
        $region57: #{_lambda_.1} parent=11 // pred_check
          %p1019 = pneg %p368
        $region58: #{_lambda_.1} parent=11 // pred_check_branch
          %1021 = sbr.rel (%p1019) target = $region60
        $region59: #{_lambda_.1} parent=11 // pred_region
          _
        $region60: #{_lambda_.1} parent=11 // pred_fallthru
          _
        // Predicated region
        $region61: #{_lambda_.1} parent=11 // pred_check
          %p1022 = pneg %p389
        $region62: #{_lambda_.1} parent=11 // pred_check_branch
          %1024 = sbr.rel (%p1022) target = $region64
        $region63: #{_lambda_.1} parent=11 // pred_region
          _
        $region64: #{_lambda_.1} parent=11 // pred_fallthru
          _
        // Predicated region
        $region65: #{_lambda_.1} parent=11 // pred_check
          %p1025 = pneg %p410
        $region66: #{_lambda_.1} parent=11 // pred_check_branch
          %1027 = sbr.rel (%p1025) target = $region68
        $region67: #{_lambda_.1} parent=11 // pred_region
          _
        $region68: #{_lambda_.1} parent=11 // pred_fallthru
          _
        // Predicated region
        $region69: #{_lambda_.1} parent=11 // pred_check
          %p1028 = pneg %p431
        $region70: #{_lambda_.1} parent=11 // pred_check_branch
          %1030 = sbr.rel (%p1028) target = $region72
        $region71: #{_lambda_.1} parent=11 // pred_region
          _
        $region72: #{_lambda_.1} parent=11 // pred_fallthru
          _
        // Predicated region
        $region73: #{_lambda_.1} parent=11 // pred_check
          %p1031 = pneg %p452
        $region74: #{_lambda_.1} parent=11 // pred_check_branch
          %1033 = sbr.rel (%p1031) target = $region76
        $region75: #{_lambda_.1} parent=11 // pred_region
          _
        $region76: #{_lambda_.1} parent=11 // pred_fallthru
          _
        // Predicated region
        $region77: #{_lambda_.1} parent=11 // pred_check
          %p1034 = pneg %p473
        $region78: #{_lambda_.1} parent=11 // pred_check_branch
          %1036 = sbr.rel (%p1034) target = $region80
        $region79: #{_lambda_.1} parent=11 // pred_region
          _
        $region80: #{_lambda_.1} parent=11 // pred_fallthru
          _
        // Predicated region
        $region81: #{_lambda_.1} parent=11 // pred_check
          %p1037 = pneg %p494
        $region82: #{_lambda_.1} parent=11 // pred_check_branch
          %1039 = sbr.rel (%p1037) target = $region84
        $region83: #{_lambda_.1} parent=11 // pred_region
          _
        $region84: #{_lambda_.1} parent=11 // pred_fallthru
          _
        // Predicated region
        $region85: #{_lambda_.1} parent=11 // pred_check
          %p1040 = pneg %p567
        $region86: #{_lambda_.1} parent=11 // pred_check_branch
          %1042 = sbr.rel (%p1040) target = $region88
        $region87: #{_lambda_.1} parent=11 // pred_region
          _
        $region88: #{_lambda_.1} parent=11 // pred_fallthru
          _
        // Predicated region
        $region89: #{_lambda_.1} parent=11 // pred_check
          %p1043 = pneg %p588
        $region90: #{_lambda_.1} parent=11 // pred_check_branch
          %1045 = sbr.rel (%p1043) target = $region92
        $region91: #{_lambda_.1} parent=11 // pred_region
          _
        $region92: #{_lambda_.1} parent=11 // pred_fallthru
          _
        // Predicated region
        $region93: #{_lambda_.1} parent=11 // pred_check
          %p1046 = pneg %p609
        $region94: #{_lambda_.1} parent=11 // pred_check_branch
          %1048 = sbr.rel (%p1046) target = $region96
        $region95: #{_lambda_.1} parent=11 // pred_region
          _
        $region96: #{_lambda_.1} parent=11 // pred_fallthru
          _
        // Predicated region
        $region97: #{_lambda_.1} parent=11 // pred_check
          %p1049 = pneg %p630
        $region98: #{_lambda_.1} parent=11 // pred_check_branch
          %1051 = sbr.rel (%p1049) target = $region100
        $region99: #{_lambda_.1} parent=11 // pred_region
          _
        $region100: #{_lambda_.1} parent=11 // pred_fallthru
          _
        // Predicated region
        $region101: #{_lambda_.1} parent=11 // pred_check
          %p1052 = pneg %p651
        $region102: #{_lambda_.1} parent=11 // pred_check_branch
          %1054 = sbr.rel (%p1052) target = $region104
        $region103: #{_lambda_.1} parent=11 // pred_region
          _
        $region104: #{_lambda_.1} parent=11 // pred_fallthru
          _
        // Predicated region
        $region105: #{_lambda_.1} parent=11 // pred_check
          %p1055 = pneg %p672
        $region106: #{_lambda_.1} parent=11 // pred_check_branch
          %1057 = sbr.rel (%p1055) target = $region108
        $region107: #{_lambda_.1} parent=11 // pred_region
          _
        $region108: #{_lambda_.1} parent=11 // pred_fallthru
          _
        // Predicated region
        $region109: #{_lambda_.1} parent=11 // pred_check
          %p1058 = pneg %p693
        $region110: #{_lambda_.1} parent=11 // pred_check_branch
          %1060 = sbr.rel (%p1058) target = $region112
        $region111: #{_lambda_.1} parent=11 // pred_region
          _
        $region112: #{_lambda_.1} parent=11 // pred_fallthru
          _
        // Predicated region
        $region113: #{_lambda_.1} parent=11 // pred_check
          %p1061 = pneg %p714
        $region114: #{_lambda_.1} parent=11 // pred_check_branch
          %1063 = sbr.rel (%p1061) target = $region116
        $region115: #{_lambda_.1} parent=11 // pred_region
          _
        $region116: #{_lambda_.1} parent=11 // pred_fallthru
          _
        // Predicated region
        $region117: #{_lambda_.1} parent=11 // pred_check
          %p1064 = pneg %p735
        $region118: #{_lambda_.1} parent=11 // pred_check_branch
          %1066 = sbr.rel (%p1064) target = $region120
        $region119: #{_lambda_.1} parent=11 // pred_region
          _
        $region120: #{_lambda_.1} parent=11 // pred_fallthru
          _
        // Predicated region
        $region121: #{_lambda_.1} parent=11 // pred_check
          %p1067 = pneg %p756
        $region122: #{_lambda_.1} parent=11 // pred_check_branch
          %1069 = sbr.rel (%p1067) target = $region124
        $region123: #{_lambda_.1} parent=11 // pred_region
          _
        $region124: #{_lambda_.1} parent=11 // pred_fallthru
          _
        // Predicated region
        $region125: #{_lambda_.1} parent=11 // pred_check
          %p1070 = pneg %p777
        $region126: #{_lambda_.1} parent=11 // pred_check_branch
          %1072 = sbr.rel (%p1070) target = $region128
        $region127: #{_lambda_.1} parent=11 // pred_region
          _
        $region128: #{_lambda_.1} parent=11 // pred_fallthru
          _
        // Predicated region
        $region129: #{_lambda_.1} parent=11 // pred_check
          %p1073 = pneg %p798
        $region130: #{_lambda_.1} parent=11 // pred_check_branch
          %1075 = sbr.rel (%p1073) target = $region132
        $region131: #{_lambda_.1} parent=11 // pred_region
          _
        $region132: #{_lambda_.1} parent=11 // pred_fallthru
          _
        // Predicated region
        $region133: #{_lambda_.1} parent=11 // pred_check
          %p1076 = pneg %p819
        $region134: #{_lambda_.1} parent=11 // pred_check_branch
          %1078 = sbr.rel (%p1076) target = $region136
        $region135: #{_lambda_.1} parent=11 // pred_region
          _
        $region136: #{_lambda_.1} parent=11 // pred_fallthru
          _
        // Predicated region
        $region137: #{_lambda_.1} parent=11 // pred_check
          %p1079 = pneg %p840
        $region138: #{_lambda_.1} parent=11 // pred_check_branch
          %1081 = sbr.rel (%p1079) target = $region140
        $region139: #{_lambda_.1} parent=11 // pred_region
          _
        $region140: #{_lambda_.1} parent=11 // pred_fallthru
          _
        // Predicated region
        $region141: #{_lambda_.1} parent=11 // pred_check
          %p1082 = pneg %p861
        $region142: #{_lambda_.1} parent=11 // pred_check_branch
          %1084 = sbr.rel (%p1082) target = $region144
        $region143: #{_lambda_.1} parent=11 // pred_region
          _
        $region144: #{_lambda_.1} parent=11 // pred_fallthru
          _
        // Predicated region
        $region145: #{_lambda_.1} parent=11 // pred_check
          %p1085 = pneg %p882
        $region146: #{_lambda_.1} parent=11 // pred_check_branch
          %1087 = sbr.rel (%p1085) target = $region148
        $region147: #{_lambda_.1} parent=11 // pred_region
          _
        $region148: #{_lambda_.1} parent=11 // pred_fallthru
          _
        // Predicated region
        $region149: #{_lambda_.1} parent=11 // pred_check
          %p1088 = pneg %p903
        $region150: #{_lambda_.1} parent=11 // pred_check_branch
          %1090 = sbr.rel (%p1088) target = $region152
        $region151: #{_lambda_.1} parent=11 // pred_region
          _
        $region152: #{_lambda_.1} parent=11 // pred_fallthru
          _
        // Predicated region
        $region153: #{_lambda_.1} parent=11 // pred_check
          %p1091 = pneg %p924
        $region154: #{_lambda_.1} parent=11 // pred_check_branch
          %1093 = sbr.rel (%p1091) target = $region156
        $region155: #{_lambda_.1} parent=11 // pred_region
          _
        $region156: #{_lambda_.1} parent=11 // pred_fallthru
          _
        // Predicated region
        $region157: #{_lambda_.1} parent=11 // pred_check
          %p1094 = pneg %p945
        $region158: #{_lambda_.1} parent=11 // pred_check_branch
          %1096 = sbr.rel (%p1094) target = $region160
        $region159: #{_lambda_.1} parent=11 // pred_region
          _
        $region160: #{_lambda_.1} parent=11 // pred_fallthru
          _
      $region12: #{_lambda_.1} parent=5 // pred_fallthru
        _
      %p1097 = scmp.lt.s32.totalorder %s90, 2
      // Predicated region
      $region161: #{_lambda_.1} parent=5 // pred_check
        %p1098 = pneg %p1097
      $region162: #{_lambda_.1} parent=5 // pred_check_branch
        %1100 = sbr.rel (%p1098) target = $region164
      $region163: #{_lambda_.1} parent=5 // pred_region
        // Predicated region
        $region165: #{_lambda_.1} parent=163 // pred_check
          %p1101 = pneg %p110
        $region166: #{_lambda_.1} parent=163 // pred_check_branch
          %1103 = sbr.rel (%p1101) target = $region168
        $region167: #{_lambda_.1} parent=163 // pred_region
          %p1104 = scmp.lt.s32.totalorder %s90, 1
          %s1105 = scalar_select %p1104, %s90, 1
          %s1106 = smul.addr %s1105, 2
          %s1107 = smul.addr %s1106, 8
          %s1108 = scalar_lea.vmem %s1, %s1107
        $region168: #{_lambda_.1} parent=163 // pred_fallthru
          _
        // Predicated region
        $region169: #{_lambda_.1} parent=163 // pred_check
          %p1109 = pneg %p514
        $region170: #{_lambda_.1} parent=163 // pred_check_branch
          %1111 = sbr.rel (%p1109) target = $region172
        $region171: #{_lambda_.1} parent=163 // pred_region
          %p1112 = scmp.lt.s32.totalorder %s90, 1
          %s1113 = scalar_select %p1112, %s90, 1
          %s1114 = smul.addr %s1113, 8
          %s1115 = scalar_lea.vmem %s39, %s1114
        $region172: #{_lambda_.1} parent=163 // pred_fallthru
          _
        // Predicated region
        $region173: #{_lambda_.1} parent=163 // pred_check
          %p1116 = pneg %p540
        $region174: #{_lambda_.1} parent=163 // pred_check_branch
          %1118 = sbr.rel (%p1116) target = $region176
        $region175: #{_lambda_.1} parent=163 // pred_region
          %p1119 = scmp.lt.s32.totalorder %s90, 1
          %s1120 = scalar_select %p1119, %s90, 1
          %s1121 = smul.addr %s1120, 8
          %s1122 = scalar_lea.vmem %s41, %s1121
        $region176: #{_lambda_.1} parent=163 // pred_fallthru
          _
      $region164: #{_lambda_.1} parent=5 // pred_fallthru
        _
      %p1123 = scmp.le.s32.totalorder 1, %s90
      %p1124 = scmp.lt.s32.totalorder %s90, 3
      %p1125 = pnand %p1123, %p1124
      %p1126 = pneg %p1125
      // Predicated region
      $region177: #{_lambda_.1} parent=5 // pred_check
        _
      $region178: #{_lambda_.1} parent=5 // pred_check_branch
        %1128 = sbr.rel (%p1125) target = $region180
      $region179: #{_lambda_.1} parent=5 // pred_region
        %s1129 = ssub.s32 %s90, 1
        %p1130 = scmp.lt.s32.totalorder %s95, 1
        %s1131 = scalar_select %p1130, %s95, 1
        %s1132 = smul.addr %s1131, 2
        %s1133 = smul.addr %s1132, 8
        %s1134 = scalar_lea.vmem %s1, %s1133
        %p1135 = pneg %p116
        %p1136 = pneg %p113
        %p1137 = pneg %p137
        %p1138 = pneg %p134
        %p1139 = pneg %p158
        %p1140 = pneg %p155
        %p1141 = pneg %p179
        %p1142 = pneg %p176
        %p1143 = pneg %p200
        %p1144 = pneg %p197
        %p1145 = pneg %p221
        %p1146 = pneg %p218
        %p1147 = pneg %p242
        %p1148 = pneg %p239
        %p1149 = pneg %p263
        %p1150 = pneg %p260
        %p1151 = pneg %p284
        %p1152 = pneg %p281
        %p1153 = pneg %p305
        %p1154 = pneg %p302
        %p1155 = pneg %p326
        %p1156 = pneg %p323
        %p1157 = pneg %p347
        %p1158 = pneg %p344
        %p1159 = pneg %p368
        %p1160 = pneg %p365
        %p1161 = pneg %p389
        %p1162 = pneg %p386
        %p1163 = pneg %p410
        %p1164 = pneg %p407
        %p1165 = pneg %p431
        %p1166 = pneg %p428
        %p1167 = pneg %p452
        %p1168 = pneg %p449
        %p1169 = pneg %p473
        %p1170 = pneg %p470
        %p1171 = pneg %p494
        %p1172 = pneg %p491
        %p1173 = scmp.lt.s32.totalorder %s95, 1
        %s1174 = scalar_select %p1173, %s95, 1
        %s1175 = smul.addr %s1174, 8
        %s1176 = scalar_lea.vmem %s39, %s1175
        %p1177 = pneg %p520
        %p1178 = pneg %p517
        %p1179 = scmp.lt.s32.totalorder %s95, 1
        %s1180 = scalar_select %p1179, %s95, 1
        %s1181 = smul.addr %s1180, 8
        %s1182 = scalar_lea.vmem %s41, %s1181
        %p1183 = pneg %p546
        %p1184 = pneg %p543
        %p1185 = pneg %p567
        %p1186 = pneg %p564
        %p1187 = pneg %p588
        %p1188 = pneg %p585
        %p1189 = pneg %p609
        %p1190 = pneg %p606
        %p1191 = pneg %p630
        %p1192 = pneg %p627
        %p1193 = pneg %p651
        %p1194 = pneg %p648
        %p1195 = pneg %p672
        %p1196 = pneg %p669
        %p1197 = pneg %p693
        %p1198 = pneg %p690
        %p1199 = pneg %p714
        %p1200 = pneg %p711
        %p1201 = pneg %p735
        %p1202 = pneg %p732
        %p1203 = pneg %p756
        %p1204 = pneg %p753
        %p1205 = pneg %p777
        %p1206 = pneg %p774
        %p1207 = pneg %p798
        %p1208 = pneg %p795
        %p1209 = pneg %p819
        %p1210 = pneg %p816
        %p1211 = pneg %p840
        %p1212 = pneg %p837
        %p1213 = pneg %p861
        %p1214 = pneg %p858
        %p1215 = pneg %p882
        %p1216 = pneg %p879
        %p1217 = pneg %p903
        %p1218 = pneg %p900
        %p1219 = pneg %p924
        %p1220 = pneg %p921
        %p1221 = pneg %p945
        %p1222 = pneg %p942
        %p1223 = pneg %p971
        %p1224 = pneg %p968
        %s1225 = sand.u32 %s958, 1
        %s1226 = scalar_lea.sflag [#allocation3], %s1225
        %s1227 = sand.u32 %s958, 1
        %s1228 = scalar_lea.vmem [#allocation2], %s1227
        %p1229 = scmp.lt.s32.totalorder %s95, 1
        %s1230 = scalar_select %p1229, %s95, 1
        %s1231 = smul.addr %s1230, 2
        %s1232 = smul.addr %s1231, 8
        %s1233 = scalar_lea.vmem %s1, %s1232
        %p1234 = scmp.lt.s32.totalorder %s95, 1
        %s1235 = scalar_select %p1234, %s95, 1
        %s1236 = smul.addr %s1235, 8
        %s1237 = scalar_lea.vmem %s39, %s1236
        %p1238 = scmp.lt.s32.totalorder %s95, 1
        %s1239 = scalar_select %p1238, %s95, 1
        %s1240 = smul.addr %s1239, 8
        %s1241 = scalar_lea.vmem %s41, %s1240
        %v1243 = vld [vmem:[%s1233] sm:$0x1f]
        %v1244 = vld [vmem:[%s1233 + $0x8] sm:$0x1f]
        %v1245 = vpack.c.bf16 %v1243, %v1243
        %v1246 = vpack.c.bf16 %v1244, %v1244
        %v1247 = vld [vmem:[%s9] sm:$0xf]
        %v1248 = vld [vmem:[%s9 + $0x4] sm:$0xf]
        %v1249 = vld [vmem:[%s9 + $0x8] sm:$0xf]
        %v1250 = vld [vmem:[%s9 + $0xc] sm:$0xf]
        %v1251 = vld [vmem:[%s9 + $0x10] sm:$0xf]
        %v1252 = vld [vmem:[%s9 + $0x14] sm:$0xf]
        %v1253 = vld [vmem:[%s9 + $0x18] sm:$0xf]
        %v1254 = vld [vmem:[%s9 + $0x1c] sm:$0xf]
        %v1255 = vld [vmem:[%s9 + $0x20] sm:$0xf]
        %v1256 = vld [vmem:[%s9 + $0x24] sm:$0xf]
        %v1257 = vld [vmem:[%s9 + $0x28] sm:$0xf]
        %v1258 = vld [vmem:[%s9 + $0x2c] sm:$0xf]
        %v1259 = vld [vmem:[%s9 + $0x30] sm:$0xf]
        %v1260 = vld [vmem:[%s9 + $0x34] sm:$0xf]
        %v1261 = vld [vmem:[%s9 + $0x38] sm:$0xf]
        %v1262 = vld [vmem:[%s9 + $0x3c] sm:$0xf]
        %v1263 = vld [vmem:[%s9 + $0x40] sm:$0xf]
        %v1264 = vld [vmem:[%s9 + $0x44] sm:$0xf]
        %v1265 = vld [vmem:[%s9 + $0x48] sm:$0xf]
        %v1266 = vld [vmem:[%s9 + $0x4c] sm:$0xf]
        %v1267 = vld [vmem:[%s9 + $0x50] sm:$0xf]
        %v1268 = vld [vmem:[%s9 + $0x54] sm:$0xf]
        %v1269 = vld [vmem:[%s9 + $0x58] sm:$0xf]
        %v1270 = vld [vmem:[%s9 + $0x5c] sm:$0xf]
        %v1271 = vld [vmem:[%s3] sm:$0x1f]
        %v1296 = vunpack.c.l.b16 %v1247
        %v1297 = vunpack.c.l.b16 %v1248
        %v1298 = vunpack.c.l.b16 %v1249
        %v1299 = vunpack.c.l.b16 %v1250
        %v1300 = vunpack.c.l.b16 %v1251
        %v1301 = vunpack.c.l.b16 %v1252
        %v1302 = vunpack.c.l.b16 %v1253
        %v1303 = vunpack.c.l.b16 %v1254
        %v1304 = vunpack.c.l.b16 %v1255
        %v1305 = vunpack.c.l.b16 %v1256
        %v1306 = vunpack.c.l.b16 %v1257
        %v1307 = vunpack.c.l.b16 %v1258
        %v1308 = vunpack.c.l.b16 %v1259
        %v1309 = vunpack.c.l.b16 %v1260
        %v1310 = vunpack.c.l.b16 %v1261
        %v1311 = vunpack.c.l.b16 %v1262
        %v1312 = vunpack.c.l.b16 %v1263
        %v1313 = vunpack.c.l.b16 %v1264
        %v1314 = vunpack.c.l.b16 %v1265
        %v1315 = vunpack.c.l.b16 %v1266
        %v1316 = vunpack.c.l.b16 %v1267
        %v1317 = vunpack.c.l.b16 %v1268
        %v1318 = vunpack.c.l.b16 %v1269
        %v1319 = vunpack.c.l.b16 %v1270
        %v1320 = vpack.c.b16 %v1297, %v1296
        %v1321 = vpack.c.b16 %v1299, %v1298
        %v1322 = vpack.c.b16 %v1301, %v1300
        %v1323 = vpack.c.b16 %v1303, %v1302
        %v1324 = vpack.c.b16 %v1305, %v1304
        %v1325 = vpack.c.b16 %v1307, %v1306
        %v1326 = vpack.c.b16 %v1309, %v1308
        %v1327 = vpack.c.b16 %v1311, %v1310
        %v1328 = vpack.c.b16 %v1313, %v1312
        %v1329 = vpack.c.b16 %v1315, %v1314
        %v1330 = vpack.c.b16 %v1317, %v1316
        %v1331 = vpack.c.b16 %v1319, %v1318
        %vm1344 = vcmask 523264
        %v1346 = vsel %vm1344, %v1246, 0
        %1348 = vmatpush.bf16.msra.mxu0 %v1327
        %1349 = vmatpush.bf16.msra.mxu0 %v1326
        %1350 = vmatpush.bf16.msra.mxu0 %v1325
        %1351 = vmatpush.bf16.msra.mxu0 %v1324
        %1352 = vmatpush.bf16.msra.mxu0 %v1323
        %1353 = vmatpush.bf16.msra.mxu0 %v1322
        %1354 = vmatpush.bf16.msra.mxu0 %v1321
        %1355 = vmatpush.bf16.msra.mxu0 %v1320
        %1356 = vmatmul.bf16.gmra.mxu0 %v1245
        %v1357 = vpop.f32.mrf.mxu0
        %v1358 = vadd.f32 %v1271, %v1357
        %v1359 = vpop.f32.mrf.mxu0
        %1360 = vdwg.mxu0
        %1361 = vmatpush.bf16.msra.mxu0 0
        %1362 = vmatpush.bf16.msra.mxu0 0
        %1363 = vmatpush.bf16.msra.mxu0 0
        %1364 = vmatpush.bf16.msra.mxu0 0
        %1365 = vmatpush.bf16.msra.mxu0 %v1331
        %1366 = vmatpush.bf16.msra.mxu0 %v1330
        %1367 = vmatpush.bf16.msra.mxu0 %v1329
        %1368 = vmatpush.bf16.msra.mxu0 %v1328
        %1369 = vmatmul.bf16.gmra.mxu0 %v1346
        %v1370 = vpop.f32.mrf.mxu0
        %v1371 = vadd.f32 %v1358, %v1370
        %v1372 = vpop.f32.mrf.mxu0
        %1373 = vdwg.mxu0
        %v1374 = vld [vmem:[%s5] sm:$0x1]
        %v1375 = vld [vmem:[%s7] sm:$0x1]
        %vm1376 = vcmask 258048
        %v1377 = vsel %vm1376, %v1371, 0.0
        %1378 = vadd.xlane.f32.xlu0 %v1377
        %v1379 = vpop.xlane.xlu0 %1378
        %v1380 = vrcp.pop 32.0
        %v1381 = vmul.f32 32.0, %v1380
        %v1382 = vsub.f32 1.0, %v1381
        %v1383 = vmul.f32 %v1380, %v1382
        %v1384 = vadd.f32 %v1380, %v1383
        %vm1385 = vweird.f32 %v1380
        %v1386 = vsel %vm1385, %v1380, %v1384
        %v1387 = vmul.f32 %v1379, %v1386
        %v1388 = vsub.f32 %v1371, %v1387
        %v1389 = vmul.f32 %v1388, %v1388
        %v1390 = vsel %vm1376, %v1389, 0.0
        %1391 = vadd.xlane.f32.xlu0 %v1390
        %v1392 = vpop.xlane.xlu0 %1391
        %v1393 = vmul.f32 %v1392, %v1386
        %v1394 = vadd.f32 %v1393, 1e-05
        %v1395 = vrsqrt.pop %v1394
        %v1396 = vmul.f32 %v1395, %v1394
        %v1397 = vmul.f32 %v1396, %v1395
        %v1398 = vmul.f32 0.5, %v1397
        %v1399 = vsub.f32 1.5, %v1398
        %v1400 = vmul.f32 %v1395, %v1399
        %vm1401 = vweird.f32 %v1394
        %vm1402 = vweird.f32 %v1395
        %vm1403 = vmor %vm1401, %vm1402
        %v1404 = vsel %vm1403, %v1395, %v1400
        %v1405 = vmul.f32 %v1388, %v1404
        %v1407 = vperm.slane %v1374, 0
        %v1409 = vmul.f32 %v1405, %v1407
        %v1411 = vperm.slane %v1375, 0
        %v1413 = vadd.f32 %v1409, %v1411
        %v1414 = vld [vmem:[%s13] sm:$0x1]
        %v1415 = vld [vmem:[%s15] sm:$0x1]
        %v1416 = vsel %vm1376, %v1413, 0.0
        %1417 = vadd.xlane.f32.xlu0 %v1416
        %v1418 = vpop.xlane.xlu0 %1417
        %v1419 = vmul.f32 %v1418, %v1386
        %v1420 = vsub.f32 %v1413, %v1419
        %v1421 = vmul.f32 %v1420, %v1420
        %v1422 = vsel %vm1376, %v1421, 0.0
        %1423 = vadd.xlane.f32.xlu0 %v1422
        %v1424 = vpop.xlane.xlu0 %1423
        %v1425 = vmul.f32 %v1424, %v1386
        %v1426 = vadd.f32 %v1425, 1e-05
        %v1427 = vrsqrt.pop %v1426
        %v1428 = vmul.f32 %v1427, %v1426
        %v1429 = vmul.f32 %v1428, %v1427
        %v1430 = vmul.f32 0.5, %v1429
        %v1431 = vsub.f32 1.5, %v1430
        %v1432 = vmul.f32 %v1427, %v1431
        %vm1433 = vweird.f32 %v1426
        %vm1434 = vweird.f32 %v1427
        %vm1435 = vmor %vm1433, %vm1434
        %v1436 = vsel %vm1435, %v1427, %v1432
        %v1437 = vmul.f32 %v1420, %v1436
        %v1439 = vperm.slane %v1414, 0
        %v1441 = vmul.f32 %v1437, %v1439
        %v1443 = vperm.slane %v1415, 0
        %v1445 = vadd.f32 %v1441, %v1443
        %v1446 = vpack.c.bf16 %v1445, %v1445
        %v1447 = vld [vmem:[%s17] sm:$0xf]
        %v1448 = vld [vmem:[%s17 + $0x4] sm:$0xf]
        %v1449 = vld [vmem:[%s17 + $0x8] sm:$0xf]
        %v1450 = vld [vmem:[%s17 + $0xc] sm:$0xf]
        %v1451 = vld [vmem:[%s19] sm:$0x1]
        %v1453 = vperm.slane %v1451, 0
        %v1459 = vunpack.c.l.b16 %v1447
        %v1460 = vunpack.c.l.b16 %v1448
        %v1461 = vunpack.c.l.b16 %v1449
        %v1462 = vunpack.c.l.b16 %v1450
        %v1463 = vpack.c.b16 %v1460, %v1459
        %v1464 = vpack.c.b16 %v1462, %v1461
        %vm1467 = vcmask 261120
        %v1469 = vsel %vm1467, %v1446, 0
        %1471 = vmatpush.bf16.msra.mxu0 0
        %1472 = vmatpush.bf16.msra.mxu0 0
        %1473 = vmatpush.bf16.msra.mxu0 0
        %1474 = vmatpush.bf16.msra.mxu0 0
        %1475 = vmatpush.bf16.msra.mxu0 0
        %1476 = vmatpush.bf16.msra.mxu0 0
        %1477 = vmatpush.bf16.msra.mxu0 %v1464
        %1478 = vmatpush.bf16.msra.mxu0 %v1463
        %1479 = vmatmul.bf16.gmra.mxu0 %v1469
        %v1480 = vpop.f32.mrf.mxu0
        %v1481 = vadd.f32 %v1453, %v1480
        %v1482 = vpop.f32.mrf.mxu0
        %1483 = vdwg.mxu0
        %v1484 = vld [vmem:[%s21] sm:$0xf]
        %v1485 = vld [vmem:[%s21 + $0x4] sm:$0xf]
        %v1486 = vld [vmem:[%s21 + $0x8] sm:$0xf]
        %v1487 = vld [vmem:[%s21 + $0xc] sm:$0xf]
        %v1488 = vld [vmem:[%s23] sm:$0x1]
        %v1490 = vperm.slane %v1488, 0
        %v1496 = vunpack.c.l.b16 %v1484
        %v1497 = vunpack.c.l.b16 %v1485
        %v1498 = vunpack.c.l.b16 %v1486
        %v1499 = vunpack.c.l.b16 %v1487
        %v1500 = vpack.c.b16 %v1497, %v1496
        %v1501 = vpack.c.b16 %v1499, %v1498
        %1504 = vmatpush.bf16.msra.mxu0 0
        %1505 = vmatpush.bf16.msra.mxu0 0
        %1506 = vmatpush.bf16.msra.mxu0 0
        %1507 = vmatpush.bf16.msra.mxu0 0
        %1508 = vmatpush.bf16.msra.mxu0 0
        %1509 = vmatpush.bf16.msra.mxu0 0
        %1510 = vmatpush.bf16.msra.mxu0 %v1501
        %1511 = vmatpush.bf16.msra.mxu0 %v1500
        %1512 = vmatmul.bf16.gmra.mxu0 %v1469
        %v1513 = vpop.f32.mrf.mxu0
        %v1514 = vadd.f32 %v1490, %v1513
        %v1515 = vpop.f32.mrf.mxu0
        %1516 = vdwg.mxu0
        %v1517 = vpack.c.bf16 %v1481, %v1481
        %v1518 = vpack.c.bf16 %v1514, %v1514
        %vm1519 = vcmask 64512
        %v1521 = vsel %vm1519, %v1517, 0
        %v1524 = vsel %vm1519, %v1518, 0
        %1526 = vmatpush.bf16.xpose.msra.mxu0 0
        %1527 = vmatpush.bf16.xpose.msra.mxu0 0
        %1528 = vmatpush.bf16.xpose.msra.mxu0 0
        %1529 = vmatpush.bf16.xpose.msra.mxu0 0
        %1530 = vmatpush.bf16.xpose.msra.mxu0 0
        %1531 = vmatpush.bf16.xpose.msra.mxu0 0
        %1532 = vmatpush.bf16.xpose.msra.mxu0 0
        %1533 = vmatpush.bf16.xpose.msra.mxu0 %v1524
        %1534 = vmatmul.bf16.gmra.mxu0 %v1521
        %v1535 = vpop.f32.mrf.mxu0
        %v1536 = vadd.f32 0.0, %v1535
        %v1537 = vpop.f32.mrf.mxu0
        %1538 = vdwg.mxu0
        %vm1539 = vcmask 36864
        %v1540 = vsel %vm1539, %v1536, -inf
        %1541 = vmax.xlane.f32.xlu0 %v1540
        %v1542 = vpop.xlane.xlu0 %1541
        %v1543 = vsub.f32 %v1536, %v1542
        %v1544 = vmul.f32 %v1543, 1.442695
        %v1545 = vpow.pop %v1544
        %v1546 = vsel %vm1539, %v1545, 0.0
        %1547 = vadd.xlane.f32.xlu0 %v1546
        %v1548 = vpop.xlane.xlu0 %1547
        %v1549 = vrcp.pop %v1548
        %v1550 = vmul.f32 %v1545, %v1549
        %v1551 = vld [vmem:[%s25] sm:$0xf]
        %v1552 = vld [vmem:[%s25 + $0x4] sm:$0xf]
        %v1553 = vld [vmem:[%s25 + $0x8] sm:$0xf]
        %v1554 = vld [vmem:[%s25 + $0xc] sm:$0xf]
        %v1555 = vld [vmem:[%s27] sm:$0x1]
        %v1557 = vperm.slane %v1555, 0
        %v1563 = vunpack.c.l.b16 %v1551
        %v1564 = vunpack.c.l.b16 %v1552
        %v1565 = vunpack.c.l.b16 %v1553
        %v1566 = vunpack.c.l.b16 %v1554
        %v1567 = vpack.c.b16 %v1564, %v1563
        %v1568 = vpack.c.b16 %v1566, %v1565
        %1571 = vmatpush.bf16.msra.mxu0 0
        %1572 = vmatpush.bf16.msra.mxu0 0
        %1573 = vmatpush.bf16.msra.mxu0 0
        %1574 = vmatpush.bf16.msra.mxu0 0
        %1575 = vmatpush.bf16.msra.mxu0 0
        %1576 = vmatpush.bf16.msra.mxu0 0
        %1577 = vmatpush.bf16.msra.mxu0 %v1568
        %1578 = vmatpush.bf16.msra.mxu0 %v1567
        %1579 = vmatmul.bf16.gmra.mxu0 %v1469
        %v1580 = vpop.f32.mrf.mxu0
        %v1581 = vadd.f32 %v1557, %v1580
        %v1582 = vpop.f32.mrf.mxu0
        %1583 = vdwg.mxu0
        %v1584 = vpack.c.bf16 %v1550, %v1550
        %v1585 = vpack.c.bf16 %v1581, %v1581
        %s1586 = scalar_lea.vmem %s17, 16
        %v1587 = vld [vmem:[%s1586] sm:$0xf]
        %v1588 = vld [vmem:[%s1586 + $0x4] sm:$0xf]
        %v1589 = vld [vmem:[%s1586 + $0x8] sm:$0xf]
        %v1590 = vld [vmem:[%s1586 + $0xc] sm:$0xf]
        %s1591 = scalar_lea.vmem %s19, 1
        %v1592 = vld [vmem:[%s1591] sm:$0x1]
        %v1594 = vperm.slane %v1592, 0
        %v1600 = vunpack.c.l.b16 %v1587
        %v1601 = vunpack.c.l.b16 %v1588
        %v1602 = vunpack.c.l.b16 %v1589
        %v1603 = vunpack.c.l.b16 %v1590
        %v1604 = vpack.c.b16 %v1601, %v1600
        %v1605 = vpack.c.b16 %v1603, %v1602
        %1608 = vmatpush.bf16.msra.mxu0 0
        %1609 = vmatpush.bf16.msra.mxu0 0
        %1610 = vmatpush.bf16.msra.mxu0 0
        %1611 = vmatpush.bf16.msra.mxu0 0
        %1612 = vmatpush.bf16.msra.mxu0 0
        %1613 = vmatpush.bf16.msra.mxu0 0
        %1614 = vmatpush.bf16.msra.mxu0 %v1605
        %1615 = vmatpush.bf16.msra.mxu0 %v1604
        %1616 = vmatmul.bf16.gmra.mxu0 %v1469
        %v1617 = vpop.f32.mrf.mxu0
        %v1618 = vadd.f32 %v1594, %v1617
        %v1619 = vpop.f32.mrf.mxu0
        %1620 = vdwg.mxu0
        %s1621 = scalar_lea.vmem %s21, 16
        %v1622 = vld [vmem:[%s1621] sm:$0xf]
        %v1623 = vld [vmem:[%s1621 + $0x4] sm:$0xf]
        %v1624 = vld [vmem:[%s1621 + $0x8] sm:$0xf]
        %v1625 = vld [vmem:[%s1621 + $0xc] sm:$0xf]
        %s1626 = scalar_lea.vmem %s23, 1
        %v1627 = vld [vmem:[%s1626] sm:$0x1]
        %v1629 = vperm.slane %v1627, 0
        %v1635 = vunpack.c.l.b16 %v1622
        %v1636 = vunpack.c.l.b16 %v1623
        %v1637 = vunpack.c.l.b16 %v1624
        %v1638 = vunpack.c.l.b16 %v1625
        %v1639 = vpack.c.b16 %v1636, %v1635
        %v1640 = vpack.c.b16 %v1638, %v1637
        %1643 = vmatpush.bf16.msra.mxu0 0
        %1644 = vmatpush.bf16.msra.mxu0 0
        %1645 = vmatpush.bf16.msra.mxu0 0
        %1646 = vmatpush.bf16.msra.mxu0 0
        %1647 = vmatpush.bf16.msra.mxu0 0
        %1648 = vmatpush.bf16.msra.mxu0 0
        %1649 = vmatpush.bf16.msra.mxu0 %v1640
        %1650 = vmatpush.bf16.msra.mxu0 %v1639
        %1651 = vmatmul.bf16.gmra.mxu0 %v1469
        %v1652 = vpop.f32.mrf.mxu0
        %v1653 = vadd.f32 %v1629, %v1652
        %v1654 = vpop.f32.mrf.mxu0
        %1655 = vdwg.mxu0
        %v1656 = vpack.c.bf16 %v1618, %v1618
        %v1657 = vpack.c.bf16 %v1653, %v1653
        %v1659 = vsel %vm1519, %v1656, 0
        %v1662 = vsel %vm1519, %v1657, 0
        %1664 = vmatpush.bf16.xpose.msra.mxu0 0
        %1665 = vmatpush.bf16.xpose.msra.mxu0 0
        %1666 = vmatpush.bf16.xpose.msra.mxu0 0
        %1667 = vmatpush.bf16.xpose.msra.mxu0 0
        %1668 = vmatpush.bf16.xpose.msra.mxu0 0
        %1669 = vmatpush.bf16.xpose.msra.mxu0 0
        %1670 = vmatpush.bf16.xpose.msra.mxu0 0
        %1671 = vmatpush.bf16.xpose.msra.mxu0 %v1662
        %1672 = vmatmul.bf16.gmra.mxu0 %v1659
        %v1673 = vpop.f32.mrf.mxu0
        %v1674 = vadd.f32 0.0, %v1673
        %v1675 = vpop.f32.mrf.mxu0
        %1676 = vdwg.mxu0
        %v1677 = vsel %vm1539, %v1674, -inf
        %1678 = vmax.xlane.f32.xlu0 %v1677
        %v1679 = vpop.xlane.xlu0 %1678
        %v1680 = vsub.f32 %v1674, %v1679
        %v1681 = vmul.f32 %v1680, 1.442695
        %v1682 = vpow.pop %v1681
        %v1683 = vsel %vm1539, %v1682, 0.0
        %1684 = vadd.xlane.f32.xlu0 %v1683
        %v1685 = vpop.xlane.xlu0 %1684
        %v1686 = vrcp.pop %v1685
        %v1687 = vmul.f32 %v1682, %v1686
        %s1688 = scalar_lea.vmem %s25, 16
        %v1689 = vld [vmem:[%s1688] sm:$0xf]
        %v1690 = vld [vmem:[%s1688 + $0x4] sm:$0xf]
        %v1691 = vld [vmem:[%s1688 + $0x8] sm:$0xf]
        %v1692 = vld [vmem:[%s1688 + $0xc] sm:$0xf]
        %s1693 = scalar_lea.vmem %s27, 1
        %v1694 = vld [vmem:[%s1693] sm:$0x1]
        %v1696 = vperm.slane %v1694, 0
        %v1702 = vunpack.c.l.b16 %v1689
        %v1703 = vunpack.c.l.b16 %v1690
        %v1704 = vunpack.c.l.b16 %v1691
        %v1705 = vunpack.c.l.b16 %v1692
        %v1706 = vpack.c.b16 %v1703, %v1702
        %v1707 = vpack.c.b16 %v1705, %v1704
        %1710 = vmatpush.bf16.msra.mxu0 0
        %1711 = vmatpush.bf16.msra.mxu0 0
        %1712 = vmatpush.bf16.msra.mxu0 0
        %1713 = vmatpush.bf16.msra.mxu0 0
        %1714 = vmatpush.bf16.msra.mxu0 0
        %1715 = vmatpush.bf16.msra.mxu0 0
        %1716 = vmatpush.bf16.msra.mxu0 %v1707
        %1717 = vmatpush.bf16.msra.mxu0 %v1706
        %1718 = vmatmul.bf16.gmra.mxu0 %v1469
        %v1719 = vpop.f32.mrf.mxu0
        %v1720 = vadd.f32 %v1696, %v1719
        %v1721 = vpop.f32.mrf.mxu0
        %1722 = vdwg.mxu0
        %v1723 = vpack.c.bf16 %v1687, %v1687
        %v1724 = vpack.c.bf16 %v1720, %v1720
        %vm1725 = vcmask 39936
        %v1727 = vsel %vm1725, %v1723, 0
        %vm1729 = vcmask 1041408
        %vm1730 = vcmask 1042432
        %v1731 = vsel %vm1729, 4294967295, 65535
        %v1732 = vsel %vm1730, %v1731, 0
        %v1734 = vand.u32 %v1724, %v1732
        %1736 = vmatpush.bf16.msra.mxu0 0
        %1737 = vmatpush.bf16.msra.mxu0 0
        %1738 = vmatpush.bf16.msra.mxu0 0
        %1739 = vmatpush.bf16.msra.mxu0 0
        %1740 = vmatpush.bf16.msra.mxu0 0
        %1741 = vmatpush.bf16.msra.mxu0 0
        %1742 = vmatpush.bf16.msra.mxu0 0
        %1743 = vmatpush.bf16.msra.mxu0 %v1734
        %1744 = vmatmul.bf16.gmra.mxu0 %v1727
        %v1745 = vpop.f32.mrf.mxu0
        %v1746 = vadd.f32 0.0, %v1745
        %v1747 = vpop.f32.mrf.mxu0
        %1748 = vdwg.mxu0
        %v1750 = vsel %vm1725, %v1584, 0
        %v1753 = vand.u32 %v1585, %v1732
        %1755 = vmatpush.bf16.msra.mxu0 0
        %1756 = vmatpush.bf16.msra.mxu0 0
        %1757 = vmatpush.bf16.msra.mxu0 0
        %1758 = vmatpush.bf16.msra.mxu0 0
        %1759 = vmatpush.bf16.msra.mxu0 0
        %1760 = vmatpush.bf16.msra.mxu0 0
        %1761 = vmatpush.bf16.msra.mxu0 0
        %1762 = vmatpush.bf16.msra.mxu0 %v1753
        %1763 = vmatmul.bf16.gmra.mxu0 %v1750
        %v1764 = vpop.f32.mrf.mxu0
        %v1765 = vadd.f32 %v1746, %v1764
        %v1766 = vpop.f32.mrf.mxu0
        %1767 = vdwg.mxu0
        %s1768 = scalar_lea.vmem %s17, 32
        %v1769 = vld [vmem:[%s1768] sm:$0xf]
        %v1770 = vld [vmem:[%s1768 + $0x4] sm:$0xf]
        %v1771 = vld [vmem:[%s1768 + $0x8] sm:$0xf]
        %v1772 = vld [vmem:[%s1768 + $0xc] sm:$0xf]
        %s1773 = scalar_lea.vmem %s19, 2
        %v1774 = vld [vmem:[%s1773] sm:$0x1]
        %v1776 = vperm.slane %v1774, 0
        %v1782 = vunpack.c.l.b16 %v1769
        %v1783 = vunpack.c.l.b16 %v1770
        %v1784 = vunpack.c.l.b16 %v1771
        %v1785 = vunpack.c.l.b16 %v1772
        %v1786 = vpack.c.b16 %v1783, %v1782
        %v1787 = vpack.c.b16 %v1785, %v1784
        %1790 = vmatpush.bf16.msra.mxu0 0
        %1791 = vmatpush.bf16.msra.mxu0 0
        %1792 = vmatpush.bf16.msra.mxu0 0
        %1793 = vmatpush.bf16.msra.mxu0 0
        %1794 = vmatpush.bf16.msra.mxu0 0
        %1795 = vmatpush.bf16.msra.mxu0 0
        %1796 = vmatpush.bf16.msra.mxu0 %v1787
        %1797 = vmatpush.bf16.msra.mxu0 %v1786
        %1798 = vmatmul.bf16.gmra.mxu0 %v1469
        %v1799 = vpop.f32.mrf.mxu0
        %v1800 = vadd.f32 %v1776, %v1799
        %v1801 = vpop.f32.mrf.mxu0
        %1802 = vdwg.mxu0
        %s1803 = scalar_lea.vmem %s21, 32
        %v1804 = vld [vmem:[%s1803] sm:$0xf]
        %v1805 = vld [vmem:[%s1803 + $0x4] sm:$0xf]
        %v1806 = vld [vmem:[%s1803 + $0x8] sm:$0xf]
        %v1807 = vld [vmem:[%s1803 + $0xc] sm:$0xf]
        %s1808 = scalar_lea.vmem %s23, 2
        %v1809 = vld [vmem:[%s1808] sm:$0x1]
        %v1811 = vperm.slane %v1809, 0
        %v1817 = vunpack.c.l.b16 %v1804
        %v1818 = vunpack.c.l.b16 %v1805
        %v1819 = vunpack.c.l.b16 %v1806
        %v1820 = vunpack.c.l.b16 %v1807
        %v1821 = vpack.c.b16 %v1818, %v1817
        %v1822 = vpack.c.b16 %v1820, %v1819
        %1825 = vmatpush.bf16.msra.mxu0 0
        %1826 = vmatpush.bf16.msra.mxu0 0
        %1827 = vmatpush.bf16.msra.mxu0 0
        %1828 = vmatpush.bf16.msra.mxu0 0
        %1829 = vmatpush.bf16.msra.mxu0 0
        %1830 = vmatpush.bf16.msra.mxu0 0
        %1831 = vmatpush.bf16.msra.mxu0 %v1822
        %1832 = vmatpush.bf16.msra.mxu0 %v1821
        %1833 = vmatmul.bf16.gmra.mxu0 %v1469
        %v1834 = vpop.f32.mrf.mxu0
        %v1835 = vadd.f32 %v1811, %v1834
        %v1836 = vpop.f32.mrf.mxu0
        %1837 = vdwg.mxu0
        %v1838 = vpack.c.bf16 %v1800, %v1800
        %v1839 = vpack.c.bf16 %v1835, %v1835
        %v1841 = vsel %vm1519, %v1838, 0
        %v1844 = vsel %vm1519, %v1839, 0
        %1846 = vmatpush.bf16.xpose.msra.mxu0 0
        %1847 = vmatpush.bf16.xpose.msra.mxu0 0
        %1848 = vmatpush.bf16.xpose.msra.mxu0 0
        %1849 = vmatpush.bf16.xpose.msra.mxu0 0
        %1850 = vmatpush.bf16.xpose.msra.mxu0 0
        %1851 = vmatpush.bf16.xpose.msra.mxu0 0
        %1852 = vmatpush.bf16.xpose.msra.mxu0 0
        %1853 = vmatpush.bf16.xpose.msra.mxu0 %v1844
        %1854 = vmatmul.bf16.gmra.mxu0 %v1841
        %v1855 = vpop.f32.mrf.mxu0
        %v1856 = vadd.f32 0.0, %v1855
        %v1857 = vpop.f32.mrf.mxu0
        %1858 = vdwg.mxu0
        %v1859 = vsel %vm1539, %v1856, -inf
        %1860 = vmax.xlane.f32.xlu0 %v1859
        %v1861 = vpop.xlane.xlu0 %1860
        %v1862 = vsub.f32 %v1856, %v1861
        %v1863 = vmul.f32 %v1862, 1.442695
        %v1864 = vpow.pop %v1863
        %v1865 = vsel %vm1539, %v1864, 0.0
        %1866 = vadd.xlane.f32.xlu0 %v1865
        %v1867 = vpop.xlane.xlu0 %1866
        %v1868 = vrcp.pop %v1867
        %v1869 = vmul.f32 %v1864, %v1868
        %s1870 = scalar_lea.vmem %s25, 32
        %v1871 = vld [vmem:[%s1870] sm:$0xf]
        %v1872 = vld [vmem:[%s1870 + $0x4] sm:$0xf]
        %v1873 = vld [vmem:[%s1870 + $0x8] sm:$0xf]
        %v1874 = vld [vmem:[%s1870 + $0xc] sm:$0xf]
        %s1875 = scalar_lea.vmem %s27, 2
        %v1876 = vld [vmem:[%s1875] sm:$0x1]
        %v1878 = vperm.slane %v1876, 0
        %v1884 = vunpack.c.l.b16 %v1871
        %v1885 = vunpack.c.l.b16 %v1872
        %v1886 = vunpack.c.l.b16 %v1873
        %v1887 = vunpack.c.l.b16 %v1874
        %v1888 = vpack.c.b16 %v1885, %v1884
        %v1889 = vpack.c.b16 %v1887, %v1886
        %1892 = vmatpush.bf16.msra.mxu0 0
        %1893 = vmatpush.bf16.msra.mxu0 0
        %1894 = vmatpush.bf16.msra.mxu0 0
        %1895 = vmatpush.bf16.msra.mxu0 0
        %1896 = vmatpush.bf16.msra.mxu0 0
        %1897 = vmatpush.bf16.msra.mxu0 0
        %1898 = vmatpush.bf16.msra.mxu0 %v1889
        %1899 = vmatpush.bf16.msra.mxu0 %v1888
        %1900 = vmatmul.bf16.gmra.mxu0 %v1469
        %v1901 = vpop.f32.mrf.mxu0
        %v1902 = vadd.f32 %v1878, %v1901
        %v1903 = vpop.f32.mrf.mxu0
        %1904 = vdwg.mxu0
        %v1905 = vpack.c.bf16 %v1869, %v1869
        %v1906 = vpack.c.bf16 %v1902, %v1902
        %v1908 = vsel %vm1725, %v1905, 0
        %v1911 = vand.u32 %v1906, %v1732
        %1913 = vmatpush.bf16.msra.mxu0 0
        %1914 = vmatpush.bf16.msra.mxu0 0
        %1915 = vmatpush.bf16.msra.mxu0 0
        %1916 = vmatpush.bf16.msra.mxu0 0
        %1917 = vmatpush.bf16.msra.mxu0 0
        %1918 = vmatpush.bf16.msra.mxu0 0
        %1919 = vmatpush.bf16.msra.mxu0 0
        %1920 = vmatpush.bf16.msra.mxu0 %v1911
        %1921 = vmatmul.bf16.gmra.mxu0 %v1908
        %v1922 = vpop.f32.mrf.mxu0
        %v1923 = vadd.f32 0.0, %v1922
        %v1924 = vpop.f32.mrf.mxu0
        %1925 = vdwg.mxu0
        %v1926 = vadd.f32 %v1765, %v1923
        %s1927 = scalar_lea.vmem %s17, 48
        %v1928 = vld [vmem:[%s1927] sm:$0xf]
        %v1929 = vld [vmem:[%s1927 + $0x4] sm:$0xf]
        %v1930 = vld [vmem:[%s1927 + $0x8] sm:$0xf]
        %v1931 = vld [vmem:[%s1927 + $0xc] sm:$0xf]
        %s1932 = scalar_lea.vmem %s19, 3
        %v1933 = vld [vmem:[%s1932] sm:$0x1]
        %v1935 = vperm.slane %v1933, 0
        %v1941 = vunpack.c.l.b16 %v1928
        %v1942 = vunpack.c.l.b16 %v1929
        %v1943 = vunpack.c.l.b16 %v1930
        %v1944 = vunpack.c.l.b16 %v1931
        %v1945 = vpack.c.b16 %v1942, %v1941
        %v1946 = vpack.c.b16 %v1944, %v1943
        %1949 = vmatpush.bf16.msra.mxu0 0
        %1950 = vmatpush.bf16.msra.mxu0 0
        %1951 = vmatpush.bf16.msra.mxu0 0
        %1952 = vmatpush.bf16.msra.mxu0 0
        %1953 = vmatpush.bf16.msra.mxu0 0
        %1954 = vmatpush.bf16.msra.mxu0 0
        %1955 = vmatpush.bf16.msra.mxu0 %v1946
        %1956 = vmatpush.bf16.msra.mxu0 %v1945
        %1957 = vmatmul.bf16.gmra.mxu0 %v1469
        %v1958 = vpop.f32.mrf.mxu0
        %v1959 = vadd.f32 %v1935, %v1958
        %v1960 = vpop.f32.mrf.mxu0
        %1961 = vdwg.mxu0
        %s1962 = scalar_lea.vmem %s21, 48
        %v1963 = vld [vmem:[%s1962] sm:$0xf]
        %v1964 = vld [vmem:[%s1962 + $0x4] sm:$0xf]
        %v1965 = vld [vmem:[%s1962 + $0x8] sm:$0xf]
        %v1966 = vld [vmem:[%s1962 + $0xc] sm:$0xf]
        %s1967 = scalar_lea.vmem %s23, 3
        %v1968 = vld [vmem:[%s1967] sm:$0x1]
        %v1970 = vperm.slane %v1968, 0
        %v1976 = vunpack.c.l.b16 %v1963
        %v1977 = vunpack.c.l.b16 %v1964
        %v1978 = vunpack.c.l.b16 %v1965
        %v1979 = vunpack.c.l.b16 %v1966
        %v1980 = vpack.c.b16 %v1977, %v1976
        %v1981 = vpack.c.b16 %v1979, %v1978
        %1984 = vmatpush.bf16.msra.mxu0 0
        %1985 = vmatpush.bf16.msra.mxu0 0
        %1986 = vmatpush.bf16.msra.mxu0 0
        %1987 = vmatpush.bf16.msra.mxu0 0
        %1988 = vmatpush.bf16.msra.mxu0 0
        %1989 = vmatpush.bf16.msra.mxu0 0
        %1990 = vmatpush.bf16.msra.mxu0 %v1981
        %1991 = vmatpush.bf16.msra.mxu0 %v1980
        %1992 = vmatmul.bf16.gmra.mxu0 %v1469
        %v1993 = vpop.f32.mrf.mxu0
        %v1994 = vadd.f32 %v1970, %v1993
        %v1995 = vpop.f32.mrf.mxu0
        %1996 = vdwg.mxu0
        %v1997 = vpack.c.bf16 %v1959, %v1959
        %v1998 = vpack.c.bf16 %v1994, %v1994
        %v2000 = vsel %vm1519, %v1997, 0
        %v2003 = vsel %vm1519, %v1998, 0
        %2005 = vmatpush.bf16.xpose.msra.mxu0 0
        %2006 = vmatpush.bf16.xpose.msra.mxu0 0
        %2007 = vmatpush.bf16.xpose.msra.mxu0 0
        %2008 = vmatpush.bf16.xpose.msra.mxu0 0
        %2009 = vmatpush.bf16.xpose.msra.mxu0 0
        %2010 = vmatpush.bf16.xpose.msra.mxu0 0
        %2011 = vmatpush.bf16.xpose.msra.mxu0 0
        %2012 = vmatpush.bf16.xpose.msra.mxu0 %v2003
        %2013 = vmatmul.bf16.gmra.mxu0 %v2000
        %v2014 = vpop.f32.mrf.mxu0
        %v2015 = vadd.f32 0.0, %v2014
        %v2016 = vpop.f32.mrf.mxu0
        %2017 = vdwg.mxu0
        %v2018 = vsel %vm1539, %v2015, -inf
        %2019 = vmax.xlane.f32.xlu0 %v2018
        %v2020 = vpop.xlane.xlu0 %2019
        %v2021 = vsub.f32 %v2015, %v2020
        %v2022 = vmul.f32 %v2021, 1.442695
        %v2023 = vpow.pop %v2022
        %v2024 = vsel %vm1539, %v2023, 0.0
        %2025 = vadd.xlane.f32.xlu0 %v2024
        %v2026 = vpop.xlane.xlu0 %2025
        %v2027 = vrcp.pop %v2026
        %v2028 = vmul.f32 %v2023, %v2027
        %s2029 = scalar_lea.vmem %s25, 48
        %v2030 = vld [vmem:[%s2029] sm:$0xf]
        %v2031 = vld [vmem:[%s2029 + $0x4] sm:$0xf]
        %v2032 = vld [vmem:[%s2029 + $0x8] sm:$0xf]
        %v2033 = vld [vmem:[%s2029 + $0xc] sm:$0xf]
        %s2034 = scalar_lea.vmem %s27, 3
        %v2035 = vld [vmem:[%s2034] sm:$0x1]
        %v2037 = vperm.slane %v2035, 0
        %v2043 = vunpack.c.l.b16 %v2030
        %v2044 = vunpack.c.l.b16 %v2031
        %v2045 = vunpack.c.l.b16 %v2032
        %v2046 = vunpack.c.l.b16 %v2033
        %v2047 = vpack.c.b16 %v2044, %v2043
        %v2048 = vpack.c.b16 %v2046, %v2045
        %2051 = vmatpush.bf16.msra.mxu0 0
        %2052 = vmatpush.bf16.msra.mxu0 0
        %2053 = vmatpush.bf16.msra.mxu0 0
        %2054 = vmatpush.bf16.msra.mxu0 0
        %2055 = vmatpush.bf16.msra.mxu0 0
        %2056 = vmatpush.bf16.msra.mxu0 0
        %2057 = vmatpush.bf16.msra.mxu0 %v2048
        %2058 = vmatpush.bf16.msra.mxu0 %v2047
        %2059 = vmatmul.bf16.gmra.mxu0 %v1469
        %v2060 = vpop.f32.mrf.mxu0
        %v2061 = vadd.f32 %v2037, %v2060
        %v2062 = vpop.f32.mrf.mxu0
        %2063 = vdwg.mxu0
        %v2064 = vpack.c.bf16 %v2028, %v2028
        %v2065 = vpack.c.bf16 %v2061, %v2061
        %v2067 = vsel %vm1725, %v2064, 0
        %v2070 = vand.u32 %v2065, %v1732
        %2072 = vmatpush.bf16.msra.mxu0 0
        %2073 = vmatpush.bf16.msra.mxu0 0
        %2074 = vmatpush.bf16.msra.mxu0 0
        %2075 = vmatpush.bf16.msra.mxu0 0
        %2076 = vmatpush.bf16.msra.mxu0 0
        %2077 = vmatpush.bf16.msra.mxu0 0
        %2078 = vmatpush.bf16.msra.mxu0 0
        %2079 = vmatpush.bf16.msra.mxu0 %v2070
        %2080 = vmatmul.bf16.gmra.mxu0 %v2067
        %v2081 = vpop.f32.mrf.mxu0
        %v2082 = vadd.f32 0.0, %v2081
        %v2083 = vpop.f32.mrf.mxu0
        %2084 = vdwg.mxu0
        %v2085 = vadd.f32 %v1926, %v2082
        %v2086 = vadd.f32 %v1413, %v2085
        %v2087 = vld [vmem:[%s29] sm:$0x1]
        %v2089 = vperm.slane %v2087, 0
        %v2091 = vadd.f32 %v2086, %v2089
        %s2092 = scalar_lea.vmem %s13, 1
        %v2093 = vld [vmem:[%s2092] sm:$0x1]
        %s2094 = scalar_lea.vmem %s15, 1
        %v2095 = vld [vmem:[%s2094] sm:$0x1]
        %v2096 = vsel %vm1376, %v2091, 0.0
        %2097 = vadd.xlane.f32.xlu0 %v2096
        %v2098 = vpop.xlane.xlu0 %2097
        %v2099 = vmul.f32 %v2098, %v1386
        %v2100 = vsub.f32 %v2091, %v2099
        %v2101 = vmul.f32 %v2100, %v2100
        %v2102 = vsel %vm1376, %v2101, 0.0
        %2103 = vadd.xlane.f32.xlu0 %v2102
        %v2104 = vpop.xlane.xlu0 %2103
        %v2105 = vmul.f32 %v2104, %v1386
        %v2106 = vadd.f32 %v2105, 1e-05
        %v2107 = vrsqrt.pop %v2106
        %v2108 = vmul.f32 %v2107, %v2106
        %v2109 = vmul.f32 %v2108, %v2107
        %v2110 = vmul.f32 0.5, %v2109
        %v2111 = vsub.f32 1.5, %v2110
        %v2112 = vmul.f32 %v2107, %v2111
        %vm2113 = vweird.f32 %v2106
        %vm2114 = vweird.f32 %v2107
        %vm2115 = vmor %vm2113, %vm2114
        %v2116 = vsel %vm2115, %v2107, %v2112
        %v2117 = vmul.f32 %v2100, %v2116
        %v2119 = vperm.slane %v2093, 0
        %v2121 = vmul.f32 %v2117, %v2119
        %v2123 = vperm.slane %v2095, 0
        %v2125 = vadd.f32 %v2121, %v2123
        %v2126 = vpack.c.bf16 %v2125, %v2125
        %v2127 = vld [vmem:[%s31] sm:$0xf]
        %v2128 = vld [vmem:[%s31 + $0x4] sm:$0xf]
        %v2129 = vld [vmem:[%s31 + $0x8] sm:$0xf]
        %v2130 = vld [vmem:[%s31 + $0xc] sm:$0xf]
        %v2131 = vld [vmem:[%s33] sm:$0x1]
        %v2133 = vperm.slane %v2131, 0
        %v2139 = vunpack.c.l.b16 %v2127
        %v2140 = vunpack.c.l.b16 %v2128
        %v2141 = vunpack.c.l.b16 %v2129
        %v2142 = vunpack.c.l.b16 %v2130
        %v2143 = vpack.c.b16 %v2140, %v2139
        %v2144 = vpack.c.b16 %v2142, %v2141
        %v2148 = vsel %vm1467, %v2126, 0
        %2150 = vmatpush.bf16.msra.mxu0 0
        %2151 = vmatpush.bf16.msra.mxu0 0
        %2152 = vmatpush.bf16.msra.mxu0 0
        %2153 = vmatpush.bf16.msra.mxu0 0
        %2154 = vmatpush.bf16.msra.mxu0 0
        %2155 = vmatpush.bf16.msra.mxu0 0
        %2156 = vmatpush.bf16.msra.mxu0 %v2144
        %2157 = vmatpush.bf16.msra.mxu0 %v2143
        %2158 = vmatmul.bf16.gmra.mxu0 %v2148
        %v2159 = vpop.f32.mrf.mxu0
        %v2160 = vadd.f32 %v2133, %v2159
        %v2161 = vpop.f32.mrf.mxu0
        %2162 = vdwg.mxu0
        %v2163 = vmul.f32 %v2160, 1.702
        %v2164 = vxor.u32 %v2163, 2147483648
        %v2165 = vmul.f32 %v2164, 1.442695
        %v2166 = vpow.pop %v2165
        %v2167 = vadd.f32 %v2166, 1.0
        %v2168 = vrcp.pop %v2167
        %v2169 = vmul.f32 %v2167, %v2168
        %v2170 = vsub.f32 1.0, %v2169
        %v2171 = vmul.f32 %v2168, %v2170
        %v2172 = vadd.f32 %v2168, %v2171
        %vm2173 = vweird.f32 %v2167
        %vm2174 = vweird.f32 %v2168
        %vm2175 = vmor %vm2173, %vm2174
        %v2176 = vsel %vm2175, %v2168, %v2172
        %v2177 = vand.u32 2147483647, %v2167
        %vm2178 = vcmp.eq.f32.partialorder %v2177, 8.507059e+37
        %v2179 = vand.u32 %v2167, 2147483648
        %v2180 = vor.u32 1.1754944e-38, %v2179
        %v2181 = vsel %vm2178, %v2180, %v2176
        %v2182 = vmul.f32 1.0, %v2181
        %v2183 = vmul.f32 %v2160, %v2182
        %v2184 = vpack.c.bf16 %v2183, %v2183
        %v2185 = vld [vmem:[%s35] sm:$0xf]
        %v2186 = vld [vmem:[%s35 + $0x4] sm:$0xf]
        %v2187 = vld [vmem:[%s35 + $0x8] sm:$0xf]
        %v2188 = vld [vmem:[%s35 + $0xc] sm:$0xf]
        %v2189 = vld [vmem:[%s35 + $0x10] sm:$0xf]
        %v2190 = vld [vmem:[%s35 + $0x14] sm:$0xf]
        %v2191 = vld [vmem:[%s35 + $0x18] sm:$0xf]
        %v2192 = vld [vmem:[%s35 + $0x1c] sm:$0xf]
        %v2193 = vld [vmem:[%s37] sm:$0x1]
        %v2195 = vperm.slane %v2193, 0
        %v2205 = vunpack.c.l.b16 %v2185
        %v2206 = vunpack.c.l.b16 %v2186
        %v2207 = vunpack.c.l.b16 %v2187
        %v2208 = vunpack.c.l.b16 %v2188
        %v2209 = vunpack.c.l.b16 %v2189
        %v2210 = vunpack.c.l.b16 %v2190
        %v2211 = vunpack.c.l.b16 %v2191
        %v2212 = vunpack.c.l.b16 %v2192
        %v2213 = vpack.c.b16 %v2206, %v2205
        %v2214 = vpack.c.b16 %v2208, %v2207
        %v2215 = vpack.c.b16 %v2210, %v2209
        %v2216 = vpack.c.b16 %v2212, %v2211
        %v2222 = vsel %vm1344, %v2184, 0
        %2224 = vmatpush.bf16.msra.mxu0 0
        %2225 = vmatpush.bf16.msra.mxu0 0
        %2226 = vmatpush.bf16.msra.mxu0 0
        %2227 = vmatpush.bf16.msra.mxu0 0
        %2228 = vmatpush.bf16.msra.mxu0 %v2216
        %2229 = vmatpush.bf16.msra.mxu0 %v2215
        %2230 = vmatpush.bf16.msra.mxu0 %v2214
        %2231 = vmatpush.bf16.msra.mxu0 %v2213
        %2232 = vmatmul.bf16.gmra.mxu0 %v2222
        %v2233 = vpop.f32.mrf.mxu0
        %v2234 = vadd.f32 %v2195, %v2233
        %v2235 = vpop.f32.mrf.mxu0
        %2236 = vdwg.mxu0
        %v2237 = vadd.f32 %v2091, %v2234
        %s2238 = scalar_lea.vmem %s13, 2
        %v2239 = vld [vmem:[%s2238] sm:$0x1]
        %s2240 = scalar_lea.vmem %s15, 2
        %v2241 = vld [vmem:[%s2240] sm:$0x1]
        %v2242 = vsel %vm1376, %v2237, 0.0
        %2243 = vadd.xlane.f32.xlu0 %v2242
        %v2244 = vpop.xlane.xlu0 %2243
        %v2245 = vmul.f32 %v2244, %v1386
        %v2246 = vsub.f32 %v2237, %v2245
        %v2247 = vmul.f32 %v2246, %v2246
        %v2248 = vsel %vm1376, %v2247, 0.0
        %2249 = vadd.xlane.f32.xlu0 %v2248
        %v2250 = vpop.xlane.xlu0 %2249
        %v2251 = vmul.f32 %v2250, %v1386
        %v2252 = vadd.f32 %v2251, 1e-05
        %v2253 = vrsqrt.pop %v2252
        %v2254 = vmul.f32 %v2253, %v2252
        %v2255 = vmul.f32 %v2254, %v2253
        %v2256 = vmul.f32 0.5, %v2255
        %v2257 = vsub.f32 1.5, %v2256
        %v2258 = vmul.f32 %v2253, %v2257
        %vm2259 = vweird.f32 %v2252
        %vm2260 = vweird.f32 %v2253
        %vm2261 = vmor %vm2259, %vm2260
        %v2262 = vsel %vm2261, %v2253, %v2258
        %v2263 = vmul.f32 %v2246, %v2262
        %v2265 = vperm.slane %v2239, 0
        %v2267 = vmul.f32 %v2263, %v2265
        %v2269 = vperm.slane %v2241, 0
        %v2271 = vadd.f32 %v2267, %v2269
        %v2272 = vpack.c.bf16 %v2271, %v2271
        %s2273 = scalar_lea.vmem %s17, 64
        %v2274 = vld [vmem:[%s2273] sm:$0xf]
        %v2275 = vld [vmem:[%s2273 + $0x4] sm:$0xf]
        %v2276 = vld [vmem:[%s2273 + $0x8] sm:$0xf]
        %v2277 = vld [vmem:[%s2273 + $0xc] sm:$0xf]
        %s2278 = scalar_lea.vmem %s19, 4
        %v2279 = vld [vmem:[%s2278] sm:$0x1]
        %v2281 = vperm.slane %v2279, 0
        %v2287 = vunpack.c.l.b16 %v2274
        %v2288 = vunpack.c.l.b16 %v2275
        %v2289 = vunpack.c.l.b16 %v2276
        %v2290 = vunpack.c.l.b16 %v2277
        %v2291 = vpack.c.b16 %v2288, %v2287
        %v2292 = vpack.c.b16 %v2290, %v2289
        %v2296 = vsel %vm1467, %v2272, 0
        %2298 = vmatpush.bf16.msra.mxu0 0
        %2299 = vmatpush.bf16.msra.mxu0 0
        %2300 = vmatpush.bf16.msra.mxu0 0
        %2301 = vmatpush.bf16.msra.mxu0 0
        %2302 = vmatpush.bf16.msra.mxu0 0
        %2303 = vmatpush.bf16.msra.mxu0 0
        %2304 = vmatpush.bf16.msra.mxu0 %v2292
        %2305 = vmatpush.bf16.msra.mxu0 %v2291
        %2306 = vmatmul.bf16.gmra.mxu0 %v2296
        %v2307 = vpop.f32.mrf.mxu0
        %v2308 = vadd.f32 %v2281, %v2307
        %v2309 = vpop.f32.mrf.mxu0
        %2310 = vdwg.mxu0
        %s2311 = scalar_lea.vmem %s21, 64
        %v2312 = vld [vmem:[%s2311] sm:$0xf]
        %v2313 = vld [vmem:[%s2311 + $0x4] sm:$0xf]
        %v2314 = vld [vmem:[%s2311 + $0x8] sm:$0xf]
        %v2315 = vld [vmem:[%s2311 + $0xc] sm:$0xf]
        %s2316 = scalar_lea.vmem %s23, 4
        %v2317 = vld [vmem:[%s2316] sm:$0x1]
        %v2319 = vperm.slane %v2317, 0
        %v2325 = vunpack.c.l.b16 %v2312
        %v2326 = vunpack.c.l.b16 %v2313
        %v2327 = vunpack.c.l.b16 %v2314
        %v2328 = vunpack.c.l.b16 %v2315
        %v2329 = vpack.c.b16 %v2326, %v2325
        %v2330 = vpack.c.b16 %v2328, %v2327
        %2333 = vmatpush.bf16.msra.mxu0 0
        %2334 = vmatpush.bf16.msra.mxu0 0
        %2335 = vmatpush.bf16.msra.mxu0 0
        %2336 = vmatpush.bf16.msra.mxu0 0
        %2337 = vmatpush.bf16.msra.mxu0 0
        %2338 = vmatpush.bf16.msra.mxu0 0
        %2339 = vmatpush.bf16.msra.mxu0 %v2330
        %2340 = vmatpush.bf16.msra.mxu0 %v2329
        %2341 = vmatmul.bf16.gmra.mxu0 %v2296
        %v2342 = vpop.f32.mrf.mxu0
        %v2343 = vadd.f32 %v2319, %v2342
        %v2344 = vpop.f32.mrf.mxu0
        %2345 = vdwg.mxu0
        %v2346 = vpack.c.bf16 %v2308, %v2308
        %v2347 = vpack.c.bf16 %v2343, %v2343
        %v2349 = vsel %vm1519, %v2346, 0
        %v2352 = vsel %vm1519, %v2347, 0
        %2354 = vmatpush.bf16.xpose.msra.mxu0 0
        %2355 = vmatpush.bf16.xpose.msra.mxu0 0
        %2356 = vmatpush.bf16.xpose.msra.mxu0 0
        %2357 = vmatpush.bf16.xpose.msra.mxu0 0
        %2358 = vmatpush.bf16.xpose.msra.mxu0 0
        %2359 = vmatpush.bf16.xpose.msra.mxu0 0
        %2360 = vmatpush.bf16.xpose.msra.mxu0 0
        %2361 = vmatpush.bf16.xpose.msra.mxu0 %v2352
        %2362 = vmatmul.bf16.gmra.mxu0 %v2349
        %v2363 = vpop.f32.mrf.mxu0
        %v2364 = vadd.f32 0.0, %v2363
        %v2365 = vpop.f32.mrf.mxu0
        %2366 = vdwg.mxu0
        %v2367 = vsel %vm1539, %v2364, -inf
        %2368 = vmax.xlane.f32.xlu0 %v2367
        %v2369 = vpop.xlane.xlu0 %2368
        %v2370 = vsub.f32 %v2364, %v2369
        %v2371 = vmul.f32 %v2370, 1.442695
        %v2372 = vpow.pop %v2371
        %v2373 = vsel %vm1539, %v2372, 0.0
        %2374 = vadd.xlane.f32.xlu0 %v2373
        %v2375 = vpop.xlane.xlu0 %2374
        %v2376 = vrcp.pop %v2375
        %v2377 = vmul.f32 %v2372, %v2376
        %s2378 = scalar_lea.vmem %s25, 64
        %v2379 = vld [vmem:[%s2378] sm:$0xf]
        %v2380 = vld [vmem:[%s2378 + $0x4] sm:$0xf]
        %v2381 = vld [vmem:[%s2378 + $0x8] sm:$0xf]
        %v2382 = vld [vmem:[%s2378 + $0xc] sm:$0xf]
        %s2383 = scalar_lea.vmem %s27, 4
        %v2384 = vld [vmem:[%s2383] sm:$0x1]
        %v2386 = vperm.slane %v2384, 0
        %v2392 = vunpack.c.l.b16 %v2379
        %v2393 = vunpack.c.l.b16 %v2380
        %v2394 = vunpack.c.l.b16 %v2381
        %v2395 = vunpack.c.l.b16 %v2382
        %v2396 = vpack.c.b16 %v2393, %v2392
        %v2397 = vpack.c.b16 %v2395, %v2394
        %2400 = vmatpush.bf16.msra.mxu0 0
        %2401 = vmatpush.bf16.msra.mxu0 0
        %2402 = vmatpush.bf16.msra.mxu0 0
        %2403 = vmatpush.bf16.msra.mxu0 0
        %2404 = vmatpush.bf16.msra.mxu0 0
        %2405 = vmatpush.bf16.msra.mxu0 0
        %2406 = vmatpush.bf16.msra.mxu0 %v2397
        %2407 = vmatpush.bf16.msra.mxu0 %v2396
        %2408 = vmatmul.bf16.gmra.mxu0 %v2296
        %v2409 = vpop.f32.mrf.mxu0
        %v2410 = vadd.f32 %v2386, %v2409
        %v2411 = vpop.f32.mrf.mxu0
        %2412 = vdwg.mxu0
        %v2413 = vpack.c.bf16 %v2377, %v2377
        %v2414 = vpack.c.bf16 %v2410, %v2410
        %s2415 = scalar_lea.vmem %s17, 80
        %v2416 = vld [vmem:[%s2415] sm:$0xf]
        %v2417 = vld [vmem:[%s2415 + $0x4] sm:$0xf]
        %v2418 = vld [vmem:[%s2415 + $0x8] sm:$0xf]
        %v2419 = vld [vmem:[%s2415 + $0xc] sm:$0xf]
        %s2420 = scalar_lea.vmem %s19, 5
        %v2421 = vld [vmem:[%s2420] sm:$0x1]
        %v2423 = vperm.slane %v2421, 0
        %v2429 = vunpack.c.l.b16 %v2416
        %v2430 = vunpack.c.l.b16 %v2417
        %v2431 = vunpack.c.l.b16 %v2418
        %v2432 = vunpack.c.l.b16 %v2419
        %v2433 = vpack.c.b16 %v2430, %v2429
        %v2434 = vpack.c.b16 %v2432, %v2431
        %2437 = vmatpush.bf16.msra.mxu0 0
        %2438 = vmatpush.bf16.msra.mxu0 0
        %2439 = vmatpush.bf16.msra.mxu0 0
        %2440 = vmatpush.bf16.msra.mxu0 0
        %2441 = vmatpush.bf16.msra.mxu0 0
        %2442 = vmatpush.bf16.msra.mxu0 0
        %2443 = vmatpush.bf16.msra.mxu0 %v2434
        %2444 = vmatpush.bf16.msra.mxu0 %v2433
        %2445 = vmatmul.bf16.gmra.mxu0 %v2296
        %v2446 = vpop.f32.mrf.mxu0
        %v2447 = vadd.f32 %v2423, %v2446
        %v2448 = vpop.f32.mrf.mxu0
        %2449 = vdwg.mxu0
        %s2450 = scalar_lea.vmem %s21, 80
        %v2451 = vld [vmem:[%s2450] sm:$0xf]
        %v2452 = vld [vmem:[%s2450 + $0x4] sm:$0xf]
        %v2453 = vld [vmem:[%s2450 + $0x8] sm:$0xf]
        %v2454 = vld [vmem:[%s2450 + $0xc] sm:$0xf]
        %s2455 = scalar_lea.vmem %s23, 5
        %v2456 = vld [vmem:[%s2455] sm:$0x1]
        %v2458 = vperm.slane %v2456, 0
        %v2464 = vunpack.c.l.b16 %v2451
        %v2465 = vunpack.c.l.b16 %v2452
        %v2466 = vunpack.c.l.b16 %v2453
        %v2467 = vunpack.c.l.b16 %v2454
        %v2468 = vpack.c.b16 %v2465, %v2464
        %v2469 = vpack.c.b16 %v2467, %v2466
        %2472 = vmatpush.bf16.msra.mxu0 0
        %2473 = vmatpush.bf16.msra.mxu0 0
        %2474 = vmatpush.bf16.msra.mxu0 0
        %2475 = vmatpush.bf16.msra.mxu0 0
        %2476 = vmatpush.bf16.msra.mxu0 0
        %2477 = vmatpush.bf16.msra.mxu0 0
        %2478 = vmatpush.bf16.msra.mxu0 %v2469
        %2479 = vmatpush.bf16.msra.mxu0 %v2468
        %2480 = vmatmul.bf16.gmra.mxu0 %v2296
        %v2481 = vpop.f32.mrf.mxu0
        %v2482 = vadd.f32 %v2458, %v2481
        %v2483 = vpop.f32.mrf.mxu0
        %2484 = vdwg.mxu0
        %v2485 = vpack.c.bf16 %v2447, %v2447
        %v2486 = vpack.c.bf16 %v2482, %v2482
        %v2488 = vsel %vm1519, %v2485, 0
        %v2491 = vsel %vm1519, %v2486, 0
        %2493 = vmatpush.bf16.xpose.msra.mxu0 0
        %2494 = vmatpush.bf16.xpose.msra.mxu0 0
        %2495 = vmatpush.bf16.xpose.msra.mxu0 0
        %2496 = vmatpush.bf16.xpose.msra.mxu0 0
        %2497 = vmatpush.bf16.xpose.msra.mxu0 0
        %2498 = vmatpush.bf16.xpose.msra.mxu0 0
        %2499 = vmatpush.bf16.xpose.msra.mxu0 0
        %2500 = vmatpush.bf16.xpose.msra.mxu0 %v2491
        %2501 = vmatmul.bf16.gmra.mxu0 %v2488
        %v2502 = vpop.f32.mrf.mxu0
        %v2503 = vadd.f32 0.0, %v2502
        %v2504 = vpop.f32.mrf.mxu0
        %2505 = vdwg.mxu0
        %v2506 = vsel %vm1539, %v2503, -inf
        %2507 = vmax.xlane.f32.xlu0 %v2506
        %v2508 = vpop.xlane.xlu0 %2507
        %v2509 = vsub.f32 %v2503, %v2508
        %v2510 = vmul.f32 %v2509, 1.442695
        %v2511 = vpow.pop %v2510
        %v2512 = vsel %vm1539, %v2511, 0.0
        %2513 = vadd.xlane.f32.xlu0 %v2512
        %v2514 = vpop.xlane.xlu0 %2513
        %v2515 = vrcp.pop %v2514
        %v2516 = vmul.f32 %v2511, %v2515
        %s2517 = scalar_lea.vmem %s25, 80
        %v2518 = vld [vmem:[%s2517] sm:$0xf]
        %v2519 = vld [vmem:[%s2517 + $0x4] sm:$0xf]
        %v2520 = vld [vmem:[%s2517 + $0x8] sm:$0xf]
        %v2521 = vld [vmem:[%s2517 + $0xc] sm:$0xf]
        %s2522 = scalar_lea.vmem %s27, 5
        %v2523 = vld [vmem:[%s2522] sm:$0x1]
        %v2525 = vperm.slane %v2523, 0
        %v2531 = vunpack.c.l.b16 %v2518
        %v2532 = vunpack.c.l.b16 %v2519
        %v2533 = vunpack.c.l.b16 %v2520
        %v2534 = vunpack.c.l.b16 %v2521
        %v2535 = vpack.c.b16 %v2532, %v2531
        %v2536 = vpack.c.b16 %v2534, %v2533
        %2539 = vmatpush.bf16.msra.mxu0 0
        %2540 = vmatpush.bf16.msra.mxu0 0
        %2541 = vmatpush.bf16.msra.mxu0 0
        %2542 = vmatpush.bf16.msra.mxu0 0
        %2543 = vmatpush.bf16.msra.mxu0 0
        %2544 = vmatpush.bf16.msra.mxu0 0
        %2545 = vmatpush.bf16.msra.mxu0 %v2536
        %2546 = vmatpush.bf16.msra.mxu0 %v2535
        %2547 = vmatmul.bf16.gmra.mxu0 %v2296
        %v2548 = vpop.f32.mrf.mxu0
        %v2549 = vadd.f32 %v2525, %v2548
        %v2550 = vpop.f32.mrf.mxu0
        %2551 = vdwg.mxu0
        %v2552 = vpack.c.bf16 %v2516, %v2516
        %v2553 = vpack.c.bf16 %v2549, %v2549
        %v2555 = vsel %vm1725, %v2552, 0
        %v2558 = vand.u32 %v2553, %v1732
        %2560 = vmatpush.bf16.msra.mxu0 0
        %2561 = vmatpush.bf16.msra.mxu0 0
        %2562 = vmatpush.bf16.msra.mxu0 0
        %2563 = vmatpush.bf16.msra.mxu0 0
        %2564 = vmatpush.bf16.msra.mxu0 0
        %2565 = vmatpush.bf16.msra.mxu0 0
        %2566 = vmatpush.bf16.msra.mxu0 0
        %2567 = vmatpush.bf16.msra.mxu0 %v2558
        %2568 = vmatmul.bf16.gmra.mxu0 %v2555
        %v2569 = vpop.f32.mrf.mxu0
        %v2570 = vadd.f32 0.0, %v2569
        %v2571 = vpop.f32.mrf.mxu0
        %2572 = vdwg.mxu0
        %v2574 = vsel %vm1725, %v2413, 0
        %v2577 = vand.u32 %v2414, %v1732
        %2579 = vmatpush.bf16.msra.mxu0 0
        %2580 = vmatpush.bf16.msra.mxu0 0
        %2581 = vmatpush.bf16.msra.mxu0 0
        %2582 = vmatpush.bf16.msra.mxu0 0
        %2583 = vmatpush.bf16.msra.mxu0 0
        %2584 = vmatpush.bf16.msra.mxu0 0
        %2585 = vmatpush.bf16.msra.mxu0 0
        %2586 = vmatpush.bf16.msra.mxu0 %v2577
        %2587 = vmatmul.bf16.gmra.mxu0 %v2574
        %v2588 = vpop.f32.mrf.mxu0
        %v2589 = vadd.f32 %v2570, %v2588
        %v2590 = vpop.f32.mrf.mxu0
        %2591 = vdwg.mxu0
        %s2592 = scalar_lea.vmem %s17, 96
        %v2593 = vld [vmem:[%s2592] sm:$0xf]
        %v2594 = vld [vmem:[%s2592 + $0x4] sm:$0xf]
        %v2595 = vld [vmem:[%s2592 + $0x8] sm:$0xf]
        %v2596 = vld [vmem:[%s2592 + $0xc] sm:$0xf]
        %s2597 = scalar_lea.vmem %s19, 6
        %v2598 = vld [vmem:[%s2597] sm:$0x1]
        %v2600 = vperm.slane %v2598, 0
        %v2606 = vunpack.c.l.b16 %v2593
        %v2607 = vunpack.c.l.b16 %v2594
        %v2608 = vunpack.c.l.b16 %v2595
        %v2609 = vunpack.c.l.b16 %v2596
        %v2610 = vpack.c.b16 %v2607, %v2606
        %v2611 = vpack.c.b16 %v2609, %v2608
        %2614 = vmatpush.bf16.msra.mxu0 0
        %2615 = vmatpush.bf16.msra.mxu0 0
        %2616 = vmatpush.bf16.msra.mxu0 0
        %2617 = vmatpush.bf16.msra.mxu0 0
        %2618 = vmatpush.bf16.msra.mxu0 0
        %2619 = vmatpush.bf16.msra.mxu0 0
        %2620 = vmatpush.bf16.msra.mxu0 %v2611
        %2621 = vmatpush.bf16.msra.mxu0 %v2610
        %2622 = vmatmul.bf16.gmra.mxu0 %v2296
        %v2623 = vpop.f32.mrf.mxu0
        %v2624 = vadd.f32 %v2600, %v2623
        %v2625 = vpop.f32.mrf.mxu0
        %2626 = vdwg.mxu0
        %s2627 = scalar_lea.vmem %s21, 96
        %v2628 = vld [vmem:[%s2627] sm:$0xf]
        %v2629 = vld [vmem:[%s2627 + $0x4] sm:$0xf]
        %v2630 = vld [vmem:[%s2627 + $0x8] sm:$0xf]
        %v2631 = vld [vmem:[%s2627 + $0xc] sm:$0xf]
        %s2632 = scalar_lea.vmem %s23, 6
        %v2633 = vld [vmem:[%s2632] sm:$0x1]
        %v2635 = vperm.slane %v2633, 0
        %v2641 = vunpack.c.l.b16 %v2628
        %v2642 = vunpack.c.l.b16 %v2629
        %v2643 = vunpack.c.l.b16 %v2630
        %v2644 = vunpack.c.l.b16 %v2631
        %v2645 = vpack.c.b16 %v2642, %v2641
        %v2646 = vpack.c.b16 %v2644, %v2643
        %2649 = vmatpush.bf16.msra.mxu0 0
        %2650 = vmatpush.bf16.msra.mxu0 0
        %2651 = vmatpush.bf16.msra.mxu0 0
        %2652 = vmatpush.bf16.msra.mxu0 0
        %2653 = vmatpush.bf16.msra.mxu0 0
        %2654 = vmatpush.bf16.msra.mxu0 0
        %2655 = vmatpush.bf16.msra.mxu0 %v2646
        %2656 = vmatpush.bf16.msra.mxu0 %v2645
        %2657 = vmatmul.bf16.gmra.mxu0 %v2296
        %v2658 = vpop.f32.mrf.mxu0
        %v2659 = vadd.f32 %v2635, %v2658
        %v2660 = vpop.f32.mrf.mxu0
        %2661 = vdwg.mxu0
        %v2662 = vpack.c.bf16 %v2624, %v2624
        %v2663 = vpack.c.bf16 %v2659, %v2659
        %v2665 = vsel %vm1519, %v2662, 0
        %v2668 = vsel %vm1519, %v2663, 0
        %2670 = vmatpush.bf16.xpose.msra.mxu0 0
        %2671 = vmatpush.bf16.xpose.msra.mxu0 0
        %2672 = vmatpush.bf16.xpose.msra.mxu0 0
        %2673 = vmatpush.bf16.xpose.msra.mxu0 0
        %2674 = vmatpush.bf16.xpose.msra.mxu0 0
        %2675 = vmatpush.bf16.xpose.msra.mxu0 0
        %2676 = vmatpush.bf16.xpose.msra.mxu0 0
        %2677 = vmatpush.bf16.xpose.msra.mxu0 %v2668
        %2678 = vmatmul.bf16.gmra.mxu0 %v2665
        %v2679 = vpop.f32.mrf.mxu0
        %v2680 = vadd.f32 0.0, %v2679
        %v2681 = vpop.f32.mrf.mxu0
        %2682 = vdwg.mxu0
        %v2683 = vsel %vm1539, %v2680, -inf
        %2684 = vmax.xlane.f32.xlu0 %v2683
        %v2685 = vpop.xlane.xlu0 %2684
        %v2686 = vsub.f32 %v2680, %v2685
        %v2687 = vmul.f32 %v2686, 1.442695
        %v2688 = vpow.pop %v2687
        %v2689 = vsel %vm1539, %v2688, 0.0
        %2690 = vadd.xlane.f32.xlu0 %v2689
        %v2691 = vpop.xlane.xlu0 %2690
        %v2692 = vrcp.pop %v2691
        %v2693 = vmul.f32 %v2688, %v2692
        %s2694 = scalar_lea.vmem %s25, 96
        %v2695 = vld [vmem:[%s2694] sm:$0xf]
        %v2696 = vld [vmem:[%s2694 + $0x4] sm:$0xf]
        %v2697 = vld [vmem:[%s2694 + $0x8] sm:$0xf]
        %v2698 = vld [vmem:[%s2694 + $0xc] sm:$0xf]
        %s2699 = scalar_lea.vmem %s27, 6
        %v2700 = vld [vmem:[%s2699] sm:$0x1]
        %v2702 = vperm.slane %v2700, 0
        %v2708 = vunpack.c.l.b16 %v2695
        %v2709 = vunpack.c.l.b16 %v2696
        %v2710 = vunpack.c.l.b16 %v2697
        %v2711 = vunpack.c.l.b16 %v2698
        %v2712 = vpack.c.b16 %v2709, %v2708
        %v2713 = vpack.c.b16 %v2711, %v2710
        %2716 = vmatpush.bf16.msra.mxu0 0
        %2717 = vmatpush.bf16.msra.mxu0 0
        %2718 = vmatpush.bf16.msra.mxu0 0
        %2719 = vmatpush.bf16.msra.mxu0 0
        %2720 = vmatpush.bf16.msra.mxu0 0
        %2721 = vmatpush.bf16.msra.mxu0 0
        %2722 = vmatpush.bf16.msra.mxu0 %v2713
        %2723 = vmatpush.bf16.msra.mxu0 %v2712
        %2724 = vmatmul.bf16.gmra.mxu0 %v2296
        %v2725 = vpop.f32.mrf.mxu0
        %v2726 = vadd.f32 %v2702, %v2725
        %v2727 = vpop.f32.mrf.mxu0
        %2728 = vdwg.mxu0
        %v2729 = vpack.c.bf16 %v2693, %v2693
        %v2730 = vpack.c.bf16 %v2726, %v2726
        %v2732 = vsel %vm1725, %v2729, 0
        %v2735 = vand.u32 %v2730, %v1732
        %2737 = vmatpush.bf16.msra.mxu0 0
        %2738 = vmatpush.bf16.msra.mxu0 0
        %2739 = vmatpush.bf16.msra.mxu0 0
        %2740 = vmatpush.bf16.msra.mxu0 0
        %2741 = vmatpush.bf16.msra.mxu0 0
        %2742 = vmatpush.bf16.msra.mxu0 0
        %2743 = vmatpush.bf16.msra.mxu0 0
        %2744 = vmatpush.bf16.msra.mxu0 %v2735
        %2745 = vmatmul.bf16.gmra.mxu0 %v2732
        %v2746 = vpop.f32.mrf.mxu0
        %v2747 = vadd.f32 0.0, %v2746
        %v2748 = vpop.f32.mrf.mxu0
        %2749 = vdwg.mxu0
        %v2750 = vadd.f32 %v2589, %v2747
        %s2751 = scalar_lea.vmem %s17, 112
        %v2752 = vld [vmem:[%s2751] sm:$0xf]
        %v2753 = vld [vmem:[%s2751 + $0x4] sm:$0xf]
        %v2754 = vld [vmem:[%s2751 + $0x8] sm:$0xf]
        %v2755 = vld [vmem:[%s2751 + $0xc] sm:$0xf]
        %s2756 = scalar_lea.vmem %s19, 7
        %v2757 = vld [vmem:[%s2756] sm:$0x1]
        %v2759 = vperm.slane %v2757, 0
        %v2765 = vunpack.c.l.b16 %v2752
        %v2766 = vunpack.c.l.b16 %v2753
        %v2767 = vunpack.c.l.b16 %v2754
        %v2768 = vunpack.c.l.b16 %v2755
        %v2769 = vpack.c.b16 %v2766, %v2765
        %v2770 = vpack.c.b16 %v2768, %v2767
        %2773 = vmatpush.bf16.msra.mxu0 0
        %2774 = vmatpush.bf16.msra.mxu0 0
        %2775 = vmatpush.bf16.msra.mxu0 0
        %2776 = vmatpush.bf16.msra.mxu0 0
        %2777 = vmatpush.bf16.msra.mxu0 0
        %2778 = vmatpush.bf16.msra.mxu0 0
        %2779 = vmatpush.bf16.msra.mxu0 %v2770
        %2780 = vmatpush.bf16.msra.mxu0 %v2769
        %2781 = vmatmul.bf16.gmra.mxu0 %v2296
        %v2782 = vpop.f32.mrf.mxu0
        %v2783 = vadd.f32 %v2759, %v2782
        %v2784 = vpop.f32.mrf.mxu0
        %2785 = vdwg.mxu0
        %s2786 = scalar_lea.vmem %s21, 112
        %v2787 = vld [vmem:[%s2786] sm:$0xf]
        %v2788 = vld [vmem:[%s2786 + $0x4] sm:$0xf]
        %v2789 = vld [vmem:[%s2786 + $0x8] sm:$0xf]
        %v2790 = vld [vmem:[%s2786 + $0xc] sm:$0xf]
        %s2791 = scalar_lea.vmem %s23, 7
        %v2792 = vld [vmem:[%s2791] sm:$0x1]
        %v2794 = vperm.slane %v2792, 0
        %v2800 = vunpack.c.l.b16 %v2787
        %v2801 = vunpack.c.l.b16 %v2788
        %v2802 = vunpack.c.l.b16 %v2789
        %v2803 = vunpack.c.l.b16 %v2790
        %v2804 = vpack.c.b16 %v2801, %v2800
        %v2805 = vpack.c.b16 %v2803, %v2802
        %2808 = vmatpush.bf16.msra.mxu0 0
        %2809 = vmatpush.bf16.msra.mxu0 0
        %2810 = vmatpush.bf16.msra.mxu0 0
        %2811 = vmatpush.bf16.msra.mxu0 0
        %2812 = vmatpush.bf16.msra.mxu0 0
        %2813 = vmatpush.bf16.msra.mxu0 0
        %2814 = vmatpush.bf16.msra.mxu0 %v2805
        %2815 = vmatpush.bf16.msra.mxu0 %v2804
        %2816 = vmatmul.bf16.gmra.mxu0 %v2296
        %v2817 = vpop.f32.mrf.mxu0
        %v2818 = vadd.f32 %v2794, %v2817
        %v2819 = vpop.f32.mrf.mxu0
        %2820 = vdwg.mxu0
        %v2821 = vpack.c.bf16 %v2783, %v2783
        %v2822 = vpack.c.bf16 %v2818, %v2818
        %v2824 = vsel %vm1519, %v2821, 0
        %v2827 = vsel %vm1519, %v2822, 0
        %2829 = vmatpush.bf16.xpose.msra.mxu0 0
        %2830 = vmatpush.bf16.xpose.msra.mxu0 0
        %2831 = vmatpush.bf16.xpose.msra.mxu0 0
        %2832 = vmatpush.bf16.xpose.msra.mxu0 0
        %2833 = vmatpush.bf16.xpose.msra.mxu0 0
        %2834 = vmatpush.bf16.xpose.msra.mxu0 0
        %2835 = vmatpush.bf16.xpose.msra.mxu0 0
        %2836 = vmatpush.bf16.xpose.msra.mxu0 %v2827
        %2837 = vmatmul.bf16.gmra.mxu0 %v2824
        %v2838 = vpop.f32.mrf.mxu0
        %v2839 = vadd.f32 0.0, %v2838
        %v2840 = vpop.f32.mrf.mxu0
        %2841 = vdwg.mxu0
        %v2842 = vsel %vm1539, %v2839, -inf
        %2843 = vmax.xlane.f32.xlu0 %v2842
        %v2844 = vpop.xlane.xlu0 %2843
        %v2845 = vsub.f32 %v2839, %v2844
        %v2846 = vmul.f32 %v2845, 1.442695
        %v2847 = vpow.pop %v2846
        %v2848 = vsel %vm1539, %v2847, 0.0
        %2849 = vadd.xlane.f32.xlu0 %v2848
        %v2850 = vpop.xlane.xlu0 %2849
        %v2851 = vrcp.pop %v2850
        %v2852 = vmul.f32 %v2847, %v2851
        %s2853 = scalar_lea.vmem %s25, 112
        %v2854 = vld [vmem:[%s2853] sm:$0xf]
        %v2855 = vld [vmem:[%s2853 + $0x4] sm:$0xf]
        %v2856 = vld [vmem:[%s2853 + $0x8] sm:$0xf]
        %v2857 = vld [vmem:[%s2853 + $0xc] sm:$0xf]
        %s2858 = scalar_lea.vmem %s27, 7
        %v2859 = vld [vmem:[%s2858] sm:$0x1]
        %v2861 = vperm.slane %v2859, 0
        %v2867 = vunpack.c.l.b16 %v2854
        %v2868 = vunpack.c.l.b16 %v2855
        %v2869 = vunpack.c.l.b16 %v2856
        %v2870 = vunpack.c.l.b16 %v2857
        %v2871 = vpack.c.b16 %v2868, %v2867
        %v2872 = vpack.c.b16 %v2870, %v2869
        %2875 = vmatpush.bf16.msra.mxu0 0
        %2876 = vmatpush.bf16.msra.mxu0 0
        %2877 = vmatpush.bf16.msra.mxu0 0
        %2878 = vmatpush.bf16.msra.mxu0 0
        %2879 = vmatpush.bf16.msra.mxu0 0
        %2880 = vmatpush.bf16.msra.mxu0 0
        %2881 = vmatpush.bf16.msra.mxu0 %v2872
        %2882 = vmatpush.bf16.msra.mxu0 %v2871
        %2883 = vmatmul.bf16.gmra.mxu0 %v2296
        %v2884 = vpop.f32.mrf.mxu0
        %v2885 = vadd.f32 %v2861, %v2884
        %v2886 = vpop.f32.mrf.mxu0
        %2887 = vdwg.mxu0
        %v2888 = vpack.c.bf16 %v2852, %v2852
        %v2889 = vpack.c.bf16 %v2885, %v2885
        %v2891 = vsel %vm1725, %v2888, 0
        %v2894 = vand.u32 %v2889, %v1732
        %2896 = vmatpush.bf16.msra.mxu0 0
        %2897 = vmatpush.bf16.msra.mxu0 0
        %2898 = vmatpush.bf16.msra.mxu0 0
        %2899 = vmatpush.bf16.msra.mxu0 0
        %2900 = vmatpush.bf16.msra.mxu0 0
        %2901 = vmatpush.bf16.msra.mxu0 0
        %2902 = vmatpush.bf16.msra.mxu0 0
        %2903 = vmatpush.bf16.msra.mxu0 %v2894
        %2904 = vmatmul.bf16.gmra.mxu0 %v2891
        %v2905 = vpop.f32.mrf.mxu0
        %v2906 = vadd.f32 0.0, %v2905
        %v2907 = vpop.f32.mrf.mxu0
        %2908 = vdwg.mxu0
        %v2909 = vadd.f32 %v2750, %v2906
        %v2910 = vadd.f32 %v2237, %v2909
        %s2911 = scalar_lea.vmem %s29, 1
        %v2912 = vld [vmem:[%s2911] sm:$0x1]
        %v2914 = vperm.slane %v2912, 0
        %v2916 = vadd.f32 %v2910, %v2914
        %s2917 = scalar_lea.vmem %s13, 3
        %v2918 = vld [vmem:[%s2917] sm:$0x1]
        %s2919 = scalar_lea.vmem %s15, 3
        %v2920 = vld [vmem:[%s2919] sm:$0x1]
        %v2921 = vsel %vm1376, %v2916, 0.0
        %2922 = vadd.xlane.f32.xlu0 %v2921
        %v2923 = vpop.xlane.xlu0 %2922
        %v2924 = vmul.f32 %v2923, %v1386
        %v2925 = vsub.f32 %v2916, %v2924
        %v2926 = vmul.f32 %v2925, %v2925
        %v2927 = vsel %vm1376, %v2926, 0.0
        %2928 = vadd.xlane.f32.xlu0 %v2927
        %v2929 = vpop.xlane.xlu0 %2928
        %v2930 = vmul.f32 %v2929, %v1386
        %v2931 = vadd.f32 %v2930, 1e-05
        %v2932 = vrsqrt.pop %v2931
        %v2933 = vmul.f32 %v2932, %v2931
        %v2934 = vmul.f32 %v2933, %v2932
        %v2935 = vmul.f32 0.5, %v2934
        %v2936 = vsub.f32 1.5, %v2935
        %v2937 = vmul.f32 %v2932, %v2936
        %vm2938 = vweird.f32 %v2931
        %vm2939 = vweird.f32 %v2932
        %vm2940 = vmor %vm2938, %vm2939
        %v2941 = vsel %vm2940, %v2932, %v2937
        %v2942 = vmul.f32 %v2925, %v2941
        %v2944 = vperm.slane %v2918, 0
        %v2946 = vmul.f32 %v2942, %v2944
        %v2948 = vperm.slane %v2920, 0
        %v2950 = vadd.f32 %v2946, %v2948
        %v2951 = vpack.c.bf16 %v2950, %v2950
        %s2952 = scalar_lea.vmem %s31, 16
        %v2953 = vld [vmem:[%s2952] sm:$0xf]
        %v2954 = vld [vmem:[%s2952 + $0x4] sm:$0xf]
        %v2955 = vld [vmem:[%s2952 + $0x8] sm:$0xf]
        %v2956 = vld [vmem:[%s2952 + $0xc] sm:$0xf]
        %s2957 = scalar_lea.vmem %s33, 1
        %v2958 = vld [vmem:[%s2957] sm:$0x1]
        %v2960 = vperm.slane %v2958, 0
        %v2966 = vunpack.c.l.b16 %v2953
        %v2967 = vunpack.c.l.b16 %v2954
        %v2968 = vunpack.c.l.b16 %v2955
        %v2969 = vunpack.c.l.b16 %v2956
        %v2970 = vpack.c.b16 %v2967, %v2966
        %v2971 = vpack.c.b16 %v2969, %v2968
        %v2975 = vsel %vm1467, %v2951, 0
        %2977 = vmatpush.bf16.msra.mxu0 0
        %2978 = vmatpush.bf16.msra.mxu0 0
        %2979 = vmatpush.bf16.msra.mxu0 0
        %2980 = vmatpush.bf16.msra.mxu0 0
        %2981 = vmatpush.bf16.msra.mxu0 0
        %2982 = vmatpush.bf16.msra.mxu0 0
        %2983 = vmatpush.bf16.msra.mxu0 %v2971
        %2984 = vmatpush.bf16.msra.mxu0 %v2970
        %2985 = vmatmul.bf16.gmra.mxu0 %v2975
        %v2986 = vpop.f32.mrf.mxu0
        %v2987 = vadd.f32 %v2960, %v2986
        %v2988 = vpop.f32.mrf.mxu0
        %2989 = vdwg.mxu0
        %v2990 = vmul.f32 %v2987, 1.702
        %v2991 = vxor.u32 %v2990, 2147483648
        %v2992 = vmul.f32 %v2991, 1.442695
        %v2993 = vpow.pop %v2992
        %v2994 = vadd.f32 %v2993, 1.0
        %v2995 = vrcp.pop %v2994
        %v2996 = vmul.f32 %v2994, %v2995
        %v2997 = vsub.f32 1.0, %v2996
        %v2998 = vmul.f32 %v2995, %v2997
        %v2999 = vadd.f32 %v2995, %v2998
        %vm3000 = vweird.f32 %v2994
        %vm3001 = vweird.f32 %v2995
        %vm3002 = vmor %vm3000, %vm3001
        %v3003 = vsel %vm3002, %v2995, %v2999
        %v3004 = vand.u32 2147483647, %v2994
        %vm3005 = vcmp.eq.f32.partialorder %v3004, 8.507059e+37
        %v3006 = vand.u32 %v2994, 2147483648
        %v3007 = vor.u32 1.1754944e-38, %v3006
        %v3008 = vsel %vm3005, %v3007, %v3003
        %v3009 = vmul.f32 1.0, %v3008
        %v3010 = vmul.f32 %v2987, %v3009
        %v3011 = vpack.c.bf16 %v3010, %v3010
        %s3012 = scalar_lea.vmem %s35, 32
        %v3013 = vld [vmem:[%s3012] sm:$0xf]
        %v3014 = vld [vmem:[%s3012 + $0x4] sm:$0xf]
        %v3015 = vld [vmem:[%s3012 + $0x8] sm:$0xf]
        %v3016 = vld [vmem:[%s3012 + $0xc] sm:$0xf]
        %v3017 = vld [vmem:[%s3012 + $0x10] sm:$0xf]
        %v3018 = vld [vmem:[%s3012 + $0x14] sm:$0xf]
        %v3019 = vld [vmem:[%s3012 + $0x18] sm:$0xf]
        %v3020 = vld [vmem:[%s3012 + $0x1c] sm:$0xf]
        %s3021 = scalar_lea.vmem %s37, 1
        %v3022 = vld [vmem:[%s3021] sm:$0x1]
        %v3024 = vperm.slane %v3022, 0
        %v3034 = vunpack.c.l.b16 %v3013
        %v3035 = vunpack.c.l.b16 %v3014
        %v3036 = vunpack.c.l.b16 %v3015
        %v3037 = vunpack.c.l.b16 %v3016
        %v3038 = vunpack.c.l.b16 %v3017
        %v3039 = vunpack.c.l.b16 %v3018
        %v3040 = vunpack.c.l.b16 %v3019
        %v3041 = vunpack.c.l.b16 %v3020
        %v3042 = vpack.c.b16 %v3035, %v3034
        %v3043 = vpack.c.b16 %v3037, %v3036
        %v3044 = vpack.c.b16 %v3039, %v3038
        %v3045 = vpack.c.b16 %v3041, %v3040
        %v3051 = vsel %vm1344, %v3011, 0
        %3053 = vmatpush.bf16.msra.mxu0 0
        %3054 = vmatpush.bf16.msra.mxu0 0
        %3055 = vmatpush.bf16.msra.mxu0 0
        %3056 = vmatpush.bf16.msra.mxu0 0
        %3057 = vmatpush.bf16.msra.mxu0 %v3045
        %3058 = vmatpush.bf16.msra.mxu0 %v3044
        %3059 = vmatpush.bf16.msra.mxu0 %v3043
        %3060 = vmatpush.bf16.msra.mxu0 %v3042
        %3061 = vmatmul.bf16.gmra.mxu0 %v3051
        %v3062 = vpop.f32.mrf.mxu0
        %v3063 = vadd.f32 %v3024, %v3062
        %v3064 = vpop.f32.mrf.mxu0
        %3065 = vdwg.mxu0
        %v3066 = vadd.f32 %v2916, %v3063
        %v3067 = vpack.c.bf16 %v3066, %v3066
        %v3068 = vld [vmem:[%s11] sm:$0xf]
        %v3069 = vld [vmem:[%s11 + $0x4] sm:$0xf]
        %v3070 = vld [vmem:[%s11 + $0x8] sm:$0xf]
        %v3071 = vld [vmem:[%s11 + $0xc] sm:$0xf]
        %v3076 = vunpack.c.l.b16 %v3068
        %v3077 = vunpack.c.l.b16 %v3069
        %v3078 = vunpack.c.l.b16 %v3070
        %v3079 = vunpack.c.l.b16 %v3071
        %v3080 = vpack.c.b16 %v3077, %v3076
        %v3081 = vpack.c.b16 %v3079, %v3078
        %v3085 = vsel %vm1467, %v3067, 0
        %3087 = vmatpush.bf16.msra.mxu0 0
        %3088 = vmatpush.bf16.msra.mxu0 0
        %3089 = vmatpush.bf16.msra.mxu0 0
        %3090 = vmatpush.bf16.msra.mxu0 0
        %3091 = vmatpush.bf16.msra.mxu0 0
        %3092 = vmatpush.bf16.msra.mxu0 0
        %3093 = vmatpush.bf16.msra.mxu0 %v3081
        %3094 = vmatpush.bf16.msra.mxu0 %v3080
        %3095 = vmatmul.bf16.gmra.mxu0 %v3085
        %v3096 = vpop.f32.mrf.mxu0
        %v3097 = vadd.f32 0.0, %v3096
        %v3098 = vpop.f32.mrf.mxu0
        %3099 = vdwg.mxu0
        %v3100 = vld [vmem:[%s1237] sm:$0xff]
        %v3101 = vld [vmem:[%s1241] sm:$0xff]
        %v3102 = vld [vmem:[%s51] sm:$0x1]
        %v3103 = vld [vmem:[%s53] sm:$0x1]
        %v3104 = vsel %vm1467, %v3100, 0.0
        %3105 = vadd.xlane.f32.xlu0 %v3104
        %v3106 = vpop.xlane.xlu0 %3105
        %v3107 = vmul.f32 %v3106, %v1386
        %v3108 = vsub.f32 %v3100, %v3107
        %v3109 = vmul.f32 %v3108, %v3108
        %v3110 = vsel %vm1467, %v3109, 0.0
        %3111 = vadd.xlane.f32.xlu0 %v3110
        %v3112 = vpop.xlane.xlu0 %3111
        %v3113 = vmul.f32 %v3112, %v1386
        %v3114 = vadd.f32 %v3113, 1e-05
        %v3115 = vrsqrt.pop %v3114
        %v3116 = vmul.f32 %v3115, %v3114
        %v3117 = vmul.f32 %v3116, %v3115
        %v3118 = vmul.f32 0.5, %v3117
        %v3119 = vsub.f32 1.5, %v3118
        %v3120 = vmul.f32 %v3115, %v3119
        %vm3121 = vweird.f32 %v3114
        %vm3122 = vweird.f32 %v3115
        %vm3123 = vmor %vm3121, %vm3122
        %v3124 = vsel %vm3123, %v3115, %v3120
        %v3125 = vmul.f32 %v3108, %v3124
        %v3127 = vperm.slane %v3102, 0
        %v3129 = vmul.f32 %v3125, %v3127
        %v3131 = vperm.slane %v3103, 0
        %v3133 = vadd.f32 %v3129, %v3131
        %v3134 = vpack.c.bf16 %v3133, %v3133
        %v3135 = vld [vmem:[%s55] sm:$0xf]
        %v3136 = vld [vmem:[%s55 + $0x4] sm:$0xf]
        %v3137 = vld [vmem:[%s55 + $0x8] sm:$0xf]
        %v3138 = vld [vmem:[%s55 + $0xc] sm:$0xf]
        %v3139 = vld [vmem:[%s57] sm:$0x1]
        %v3141 = vperm.slane %v3139, 0
        %v3147 = vunpack.c.l.b16 %v3135
        %v3148 = vunpack.c.l.b16 %v3136
        %v3149 = vunpack.c.l.b16 %v3137
        %v3150 = vunpack.c.l.b16 %v3138
        %v3151 = vpack.c.b16 %v3148, %v3147
        %v3152 = vpack.c.b16 %v3150, %v3149
        %v3156 = vsel %vm1467, %v3134, 0
        %3158 = vmatpush.bf16.msra.mxu0 0
        %3159 = vmatpush.bf16.msra.mxu0 0
        %3160 = vmatpush.bf16.msra.mxu0 0
        %3161 = vmatpush.bf16.msra.mxu0 0
        %3162 = vmatpush.bf16.msra.mxu0 0
        %3163 = vmatpush.bf16.msra.mxu0 0
        %3164 = vmatpush.bf16.msra.mxu0 %v3152
        %3165 = vmatpush.bf16.msra.mxu0 %v3151
        %3166 = vmatmul.bf16.gmra.mxu0 %v3156
        %v3167 = vpop.f32.mrf.mxu0
        %v3168 = vadd.f32 %v3141, %v3167
        %v3169 = vpop.f32.mrf.mxu0
        %3170 = vdwg.mxu0
        %v3171 = vld [vmem:[%s59] sm:$0xf]
        %v3172 = vld [vmem:[%s59 + $0x4] sm:$0xf]
        %v3173 = vld [vmem:[%s59 + $0x8] sm:$0xf]
        %v3174 = vld [vmem:[%s59 + $0xc] sm:$0xf]
        %v3175 = vld [vmem:[%s61] sm:$0x1]
        %v3177 = vperm.slane %v3175, 0
        %v3183 = vunpack.c.l.b16 %v3171
        %v3184 = vunpack.c.l.b16 %v3172
        %v3185 = vunpack.c.l.b16 %v3173
        %v3186 = vunpack.c.l.b16 %v3174
        %v3187 = vpack.c.b16 %v3184, %v3183
        %v3188 = vpack.c.b16 %v3186, %v3185
        %3191 = vmatpush.bf16.msra.mxu0 0
        %3192 = vmatpush.bf16.msra.mxu0 0
        %3193 = vmatpush.bf16.msra.mxu0 0
        %3194 = vmatpush.bf16.msra.mxu0 0
        %3195 = vmatpush.bf16.msra.mxu0 0
        %3196 = vmatpush.bf16.msra.mxu0 0
        %3197 = vmatpush.bf16.msra.mxu0 %v3188
        %3198 = vmatpush.bf16.msra.mxu0 %v3187
        %3199 = vmatmul.bf16.gmra.mxu0 %v3156
        %v3200 = vpop.f32.mrf.mxu0
        %v3201 = vadd.f32 %v3177, %v3200
        %v3202 = vpop.f32.mrf.mxu0
        %3203 = vdwg.mxu0
        %v3204 = vpack.c.bf16 %v3168, %v3168
        %v3205 = vpack.c.bf16 %v3201, %v3201
        %v3207 = vsel %vm1519, %v3204, 0
        %v3210 = vsel %vm1519, %v3205, 0
        %3212 = vmatpush.bf16.xpose.msra.mxu0 0
        %3213 = vmatpush.bf16.xpose.msra.mxu0 0
        %3214 = vmatpush.bf16.xpose.msra.mxu0 0
        %3215 = vmatpush.bf16.xpose.msra.mxu0 0
        %3216 = vmatpush.bf16.xpose.msra.mxu0 0
        %3217 = vmatpush.bf16.xpose.msra.mxu0 0
        %3218 = vmatpush.bf16.xpose.msra.mxu0 0
        %3219 = vmatpush.bf16.xpose.msra.mxu0 %v3210
        %3220 = vmatmul.bf16.gmra.mxu0 %v3207
        %v3221 = vpop.f32.mrf.mxu0
        %v3222 = vadd.f32 %v3101, %v3221
        %v3223 = vpop.f32.mrf.mxu0
        %3224 = vdwg.mxu0
        %v3225 = vsel %vm1519, %v3222, -inf
        %3226 = vmax.xlane.f32.xlu0 %v3225
        %v3227 = vpop.xlane.xlu0 %3226
        %v3228 = vsub.f32 %v3222, %v3227
        %v3229 = vmul.f32 %v3228, 1.442695
        %v3230 = vpow.pop %v3229
        %v3231 = vsel %vm1519, %v3230, 0.0
        %3232 = vadd.xlane.f32.xlu0 %v3231
        %v3233 = vpop.xlane.xlu0 %3232
        %v3234 = vrcp.pop %v3233
        %v3235 = vmul.f32 %v3230, %v3234
        %v3236 = vld [vmem:[%s63] sm:$0xf]
        %v3237 = vld [vmem:[%s63 + $0x4] sm:$0xf]
        %v3238 = vld [vmem:[%s63 + $0x8] sm:$0xf]
        %v3239 = vld [vmem:[%s63 + $0xc] sm:$0xf]
        %v3240 = vld [vmem:[%s65] sm:$0x1]
        %v3242 = vperm.slane %v3240, 0
        %v3248 = vunpack.c.l.b16 %v3236
        %v3249 = vunpack.c.l.b16 %v3237
        %v3250 = vunpack.c.l.b16 %v3238
        %v3251 = vunpack.c.l.b16 %v3239
        %v3252 = vpack.c.b16 %v3249, %v3248
        %v3253 = vpack.c.b16 %v3251, %v3250
        %3256 = vmatpush.bf16.msra.mxu0 0
        %3257 = vmatpush.bf16.msra.mxu0 0
        %3258 = vmatpush.bf16.msra.mxu0 0
        %3259 = vmatpush.bf16.msra.mxu0 0
        %3260 = vmatpush.bf16.msra.mxu0 0
        %3261 = vmatpush.bf16.msra.mxu0 0
        %3262 = vmatpush.bf16.msra.mxu0 %v3253
        %3263 = vmatpush.bf16.msra.mxu0 %v3252
        %3264 = vmatmul.bf16.gmra.mxu0 %v3156
        %v3265 = vpop.f32.mrf.mxu0
        %v3266 = vadd.f32 %v3242, %v3265
        %v3267 = vpop.f32.mrf.mxu0
        %3268 = vdwg.mxu0
        %v3269 = vpack.c.bf16 %v3235, %v3235
        %v3270 = vpack.c.bf16 %v3266, %v3266
        %s3271 = scalar_lea.vmem %s55, 16
        %v3272 = vld [vmem:[%s3271] sm:$0xf]
        %v3273 = vld [vmem:[%s3271 + $0x4] sm:$0xf]
        %v3274 = vld [vmem:[%s3271 + $0x8] sm:$0xf]
        %v3275 = vld [vmem:[%s3271 + $0xc] sm:$0xf]
        %s3276 = scalar_lea.vmem %s57, 1
        %v3277 = vld [vmem:[%s3276] sm:$0x1]
        %v3279 = vperm.slane %v3277, 0
        %v3285 = vunpack.c.l.b16 %v3272
        %v3286 = vunpack.c.l.b16 %v3273
        %v3287 = vunpack.c.l.b16 %v3274
        %v3288 = vunpack.c.l.b16 %v3275
        %v3289 = vpack.c.b16 %v3286, %v3285
        %v3290 = vpack.c.b16 %v3288, %v3287
        %3293 = vmatpush.bf16.msra.mxu0 0
        %3294 = vmatpush.bf16.msra.mxu0 0
        %3295 = vmatpush.bf16.msra.mxu0 0
        %3296 = vmatpush.bf16.msra.mxu0 0
        %3297 = vmatpush.bf16.msra.mxu0 0
        %3298 = vmatpush.bf16.msra.mxu0 0
        %3299 = vmatpush.bf16.msra.mxu0 %v3290
        %3300 = vmatpush.bf16.msra.mxu0 %v3289
        %3301 = vmatmul.bf16.gmra.mxu0 %v3156
        %v3302 = vpop.f32.mrf.mxu0
        %v3303 = vadd.f32 %v3279, %v3302
        %v3304 = vpop.f32.mrf.mxu0
        %3305 = vdwg.mxu0
        %s3306 = scalar_lea.vmem %s59, 16
        %v3307 = vld [vmem:[%s3306] sm:$0xf]
        %v3308 = vld [vmem:[%s3306 + $0x4] sm:$0xf]
        %v3309 = vld [vmem:[%s3306 + $0x8] sm:$0xf]
        %v3310 = vld [vmem:[%s3306 + $0xc] sm:$0xf]
        %s3311 = scalar_lea.vmem %s61, 1
        %v3312 = vld [vmem:[%s3311] sm:$0x1]
        %v3314 = vperm.slane %v3312, 0
        %v3320 = vunpack.c.l.b16 %v3307
        %v3321 = vunpack.c.l.b16 %v3308
        %v3322 = vunpack.c.l.b16 %v3309
        %v3323 = vunpack.c.l.b16 %v3310
        %v3324 = vpack.c.b16 %v3321, %v3320
        %v3325 = vpack.c.b16 %v3323, %v3322
        %3328 = vmatpush.bf16.msra.mxu0 0
        %3329 = vmatpush.bf16.msra.mxu0 0
        %3330 = vmatpush.bf16.msra.mxu0 0
        %3331 = vmatpush.bf16.msra.mxu0 0
        %3332 = vmatpush.bf16.msra.mxu0 0
        %3333 = vmatpush.bf16.msra.mxu0 0
        %3334 = vmatpush.bf16.msra.mxu0 %v3325
        %3335 = vmatpush.bf16.msra.mxu0 %v3324
        %3336 = vmatmul.bf16.gmra.mxu0 %v3156
        %v3337 = vpop.f32.mrf.mxu0
        %v3338 = vadd.f32 %v3314, %v3337
        %v3339 = vpop.f32.mrf.mxu0
        %3340 = vdwg.mxu0
        %v3341 = vpack.c.bf16 %v3303, %v3303
        %v3342 = vpack.c.bf16 %v3338, %v3338
        %v3344 = vsel %vm1519, %v3341, 0
        %v3347 = vsel %vm1519, %v3342, 0
        %3349 = vmatpush.bf16.xpose.msra.mxu0 0
        %3350 = vmatpush.bf16.xpose.msra.mxu0 0
        %3351 = vmatpush.bf16.xpose.msra.mxu0 0
        %3352 = vmatpush.bf16.xpose.msra.mxu0 0
        %3353 = vmatpush.bf16.xpose.msra.mxu0 0
        %3354 = vmatpush.bf16.xpose.msra.mxu0 0
        %3355 = vmatpush.bf16.xpose.msra.mxu0 0
        %3356 = vmatpush.bf16.xpose.msra.mxu0 %v3347
        %3357 = vmatmul.bf16.gmra.mxu0 %v3344
        %v3358 = vpop.f32.mrf.mxu0
        %v3359 = vadd.f32 %v3101, %v3358
        %v3360 = vpop.f32.mrf.mxu0
        %3361 = vdwg.mxu0
        %v3362 = vsel %vm1519, %v3359, -inf
        %3363 = vmax.xlane.f32.xlu0 %v3362
        %v3364 = vpop.xlane.xlu0 %3363
        %v3365 = vsub.f32 %v3359, %v3364
        %v3366 = vmul.f32 %v3365, 1.442695
        %v3367 = vpow.pop %v3366
        %v3368 = vsel %vm1519, %v3367, 0.0
        %3369 = vadd.xlane.f32.xlu0 %v3368
        %v3370 = vpop.xlane.xlu0 %3369
        %v3371 = vrcp.pop %v3370
        %v3372 = vmul.f32 %v3367, %v3371
        %s3373 = scalar_lea.vmem %s63, 16
        %v3374 = vld [vmem:[%s3373] sm:$0xf]
        %v3375 = vld [vmem:[%s3373 + $0x4] sm:$0xf]
        %v3376 = vld [vmem:[%s3373 + $0x8] sm:$0xf]
        %v3377 = vld [vmem:[%s3373 + $0xc] sm:$0xf]
        %s3378 = scalar_lea.vmem %s65, 1
        %v3379 = vld [vmem:[%s3378] sm:$0x1]
        %v3381 = vperm.slane %v3379, 0
        %v3387 = vunpack.c.l.b16 %v3374
        %v3388 = vunpack.c.l.b16 %v3375
        %v3389 = vunpack.c.l.b16 %v3376
        %v3390 = vunpack.c.l.b16 %v3377
        %v3391 = vpack.c.b16 %v3388, %v3387
        %v3392 = vpack.c.b16 %v3390, %v3389
        %3395 = vmatpush.bf16.msra.mxu0 0
        %3396 = vmatpush.bf16.msra.mxu0 0
        %3397 = vmatpush.bf16.msra.mxu0 0
        %3398 = vmatpush.bf16.msra.mxu0 0
        %3399 = vmatpush.bf16.msra.mxu0 0
        %3400 = vmatpush.bf16.msra.mxu0 0
        %3401 = vmatpush.bf16.msra.mxu0 %v3392
        %3402 = vmatpush.bf16.msra.mxu0 %v3391
        %3403 = vmatmul.bf16.gmra.mxu0 %v3156
        %v3404 = vpop.f32.mrf.mxu0
        %v3405 = vadd.f32 %v3381, %v3404
        %v3406 = vpop.f32.mrf.mxu0
        %3407 = vdwg.mxu0
        %v3408 = vpack.c.bf16 %v3372, %v3372
        %v3409 = vpack.c.bf16 %v3405, %v3405
        %v3411 = vsel %vm1519, %v3408, 0
        %vm3413 = vcmask 1043456
        %v3415 = vsel %vm3413, %v3409, 0
        %3417 = vmatpush.bf16.msra.mxu0 0
        %3418 = vmatpush.bf16.msra.mxu0 0
        %3419 = vmatpush.bf16.msra.mxu0 0
        %3420 = vmatpush.bf16.msra.mxu0 0
        %3421 = vmatpush.bf16.msra.mxu0 0
        %3422 = vmatpush.bf16.msra.mxu0 0
        %3423 = vmatpush.bf16.msra.mxu0 0
        %3424 = vmatpush.bf16.msra.mxu0 %v3415
        %3425 = vmatmul.bf16.gmra.mxu0 %v3411
        %v3426 = vpop.f32.mrf.mxu0
        %v3427 = vadd.f32 0.0, %v3426
        %v3428 = vpop.f32.mrf.mxu0
        %3429 = vdwg.mxu0
        %v3431 = vsel %vm1519, %v3269, 0
        %v3434 = vsel %vm3413, %v3270, 0
        %3436 = vmatpush.bf16.msra.mxu0 0
        %3437 = vmatpush.bf16.msra.mxu0 0
        %3438 = vmatpush.bf16.msra.mxu0 0
        %3439 = vmatpush.bf16.msra.mxu0 0
        %3440 = vmatpush.bf16.msra.mxu0 0
        %3441 = vmatpush.bf16.msra.mxu0 0
        %3442 = vmatpush.bf16.msra.mxu0 0
        %3443 = vmatpush.bf16.msra.mxu0 %v3434
        %3444 = vmatmul.bf16.gmra.mxu0 %v3431
        %v3445 = vpop.f32.mrf.mxu0
        %v3446 = vadd.f32 %v3427, %v3445
        %v3447 = vpop.f32.mrf.mxu0
        %3448 = vdwg.mxu0
        %s3449 = scalar_lea.vmem %s55, 32
        %v3450 = vld [vmem:[%s3449] sm:$0xf]
        %v3451 = vld [vmem:[%s3449 + $0x4] sm:$0xf]
        %v3452 = vld [vmem:[%s3449 + $0x8] sm:$0xf]
        %v3453 = vld [vmem:[%s3449 + $0xc] sm:$0xf]
        %s3454 = scalar_lea.vmem %s57, 2
        %v3455 = vld [vmem:[%s3454] sm:$0x1]
        %v3457 = vperm.slane %v3455, 0
        %v3463 = vunpack.c.l.b16 %v3450
        %v3464 = vunpack.c.l.b16 %v3451
        %v3465 = vunpack.c.l.b16 %v3452
        %v3466 = vunpack.c.l.b16 %v3453
        %v3467 = vpack.c.b16 %v3464, %v3463
        %v3468 = vpack.c.b16 %v3466, %v3465
        %3471 = vmatpush.bf16.msra.mxu0 0
        %3472 = vmatpush.bf16.msra.mxu0 0
        %3473 = vmatpush.bf16.msra.mxu0 0
        %3474 = vmatpush.bf16.msra.mxu0 0
        %3475 = vmatpush.bf16.msra.mxu0 0
        %3476 = vmatpush.bf16.msra.mxu0 0
        %3477 = vmatpush.bf16.msra.mxu0 %v3468
        %3478 = vmatpush.bf16.msra.mxu0 %v3467
        %3479 = vmatmul.bf16.gmra.mxu0 %v3156
        %v3480 = vpop.f32.mrf.mxu0
        %v3481 = vadd.f32 %v3457, %v3480
        %v3482 = vpop.f32.mrf.mxu0
        %3483 = vdwg.mxu0
        %s3484 = scalar_lea.vmem %s59, 32
        %v3485 = vld [vmem:[%s3484] sm:$0xf]
        %v3486 = vld [vmem:[%s3484 + $0x4] sm:$0xf]
        %v3487 = vld [vmem:[%s3484 + $0x8] sm:$0xf]
        %v3488 = vld [vmem:[%s3484 + $0xc] sm:$0xf]
        %s3489 = scalar_lea.vmem %s61, 2
        %v3490 = vld [vmem:[%s3489] sm:$0x1]
        %v3492 = vperm.slane %v3490, 0
        %v3498 = vunpack.c.l.b16 %v3485
        %v3499 = vunpack.c.l.b16 %v3486
        %v3500 = vunpack.c.l.b16 %v3487
        %v3501 = vunpack.c.l.b16 %v3488
        %v3502 = vpack.c.b16 %v3499, %v3498
        %v3503 = vpack.c.b16 %v3501, %v3500
        %3506 = vmatpush.bf16.msra.mxu0 0
        %3507 = vmatpush.bf16.msra.mxu0 0
        %3508 = vmatpush.bf16.msra.mxu0 0
        %3509 = vmatpush.bf16.msra.mxu0 0
        %3510 = vmatpush.bf16.msra.mxu0 0
        %3511 = vmatpush.bf16.msra.mxu0 0
        %3512 = vmatpush.bf16.msra.mxu0 %v3503
        %3513 = vmatpush.bf16.msra.mxu0 %v3502
        %3514 = vmatmul.bf16.gmra.mxu0 %v3156
        %v3515 = vpop.f32.mrf.mxu0
        %v3516 = vadd.f32 %v3492, %v3515
        %v3517 = vpop.f32.mrf.mxu0
        %3518 = vdwg.mxu0
        %v3519 = vpack.c.bf16 %v3481, %v3481
        %v3520 = vpack.c.bf16 %v3516, %v3516
        %v3522 = vsel %vm1519, %v3519, 0
        %v3525 = vsel %vm1519, %v3520, 0
        %3527 = vmatpush.bf16.xpose.msra.mxu0 0
        %3528 = vmatpush.bf16.xpose.msra.mxu0 0
        %3529 = vmatpush.bf16.xpose.msra.mxu0 0
        %3530 = vmatpush.bf16.xpose.msra.mxu0 0
        %3531 = vmatpush.bf16.xpose.msra.mxu0 0
        %3532 = vmatpush.bf16.xpose.msra.mxu0 0
        %3533 = vmatpush.bf16.xpose.msra.mxu0 0
        %3534 = vmatpush.bf16.xpose.msra.mxu0 %v3525
        %3535 = vmatmul.bf16.gmra.mxu0 %v3522
        %v3536 = vpop.f32.mrf.mxu0
        %v3537 = vadd.f32 %v3101, %v3536
        %v3538 = vpop.f32.mrf.mxu0
        %3539 = vdwg.mxu0
        %v3540 = vsel %vm1519, %v3537, -inf
        %3541 = vmax.xlane.f32.xlu0 %v3540
        %v3542 = vpop.xlane.xlu0 %3541
        %v3543 = vsub.f32 %v3537, %v3542
        %v3544 = vmul.f32 %v3543, 1.442695
        %v3545 = vpow.pop %v3544
        %v3546 = vsel %vm1519, %v3545, 0.0
        %3547 = vadd.xlane.f32.xlu0 %v3546
        %v3548 = vpop.xlane.xlu0 %3547
        %v3549 = vrcp.pop %v3548
        %v3550 = vmul.f32 %v3545, %v3549
        %s3551 = scalar_lea.vmem %s63, 32
        %v3552 = vld [vmem:[%s3551] sm:$0xf]
        %v3553 = vld [vmem:[%s3551 + $0x4] sm:$0xf]
        %v3554 = vld [vmem:[%s3551 + $0x8] sm:$0xf]
        %v3555 = vld [vmem:[%s3551 + $0xc] sm:$0xf]
        %s3556 = scalar_lea.vmem %s65, 2
        %v3557 = vld [vmem:[%s3556] sm:$0x1]
        %v3559 = vperm.slane %v3557, 0
        %v3565 = vunpack.c.l.b16 %v3552
        %v3566 = vunpack.c.l.b16 %v3553
        %v3567 = vunpack.c.l.b16 %v3554
        %v3568 = vunpack.c.l.b16 %v3555
        %v3569 = vpack.c.b16 %v3566, %v3565
        %v3570 = vpack.c.b16 %v3568, %v3567
        %3573 = vmatpush.bf16.msra.mxu0 0
        %3574 = vmatpush.bf16.msra.mxu0 0
        %3575 = vmatpush.bf16.msra.mxu0 0
        %3576 = vmatpush.bf16.msra.mxu0 0
        %3577 = vmatpush.bf16.msra.mxu0 0
        %3578 = vmatpush.bf16.msra.mxu0 0
        %3579 = vmatpush.bf16.msra.mxu0 %v3570
        %3580 = vmatpush.bf16.msra.mxu0 %v3569
        %3581 = vmatmul.bf16.gmra.mxu0 %v3156
        %v3582 = vpop.f32.mrf.mxu0
        %v3583 = vadd.f32 %v3559, %v3582
        %v3584 = vpop.f32.mrf.mxu0
        %3585 = vdwg.mxu0
        %v3586 = vpack.c.bf16 %v3550, %v3550
        %v3587 = vpack.c.bf16 %v3583, %v3583
        %v3589 = vsel %vm1519, %v3586, 0
        %v3592 = vsel %vm3413, %v3587, 0
        %3594 = vmatpush.bf16.msra.mxu0 0
        %3595 = vmatpush.bf16.msra.mxu0 0
        %3596 = vmatpush.bf16.msra.mxu0 0
        %3597 = vmatpush.bf16.msra.mxu0 0
        %3598 = vmatpush.bf16.msra.mxu0 0
        %3599 = vmatpush.bf16.msra.mxu0 0
        %3600 = vmatpush.bf16.msra.mxu0 0
        %3601 = vmatpush.bf16.msra.mxu0 %v3592
        %3602 = vmatmul.bf16.gmra.mxu0 %v3589
        %v3603 = vpop.f32.mrf.mxu0
        %v3604 = vadd.f32 0.0, %v3603
        %v3605 = vpop.f32.mrf.mxu0
        %3606 = vdwg.mxu0
        %v3607 = vadd.f32 %v3446, %v3604
        %s3608 = scalar_lea.vmem %s55, 48
        %v3609 = vld [vmem:[%s3608] sm:$0xf]
        %v3610 = vld [vmem:[%s3608 + $0x4] sm:$0xf]
        %v3611 = vld [vmem:[%s3608 + $0x8] sm:$0xf]
        %v3612 = vld [vmem:[%s3608 + $0xc] sm:$0xf]
        %s3613 = scalar_lea.vmem %s57, 3
        %v3614 = vld [vmem:[%s3613] sm:$0x1]
        %v3616 = vperm.slane %v3614, 0
        %v3622 = vunpack.c.l.b16 %v3609
        %v3623 = vunpack.c.l.b16 %v3610
        %v3624 = vunpack.c.l.b16 %v3611
        %v3625 = vunpack.c.l.b16 %v3612
        %v3626 = vpack.c.b16 %v3623, %v3622
        %v3627 = vpack.c.b16 %v3625, %v3624
        %3630 = vmatpush.bf16.msra.mxu0 0
        %3631 = vmatpush.bf16.msra.mxu0 0
        %3632 = vmatpush.bf16.msra.mxu0 0
        %3633 = vmatpush.bf16.msra.mxu0 0
        %3634 = vmatpush.bf16.msra.mxu0 0
        %3635 = vmatpush.bf16.msra.mxu0 0
        %3636 = vmatpush.bf16.msra.mxu0 %v3627
        %3637 = vmatpush.bf16.msra.mxu0 %v3626
        %3638 = vmatmul.bf16.gmra.mxu0 %v3156
        %v3639 = vpop.f32.mrf.mxu0
        %v3640 = vadd.f32 %v3616, %v3639
        %v3641 = vpop.f32.mrf.mxu0
        %3642 = vdwg.mxu0
        %s3643 = scalar_lea.vmem %s59, 48
        %v3644 = vld [vmem:[%s3643] sm:$0xf]
        %v3645 = vld [vmem:[%s3643 + $0x4] sm:$0xf]
        %v3646 = vld [vmem:[%s3643 + $0x8] sm:$0xf]
        %v3647 = vld [vmem:[%s3643 + $0xc] sm:$0xf]
        %s3648 = scalar_lea.vmem %s61, 3
        %v3649 = vld [vmem:[%s3648] sm:$0x1]
        %v3651 = vperm.slane %v3649, 0
        %v3657 = vunpack.c.l.b16 %v3644
        %v3658 = vunpack.c.l.b16 %v3645
        %v3659 = vunpack.c.l.b16 %v3646
        %v3660 = vunpack.c.l.b16 %v3647
        %v3661 = vpack.c.b16 %v3658, %v3657
        %v3662 = vpack.c.b16 %v3660, %v3659
        %3665 = vmatpush.bf16.msra.mxu0 0
        %3666 = vmatpush.bf16.msra.mxu0 0
        %3667 = vmatpush.bf16.msra.mxu0 0
        %3668 = vmatpush.bf16.msra.mxu0 0
        %3669 = vmatpush.bf16.msra.mxu0 0
        %3670 = vmatpush.bf16.msra.mxu0 0
        %3671 = vmatpush.bf16.msra.mxu0 %v3662
        %3672 = vmatpush.bf16.msra.mxu0 %v3661
        %3673 = vmatmul.bf16.gmra.mxu0 %v3156
        %v3674 = vpop.f32.mrf.mxu0
        %v3675 = vadd.f32 %v3651, %v3674
        %v3676 = vpop.f32.mrf.mxu0
        %3677 = vdwg.mxu0
        %v3678 = vpack.c.bf16 %v3640, %v3640
        %v3679 = vpack.c.bf16 %v3675, %v3675
        %v3681 = vsel %vm1519, %v3678, 0
        %v3684 = vsel %vm1519, %v3679, 0
        %3686 = vmatpush.bf16.xpose.msra.mxu0 0
        %3687 = vmatpush.bf16.xpose.msra.mxu0 0
        %3688 = vmatpush.bf16.xpose.msra.mxu0 0
        %3689 = vmatpush.bf16.xpose.msra.mxu0 0
        %3690 = vmatpush.bf16.xpose.msra.mxu0 0
        %3691 = vmatpush.bf16.xpose.msra.mxu0 0
        %3692 = vmatpush.bf16.xpose.msra.mxu0 0
        %3693 = vmatpush.bf16.xpose.msra.mxu0 %v3684
        %3694 = vmatmul.bf16.gmra.mxu0 %v3681
        %v3695 = vpop.f32.mrf.mxu0
        %v3696 = vadd.f32 %v3101, %v3695
        %v3697 = vpop.f32.mrf.mxu0
        %3698 = vdwg.mxu0
        %v3699 = vsel %vm1519, %v3696, -inf
        %3700 = vmax.xlane.f32.xlu0 %v3699
        %v3701 = vpop.xlane.xlu0 %3700
        %v3702 = vsub.f32 %v3696, %v3701
        %v3703 = vmul.f32 %v3702, 1.442695
        %v3704 = vpow.pop %v3703
        %v3705 = vsel %vm1519, %v3704, 0.0
        %3706 = vadd.xlane.f32.xlu0 %v3705
        %v3707 = vpop.xlane.xlu0 %3706
        %v3708 = vrcp.pop %v3707
        %v3709 = vmul.f32 %v3704, %v3708
        %s3710 = scalar_lea.vmem %s63, 48
        %v3711 = vld [vmem:[%s3710] sm:$0xf]
        %v3712 = vld [vmem:[%s3710 + $0x4] sm:$0xf]
        %v3713 = vld [vmem:[%s3710 + $0x8] sm:$0xf]
        %v3714 = vld [vmem:[%s3710 + $0xc] sm:$0xf]
        %s3715 = scalar_lea.vmem %s65, 3
        %v3716 = vld [vmem:[%s3715] sm:$0x1]
        %v3718 = vperm.slane %v3716, 0
        %v3724 = vunpack.c.l.b16 %v3711
        %v3725 = vunpack.c.l.b16 %v3712
        %v3726 = vunpack.c.l.b16 %v3713
        %v3727 = vunpack.c.l.b16 %v3714
        %v3728 = vpack.c.b16 %v3725, %v3724
        %v3729 = vpack.c.b16 %v3727, %v3726
        %3732 = vmatpush.bf16.msra.mxu0 0
        %3733 = vmatpush.bf16.msra.mxu0 0
        %3734 = vmatpush.bf16.msra.mxu0 0
        %3735 = vmatpush.bf16.msra.mxu0 0
        %3736 = vmatpush.bf16.msra.mxu0 0
        %3737 = vmatpush.bf16.msra.mxu0 0
        %3738 = vmatpush.bf16.msra.mxu0 %v3729
        %3739 = vmatpush.bf16.msra.mxu0 %v3728
        %3740 = vmatmul.bf16.gmra.mxu0 %v3156
        %v3741 = vpop.f32.mrf.mxu0
        %v3742 = vadd.f32 %v3718, %v3741
        %v3743 = vpop.f32.mrf.mxu0
        %3744 = vdwg.mxu0
        %v3745 = vpack.c.bf16 %v3709, %v3709
        %v3746 = vpack.c.bf16 %v3742, %v3742
        %v3748 = vsel %vm1519, %v3745, 0
        %v3751 = vsel %vm3413, %v3746, 0
        %3753 = vmatpush.bf16.msra.mxu0 0
        %3754 = vmatpush.bf16.msra.mxu0 0
        %3755 = vmatpush.bf16.msra.mxu0 0
        %3756 = vmatpush.bf16.msra.mxu0 0
        %3757 = vmatpush.bf16.msra.mxu0 0
        %3758 = vmatpush.bf16.msra.mxu0 0
        %3759 = vmatpush.bf16.msra.mxu0 0
        %3760 = vmatpush.bf16.msra.mxu0 %v3751
        %3761 = vmatmul.bf16.gmra.mxu0 %v3748
        %v3762 = vpop.f32.mrf.mxu0
        %v3763 = vadd.f32 0.0, %v3762
        %v3764 = vpop.f32.mrf.mxu0
        %3765 = vdwg.mxu0
        %v3766 = vadd.f32 %v3607, %v3763
        %v3767 = vadd.f32 %v3100, %v3766
        %v3768 = vld [vmem:[%s67] sm:$0x1]
        %v3770 = vperm.slane %v3768, 0
        %v3772 = vadd.f32 %v3767, %v3770
        %s3773 = scalar_lea.vmem %s51, 1
        %v3774 = vld [vmem:[%s3773] sm:$0x1]
        %s3775 = scalar_lea.vmem %s53, 1
        %v3776 = vld [vmem:[%s3775] sm:$0x1]
        %v3777 = vsel %vm1467, %v3772, 0.0
        %3778 = vadd.xlane.f32.xlu0 %v3777
        %v3779 = vpop.xlane.xlu0 %3778
        %v3780 = vmul.f32 %v3779, %v1386
        %v3781 = vsub.f32 %v3772, %v3780
        %v3782 = vmul.f32 %v3781, %v3781
        %v3783 = vsel %vm1467, %v3782, 0.0
        %3784 = vadd.xlane.f32.xlu0 %v3783
        %v3785 = vpop.xlane.xlu0 %3784
        %v3786 = vmul.f32 %v3785, %v1386
        %v3787 = vadd.f32 %v3786, 1e-05
        %v3788 = vrsqrt.pop %v3787
        %v3789 = vmul.f32 %v3788, %v3787
        %v3790 = vmul.f32 %v3789, %v3788
        %v3791 = vmul.f32 0.5, %v3790
        %v3792 = vsub.f32 1.5, %v3791
        %v3793 = vmul.f32 %v3788, %v3792
        %vm3794 = vweird.f32 %v3787
        %vm3795 = vweird.f32 %v3788
        %vm3796 = vmor %vm3794, %vm3795
        %v3797 = vsel %vm3796, %v3788, %v3793
        %v3798 = vmul.f32 %v3781, %v3797
        %v3800 = vperm.slane %v3774, 0
        %v3802 = vmul.f32 %v3798, %v3800
        %v3804 = vperm.slane %v3776, 0
        %v3806 = vadd.f32 %v3802, %v3804
        %v3807 = vpack.c.bf16 %v3806, %v3806
        %v3808 = vld [vmem:[%s69] sm:$0xf]
        %v3809 = vld [vmem:[%s69 + $0x4] sm:$0xf]
        %v3810 = vld [vmem:[%s69 + $0x8] sm:$0xf]
        %v3811 = vld [vmem:[%s69 + $0xc] sm:$0xf]
        %v3812 = vld [vmem:[%s71] sm:$0x1]
        %v3814 = vperm.slane %v3812, 0
        %v3820 = vunpack.c.l.b16 %v3808
        %v3821 = vunpack.c.l.b16 %v3809
        %v3822 = vunpack.c.l.b16 %v3810
        %v3823 = vunpack.c.l.b16 %v3811
        %v3824 = vpack.c.b16 %v3821, %v3820
        %v3825 = vpack.c.b16 %v3823, %v3822
        %v3829 = vsel %vm1467, %v3807, 0
        %3831 = vmatpush.bf16.msra.mxu0 0
        %3832 = vmatpush.bf16.msra.mxu0 0
        %3833 = vmatpush.bf16.msra.mxu0 0
        %3834 = vmatpush.bf16.msra.mxu0 0
        %3835 = vmatpush.bf16.msra.mxu0 0
        %3836 = vmatpush.bf16.msra.mxu0 0
        %3837 = vmatpush.bf16.msra.mxu0 %v3825
        %3838 = vmatpush.bf16.msra.mxu0 %v3824
        %3839 = vmatmul.bf16.gmra.mxu0 %v3829
        %v3840 = vpop.f32.mrf.mxu0
        %v3841 = vadd.f32 %v3814, %v3840
        %v3842 = vpop.f32.mrf.mxu0
        %3843 = vdwg.mxu0
        %v3844 = vmul.f32 %v3841, 1.702
        %v3845 = vxor.u32 %v3844, 2147483648
        %v3846 = vmul.f32 %v3845, 1.442695
        %v3847 = vpow.pop %v3846
        %v3848 = vadd.f32 %v3847, 1.0
        %v3849 = vrcp.pop %v3848
        %v3850 = vmul.f32 %v3848, %v3849
        %v3851 = vsub.f32 1.0, %v3850
        %v3852 = vmul.f32 %v3849, %v3851
        %v3853 = vadd.f32 %v3849, %v3852
        %vm3854 = vweird.f32 %v3848
        %vm3855 = vweird.f32 %v3849
        %vm3856 = vmor %vm3854, %vm3855
        %v3857 = vsel %vm3856, %v3849, %v3853
        %v3858 = vand.u32 2147483647, %v3848
        %vm3859 = vcmp.eq.f32.partialorder %v3858, 8.507059e+37
        %v3860 = vand.u32 %v3848, 2147483648
        %v3861 = vor.u32 1.1754944e-38, %v3860
        %v3862 = vsel %vm3859, %v3861, %v3857
        %v3863 = vmul.f32 1.0, %v3862
        %v3864 = vmul.f32 %v3841, %v3863
        %v3865 = vpack.c.bf16 %v3864, %v3864
        %v3866 = vld [vmem:[%s73] sm:$0xf]
        %v3867 = vld [vmem:[%s73 + $0x4] sm:$0xf]
        %v3868 = vld [vmem:[%s73 + $0x8] sm:$0xf]
        %v3869 = vld [vmem:[%s73 + $0xc] sm:$0xf]
        %v3870 = vld [vmem:[%s73 + $0x10] sm:$0xf]
        %v3871 = vld [vmem:[%s73 + $0x14] sm:$0xf]
        %v3872 = vld [vmem:[%s73 + $0x18] sm:$0xf]
        %v3873 = vld [vmem:[%s73 + $0x1c] sm:$0xf]
        %v3874 = vld [vmem:[%s75] sm:$0x1]
        %v3876 = vperm.slane %v3874, 0
        %v3886 = vunpack.c.l.b16 %v3866
        %v3887 = vunpack.c.l.b16 %v3867
        %v3888 = vunpack.c.l.b16 %v3868
        %v3889 = vunpack.c.l.b16 %v3869
        %v3890 = vunpack.c.l.b16 %v3870
        %v3891 = vunpack.c.l.b16 %v3871
        %v3892 = vunpack.c.l.b16 %v3872
        %v3893 = vunpack.c.l.b16 %v3873
        %v3894 = vpack.c.b16 %v3887, %v3886
        %v3895 = vpack.c.b16 %v3889, %v3888
        %v3896 = vpack.c.b16 %v3891, %v3890
        %v3897 = vpack.c.b16 %v3893, %v3892
        %v3903 = vsel %vm1344, %v3865, 0
        %3905 = vmatpush.bf16.msra.mxu0 0
        %3906 = vmatpush.bf16.msra.mxu0 0
        %3907 = vmatpush.bf16.msra.mxu0 0
        %3908 = vmatpush.bf16.msra.mxu0 0
        %3909 = vmatpush.bf16.msra.mxu0 %v3897
        %3910 = vmatpush.bf16.msra.mxu0 %v3896
        %3911 = vmatpush.bf16.msra.mxu0 %v3895
        %3912 = vmatpush.bf16.msra.mxu0 %v3894
        %3913 = vmatmul.bf16.gmra.mxu0 %v3903
        %v3914 = vpop.f32.mrf.mxu0
        %v3915 = vadd.f32 %v3876, %v3914
        %v3916 = vpop.f32.mrf.mxu0
        %3917 = vdwg.mxu0
        %v3918 = vadd.f32 %v3772, %v3915
        %s3919 = scalar_lea.vmem %s51, 2
        %v3920 = vld [vmem:[%s3919] sm:$0x1]
        %s3921 = scalar_lea.vmem %s53, 2
        %v3922 = vld [vmem:[%s3921] sm:$0x1]
        %v3923 = vsel %vm1467, %v3918, 0.0
        %3924 = vadd.xlane.f32.xlu0 %v3923
        %v3925 = vpop.xlane.xlu0 %3924
        %v3926 = vmul.f32 %v3925, %v1386
        %v3927 = vsub.f32 %v3918, %v3926
        %v3928 = vmul.f32 %v3927, %v3927
        %v3929 = vsel %vm1467, %v3928, 0.0
        %3930 = vadd.xlane.f32.xlu0 %v3929
        %v3931 = vpop.xlane.xlu0 %3930
        %v3932 = vmul.f32 %v3931, %v1386
        %v3933 = vadd.f32 %v3932, 1e-05
        %v3934 = vrsqrt.pop %v3933
        %v3935 = vmul.f32 %v3934, %v3933
        %v3936 = vmul.f32 %v3935, %v3934
        %v3937 = vmul.f32 0.5, %v3936
        %v3938 = vsub.f32 1.5, %v3937
        %v3939 = vmul.f32 %v3934, %v3938
        %vm3940 = vweird.f32 %v3933
        %vm3941 = vweird.f32 %v3934
        %vm3942 = vmor %vm3940, %vm3941
        %v3943 = vsel %vm3942, %v3934, %v3939
        %v3944 = vmul.f32 %v3927, %v3943
        %v3946 = vperm.slane %v3920, 0
        %v3948 = vmul.f32 %v3944, %v3946
        %v3950 = vperm.slane %v3922, 0
        %v3952 = vadd.f32 %v3948, %v3950
        %v3953 = vpack.c.bf16 %v3952, %v3952
        %s3954 = scalar_lea.vmem %s55, 64
        %v3955 = vld [vmem:[%s3954] sm:$0xf]
        %v3956 = vld [vmem:[%s3954 + $0x4] sm:$0xf]
        %v3957 = vld [vmem:[%s3954 + $0x8] sm:$0xf]
        %v3958 = vld [vmem:[%s3954 + $0xc] sm:$0xf]
        %s3959 = scalar_lea.vmem %s57, 4
        %v3960 = vld [vmem:[%s3959] sm:$0x1]
        %v3962 = vperm.slane %v3960, 0
        %v3968 = vunpack.c.l.b16 %v3955
        %v3969 = vunpack.c.l.b16 %v3956
        %v3970 = vunpack.c.l.b16 %v3957
        %v3971 = vunpack.c.l.b16 %v3958
        %v3972 = vpack.c.b16 %v3969, %v3968
        %v3973 = vpack.c.b16 %v3971, %v3970
        %v3977 = vsel %vm1467, %v3953, 0
        %3979 = vmatpush.bf16.msra.mxu0 0
        %3980 = vmatpush.bf16.msra.mxu0 0
        %3981 = vmatpush.bf16.msra.mxu0 0
        %3982 = vmatpush.bf16.msra.mxu0 0
        %3983 = vmatpush.bf16.msra.mxu0 0
        %3984 = vmatpush.bf16.msra.mxu0 0
        %3985 = vmatpush.bf16.msra.mxu0 %v3973
        %3986 = vmatpush.bf16.msra.mxu0 %v3972
        %3987 = vmatmul.bf16.gmra.mxu0 %v3977
        %v3988 = vpop.f32.mrf.mxu0
        %v3989 = vadd.f32 %v3962, %v3988
        %v3990 = vpop.f32.mrf.mxu0
        %3991 = vdwg.mxu0
        %s3992 = scalar_lea.vmem %s59, 64
        %v3993 = vld [vmem:[%s3992] sm:$0xf]
        %v3994 = vld [vmem:[%s3992 + $0x4] sm:$0xf]
        %v3995 = vld [vmem:[%s3992 + $0x8] sm:$0xf]
        %v3996 = vld [vmem:[%s3992 + $0xc] sm:$0xf]
        %s3997 = scalar_lea.vmem %s61, 4
        %v3998 = vld [vmem:[%s3997] sm:$0x1]
        %v4000 = vperm.slane %v3998, 0
        %v4006 = vunpack.c.l.b16 %v3993
        %v4007 = vunpack.c.l.b16 %v3994
        %v4008 = vunpack.c.l.b16 %v3995
        %v4009 = vunpack.c.l.b16 %v3996
        %v4010 = vpack.c.b16 %v4007, %v4006
        %v4011 = vpack.c.b16 %v4009, %v4008
        %4014 = vmatpush.bf16.msra.mxu0 0
        %4015 = vmatpush.bf16.msra.mxu0 0
        %4016 = vmatpush.bf16.msra.mxu0 0
        %4017 = vmatpush.bf16.msra.mxu0 0
        %4018 = vmatpush.bf16.msra.mxu0 0
        %4019 = vmatpush.bf16.msra.mxu0 0
        %4020 = vmatpush.bf16.msra.mxu0 %v4011
        %4021 = vmatpush.bf16.msra.mxu0 %v4010
        %4022 = vmatmul.bf16.gmra.mxu0 %v3977
        %v4023 = vpop.f32.mrf.mxu0
        %v4024 = vadd.f32 %v4000, %v4023
        %v4025 = vpop.f32.mrf.mxu0
        %4026 = vdwg.mxu0
        %v4027 = vpack.c.bf16 %v3989, %v3989
        %v4028 = vpack.c.bf16 %v4024, %v4024
        %v4030 = vsel %vm1519, %v4027, 0
        %v4033 = vsel %vm1519, %v4028, 0
        %4035 = vmatpush.bf16.xpose.msra.mxu0 0
        %4036 = vmatpush.bf16.xpose.msra.mxu0 0
        %4037 = vmatpush.bf16.xpose.msra.mxu0 0
        %4038 = vmatpush.bf16.xpose.msra.mxu0 0
        %4039 = vmatpush.bf16.xpose.msra.mxu0 0
        %4040 = vmatpush.bf16.xpose.msra.mxu0 0
        %4041 = vmatpush.bf16.xpose.msra.mxu0 0
        %4042 = vmatpush.bf16.xpose.msra.mxu0 %v4033
        %4043 = vmatmul.bf16.gmra.mxu0 %v4030
        %v4044 = vpop.f32.mrf.mxu0
        %v4045 = vadd.f32 %v3101, %v4044
        %v4046 = vpop.f32.mrf.mxu0
        %4047 = vdwg.mxu0
        %v4048 = vsel %vm1519, %v4045, -inf
        %4049 = vmax.xlane.f32.xlu0 %v4048
        %v4050 = vpop.xlane.xlu0 %4049
        %v4051 = vsub.f32 %v4045, %v4050
        %v4052 = vmul.f32 %v4051, 1.442695
        %v4053 = vpow.pop %v4052
        %v4054 = vsel %vm1519, %v4053, 0.0
        %4055 = vadd.xlane.f32.xlu0 %v4054
        %v4056 = vpop.xlane.xlu0 %4055
        %v4057 = vrcp.pop %v4056
        %v4058 = vmul.f32 %v4053, %v4057
        %s4059 = scalar_lea.vmem %s63, 64
        %v4060 = vld [vmem:[%s4059] sm:$0xf]
        %v4061 = vld [vmem:[%s4059 + $0x4] sm:$0xf]
        %v4062 = vld [vmem:[%s4059 + $0x8] sm:$0xf]
        %v4063 = vld [vmem:[%s4059 + $0xc] sm:$0xf]
        %s4064 = scalar_lea.vmem %s65, 4
        %v4065 = vld [vmem:[%s4064] sm:$0x1]
        %v4067 = vperm.slane %v4065, 0
        %v4073 = vunpack.c.l.b16 %v4060
        %v4074 = vunpack.c.l.b16 %v4061
        %v4075 = vunpack.c.l.b16 %v4062
        %v4076 = vunpack.c.l.b16 %v4063
        %v4077 = vpack.c.b16 %v4074, %v4073
        %v4078 = vpack.c.b16 %v4076, %v4075
        %4081 = vmatpush.bf16.msra.mxu0 0
        %4082 = vmatpush.bf16.msra.mxu0 0
        %4083 = vmatpush.bf16.msra.mxu0 0
        %4084 = vmatpush.bf16.msra.mxu0 0
        %4085 = vmatpush.bf16.msra.mxu0 0
        %4086 = vmatpush.bf16.msra.mxu0 0
        %4087 = vmatpush.bf16.msra.mxu0 %v4078
        %4088 = vmatpush.bf16.msra.mxu0 %v4077
        %4089 = vmatmul.bf16.gmra.mxu0 %v3977
        %v4090 = vpop.f32.mrf.mxu0
        %v4091 = vadd.f32 %v4067, %v4090
        %v4092 = vpop.f32.mrf.mxu0
        %4093 = vdwg.mxu0
        %v4094 = vpack.c.bf16 %v4058, %v4058
        %v4095 = vpack.c.bf16 %v4091, %v4091
        %s4096 = scalar_lea.vmem %s55, 80
        %v4097 = vld [vmem:[%s4096] sm:$0xf]
        %v4098 = vld [vmem:[%s4096 + $0x4] sm:$0xf]
        %v4099 = vld [vmem:[%s4096 + $0x8] sm:$0xf]
        %v4100 = vld [vmem:[%s4096 + $0xc] sm:$0xf]
        %s4101 = scalar_lea.vmem %s57, 5
        %v4102 = vld [vmem:[%s4101] sm:$0x1]
        %v4104 = vperm.slane %v4102, 0
        %v4110 = vunpack.c.l.b16 %v4097
        %v4111 = vunpack.c.l.b16 %v4098
        %v4112 = vunpack.c.l.b16 %v4099
        %v4113 = vunpack.c.l.b16 %v4100
        %v4114 = vpack.c.b16 %v4111, %v4110
        %v4115 = vpack.c.b16 %v4113, %v4112
        %4118 = vmatpush.bf16.msra.mxu0 0
        %4119 = vmatpush.bf16.msra.mxu0 0
        %4120 = vmatpush.bf16.msra.mxu0 0
        %4121 = vmatpush.bf16.msra.mxu0 0
        %4122 = vmatpush.bf16.msra.mxu0 0
        %4123 = vmatpush.bf16.msra.mxu0 0
        %4124 = vmatpush.bf16.msra.mxu0 %v4115
        %4125 = vmatpush.bf16.msra.mxu0 %v4114
        %4126 = vmatmul.bf16.gmra.mxu0 %v3977
        %v4127 = vpop.f32.mrf.mxu0
        %v4128 = vadd.f32 %v4104, %v4127
        %v4129 = vpop.f32.mrf.mxu0
        %4130 = vdwg.mxu0
        %s4131 = scalar_lea.vmem %s59, 80
        %v4132 = vld [vmem:[%s4131] sm:$0xf]
        %v4133 = vld [vmem:[%s4131 + $0x4] sm:$0xf]
        %v4134 = vld [vmem:[%s4131 + $0x8] sm:$0xf]
        %v4135 = vld [vmem:[%s4131 + $0xc] sm:$0xf]
        %s4136 = scalar_lea.vmem %s61, 5
        %v4137 = vld [vmem:[%s4136] sm:$0x1]
        %v4139 = vperm.slane %v4137, 0
        %v4145 = vunpack.c.l.b16 %v4132
        %v4146 = vunpack.c.l.b16 %v4133
        %v4147 = vunpack.c.l.b16 %v4134
        %v4148 = vunpack.c.l.b16 %v4135
        %v4149 = vpack.c.b16 %v4146, %v4145
        %v4150 = vpack.c.b16 %v4148, %v4147
        %4153 = vmatpush.bf16.msra.mxu0 0
        %4154 = vmatpush.bf16.msra.mxu0 0
        %4155 = vmatpush.bf16.msra.mxu0 0
        %4156 = vmatpush.bf16.msra.mxu0 0
        %4157 = vmatpush.bf16.msra.mxu0 0
        %4158 = vmatpush.bf16.msra.mxu0 0
        %4159 = vmatpush.bf16.msra.mxu0 %v4150
        %4160 = vmatpush.bf16.msra.mxu0 %v4149
        %4161 = vmatmul.bf16.gmra.mxu0 %v3977
        %v4162 = vpop.f32.mrf.mxu0
        %v4163 = vadd.f32 %v4139, %v4162
        %v4164 = vpop.f32.mrf.mxu0
        %4165 = vdwg.mxu0
        %v4166 = vpack.c.bf16 %v4128, %v4128
        %v4167 = vpack.c.bf16 %v4163, %v4163
        %v4169 = vsel %vm1519, %v4166, 0
        %v4172 = vsel %vm1519, %v4167, 0
        %4174 = vmatpush.bf16.xpose.msra.mxu0 0
        %4175 = vmatpush.bf16.xpose.msra.mxu0 0
        %4176 = vmatpush.bf16.xpose.msra.mxu0 0
        %4177 = vmatpush.bf16.xpose.msra.mxu0 0
        %4178 = vmatpush.bf16.xpose.msra.mxu0 0
        %4179 = vmatpush.bf16.xpose.msra.mxu0 0
        %4180 = vmatpush.bf16.xpose.msra.mxu0 0
        %4181 = vmatpush.bf16.xpose.msra.mxu0 %v4172
        %4182 = vmatmul.bf16.gmra.mxu0 %v4169
        %v4183 = vpop.f32.mrf.mxu0
        %v4184 = vadd.f32 %v3101, %v4183
        %v4185 = vpop.f32.mrf.mxu0
        %4186 = vdwg.mxu0
        %v4187 = vsel %vm1519, %v4184, -inf
        %4188 = vmax.xlane.f32.xlu0 %v4187
        %v4189 = vpop.xlane.xlu0 %4188
        %v4190 = vsub.f32 %v4184, %v4189
        %v4191 = vmul.f32 %v4190, 1.442695
        %v4192 = vpow.pop %v4191
        %v4193 = vsel %vm1519, %v4192, 0.0
        %4194 = vadd.xlane.f32.xlu0 %v4193
        %v4195 = vpop.xlane.xlu0 %4194
        %v4196 = vrcp.pop %v4195
        %v4197 = vmul.f32 %v4192, %v4196
        %s4198 = scalar_lea.vmem %s63, 80
        %v4199 = vld [vmem:[%s4198] sm:$0xf]
        %v4200 = vld [vmem:[%s4198 + $0x4] sm:$0xf]
        %v4201 = vld [vmem:[%s4198 + $0x8] sm:$0xf]
        %v4202 = vld [vmem:[%s4198 + $0xc] sm:$0xf]
        %s4203 = scalar_lea.vmem %s65, 5
        %v4204 = vld [vmem:[%s4203] sm:$0x1]
        %v4206 = vperm.slane %v4204, 0
        %v4212 = vunpack.c.l.b16 %v4199
        %v4213 = vunpack.c.l.b16 %v4200
        %v4214 = vunpack.c.l.b16 %v4201
        %v4215 = vunpack.c.l.b16 %v4202
        %v4216 = vpack.c.b16 %v4213, %v4212
        %v4217 = vpack.c.b16 %v4215, %v4214
        %4220 = vmatpush.bf16.msra.mxu0 0
        %4221 = vmatpush.bf16.msra.mxu0 0
        %4222 = vmatpush.bf16.msra.mxu0 0
        %4223 = vmatpush.bf16.msra.mxu0 0
        %4224 = vmatpush.bf16.msra.mxu0 0
        %4225 = vmatpush.bf16.msra.mxu0 0
        %4226 = vmatpush.bf16.msra.mxu0 %v4217
        %4227 = vmatpush.bf16.msra.mxu0 %v4216
        %4228 = vmatmul.bf16.gmra.mxu0 %v3977
        %v4229 = vpop.f32.mrf.mxu0
        %v4230 = vadd.f32 %v4206, %v4229
        %v4231 = vpop.f32.mrf.mxu0
        %4232 = vdwg.mxu0
        %v4233 = vpack.c.bf16 %v4197, %v4197
        %v4234 = vpack.c.bf16 %v4230, %v4230
        %v4236 = vsel %vm1519, %v4233, 0
        %v4239 = vsel %vm3413, %v4234, 0
        %4241 = vmatpush.bf16.msra.mxu0 0
        %4242 = vmatpush.bf16.msra.mxu0 0
        %4243 = vmatpush.bf16.msra.mxu0 0
        %4244 = vmatpush.bf16.msra.mxu0 0
        %4245 = vmatpush.bf16.msra.mxu0 0
        %4246 = vmatpush.bf16.msra.mxu0 0
        %4247 = vmatpush.bf16.msra.mxu0 0
        %4248 = vmatpush.bf16.msra.mxu0 %v4239
        %4249 = vmatmul.bf16.gmra.mxu0 %v4236
        %v4250 = vpop.f32.mrf.mxu0
        %v4251 = vadd.f32 0.0, %v4250
        %v4252 = vpop.f32.mrf.mxu0
        %4253 = vdwg.mxu0
        %v4255 = vsel %vm1519, %v4094, 0
        %v4258 = vsel %vm3413, %v4095, 0
        %4260 = vmatpush.bf16.msra.mxu0 0
        %4261 = vmatpush.bf16.msra.mxu0 0
        %4262 = vmatpush.bf16.msra.mxu0 0
        %4263 = vmatpush.bf16.msra.mxu0 0
        %4264 = vmatpush.bf16.msra.mxu0 0
        %4265 = vmatpush.bf16.msra.mxu0 0
        %4266 = vmatpush.bf16.msra.mxu0 0
        %4267 = vmatpush.bf16.msra.mxu0 %v4258
        %4268 = vmatmul.bf16.gmra.mxu0 %v4255
        %v4269 = vpop.f32.mrf.mxu0
        %v4270 = vadd.f32 %v4251, %v4269
        %v4271 = vpop.f32.mrf.mxu0
        %4272 = vdwg.mxu0
        %s4273 = scalar_lea.vmem %s55, 96
        %v4274 = vld [vmem:[%s4273] sm:$0xf]
        %v4275 = vld [vmem:[%s4273 + $0x4] sm:$0xf]
        %v4276 = vld [vmem:[%s4273 + $0x8] sm:$0xf]
        %v4277 = vld [vmem:[%s4273 + $0xc] sm:$0xf]
        %s4278 = scalar_lea.vmem %s57, 6
        %v4279 = vld [vmem:[%s4278] sm:$0x1]
        %v4281 = vperm.slane %v4279, 0
        %v4287 = vunpack.c.l.b16 %v4274
        %v4288 = vunpack.c.l.b16 %v4275
        %v4289 = vunpack.c.l.b16 %v4276
        %v4290 = vunpack.c.l.b16 %v4277
        %v4291 = vpack.c.b16 %v4288, %v4287
        %v4292 = vpack.c.b16 %v4290, %v4289
        %4295 = vmatpush.bf16.msra.mxu0 0
        %4296 = vmatpush.bf16.msra.mxu0 0
        %4297 = vmatpush.bf16.msra.mxu0 0
        %4298 = vmatpush.bf16.msra.mxu0 0
        %4299 = vmatpush.bf16.msra.mxu0 0
        %4300 = vmatpush.bf16.msra.mxu0 0
        %4301 = vmatpush.bf16.msra.mxu0 %v4292
        %4302 = vmatpush.bf16.msra.mxu0 %v4291
        %4303 = vmatmul.bf16.gmra.mxu0 %v3977
        %v4304 = vpop.f32.mrf.mxu0
        %v4305 = vadd.f32 %v4281, %v4304
        %v4306 = vpop.f32.mrf.mxu0
        %4307 = vdwg.mxu0
        %s4308 = scalar_lea.vmem %s59, 96
        %v4309 = vld [vmem:[%s4308] sm:$0xf]
        %v4310 = vld [vmem:[%s4308 + $0x4] sm:$0xf]
        %v4311 = vld [vmem:[%s4308 + $0x8] sm:$0xf]
        %v4312 = vld [vmem:[%s4308 + $0xc] sm:$0xf]
        %s4313 = scalar_lea.vmem %s61, 6
        %v4314 = vld [vmem:[%s4313] sm:$0x1]
        %v4316 = vperm.slane %v4314, 0
        %v4322 = vunpack.c.l.b16 %v4309
        %v4323 = vunpack.c.l.b16 %v4310
        %v4324 = vunpack.c.l.b16 %v4311
        %v4325 = vunpack.c.l.b16 %v4312
        %v4326 = vpack.c.b16 %v4323, %v4322
        %v4327 = vpack.c.b16 %v4325, %v4324
        %4330 = vmatpush.bf16.msra.mxu0 0
        %4331 = vmatpush.bf16.msra.mxu0 0
        %4332 = vmatpush.bf16.msra.mxu0 0
        %4333 = vmatpush.bf16.msra.mxu0 0
        %4334 = vmatpush.bf16.msra.mxu0 0
        %4335 = vmatpush.bf16.msra.mxu0 0
        %4336 = vmatpush.bf16.msra.mxu0 %v4327
        %4337 = vmatpush.bf16.msra.mxu0 %v4326
        %4338 = vmatmul.bf16.gmra.mxu0 %v3977
        %v4339 = vpop.f32.mrf.mxu0
        %v4340 = vadd.f32 %v4316, %v4339
        %v4341 = vpop.f32.mrf.mxu0
        %4342 = vdwg.mxu0
        %v4343 = vpack.c.bf16 %v4305, %v4305
        %v4344 = vpack.c.bf16 %v4340, %v4340
        %v4346 = vsel %vm1519, %v4343, 0
        %v4349 = vsel %vm1519, %v4344, 0
        %4351 = vmatpush.bf16.xpose.msra.mxu0 0
        %4352 = vmatpush.bf16.xpose.msra.mxu0 0
        %4353 = vmatpush.bf16.xpose.msra.mxu0 0
        %4354 = vmatpush.bf16.xpose.msra.mxu0 0
        %4355 = vmatpush.bf16.xpose.msra.mxu0 0
        %4356 = vmatpush.bf16.xpose.msra.mxu0 0
        %4357 = vmatpush.bf16.xpose.msra.mxu0 0
        %4358 = vmatpush.bf16.xpose.msra.mxu0 %v4349
        %4359 = vmatmul.bf16.gmra.mxu0 %v4346
        %v4360 = vpop.f32.mrf.mxu0
        %v4361 = vadd.f32 %v3101, %v4360
        %v4362 = vpop.f32.mrf.mxu0
        %4363 = vdwg.mxu0
        %v4364 = vsel %vm1519, %v4361, -inf
        %4365 = vmax.xlane.f32.xlu0 %v4364
        %v4366 = vpop.xlane.xlu0 %4365
        %v4367 = vsub.f32 %v4361, %v4366
        %v4368 = vmul.f32 %v4367, 1.442695
        %v4369 = vpow.pop %v4368
        %v4370 = vsel %vm1519, %v4369, 0.0
        %4371 = vadd.xlane.f32.xlu0 %v4370
        %v4372 = vpop.xlane.xlu0 %4371
        %v4373 = vrcp.pop %v4372
        %v4374 = vmul.f32 %v4369, %v4373
        %s4375 = scalar_lea.vmem %s63, 96
        %v4376 = vld [vmem:[%s4375] sm:$0xf]
        %v4377 = vld [vmem:[%s4375 + $0x4] sm:$0xf]
        %v4378 = vld [vmem:[%s4375 + $0x8] sm:$0xf]
        %v4379 = vld [vmem:[%s4375 + $0xc] sm:$0xf]
        %s4380 = scalar_lea.vmem %s65, 6
        %v4381 = vld [vmem:[%s4380] sm:$0x1]
        %v4383 = vperm.slane %v4381, 0
        %v4389 = vunpack.c.l.b16 %v4376
        %v4390 = vunpack.c.l.b16 %v4377
        %v4391 = vunpack.c.l.b16 %v4378
        %v4392 = vunpack.c.l.b16 %v4379
        %v4393 = vpack.c.b16 %v4390, %v4389
        %v4394 = vpack.c.b16 %v4392, %v4391
        %4397 = vmatpush.bf16.msra.mxu0 0
        %4398 = vmatpush.bf16.msra.mxu0 0
        %4399 = vmatpush.bf16.msra.mxu0 0
        %4400 = vmatpush.bf16.msra.mxu0 0
        %4401 = vmatpush.bf16.msra.mxu0 0
        %4402 = vmatpush.bf16.msra.mxu0 0
        %4403 = vmatpush.bf16.msra.mxu0 %v4394
        %4404 = vmatpush.bf16.msra.mxu0 %v4393
        %4405 = vmatmul.bf16.gmra.mxu0 %v3977
        %v4406 = vpop.f32.mrf.mxu0
        %v4407 = vadd.f32 %v4383, %v4406
        %v4408 = vpop.f32.mrf.mxu0
        %4409 = vdwg.mxu0
        %v4410 = vpack.c.bf16 %v4374, %v4374
        %v4411 = vpack.c.bf16 %v4407, %v4407
        %v4413 = vsel %vm1519, %v4410, 0
        %v4416 = vsel %vm3413, %v4411, 0
        %4418 = vmatpush.bf16.msra.mxu0 0
        %4419 = vmatpush.bf16.msra.mxu0 0
        %4420 = vmatpush.bf16.msra.mxu0 0
        %4421 = vmatpush.bf16.msra.mxu0 0
        %4422 = vmatpush.bf16.msra.mxu0 0
        %4423 = vmatpush.bf16.msra.mxu0 0
        %4424 = vmatpush.bf16.msra.mxu0 0
        %4425 = vmatpush.bf16.msra.mxu0 %v4416
        %4426 = vmatmul.bf16.gmra.mxu0 %v4413
        %v4427 = vpop.f32.mrf.mxu0
        %v4428 = vadd.f32 0.0, %v4427
        %v4429 = vpop.f32.mrf.mxu0
        %4430 = vdwg.mxu0
        %v4431 = vadd.f32 %v4270, %v4428
        %s4432 = scalar_lea.vmem %s55, 112
        %v4433 = vld [vmem:[%s4432] sm:$0xf]
        %v4434 = vld [vmem:[%s4432 + $0x4] sm:$0xf]
        %v4435 = vld [vmem:[%s4432 + $0x8] sm:$0xf]
        %v4436 = vld [vmem:[%s4432 + $0xc] sm:$0xf]
        %s4437 = scalar_lea.vmem %s57, 7
        %v4438 = vld [vmem:[%s4437] sm:$0x1]
        %v4440 = vperm.slane %v4438, 0
        %v4446 = vunpack.c.l.b16 %v4433
        %v4447 = vunpack.c.l.b16 %v4434
        %v4448 = vunpack.c.l.b16 %v4435
        %v4449 = vunpack.c.l.b16 %v4436
        %v4450 = vpack.c.b16 %v4447, %v4446
        %v4451 = vpack.c.b16 %v4449, %v4448
        %4454 = vmatpush.bf16.msra.mxu0 0
        %4455 = vmatpush.bf16.msra.mxu0 0
        %4456 = vmatpush.bf16.msra.mxu0 0
        %4457 = vmatpush.bf16.msra.mxu0 0
        %4458 = vmatpush.bf16.msra.mxu0 0
        %4459 = vmatpush.bf16.msra.mxu0 0
        %4460 = vmatpush.bf16.msra.mxu0 %v4451
        %4461 = vmatpush.bf16.msra.mxu0 %v4450
        %4462 = vmatmul.bf16.gmra.mxu0 %v3977
        %v4463 = vpop.f32.mrf.mxu0
        %v4464 = vadd.f32 %v4440, %v4463
        %v4465 = vpop.f32.mrf.mxu0
        %4466 = vdwg.mxu0
        %s4467 = scalar_lea.vmem %s59, 112
        %v4468 = vld [vmem:[%s4467] sm:$0xf]
        %v4469 = vld [vmem:[%s4467 + $0x4] sm:$0xf]
        %v4470 = vld [vmem:[%s4467 + $0x8] sm:$0xf]
        %v4471 = vld [vmem:[%s4467 + $0xc] sm:$0xf]
        %s4472 = scalar_lea.vmem %s61, 7
        %v4473 = vld [vmem:[%s4472] sm:$0x1]
        %v4475 = vperm.slane %v4473, 0
        %v4481 = vunpack.c.l.b16 %v4468
        %v4482 = vunpack.c.l.b16 %v4469
        %v4483 = vunpack.c.l.b16 %v4470
        %v4484 = vunpack.c.l.b16 %v4471
        %v4485 = vpack.c.b16 %v4482, %v4481
        %v4486 = vpack.c.b16 %v4484, %v4483
        %4489 = vmatpush.bf16.msra.mxu0 0
        %4490 = vmatpush.bf16.msra.mxu0 0
        %4491 = vmatpush.bf16.msra.mxu0 0
        %4492 = vmatpush.bf16.msra.mxu0 0
        %4493 = vmatpush.bf16.msra.mxu0 0
        %4494 = vmatpush.bf16.msra.mxu0 0
        %4495 = vmatpush.bf16.msra.mxu0 %v4486
        %4496 = vmatpush.bf16.msra.mxu0 %v4485
        %4497 = vmatmul.bf16.gmra.mxu0 %v3977
        %v4498 = vpop.f32.mrf.mxu0
        %v4499 = vadd.f32 %v4475, %v4498
        %v4500 = vpop.f32.mrf.mxu0
        %4501 = vdwg.mxu0
        %v4502 = vpack.c.bf16 %v4464, %v4464
        %v4503 = vpack.c.bf16 %v4499, %v4499
        %v4505 = vsel %vm1519, %v4502, 0
        %v4508 = vsel %vm1519, %v4503, 0
        %4510 = vmatpush.bf16.xpose.msra.mxu0 0
        %4511 = vmatpush.bf16.xpose.msra.mxu0 0
        %4512 = vmatpush.bf16.xpose.msra.mxu0 0
        %4513 = vmatpush.bf16.xpose.msra.mxu0 0
        %4514 = vmatpush.bf16.xpose.msra.mxu0 0
        %4515 = vmatpush.bf16.xpose.msra.mxu0 0
        %4516 = vmatpush.bf16.xpose.msra.mxu0 0
        %4517 = vmatpush.bf16.xpose.msra.mxu0 %v4508
        %4518 = vmatmul.bf16.gmra.mxu0 %v4505
        %v4519 = vpop.f32.mrf.mxu0
        %v4520 = vadd.f32 %v3101, %v4519
        %v4521 = vpop.f32.mrf.mxu0
        %4522 = vdwg.mxu0
        %v4523 = vsel %vm1519, %v4520, -inf
        %4524 = vmax.xlane.f32.xlu0 %v4523
        %v4525 = vpop.xlane.xlu0 %4524
        %v4526 = vsub.f32 %v4520, %v4525
        %v4527 = vmul.f32 %v4526, 1.442695
        %v4528 = vpow.pop %v4527
        %v4529 = vsel %vm1519, %v4528, 0.0
        %4530 = vadd.xlane.f32.xlu0 %v4529
        %v4531 = vpop.xlane.xlu0 %4530
        %v4532 = vrcp.pop %v4531
        %v4533 = vmul.f32 %v4528, %v4532
        %s4534 = scalar_lea.vmem %s63, 112
        %v4535 = vld [vmem:[%s4534] sm:$0xf]
        %v4536 = vld [vmem:[%s4534 + $0x4] sm:$0xf]
        %v4537 = vld [vmem:[%s4534 + $0x8] sm:$0xf]
        %v4538 = vld [vmem:[%s4534 + $0xc] sm:$0xf]
        %s4539 = scalar_lea.vmem %s65, 7
        %v4540 = vld [vmem:[%s4539] sm:$0x1]
        %v4542 = vperm.slane %v4540, 0
        %v4548 = vunpack.c.l.b16 %v4535
        %v4549 = vunpack.c.l.b16 %v4536
        %v4550 = vunpack.c.l.b16 %v4537
        %v4551 = vunpack.c.l.b16 %v4538
        %v4552 = vpack.c.b16 %v4549, %v4548
        %v4553 = vpack.c.b16 %v4551, %v4550
        %4556 = vmatpush.bf16.msra.mxu0 0
        %4557 = vmatpush.bf16.msra.mxu0 0
        %4558 = vmatpush.bf16.msra.mxu0 0
        %4559 = vmatpush.bf16.msra.mxu0 0
        %4560 = vmatpush.bf16.msra.mxu0 0
        %4561 = vmatpush.bf16.msra.mxu0 0
        %4562 = vmatpush.bf16.msra.mxu0 %v4553
        %4563 = vmatpush.bf16.msra.mxu0 %v4552
        %4564 = vmatmul.bf16.gmra.mxu0 %v3977
        %v4565 = vpop.f32.mrf.mxu0
        %v4566 = vadd.f32 %v4542, %v4565
        %v4567 = vpop.f32.mrf.mxu0
        %4568 = vdwg.mxu0
        %v4569 = vpack.c.bf16 %v4533, %v4533
        %v4570 = vpack.c.bf16 %v4566, %v4566
        %v4572 = vsel %vm1519, %v4569, 0
        %v4575 = vsel %vm3413, %v4570, 0
        %4577 = vmatpush.bf16.msra.mxu0 0
        %4578 = vmatpush.bf16.msra.mxu0 0
        %4579 = vmatpush.bf16.msra.mxu0 0
        %4580 = vmatpush.bf16.msra.mxu0 0
        %4581 = vmatpush.bf16.msra.mxu0 0
        %4582 = vmatpush.bf16.msra.mxu0 0
        %4583 = vmatpush.bf16.msra.mxu0 0
        %4584 = vmatpush.bf16.msra.mxu0 %v4575
        %4585 = vmatmul.bf16.gmra.mxu0 %v4572
        %v4586 = vpop.f32.mrf.mxu0
        %v4587 = vadd.f32 0.0, %v4586
        %v4588 = vpop.f32.mrf.mxu0
        %4589 = vdwg.mxu0
        %v4590 = vadd.f32 %v4431, %v4587
        %v4591 = vadd.f32 %v3918, %v4590
        %s4592 = scalar_lea.vmem %s67, 1
        %v4593 = vld [vmem:[%s4592] sm:$0x1]
        %v4595 = vperm.slane %v4593, 0
        %v4597 = vadd.f32 %v4591, %v4595
        %s4598 = scalar_lea.vmem %s51, 3
        %v4599 = vld [vmem:[%s4598] sm:$0x1]
        %s4600 = scalar_lea.vmem %s53, 3
        %v4601 = vld [vmem:[%s4600] sm:$0x1]
        %v4602 = vsel %vm1467, %v4597, 0.0
        %4603 = vadd.xlane.f32.xlu0 %v4602
        %v4604 = vpop.xlane.xlu0 %4603
        %v4605 = vmul.f32 %v4604, %v1386
        %v4606 = vsub.f32 %v4597, %v4605
        %v4607 = vmul.f32 %v4606, %v4606
        %v4608 = vsel %vm1467, %v4607, 0.0
        %4609 = vadd.xlane.f32.xlu0 %v4608
        %v4610 = vpop.xlane.xlu0 %4609
        %v4611 = vmul.f32 %v4610, %v1386
        %v4612 = vadd.f32 %v4611, 1e-05
        %v4613 = vrsqrt.pop %v4612
        %v4614 = vmul.f32 %v4613, %v4612
        %v4615 = vmul.f32 %v4614, %v4613
        %v4616 = vmul.f32 0.5, %v4615
        %v4617 = vsub.f32 1.5, %v4616
        %v4618 = vmul.f32 %v4613, %v4617
        %vm4619 = vweird.f32 %v4612
        %vm4620 = vweird.f32 %v4613
        %vm4621 = vmor %vm4619, %vm4620
        %v4622 = vsel %vm4621, %v4613, %v4618
        %v4623 = vmul.f32 %v4606, %v4622
        %v4625 = vperm.slane %v4599, 0
        %v4627 = vmul.f32 %v4623, %v4625
        %v4629 = vperm.slane %v4601, 0
        %v4631 = vadd.f32 %v4627, %v4629
        %v4632 = vpack.c.bf16 %v4631, %v4631
        %s4633 = scalar_lea.vmem %s69, 16
        %v4634 = vld [vmem:[%s4633] sm:$0xf]
        %v4635 = vld [vmem:[%s4633 + $0x4] sm:$0xf]
        %v4636 = vld [vmem:[%s4633 + $0x8] sm:$0xf]
        %v4637 = vld [vmem:[%s4633 + $0xc] sm:$0xf]
        %s4638 = scalar_lea.vmem %s71, 1
        %v4639 = vld [vmem:[%s4638] sm:$0x1]
        %v4641 = vperm.slane %v4639, 0
        %v4647 = vunpack.c.l.b16 %v4634
        %v4648 = vunpack.c.l.b16 %v4635
        %v4649 = vunpack.c.l.b16 %v4636
        %v4650 = vunpack.c.l.b16 %v4637
        %v4651 = vpack.c.b16 %v4648, %v4647
        %v4652 = vpack.c.b16 %v4650, %v4649
        %v4656 = vsel %vm1467, %v4632, 0
        %4658 = vmatpush.bf16.msra.mxu0 0
        %4659 = vmatpush.bf16.msra.mxu0 0
        %4660 = vmatpush.bf16.msra.mxu0 0
        %4661 = vmatpush.bf16.msra.mxu0 0
        %4662 = vmatpush.bf16.msra.mxu0 0
        %4663 = vmatpush.bf16.msra.mxu0 0
        %4664 = vmatpush.bf16.msra.mxu0 %v4652
        %4665 = vmatpush.bf16.msra.mxu0 %v4651
        %4666 = vmatmul.bf16.gmra.mxu0 %v4656
        %v4667 = vpop.f32.mrf.mxu0
        %v4668 = vadd.f32 %v4641, %v4667
        %v4669 = vpop.f32.mrf.mxu0
        %4670 = vdwg.mxu0
        %v4671 = vmul.f32 %v4668, 1.702
        %v4672 = vxor.u32 %v4671, 2147483648
        %v4673 = vmul.f32 %v4672, 1.442695
        %v4674 = vpow.pop %v4673
        %v4675 = vadd.f32 %v4674, 1.0
        %v4676 = vrcp.pop %v4675
        %v4677 = vmul.f32 %v4675, %v4676
        %v4678 = vsub.f32 1.0, %v4677
        %v4679 = vmul.f32 %v4676, %v4678
        %v4680 = vadd.f32 %v4676, %v4679
        %vm4681 = vweird.f32 %v4675
        %vm4682 = vweird.f32 %v4676
        %vm4683 = vmor %vm4681, %vm4682
        %v4684 = vsel %vm4683, %v4676, %v4680
        %v4685 = vand.u32 2147483647, %v4675
        %vm4686 = vcmp.eq.f32.partialorder %v4685, 8.507059e+37
        %v4687 = vand.u32 %v4675, 2147483648
        %v4688 = vor.u32 1.1754944e-38, %v4687
        %v4689 = vsel %vm4686, %v4688, %v4684
        %v4690 = vmul.f32 1.0, %v4689
        %v4691 = vmul.f32 %v4668, %v4690
        %v4692 = vpack.c.bf16 %v4691, %v4691
        %s4693 = scalar_lea.vmem %s73, 32
        %v4694 = vld [vmem:[%s4693] sm:$0xf]
        %v4695 = vld [vmem:[%s4693 + $0x4] sm:$0xf]
        %v4696 = vld [vmem:[%s4693 + $0x8] sm:$0xf]
        %v4697 = vld [vmem:[%s4693 + $0xc] sm:$0xf]
        %v4698 = vld [vmem:[%s4693 + $0x10] sm:$0xf]
        %v4699 = vld [vmem:[%s4693 + $0x14] sm:$0xf]
        %v4700 = vld [vmem:[%s4693 + $0x18] sm:$0xf]
        %v4701 = vld [vmem:[%s4693 + $0x1c] sm:$0xf]
        %s4702 = scalar_lea.vmem %s75, 1
        %v4703 = vld [vmem:[%s4702] sm:$0x1]
        %v4705 = vperm.slane %v4703, 0
        %v4715 = vunpack.c.l.b16 %v4694
        %v4716 = vunpack.c.l.b16 %v4695
        %v4717 = vunpack.c.l.b16 %v4696
        %v4718 = vunpack.c.l.b16 %v4697
        %v4719 = vunpack.c.l.b16 %v4698
        %v4720 = vunpack.c.l.b16 %v4699
        %v4721 = vunpack.c.l.b16 %v4700
        %v4722 = vunpack.c.l.b16 %v4701
        %v4723 = vpack.c.b16 %v4716, %v4715
        %v4724 = vpack.c.b16 %v4718, %v4717
        %v4725 = vpack.c.b16 %v4720, %v4719
        %v4726 = vpack.c.b16 %v4722, %v4721
        %v4732 = vsel %vm1344, %v4692, 0
        %4734 = vmatpush.bf16.msra.mxu0 0
        %4735 = vmatpush.bf16.msra.mxu0 0
        %4736 = vmatpush.bf16.msra.mxu0 0
        %4737 = vmatpush.bf16.msra.mxu0 0
        %4738 = vmatpush.bf16.msra.mxu0 %v4726
        %4739 = vmatpush.bf16.msra.mxu0 %v4725
        %4740 = vmatpush.bf16.msra.mxu0 %v4724
        %4741 = vmatpush.bf16.msra.mxu0 %v4723
        %4742 = vmatmul.bf16.gmra.mxu0 %v4732
        %v4743 = vpop.f32.mrf.mxu0
        %v4744 = vadd.f32 %v4705, %v4743
        %v4745 = vpop.f32.mrf.mxu0
        %4746 = vdwg.mxu0
        %v4747 = vadd.f32 %v4597, %v4744
        %v4748 = vld [vmem:[%s43] sm:$0x1]
        %v4749 = vld [vmem:[%s45] sm:$0x1]
        %v4750 = vsel %vm1467, %v4747, 0.0
        %4751 = vadd.xlane.f32.xlu0 %v4750
        %v4752 = vpop.xlane.xlu0 %4751
        %v4753 = vmul.f32 %v4752, %v1386
        %v4754 = vsub.f32 %v4747, %v4753
        %v4755 = vmul.f32 %v4754, %v4754
        %v4756 = vsel %vm1467, %v4755, 0.0
        %4757 = vadd.xlane.f32.xlu0 %v4756
        %v4758 = vpop.xlane.xlu0 %4757
        %v4759 = vmul.f32 %v4758, %v1386
        %v4760 = vadd.f32 %v4759, 1e-05
        %v4761 = vrsqrt.pop %v4760
        %v4762 = vmul.f32 %v4761, %v4760
        %v4763 = vmul.f32 %v4762, %v4761
        %v4764 = vmul.f32 0.5, %v4763
        %v4765 = vsub.f32 1.5, %v4764
        %v4766 = vmul.f32 %v4761, %v4765
        %vm4767 = vweird.f32 %v4760
        %vm4768 = vweird.f32 %v4761
        %vm4769 = vmor %vm4767, %vm4768
        %v4770 = vsel %vm4769, %v4761, %v4766
        %v4771 = vmul.f32 %v4754, %v4770
        %v4773 = vperm.slane %v4748, 0
        %v4775 = vmul.f32 %v4771, %v4773
        %v4777 = vperm.slane %v4749, 0
        %v4779 = vadd.f32 %v4775, %v4777
        %v4780 = vpack.c.bf16 %v4779, %v4779
        %v4781 = vld [vmem:[%s47] sm:$0xf]
        %v4782 = vld [vmem:[%s47 + $0x4] sm:$0xf]
        %v4783 = vld [vmem:[%s47 + $0x8] sm:$0xf]
        %v4784 = vld [vmem:[%s47 + $0xc] sm:$0xf]
        %v4785 = vld [vmem:[%s49] sm:$0x1]
        %v4790 = vunpack.c.l.b16 %v4781
        %v4791 = vunpack.c.l.b16 %v4782
        %v4792 = vunpack.c.l.b16 %v4783
        %v4793 = vunpack.c.l.b16 %v4784
        %v4794 = vpack.c.b16 %v4791, %v4790
        %v4795 = vpack.c.b16 %v4793, %v4792
        %v4799 = vsel %vm1467, %v4780, 0
        %4801 = vmatpush.bf16.msra.mxu0 0
        %4802 = vmatpush.bf16.msra.mxu0 0
        %4803 = vmatpush.bf16.msra.mxu0 0
        %4804 = vmatpush.bf16.msra.mxu0 0
        %4805 = vmatpush.bf16.msra.mxu0 0
        %4806 = vmatpush.bf16.msra.mxu0 0
        %4807 = vmatpush.bf16.msra.mxu0 %v4795
        %4808 = vmatpush.bf16.msra.mxu0 %v4794
        %4809 = vmatmul.bf16.gmra.mxu0 %v4799
        %v4810 = vpop.f32.mrf.mxu0
        %v4811 = vadd.f32 %v4785, %v4810
        %v4812 = vpop.f32.mrf.mxu0
        %4813 = vdwg.mxu0
        %v4814 = vmul.f32 %v3097, %v3097
        %vm4815 = vcmask 122880
        %v4816 = vsel %vm4815, %v4814, 0.0
        %4817 = vadd.xlane.f32.xlu0 %v4816
        %v4818 = vpop.xlane.xlu0 %4817
        %v4819 = vrsqrt.pop %v4818
        %v4820 = vmul.f32 %v4819, %v4818
        %v4821 = vmul.f32 %v4820, %v4819
        %v4822 = vmul.f32 0.5, %v4821
        %v4823 = vsub.f32 1.5, %v4822
        %v4824 = vmul.f32 %v4819, %v4823
        %vm4825 = vweird.f32 %v4818
        %vm4826 = vweird.f32 %v4819
        %vm4827 = vmor %vm4825, %vm4826
        %v4828 = vsel %vm4827, %v4819, %v4824
        %v4829 = vmul.f32 %v3097, %v4828
        %v4830 = vmul.f32 %v4811, %v4811
        %v4831 = vsel %vm4815, %v4830, 0.0
        %4832 = vadd.xlane.f32.xlu0 %v4831
        %v4833 = vpop.xlane.xlu0 %4832
        %v4834 = vrsqrt.pop %v4833
        %v4835 = vmul.f32 %v4834, %v4833
        %v4836 = vmul.f32 %v4835, %v4834
        %v4837 = vmul.f32 0.5, %v4836
        %v4838 = vsub.f32 1.5, %v4837
        %v4839 = vmul.f32 %v4834, %v4838
        %vm4840 = vweird.f32 %v4833
        %vm4841 = vweird.f32 %v4834
        %vm4842 = vmor %vm4840, %vm4841
        %v4843 = vsel %vm4842, %v4834, %v4839
        %v4844 = vmul.f32 %v4811, %v4843
        %v4845 = vadd.f32 %v4829, %v4844
        %v4846 = vpack.c.bf16 %v4845, %v4845
        %v4847 = vld [vmem:[%s77] sm:$0xf]
        %v4848 = vld [vmem:[%s77 + $0x4] sm:$0xf]
        %v4849 = vld [vmem:[%s79] sm:$0x1]
        %v4852 = vunpack.c.l.b16 %v4847
        %v4853 = vunpack.c.l.b16 %v4848
        %v4854 = vpack.c.b16 %v4853, %v4852
        %vm4856 = vcmask 130048
        %v4858 = vsel %vm4856, %v4846, 0
        %4860 = vmatpush.bf16.msra.mxu0 0
        %4861 = vmatpush.bf16.msra.mxu0 0
        %4862 = vmatpush.bf16.msra.mxu0 0
        %4863 = vmatpush.bf16.msra.mxu0 0
        %4864 = vmatpush.bf16.msra.mxu0 0
        %4865 = vmatpush.bf16.msra.mxu0 0
        %4866 = vmatpush.bf16.msra.mxu0 0
        %4867 = vmatpush.bf16.msra.mxu0 %v4854
        %4868 = vmatmul.bf16.gmra.mxu0 %v4858
        %v4869 = vpop.f32.mrf.mxu0
        %v4870 = vadd.f32 %v4849, %v4869
        %v4871 = vpop.f32.mrf.mxu0
        %4872 = vdwg.mxu0
        %vm4873 = vcmask 8192
        %4874 = vst.msk [vmem:[%s1228] sm:$0x1] %vm4873, %v4870
        %s4875 = sand.u32 %s958, 1
        %s4876 = scalar_lea.sflag [#allocation3], %s4875
        %s4877 = sand.u32 %s958, 1
        %s4878 = scalar_lea.vmem [#allocation2], %s4877
        // Predicated region
        $region181: #{_lambda_.1} parent=179 // pred_check
          %p4879 = pneg %p968
        $region182: #{_lambda_.1} parent=179 // pred_check_branch
          %4881 = sbr.rel (%p4879) target = $region184
        $region183: #{_lambda_.1} parent=179 // pred_region
          %4883 = vsyncadd %s4876, 0
          %s4884 = scalar_lea.hbm %s81, %s95
          %s4886 = sshll.u32 %s4878, 4
          %s4887 = int_to_ptr.vmem [resolvable:$true] %s4886
          %s4888 = sshll.u32 %s4884, 4
          %s4889 = int_to_ptr.hbm [resolvable:$true] %s4888
          %4891 = dma.vmem_to_hbm [thread:$0]  %s4887, 16, %s4889, %s4876
        $region184: #{_lambda_.1} parent=179 // pred_fallthru
          _
      $region180: #{_lambda_.1} parent=5 // pred_fallthru
        _
      %p4892 = scmp.le.s32.totalorder 2, %s90
      // Predicated region
      $region185: #{_lambda_.1} parent=5 // pred_check
        %p4893 = pneg %p4892
      $region186: #{_lambda_.1} parent=5 // pred_check_branch
        %4895 = sbr.rel (%p4893) target = $region188
      $region187: #{_lambda_.1} parent=5 // pred_region
        %s4896 = ssub.s32 %s90, 2
        // Predicated region
        $region189: #{_lambda_.1} parent=187 // pred_check
          %p4897 = pneg %p974
        $region190: #{_lambda_.1} parent=187 // pred_check_branch
          %4899 = sbr.rel (%p4897) target = $region192
        $region191: #{_lambda_.1} parent=187 // pred_region
          %s4900 = sand.u32 %s959, 1
          %s4901 = scalar_lea.sflag [#allocation3], %s4900
          %s4902 = sand.u32 %s959, 1
          %s4903 = scalar_lea.vmem [#allocation2], %s4902
          %4905 = dma.done %s4901, 16
        $region192: #{_lambda_.1} parent=187 // pred_fallthru
          _
      $region188: #{_lambda_.1} parent=5 // pred_fallthru
        _
    $region6: #{_lambda_.1} parent=1 // loop_footer
      %s94 = sadd.s32 1, %s90
    $region7: #{_lambda_.1} parent=1 // loop_footer_branch
      %89 = sbr.rel target = $region3
    $region8: #{_lambda_.1} parent=1 // loop_exit
      _
    %4906 = vsyncpa [#allocation3], 1
    %s4907 = scalar_lea.sflag [#allocation3], 1
    %4908 = vsyncpa %s4907, 1

</llo_original>
